<compile_context>
chip_gen: v5e
topology: v5e:2x2
jax: 0.10.0
libtpu: 0.0.40
codegen_flags: <defaults>
</compile_context>

<pallas_src>
import jax
import jax.numpy as jnp
from jax import lax
from jax.experimental import pallas as pl
from jax.experimental.pallas import tpu as pltpu

H = 128  # hidden size is hard-coded to 128 in the PyTorch module


def _round_up(n, m):
    return ((n + m - 1) // m) * m


# ----------------------------------------------------------------------------
# Fused kernel builder
# ----------------------------------------------------------------------------
def _make_fused_kernel(n_layers, T, B, C_pad):
    """Fused kernel: n_layers LSTM layers + final Linear, single invocation.

    Ref order:
      inputs : x (T*B, F) bf16,
               per layer [w_ih (F_in,4H) bf16, w_hh (H,4H) bf16, b (1,4H) f32],
               w_fc (T*H, C_pad) bf16 (HBM, pl.ANY), b_fc (1, C_pad) f32
      output : out (B, C_pad) f32
      scratch: gx ping-pong buffers (T*B, 4H) f32 (1 if n_layers==1 else 2),
               w_fc VMEM staging buffer (T*H, C_pad) bf16, DMA semaphore
    """
    n_gx = 2 if n_layers > 1 else 1

    def kernel(*refs):
        idx = 0
        x_ref = refs[idx]; idx += 1
        layer_refs = [refs[idx + 3 * l: idx + 3 * (l + 1)] for l in range(n_layers)]
        idx += 3 * n_layers
        w_fc_hbm = refs[idx]; idx += 1
        b_fc_ref = refs[idx]; idx += 1
        out_ref = refs[idx]; idx += 1
        gx_refs = list(refs[idx: idx + n_gx]); idx += n_gx
        w_fc_vmem = refs[idx]; idx += 1
        fc_sem = refs[idx]; idx += 1

        # Kick off the largest HBM->VMEM transfer (w_fc) immediately so it
        # overlaps with the LSTM recurrence instead of preceding all compute.
        fc_copy = pltpu.make_async_copy(w_fc_hbm, w_fc_vmem, fc_sem)
        fc_copy.start()

        # Hoisted input projection of layer 0 for ALL time steps (one matmul).
        w_ih0, _, b0 = layer_refs[0]
        gx_refs[0][...] = (jnp.dot(x_ref[...], w_ih0[...],
                                   preferred_element_type=jnp.float32)
                          + b0[...])

        # Full unroll only for short sequences; partial unroll keeps LLO
        # scheduling visibility without vreg-pressure / compile-time blowup.
        unroll = True if T <= 32 else 8

        for layer in range(n_layers):
            _, w_hh_ref, _ = layer_refs[layer]
            is_last = layer == n_layers - 1
            gx_cur = gx_refs[layer % n_gx]
            if is_last:
                # FC weights must be resident before the interleaved FC matmuls.
                fc_copy.wait()
            else:
                gx_next = gx_refs[(layer + 1) % n_gx]
                w_ih_next, _, b_next = layer_refs[layer + 1]

            def lstm_cell(t, h_prev, c_prev, gx_cur=gx_cur, w_hh_ref=w_hh_ref):
                row = pl.multiple_of(t * B, B)
                gates = (gx_cur[pl.ds(row, B), :]
                         + jnp.dot(h_prev.astype(jnp.bfloat16), w_hh_ref[...],
                                   preferred_element_type=jnp.float32))
                i_g = jax.nn.sigmoid(gates[:, 0 * H:1 * H])
                f_g = jax.nn.sigmoid(gates[:, 1 * H:2 * H])
                g_g = jnp.tanh(gates[:, 2 * H:3 * H])
                o_g = jax.nn.sigmoid(gates[:, 3 * H:4 * H])
                c_new = f_g * c_prev + i_g * g_g
                h_new = o_g * jnp.tanh(c_new)
                return h_new, c_new

            h0 = jnp.zeros((B, H), jnp.float32)
            c0 = jnp.zeros((B, H), jnp.float32)

            if is_last:
                def step(t, carry):
                    h_prev, c_prev, acc = carry
                    h_new, c_new = lstm_cell(t, h_prev, c_prev)
                    # Interleaved FC: off the serial h/c chain -> fills MXU
                    # bubbles left by the gate transcendentals.
                    col = pl.multiple_of(t * H, H)
                    acc = acc + jnp.dot(h_new.astype(jnp.bfloat16),
                                        w_fc_vmem[pl.ds(col, H), :],
                                        preferred_element_type=jnp.float32)
                    return h_new, c_new, acc

                acc0 = jnp.zeros((B, C_pad), jnp.float32) + b_fc_ref[...]
                _, _, acc = lax.fori_loop(0, T, step, (h0, c0, acc0),
                                          unroll=unroll)
                out_ref[...] = acc
            else:
                def step(t, carry, gx_next=gx_next, w_ih_next=w_ih_next,
                         b_next=b_next):
                    h_prev, c_prev = carry
                    h_new, c_new = lstm_cell(t, h_prev, c_prev)
                    # Fold the NEXT layer's input projection into this step:
                    # no materialized hidden sequence, another off-chain matmul
                    # hidden inside the recurrence.
                    row = pl.multiple_of(t * B, B)
                    gx_next[pl.ds(row, B), :] = (
                        jnp.dot(h_new.astype(jnp.bfloat16), w_ih_next[...],
                                preferred_element_type=jnp.float32)
                        + b_next[...])
                    return h_new, c_new

                lax.fori_loop(0, T, step, (h0, c0), unroll=unroll)

    return kernel


# ----------------------------------------------------------------------------
# Wrapper
# ----------------------------------------------------------------------------
@jax.jit
def lstm_classifier_forward(x, lstm_params, w_fc, b_fc):
    """x: (B, T, F) batch_first, exactly like the PyTorch module."""
    B, T, F = x.shape
    n_layers = len(lstm_params)
    C = w_fc.shape[1]

    B_pad = _round_up(B, 8)      # full sublane group
    C_pad = _round_up(C, 128)    # lane-dense FC output

    x_p = jnp.pad(x.astype(jnp.float32), ((0, B_pad - B), (0, 0), (0, 0)))
    # time-major flattened input: row (t*B_pad + b) holds x[b, t, :]
    x_tm = jnp.transpose(x_p, (1, 0, 2)).reshape(T * B_pad, F).astype(jnp.bfloat16)

    w_fc_p = jnp.pad(w_fc, ((0, 0), (0, C_pad - C))).astype(jnp.bfloat16)
    b_fc_p = jnp.pad(b_fc, ((0, 0), (0, C_pad - C))).astype(jnp.float32)

    flat_params = []
    for (w_ih, w_hh, b) in lstm_params:
        flat_params += [w_ih.astype(jnp.bfloat16),
                        w_hh.astype(jnp.bfloat16),
                        b.astype(jnp.float32)]

    n_gx = 2 if n_layers > 1 else 1
    kernel = _make_fused_kernel(n_layers, T, B_pad, C_pad)

    n_vmem_in = 1 + 3 * n_layers
    in_specs = ([pl.BlockSpec(memory_space=pltpu.MemorySpace.VMEM)] * n_vmem_in
                + [pl.BlockSpec(memory_space=pl.ANY),   # w_fc stays in HBM;
                   #                                      kernel prefetches it
                   pl.BlockSpec(memory_space=pltpu.MemorySpace.VMEM)])

    scratch_shapes = ([pltpu.VMEM((T * B_pad, 4 * H), jnp.float32)] * n_gx
                      + [pltpu.VMEM((T * H, C_pad), jnp.bfloat16),
                         pltpu.SemaphoreType.DMA])

    # Explicit VMEM budget (default scoped limit is only 16/32 MiB).
    est = (x_tm.size * 2
           + sum(int(p.size) * p.dtype.itemsize for p in flat_params)
           + int(b_fc_p.size) * 4
           + B_pad * C_pad * 4
           + n_gx * T * B_pad * 4 * H * 4
           + T * H * C_pad * 2)
    vmem_limit = int(min(max(2 * est + (8 << 20), 32 << 20), 100 << 20))

    out = pl.pallas_call(
        kernel,
        out_shape=jax.ShapeDtypeStruct((B_pad, C_pad), jnp.float32),
        in_specs=in_specs,
        out_specs=pl.BlockSpec(memory_space=pltpu.MemorySpace.VMEM),
        scratch_shapes=scratch_shapes,
        compiler_params=pltpu.CompilerParams(vmem_limit_bytes=vmem_limit),
    )(x_tm, *flat_params, w_fc_p, b_fc_p)

    return out[:B, :C]


# ----------------------------------------------------------------------------
# Pure-JAX f32 reference (correctness check only)
# ----------------------------------------------------------------------------
def _reference_forward(x, lstm_params, w_fc, b_fc):
    B, T, _ = x.shape
    layer_in = x
    for (w_ih, w_hh, b) in lstm_params:
        def step(carry, x_t, w_ih=w_ih, w_hh=w_hh, b=b):
            h, c = carry
            gates = x_t @ w_ih + h @ w_hh + b[0]
            i = jax.nn.sigmoid(gates[:, 0 * H:1 * H])
            f = jax.nn.sigmoid(gates[:, 1 * H:2 * H])
            g = jnp.tanh(gates[:, 2 * H:3 * H])
            o = jax.nn.sigmoid(gates[:, 3 * H:4 * H])
            c = f * c + i * g
            h = o * jnp.tanh(c)
            return (h, c), h
        h0 = jnp.zeros((B, H), jnp.float32)
        c0 = jnp.zeros((B, H), jnp.float32)
        _, hs = jax.lax.scan(step, (h0, c0), jnp.transpose(layer_in, (1, 0, 2)))
        layer_in = jnp.transpose(hs, (1, 0, 2))
    flat = layer_in.reshape(B, -1)
    return flat @ w_fc + b_fc[0]


# ----------------------------------------------------------------------------
# Parameter init (deterministic, synthetic — no checkpoint loading)
# ----------------------------------------------------------------------------
def init_params(key, n_features, n_layers, seq_length, nb_classes):
    scale = 1.0 / jnp.sqrt(jnp.float32(H))
    lstm_params = []
    for layer in range(n_layers):
        f_in = n_features if layer == 0 else H
        key, k1, k2, k3, k4 = jax.random.split(key, 5)
        # stored pre-transposed: (F_in, 4H) and (H, 4H); bias = b_ih + b_hh
        w_ih = jax.random.uniform(k1, (f_in, 4 * H), jnp.float32, -scale, scale)
        w_hh = jax.random.uniform(k2, (H, 4 * H), jnp.float32, -scale, scale)
        b_ih = jax.random.uniform(k3, (4 * H,), jnp.float32, -scale, scale)
        b_hh = jax.random.uniform(k4, (4 * H,), jnp.float32, -scale, scale)
        lstm_params.append((w_ih, w_hh, (b_ih + b_hh).reshape(1, 4 * H)))
    key, k5, k6 = jax.random.split(key, 3)
    d_fc = H * seq_length
    s_fc = 1.0 / jnp.sqrt(jnp.float32(d_fc))
    w_fc = jax.random.uniform(k5, (d_fc, nb_classes), jnp.float32, -s_fc, s_fc)
    b_fc = jax.random.uniform(k6, (1, nb_classes), jnp.float32, -s_fc, s_fc)
    return lstm_params, w_fc, b_fc


if __name__ == "__main__":
    # small shapes consistent with the module's forward
    batch, seq_len, n_features = 2, 8, 16
    n_layers, nb_classes = 2, 5

    key = jax.random.PRNGKey(0)
    key, kx, kp = jax.random.split(key, 3)
    x = jax.random.normal(kx, (batch, seq_len, n_features), jnp.float32)
    lstm_params, w_fc, b_fc = init_params(kp, n_features, n_layers,
                                          seq_len, nb_classes)

    out = lstm_classifier_forward(x, lstm_params, w_fc, b_fc)
    out = jax.block_until_ready(out)

    ref = _reference_forward(x, lstm_params, w_fc, b_fc)
    assert out.shape == (batch, nb_classes)
    # tolerance loosened vs f32 reference because matmul operands are bf16
    assert jnp.allclose(out, ref, rtol=3e-2, atol=3e-2), "mismatch vs reference"

    print("KERNEL_OK")
</pallas_src>

<mosaic_0001>
module attributes {stable_mosaic.version = 11 : i64} {
  func.func @kernel(%arg0: memref<64x16xbf16, #tpu.memory_space<vmem>>, %arg1: memref<16x512xbf16, #tpu.memory_space<vmem>>, %arg2: memref<128x512xbf16, #tpu.memory_space<vmem>>, %arg3: memref<1x512xf32, #tpu.memory_space<vmem>>, %arg4: memref<128x512xbf16, #tpu.memory_space<vmem>>, %arg5: memref<128x512xbf16, #tpu.memory_space<vmem>>, %arg6: memref<1x512xf32, #tpu.memory_space<vmem>>, %arg7: memref<1024x128xbf16, #tpu.memory_space<any>>, %arg8: memref<1x128xf32, #tpu.memory_space<vmem>>, %arg9: memref<8x128xf32, #tpu.memory_space<vmem>>, %arg10: memref<64x512xf32, #tpu.memory_space<vmem>>, %arg11: memref<64x512xf32, #tpu.memory_space<vmem>>, %arg12: memref<1024x128xbf16, #tpu.memory_space<vmem>>, %arg13: memref<!tpu.dma_semaphore, #tpu.memory_space<semaphore_mem>>) attributes {dimension_semantics = [], scalar_prefetch = 0 : i64, scratch_operands = 4 : i64, tpu.core_type = #tpu.core_type<tc>} {
    tpu.enqueue_dma source(%arg7 : memref<1024x128xbf16, #tpu.memory_space<any>>) target(%arg12 : memref<1024x128xbf16, #tpu.memory_space<vmem>>) target_semaphore(%arg13 : memref<!tpu.dma_semaphore, #tpu.memory_space<semaphore_mem>>)
    %c0 = arith.constant 0 : index
    %c0_0 = arith.constant 0 : index
    %0 = vector.load %arg0[%c0, %c0_0] : memref<64x16xbf16, #tpu.memory_space<vmem>>, vector<64x16xbf16>
    %c0_1 = arith.constant 0 : index
    %c0_2 = arith.constant 0 : index
    %1 = vector.load %arg1[%c0_1, %c0_2] : memref<16x512xbf16, #tpu.memory_space<vmem>>, vector<16x512xbf16>
    %cst = arith.constant dense<0.000000e+00> : vector<64x512xf32>
    %2 = tpu.matmul %0, %1, %cst {dimension_numbers = #tpu.dot_dimension_numbers<[1], [0], [0], [1], [0, 0, 1, 1], [], []>} : vector<64x16xbf16>, vector<16x512xbf16>, vector<64x512xf32> -> vector<64x512xf32>
    %c0_3 = arith.constant 0 : index
    %c0_4 = arith.constant 0 : index
    %3 = vector.load %arg3[%c0_3, %c0_4] : memref<1x512xf32, #tpu.memory_space<vmem>>, vector<1x512xf32>
    %4 = vector.broadcast %3 : vector<1x512xf32> to vector<64x512xf32>
    %5 = arith.addf %2, %4 : vector<64x512xf32>
    %c0_5 = arith.constant 0 : index
    %c0_6 = arith.constant 0 : index
    %6 = vector.load %arg10[%c0_5, %c0_6] : memref<64x512xf32, #tpu.memory_space<vmem>>, vector<64x512xf32>
    tpu.vector_store %arg10[%c0_5, %c0_6], %5 {strides = array<i32>} : memref<64x512xf32, #tpu.memory_space<vmem>>, vector<64x512xf32>,
    %cst_7 = arith.constant 0.000000e+00 : f32
    %7 = vector.broadcast %cst_7 : f32 to vector<8x128xf32>
    %cst_8 = arith.constant 0.000000e+00 : f32
    %8 = vector.broadcast %cst_8 : f32 to vector<8x128xf32>
    %c0_i32 = arith.constant 0 : i32
    %c8_i32 = arith.constant 8 : i32
    %9 = arith.muli %c0_i32, %c8_i32 : i32
    %10 = tpu.assume_multiple %9, 8 : i32
    %11 = arith.index_cast %10 : i32 to index
    %c0_9 = arith.constant 0 : index
    %12 = vector.load %arg10[%11, %c0_9] : memref<64x512xf32, #tpu.memory_space<vmem>>, vector<8x512xf32>
    %13 = arith.truncf %7 : vector<8x128xf32> to vector<8x128xbf16>
    %c0_10 = arith.constant 0 : index
    %c0_11 = arith.constant 0 : index
    %14 = vector.load %arg2[%c0_10, %c0_11] : memref<128x512xbf16, #tpu.memory_space<vmem>>, vector<128x512xbf16>
    %cst_12 = arith.constant dense<0.000000e+00> : vector<8x512xf32>
    %15 = tpu.matmul %13, %14, %cst_12 {dimension_numbers = #tpu.dot_dimension_numbers<[1], [0], [0], [1], [0, 0, 1, 1], [], []>} : vector<8x128xbf16>, vector<128x512xbf16>, vector<8x512xf32> -> vector<8x512xf32>
    %16 = arith.addf %12, %15 : vector<8x512xf32>
    %17 = vector.extract_strided_slice %16 {offsets = [0, 0], sizes = [8, 128], strides = [1, 1]} : vector<8x512xf32> to vector<8x128xf32>
    %18 = arith.negf %17 : vector<8x128xf32>
    %19 = math.exp %18 : vector<8x128xf32>
    %cst_13 = arith.constant 1.000000e+00 : f32
    %20 = vector.broadcast %cst_13 : f32 to vector<8x128xf32>
    %21 = arith.addf %20, %19 : vector<8x128xf32>
    %22 = arith.divf %20, %21 : vector<8x128xf32>
    %23 = vector.extract_strided_slice %16 {offsets = [0, 128], sizes = [8, 128], strides = [1, 1]} : vector<8x512xf32> to vector<8x128xf32>
    %24 = arith.negf %23 : vector<8x128xf32>
    %25 = math.exp %24 : vector<8x128xf32>
    %cst_14 = arith.constant 1.000000e+00 : f32
    %26 = vector.broadcast %cst_14 : f32 to vector<8x128xf32>
    %27 = arith.addf %26, %25 : vector<8x128xf32>
    %28 = arith.divf %26, %27 : vector<8x128xf32>
    %29 = vector.extract_strided_slice %16 {offsets = [0, 256], sizes = [8, 128], strides = [1, 1]} : vector<8x512xf32> to vector<8x128xf32>
    %30 = math.tanh %29 : vector<8x128xf32>
    %31 = vector.extract_strided_slice %16 {offsets = [0, 384], sizes = [8, 128], strides = [1, 1]} : vector<8x512xf32> to vector<8x128xf32>
    %32 = arith.negf %31 : vector<8x128xf32>
    %33 = math.exp %32 : vector<8x128xf32>
    %cst_15 = arith.constant 1.000000e+00 : f32
    %34 = vector.broadcast %cst_15 : f32 to vector<8x128xf32>
    %35 = arith.addf %34, %33 : vector<8x128xf32>
    %36 = arith.divf %34, %35 : vector<8x128xf32>
    %37 = arith.mulf %28, %8 : vector<8x128xf32>
    %38 = arith.mulf %22, %30 : vector<8x128xf32>
    %39 = arith.addf %37, %38 : vector<8x128xf32>
    %40 = math.tanh %39 : vector<8x128xf32>
    %41 = arith.mulf %36, %40 : vector<8x128xf32>
    %c8_i32_16 = arith.constant 8 : i32
    %42 = arith.muli %c0_i32, %c8_i32_16 : i32
    %43 = tpu.assume_multiple %42, 8 : i32
    %44 = arith.truncf %41 : vector<8x128xf32> to vector<8x128xbf16>
    %c0_17 = arith.constant 0 : index
    %c0_18 = arith.constant 0 : index
    %45 = vector.load %arg4[%c0_17, %c0_18] : memref<128x512xbf16, #tpu.memory_space<vmem>>, vector<128x512xbf16>
    %cst_19 = arith.constant dense<0.000000e+00> : vector<8x512xf32>
    %46 = tpu.matmul %44, %45, %cst_19 {dimension_numbers = #tpu.dot_dimension_numbers<[1], [0], [0], [1], [0, 0, 1, 1], [], []>} : vector<8x128xbf16>, vector<128x512xbf16>, vector<8x512xf32> -> vector<8x512xf32>
    %c0_20 = arith.constant 0 : index
    %c0_21 = arith.constant 0 : index
    %47 = vector.load %arg6[%c0_20, %c0_21] : memref<1x512xf32, #tpu.memory_space<vmem>>, vector<1x512xf32>
    %48 = vector.broadcast %47 : vector<1x512xf32> to vector<8x512xf32>
    %49 = arith.addf %46, %48 : vector<8x512xf32>
    %50 = arith.index_cast %43 : i32 to index
    %c0_22 = arith.constant 0 : index
    %51 = vector.load %arg11[%50, %c0_22] : memref<64x512xf32, #tpu.memory_space<vmem>>, vector<8x512xf32>
    tpu.vector_store %arg11[%50, %c0_22], %49 {strides = array<i32>} : memref<64x512xf32, #tpu.memory_space<vmem>>, vector<8x512xf32>,
    %c1_i32 = arith.constant 1 : i32
    %c8_i32_23 = arith.constant 8 : i32
    %52 = arith.muli %c1_i32, %c8_i32_23 : i32
    %53 = tpu.assume_multiple %52, 8 : i32
    %54 = arith.index_cast %53 : i32 to index
    %c0_24 = arith.constant 0 : index
    %55 = vector.load %arg10[%54, %c0_24] : memref<64x512xf32, #tpu.memory_space<vmem>>, vector<8x512xf32>
    %56 = arith.truncf %41 : vector<8x128xf32> to vector<8x128xbf16>
    %c0_25 = arith.constant 0 : index
    %c0_26 = arith.constant 0 : index
    %57 = vector.load %arg2[%c0_25, %c0_26] : memref<128x512xbf16, #tpu.memory_space<vmem>>, vector<128x512xbf16>
    %cst_27 = arith.constant dense<0.000000e+00> : vector<8x512xf32>
    %58 = tpu.matmul %56, %57, %cst_27 {dimension_numbers = #tpu.dot_dimension_numbers<[1], [0], [0], [1], [0, 0, 1, 1], [], []>} : vector<8x128xbf16>, vector<128x512xbf16>, vector<8x512xf32> -> vector<8x512xf32>
    %59 = arith.addf %55, %58 : vector<8x512xf32>
    %60 = vector.extract_strided_slice %59 {offsets = [0, 0], sizes = [8, 128], strides = [1, 1]} : vector<8x512xf32> to vector<8x128xf32>
    %61 = arith.negf %60 : vector<8x128xf32>
    %62 = math.exp %61 : vector<8x128xf32>
    %cst_28 = arith.constant 1.000000e+00 : f32
    %63 = vector.broadcast %cst_28 : f32 to vector<8x128xf32>
    %64 = arith.addf %63, %62 : vector<8x128xf32>
    %65 = arith.divf %63, %64 : vector<8x128xf32>
    %66 = vector.extract_strided_slice %59 {offsets = [0, 128], sizes = [8, 128], strides = [1, 1]} : vector<8x512xf32> to vector<8x128xf32>
    %67 = arith.negf %66 : vector<8x128xf32>
    %68 = math.exp %67 : vector<8x128xf32>
    %cst_29 = arith.constant 1.000000e+00 : f32
    %69 = vector.broadcast %cst_29 : f32 to vector<8x128xf32>
    %70 = arith.addf %69, %68 : vector<8x128xf32>
    %71 = arith.divf %69, %70 : vector<8x128xf32>
    %72 = vector.extract_strided_slice %59 {offsets = [0, 256], sizes = [8, 128], strides = [1, 1]} : vector<8x512xf32> to vector<8x128xf32>
    %73 = math.tanh %72 : vector<8x128xf32>
    %74 = vector.extract_strided_slice %59 {offsets = [0, 384], sizes = [8, 128], strides = [1, 1]} : vector<8x512xf32> to vector<8x128xf32>
    %75 = arith.negf %74 : vector<8x128xf32>
    %76 = math.exp %75 : vector<8x128xf32>
    %cst_30 = arith.constant 1.000000e+00 : f32
    %77 = vector.broadcast %cst_30 : f32 to vector<8x128xf32>
    %78 = arith.addf %77, %76 : vector<8x128xf32>
    %79 = arith.divf %77, %78 : vector<8x128xf32>
    %80 = arith.mulf %71, %39 : vector<8x128xf32>
    %81 = arith.mulf %65, %73 : vector<8x128xf32>
    %82 = arith.addf %80, %81 : vector<8x128xf32>
    %83 = math.tanh %82 : vector<8x128xf32>
    %84 = arith.mulf %79, %83 : vector<8x128xf32>
    %c8_i32_31 = arith.constant 8 : i32
    %85 = arith.muli %c1_i32, %c8_i32_31 : i32
    %86 = tpu.assume_multiple %85, 8 : i32
    %87 = arith.truncf %84 : vector<8x128xf32> to vector<8x128xbf16>
    %c0_32 = arith.constant 0 : index
    %c0_33 = arith.constant 0 : index
    %88 = vector.load %arg4[%c0_32, %c0_33] : memref<128x512xbf16, #tpu.memory_space<vmem>>, vector<128x512xbf16>
    %cst_34 = arith.constant dense<0.000000e+00> : vector<8x512xf32>
    %89 = tpu.matmul %87, %88, %cst_34 {dimension_numbers = #tpu.dot_dimension_numbers<[1], [0], [0], [1], [0, 0, 1, 1], [], []>} : vector<8x128xbf16>, vector<128x512xbf16>, vector<8x512xf32> -> vector<8x512xf32>
    %c0_35 = arith.constant 0 : index
    %c0_36 = arith.constant 0 : index
    %90 = vector.load %arg6[%c0_35, %c0_36] : memref<1x512xf32, #tpu.memory_space<vmem>>, vector<1x512xf32>
    %91 = vector.broadcast %90 : vector<1x512xf32> to vector<8x512xf32>
    %92 = arith.addf %89, %91 : vector<8x512xf32>
    %93 = arith.index_cast %86 : i32 to index
    %c0_37 = arith.constant 0 : index
    %94 = vector.load %arg11[%93, %c0_37] : memref<64x512xf32, #tpu.memory_space<vmem>>, vector<8x512xf32>
    tpu.vector_store %arg11[%93, %c0_37], %92 {strides = array<i32>} : memref<64x512xf32, #tpu.memory_space<vmem>>, vector<8x512xf32>,
    %c2_i32 = arith.constant 2 : i32
    %c8_i32_38 = arith.constant 8 : i32
    %95 = arith.muli %c2_i32, %c8_i32_38 : i32
    %96 = tpu.assume_multiple %95, 8 : i32
    %97 = arith.index_cast %96 : i32 to index
    %c0_39 = arith.constant 0 : index
    %98 = vector.load %arg10[%97, %c0_39] : memref<64x512xf32, #tpu.memory_space<vmem>>, vector<8x512xf32>
    %99 = arith.truncf %84 : vector<8x128xf32> to vector<8x128xbf16>
    %c0_40 = arith.constant 0 : index
    %c0_41 = arith.constant 0 : index
    %100 = vector.load %arg2[%c0_40, %c0_41] : memref<128x512xbf16, #tpu.memory_space<vmem>>, vector<128x512xbf16>
    %cst_42 = arith.constant dense<0.000000e+00> : vector<8x512xf32>
    %101 = tpu.matmul %99, %100, %cst_42 {dimension_numbers = #tpu.dot_dimension_numbers<[1], [0], [0], [1], [0, 0, 1, 1], [], []>} : vector<8x128xbf16>, vector<128x512xbf16>, vector<8x512xf32> -> vector<8x512xf32>
    %102 = arith.addf %98, %101 : vector<8x512xf32>
    %103 = vector.extract_strided_slice %102 {offsets = [0, 0], sizes = [8, 128], strides = [1, 1]} : vector<8x512xf32> to vector<8x128xf32>
    %104 = arith.negf %103 : vector<8x128xf32>
    %105 = math.exp %104 : vector<8x128xf32>
    %cst_43 = arith.constant 1.000000e+00 : f32
    %106 = vector.broadcast %cst_43 : f32 to vector<8x128xf32>
    %107 = arith.addf %106, %105 : vector<8x128xf32>
    %108 = arith.divf %106, %107 : vector<8x128xf32>
    %109 = vector.extract_strided_slice %102 {offsets = [0, 128], sizes = [8, 128], strides = [1, 1]} : vector<8x512xf32> to vector<8x128xf32>
    %110 = arith.negf %109 : vector<8x128xf32>
    %111 = math.exp %110 : vector<8x128xf32>
    %cst_44 = arith.constant 1.000000e+00 : f32
    %112 = vector.broadcast %cst_44 : f32 to vector<8x128xf32>
    %113 = arith.addf %112, %111 : vector<8x128xf32>
    %114 = arith.divf %112, %113 : vector<8x128xf32>
    %115 = vector.extract_strided_slice %102 {offsets = [0, 256], sizes = [8, 128], strides = [1, 1]} : vector<8x512xf32> to vector<8x128xf32>
    %116 = math.tanh %115 : vector<8x128xf32>
    %117 = vector.extract_strided_slice %102 {offsets = [0, 384], sizes = [8, 128], strides = [1, 1]} : vector<8x512xf32> to vector<8x128xf32>
    %118 = arith.negf %117 : vector<8x128xf32>
    %119 = math.exp %118 : vector<8x128xf32>
    %cst_45 = arith.constant 1.000000e+00 : f32
    %120 = vector.broadcast %cst_45 : f32 to vector<8x128xf32>
    %121 = arith.addf %120, %119 : vector<8x128xf32>
    %122 = arith.divf %120, %121 : vector<8x128xf32>
    %123 = arith.mulf %114, %82 : vector<8x128xf32>
    %124 = arith.mulf %108, %116 : vector<8x128xf32>
    %125 = arith.addf %123, %124 : vector<8x128xf32>
    %126 = math.tanh %125 : vector<8x128xf32>
    %127 = arith.mulf %122, %126 : vector<8x128xf32>
    %c8_i32_46 = arith.constant 8 : i32
    %128 = arith.muli %c2_i32, %c8_i32_46 : i32
    %129 = tpu.assume_multiple %128, 8 : i32
    %130 = arith.truncf %127 : vector<8x128xf32> to vector<8x128xbf16>
    %c0_47 = arith.constant 0 : index
    %c0_48 = arith.constant 0 : index
    %131 = vector.load %arg4[%c0_47, %c0_48] : memref<128x512xbf16, #tpu.memory_space<vmem>>, vector<128x512xbf16>
    %cst_49 = arith.constant dense<0.000000e+00> : vector<8x512xf32>
    %132 = tpu.matmul %130, %131, %cst_49 {dimension_numbers = #tpu.dot_dimension_numbers<[1], [0], [0], [1], [0, 0, 1, 1], [], []>} : vector<8x128xbf16>, vector<128x512xbf16>, vector<8x512xf32> -> vector<8x512xf32>
    %c0_50 = arith.constant 0 : index
    %c0_51 = arith.constant 0 : index
    %133 = vector.load %arg6[%c0_50, %c0_51] : memref<1x512xf32, #tpu.memory_space<vmem>>, vector<1x512xf32>
    %134 = vector.broadcast %133 : vector<1x512xf32> to vector<8x512xf32>
    %135 = arith.addf %132, %134 : vector<8x512xf32>
    %136 = arith.index_cast %129 : i32 to index
    %c0_52 = arith.constant 0 : index
    %137 = vector.load %arg11[%136, %c0_52] : memref<64x512xf32, #tpu.memory_space<vmem>>, vector<8x512xf32>
    tpu.vector_store %arg11[%136, %c0_52], %135 {strides = array<i32>} : memref<64x512xf32, #tpu.memory_space<vmem>>, vector<8x512xf32>,
    %c3_i32 = arith.constant 3 : i32
    %c8_i32_53 = arith.constant 8 : i32
    %138 = arith.muli %c3_i32, %c8_i32_53 : i32
    %139 = tpu.assume_multiple %138, 8 : i32
    %140 = arith.index_cast %139 : i32 to index
    %c0_54 = arith.constant 0 : index
    %141 = vector.load %arg10[%140, %c0_54] : memref<64x512xf32, #tpu.memory_space<vmem>>, vector<8x512xf32>
    %142 = arith.truncf %127 : vector<8x128xf32> to vector<8x128xbf16>
    %c0_55 = arith.constant 0 : index
    %c0_56 = arith.constant 0 : index
    %143 = vector.load %arg2[%c0_55, %c0_56] : memref<128x512xbf16, #tpu.memory_space<vmem>>, vector<128x512xbf16>
    %cst_57 = arith.constant dense<0.000000e+00> : vector<8x512xf32>
    %144 = tpu.matmul %142, %143, %cst_57 {dimension_numbers = #tpu.dot_dimension_numbers<[1], [0], [0], [1], [0, 0, 1, 1], [], []>} : vector<8x128xbf16>, vector<128x512xbf16>, vector<8x512xf32> -> vector<8x512xf32>
    %145 = arith.addf %141, %144 : vector<8x512xf32>
    %146 = vector.extract_strided_slice %145 {offsets = [0, 0], sizes = [8, 128], strides = [1, 1]} : vector<8x512xf32> to vector<8x128xf32>
    %147 = arith.negf %146 : vector<8x128xf32>
    %148 = math.exp %147 : vector<8x128xf32>
    %cst_58 = arith.constant 1.000000e+00 : f32
    %149 = vector.broadcast %cst_58 : f32 to vector<8x128xf32>
    %150 = arith.addf %149, %148 : vector<8x128xf32>
    %151 = arith.divf %149, %150 : vector<8x128xf32>
    %152 = vector.extract_strided_slice %145 {offsets = [0, 128], sizes = [8, 128], strides = [1, 1]} : vector<8x512xf32> to vector<8x128xf32>
    %153 = arith.negf %152 : vector<8x128xf32>
    %154 = math.exp %153 : vector<8x128xf32>
    %cst_59 = arith.constant 1.000000e+00 : f32
    %155 = vector.broadcast %cst_59 : f32 to vector<8x128xf32>
    %156 = arith.addf %155, %154 : vector<8x128xf32>
    %157 = arith.divf %155, %156 : vector<8x128xf32>
    %158 = vector.extract_strided_slice %145 {offsets = [0, 256], sizes = [8, 128], strides = [1, 1]} : vector<8x512xf32> to vector<8x128xf32>
    %159 = math.tanh %158 : vector<8x128xf32>
    %160 = vector.extract_strided_slice %145 {offsets = [0, 384], sizes = [8, 128], strides = [1, 1]} : vector<8x512xf32> to vector<8x128xf32>
    %161 = arith.negf %160 : vector<8x128xf32>
    %162 = math.exp %161 : vector<8x128xf32>
    %cst_60 = arith.constant 1.000000e+00 : f32
    %163 = vector.broadcast %cst_60 : f32 to vector<8x128xf32>
    %164 = arith.addf %163, %162 : vector<8x128xf32>
    %165 = arith.divf %163, %164 : vector<8x128xf32>
    %166 = arith.mulf %157, %125 : vector<8x128xf32>
    %167 = arith.mulf %151, %159 : vector<8x128xf32>
    %168 = arith.addf %166, %167 : vector<8x128xf32>
    %169 = math.tanh %168 : vector<8x128xf32>
    %170 = arith.mulf %165, %169 : vector<8x128xf32>
    %c8_i32_61 = arith.constant 8 : i32
    %171 = arith.muli %c3_i32, %c8_i32_61 : i32
    %172 = tpu.assume_multiple %171, 8 : i32
    %173 = arith.truncf %170 : vector<8x128xf32> to vector<8x128xbf16>
    %c0_62 = arith.constant 0 : index
    %c0_63 = arith.constant 0 : index
    %174 = vector.load %arg4[%c0_62, %c0_63] : memref<128x512xbf16, #tpu.memory_space<vmem>>, vector<128x512xbf16>
    %cst_64 = arith.constant dense<0.000000e+00> : vector<8x512xf32>
    %175 = tpu.matmul %173, %174, %cst_64 {dimension_numbers = #tpu.dot_dimension_numbers<[1], [0], [0], [1], [0, 0, 1, 1], [], []>} : vector<8x128xbf16>, vector<128x512xbf16>, vector<8x512xf32> -> vector<8x512xf32>
    %c0_65 = arith.constant 0 : index
    %c0_66 = arith.constant 0 : index
    %176 = vector.load %arg6[%c0_65, %c0_66] : memref<1x512xf32, #tpu.memory_space<vmem>>, vector<1x512xf32>
    %177 = vector.broadcast %176 : vector<1x512xf32> to vector<8x512xf32>
    %178 = arith.addf %175, %177 : vector<8x512xf32>
    %179 = arith.index_cast %172 : i32 to index
    %c0_67 = arith.constant 0 : index
    %180 = vector.load %arg11[%179, %c0_67] : memref<64x512xf32, #tpu.memory_space<vmem>>, vector<8x512xf32>
    tpu.vector_store %arg11[%179, %c0_67], %178 {strides = array<i32>} : memref<64x512xf32, #tpu.memory_space<vmem>>, vector<8x512xf32>,
    %c4_i32 = arith.constant 4 : i32
    %c8_i32_68 = arith.constant 8 : i32
    %181 = arith.muli %c4_i32, %c8_i32_68 : i32
    %182 = tpu.assume_multiple %181, 8 : i32
    %183 = arith.index_cast %182 : i32 to index
    %c0_69 = arith.constant 0 : index
    %184 = vector.load %arg10[%183, %c0_69] : memref<64x512xf32, #tpu.memory_space<vmem>>, vector<8x512xf32>
    %185 = arith.truncf %170 : vector<8x128xf32> to vector<8x128xbf16>
    %c0_70 = arith.constant 0 : index
    %c0_71 = arith.constant 0 : index
    %186 = vector.load %arg2[%c0_70, %c0_71] : memref<128x512xbf16, #tpu.memory_space<vmem>>, vector<128x512xbf16>
    %cst_72 = arith.constant dense<0.000000e+00> : vector<8x512xf32>
    %187 = tpu.matmul %185, %186, %cst_72 {dimension_numbers = #tpu.dot_dimension_numbers<[1], [0], [0], [1], [0, 0, 1, 1], [], []>} : vector<8x128xbf16>, vector<128x512xbf16>, vector<8x512xf32> -> vector<8x512xf32>
    %188 = arith.addf %184, %187 : vector<8x512xf32>
    %189 = vector.extract_strided_slice %188 {offsets = [0, 0], sizes = [8, 128], strides = [1, 1]} : vector<8x512xf32> to vector<8x128xf32>
    %190 = arith.negf %189 : vector<8x128xf32>
    %191 = math.exp %190 : vector<8x128xf32>
    %cst_73 = arith.constant 1.000000e+00 : f32
    %192 = vector.broadcast %cst_73 : f32 to vector<8x128xf32>
    %193 = arith.addf %192, %191 : vector<8x128xf32>
    %194 = arith.divf %192, %193 : vector<8x128xf32>
    %195 = vector.extract_strided_slice %188 {offsets = [0, 128], sizes = [8, 128], strides = [1, 1]} : vector<8x512xf32> to vector<8x128xf32>
    %196 = arith.negf %195 : vector<8x128xf32>
    %197 = math.exp %196 : vector<8x128xf32>
    %cst_74 = arith.constant 1.000000e+00 : f32
    %198 = vector.broadcast %cst_74 : f32 to vector<8x128xf32>
    %199 = arith.addf %198, %197 : vector<8x128xf32>
    %200 = arith.divf %198, %199 : vector<8x128xf32>
    %201 = vector.extract_strided_slice %188 {offsets = [0, 256], sizes = [8, 128], strides = [1, 1]} : vector<8x512xf32> to vector<8x128xf32>
    %202 = math.tanh %201 : vector<8x128xf32>
    %203 = vector.extract_strided_slice %188 {offsets = [0, 384], sizes = [8, 128], strides = [1, 1]} : vector<8x512xf32> to vector<8x128xf32>
    %204 = arith.negf %203 : vector<8x128xf32>
    %205 = math.exp %204 : vector<8x128xf32>
    %cst_75 = arith.constant 1.000000e+00 : f32
    %206 = vector.broadcast %cst_75 : f32 to vector<8x128xf32>
    %207 = arith.addf %206, %205 : vector<8x128xf32>
    %208 = arith.divf %206, %207 : vector<8x128xf32>
    %209 = arith.mulf %200, %168 : vector<8x128xf32>
    %210 = arith.mulf %194, %202 : vector<8x128xf32>
    %211 = arith.addf %209, %210 : vector<8x128xf32>
    %212 = math.tanh %211 : vector<8x128xf32>
    %213 = arith.mulf %208, %212 : vector<8x128xf32>
    %c8_i32_76 = arith.constant 8 : i32
    %214 = arith.muli %c4_i32, %c8_i32_76 : i32
    %215 = tpu.assume_multiple %214, 8 : i32
    %216 = arith.truncf %213 : vector<8x128xf32> to vector<8x128xbf16>
    %c0_77 = arith.constant 0 : index
    %c0_78 = arith.constant 0 : index
    %217 = vector.load %arg4[%c0_77, %c0_78] : memref<128x512xbf16, #tpu.memory_space<vmem>>, vector<128x512xbf16>
    %cst_79 = arith.constant dense<0.000000e+00> : vector<8x512xf32>
    %218 = tpu.matmul %216, %217, %cst_79 {dimension_numbers = #tpu.dot_dimension_numbers<[1], [0], [0], [1], [0, 0, 1, 1], [], []>} : vector<8x128xbf16>, vector<128x512xbf16>, vector<8x512xf32> -> vector<8x512xf32>
    %c0_80 = arith.constant 0 : index
    %c0_81 = arith.constant 0 : index
    %219 = vector.load %arg6[%c0_80, %c0_81] : memref<1x512xf32, #tpu.memory_space<vmem>>, vector<1x512xf32>
    %220 = vector.broadcast %219 : vector<1x512xf32> to vector<8x512xf32>
    %221 = arith.addf %218, %220 : vector<8x512xf32>
    %222 = arith.index_cast %215 : i32 to index
    %c0_82 = arith.constant 0 : index
    %223 = vector.load %arg11[%222, %c0_82] : memref<64x512xf32, #tpu.memory_space<vmem>>, vector<8x512xf32>
    tpu.vector_store %arg11[%222, %c0_82], %221 {strides = array<i32>} : memref<64x512xf32, #tpu.memory_space<vmem>>, vector<8x512xf32>,
    %c5_i32 = arith.constant 5 : i32
    %c8_i32_83 = arith.constant 8 : i32
    %224 = arith.muli %c5_i32, %c8_i32_83 : i32
    %225 = tpu.assume_multiple %224, 8 : i32
    %226 = arith.index_cast %225 : i32 to index
    %c0_84 = arith.constant 0 : index
    %227 = vector.load %arg10[%226, %c0_84] : memref<64x512xf32, #tpu.memory_space<vmem>>, vector<8x512xf32>
    %228 = arith.truncf %213 : vector<8x128xf32> to vector<8x128xbf16>
    %c0_85 = arith.constant 0 : index
    %c0_86 = arith.constant 0 : index
    %229 = vector.load %arg2[%c0_85, %c0_86] : memref<128x512xbf16, #tpu.memory_space<vmem>>, vector<128x512xbf16>
    %cst_87 = arith.constant dense<0.000000e+00> : vector<8x512xf32>
    %230 = tpu.matmul %228, %229, %cst_87 {dimension_numbers = #tpu.dot_dimension_numbers<[1], [0], [0], [1], [0, 0, 1, 1], [], []>} : vector<8x128xbf16>, vector<128x512xbf16>, vector<8x512xf32> -> vector<8x512xf32>
    %231 = arith.addf %227, %230 : vector<8x512xf32>
    %232 = vector.extract_strided_slice %231 {offsets = [0, 0], sizes = [8, 128], strides = [1, 1]} : vector<8x512xf32> to vector<8x128xf32>
    %233 = arith.negf %232 : vector<8x128xf32>
    %234 = math.exp %233 : vector<8x128xf32>
    %cst_88 = arith.constant 1.000000e+00 : f32
    %235 = vector.broadcast %cst_88 : f32 to vector<8x128xf32>
    %236 = arith.addf %235, %234 : vector<8x128xf32>
    %237 = arith.divf %235, %236 : vector<8x128xf32>
    %238 = vector.extract_strided_slice %231 {offsets = [0, 128], sizes = [8, 128], strides = [1, 1]} : vector<8x512xf32> to vector<8x128xf32>
    %239 = arith.negf %238 : vector<8x128xf32>
    %240 = math.exp %239 : vector<8x128xf32>
    %cst_89 = arith.constant 1.000000e+00 : f32
    %241 = vector.broadcast %cst_89 : f32 to vector<8x128xf32>
    %242 = arith.addf %241, %240 : vector<8x128xf32>
    %243 = arith.divf %241, %242 : vector<8x128xf32>
    %244 = vector.extract_strided_slice %231 {offsets = [0, 256], sizes = [8, 128], strides = [1, 1]} : vector<8x512xf32> to vector<8x128xf32>
    %245 = math.tanh %244 : vector<8x128xf32>
    %246 = vector.extract_strided_slice %231 {offsets = [0, 384], sizes = [8, 128], strides = [1, 1]} : vector<8x512xf32> to vector<8x128xf32>
    %247 = arith.negf %246 : vector<8x128xf32>
    %248 = math.exp %247 : vector<8x128xf32>
    %cst_90 = arith.constant 1.000000e+00 : f32
    %249 = vector.broadcast %cst_90 : f32 to vector<8x128xf32>
    %250 = arith.addf %249, %248 : vector<8x128xf32>
    %251 = arith.divf %249, %250 : vector<8x128xf32>
    %252 = arith.mulf %243, %211 : vector<8x128xf32>
    %253 = arith.mulf %237, %245 : vector<8x128xf32>
    %254 = arith.addf %252, %253 : vector<8x128xf32>
    %255 = math.tanh %254 : vector<8x128xf32>
    %256 = arith.mulf %251, %255 : vector<8x128xf32>
    %c8_i32_91 = arith.constant 8 : i32
    %257 = arith.muli %c5_i32, %c8_i32_91 : i32
    %258 = tpu.assume_multiple %257, 8 : i32
    %259 = arith.truncf %256 : vector<8x128xf32> to vector<8x128xbf16>
    %c0_92 = arith.constant 0 : index
    %c0_93 = arith.constant 0 : index
    %260 = vector.load %arg4[%c0_92, %c0_93] : memref<128x512xbf16, #tpu.memory_space<vmem>>, vector<128x512xbf16>
    %cst_94 = arith.constant dense<0.000000e+00> : vector<8x512xf32>
    %261 = tpu.matmul %259, %260, %cst_94 {dimension_numbers = #tpu.dot_dimension_numbers<[1], [0], [0], [1], [0, 0, 1, 1], [], []>} : vector<8x128xbf16>, vector<128x512xbf16>, vector<8x512xf32> -> vector<8x512xf32>
    %c0_95 = arith.constant 0 : index
    %c0_96 = arith.constant 0 : index
    %262 = vector.load %arg6[%c0_95, %c0_96] : memref<1x512xf32, #tpu.memory_space<vmem>>, vector<1x512xf32>
    %263 = vector.broadcast %262 : vector<1x512xf32> to vector<8x512xf32>
    %264 = arith.addf %261, %263 : vector<8x512xf32>
    %265 = arith.index_cast %258 : i32 to index
    %c0_97 = arith.constant 0 : index
    %266 = vector.load %arg11[%265, %c0_97] : memref<64x512xf32, #tpu.memory_space<vmem>>, vector<8x512xf32>
    tpu.vector_store %arg11[%265, %c0_97], %264 {strides = array<i32>} : memref<64x512xf32, #tpu.memory_space<vmem>>, vector<8x512xf32>,
    %c6_i32 = arith.constant 6 : i32
    %c8_i32_98 = arith.constant 8 : i32
    %267 = arith.muli %c6_i32, %c8_i32_98 : i32
    %268 = tpu.assume_multiple %267, 8 : i32
    %269 = arith.index_cast %268 : i32 to index
    %c0_99 = arith.constant 0 : index
    %270 = vector.load %arg10[%269, %c0_99] : memref<64x512xf32, #tpu.memory_space<vmem>>, vector<8x512xf32>
    %271 = arith.truncf %256 : vector<8x128xf32> to vector<8x128xbf16>
    %c0_100 = arith.constant 0 : index
    %c0_101 = arith.constant 0 : index
    %272 = vector.load %arg2[%c0_100, %c0_101] : memref<128x512xbf16, #tpu.memory_space<vmem>>, vector<128x512xbf16>
    %cst_102 = arith.constant dense<0.000000e+00> : vector<8x512xf32>
    %273 = tpu.matmul %271, %272, %cst_102 {dimension_numbers = #tpu.dot_dimension_numbers<[1], [0], [0], [1], [0, 0, 1, 1], [], []>} : vector<8x128xbf16>, vector<128x512xbf16>, vector<8x512xf32> -> vector<8x512xf32>
    %274 = arith.addf %270, %273 : vector<8x512xf32>
    %275 = vector.extract_strided_slice %274 {offsets = [0, 0], sizes = [8, 128], strides = [1, 1]} : vector<8x512xf32> to vector<8x128xf32>
    %276 = arith.negf %275 : vector<8x128xf32>
    %277 = math.exp %276 : vector<8x128xf32>
    %cst_103 = arith.constant 1.000000e+00 : f32
    %278 = vector.broadcast %cst_103 : f32 to vector<8x128xf32>
    %279 = arith.addf %278, %277 : vector<8x128xf32>
    %280 = arith.divf %278, %279 : vector<8x128xf32>
    %281 = vector.extract_strided_slice %274 {offsets = [0, 128], sizes = [8, 128], strides = [1, 1]} : vector<8x512xf32> to vector<8x128xf32>
    %282 = arith.negf %281 : vector<8x128xf32>
    %283 = math.exp %282 : vector<8x128xf32>
    %cst_104 = arith.constant 1.000000e+00 : f32
    %284 = vector.broadcast %cst_104 : f32 to vector<8x128xf32>
    %285 = arith.addf %284, %283 : vector<8x128xf32>
    %286 = arith.divf %284, %285 : vector<8x128xf32>
    %287 = vector.extract_strided_slice %274 {offsets = [0, 256], sizes = [8, 128], strides = [1, 1]} : vector<8x512xf32> to vector<8x128xf32>
    %288 = math.tanh %287 : vector<8x128xf32>
    %289 = vector.extract_strided_slice %274 {offsets = [0, 384], sizes = [8, 128], strides = [1, 1]} : vector<8x512xf32> to vector<8x128xf32>
    %290 = arith.negf %289 : vector<8x128xf32>
    %291 = math.exp %290 : vector<8x128xf32>
    %cst_105 = arith.constant 1.000000e+00 : f32
    %292 = vector.broadcast %cst_105 : f32 to vector<8x128xf32>
    %293 = arith.addf %292, %291 : vector<8x128xf32>
    %294 = arith.divf %292, %293 : vector<8x128xf32>
    %295 = arith.mulf %286, %254 : vector<8x128xf32>
    %296 = arith.mulf %280, %288 : vector<8x128xf32>
    %297 = arith.addf %295, %296 : vector<8x128xf32>
    %298 = math.tanh %297 : vector<8x128xf32>
    %299 = arith.mulf %294, %298 : vector<8x128xf32>
    %c8_i32_106 = arith.constant 8 : i32
    %300 = arith.muli %c6_i32, %c8_i32_106 : i32
    %301 = tpu.assume_multiple %300, 8 : i32
    %302 = arith.truncf %299 : vector<8x128xf32> to vector<8x128xbf16>
    %c0_107 = arith.constant 0 : index
    %c0_108 = arith.constant 0 : index
    %303 = vector.load %arg4[%c0_107, %c0_108] : memref<128x512xbf16, #tpu.memory_space<vmem>>, vector<128x512xbf16>
    %cst_109 = arith.constant dense<0.000000e+00> : vector<8x512xf32>
    %304 = tpu.matmul %302, %303, %cst_109 {dimension_numbers = #tpu.dot_dimension_numbers<[1], [0], [0], [1], [0, 0, 1, 1], [], []>} : vector<8x128xbf16>, vector<128x512xbf16>, vector<8x512xf32> -> vector<8x512xf32>
    %c0_110 = arith.constant 0 : index
    %c0_111 = arith.constant 0 : index
    %305 = vector.load %arg6[%c0_110, %c0_111] : memref<1x512xf32, #tpu.memory_space<vmem>>, vector<1x512xf32>
    %306 = vector.broadcast %305 : vector<1x512xf32> to vector<8x512xf32>
    %307 = arith.addf %304, %306 : vector<8x512xf32>
    %308 = arith.index_cast %301 : i32 to index
    %c0_112 = arith.constant 0 : index
    %309 = vector.load %arg11[%308, %c0_112] : memref<64x512xf32, #tpu.memory_space<vmem>>, vector<8x512xf32>
    tpu.vector_store %arg11[%308, %c0_112], %307 {strides = array<i32>} : memref<64x512xf32, #tpu.memory_space<vmem>>, vector<8x512xf32>,
    %c7_i32 = arith.constant 7 : i32
    %c8_i32_113 = arith.constant 8 : i32
    %310 = arith.muli %c7_i32, %c8_i32_113 : i32
    %311 = tpu.assume_multiple %310, 8 : i32
    %312 = arith.index_cast %311 : i32 to index
    %c0_114 = arith.constant 0 : index
    %313 = vector.load %arg10[%312, %c0_114] : memref<64x512xf32, #tpu.memory_space<vmem>>, vector<8x512xf32>
    %314 = arith.truncf %299 : vector<8x128xf32> to vector<8x128xbf16>
    %c0_115 = arith.constant 0 : index
    %c0_116 = arith.constant 0 : index
    %315 = vector.load %arg2[%c0_115, %c0_116] : memref<128x512xbf16, #tpu.memory_space<vmem>>, vector<128x512xbf16>
    %cst_117 = arith.constant dense<0.000000e+00> : vector<8x512xf32>
    %316 = tpu.matmul %314, %315, %cst_117 {dimension_numbers = #tpu.dot_dimension_numbers<[1], [0], [0], [1], [0, 0, 1, 1], [], []>} : vector<8x128xbf16>, vector<128x512xbf16>, vector<8x512xf32> -> vector<8x512xf32>
    %317 = arith.addf %313, %316 : vector<8x512xf32>
    %318 = vector.extract_strided_slice %317 {offsets = [0, 0], sizes = [8, 128], strides = [1, 1]} : vector<8x512xf32> to vector<8x128xf32>
    %319 = arith.negf %318 : vector<8x128xf32>
    %320 = math.exp %319 : vector<8x128xf32>
    %cst_118 = arith.constant 1.000000e+00 : f32
    %321 = vector.broadcast %cst_118 : f32 to vector<8x128xf32>
    %322 = arith.addf %321, %320 : vector<8x128xf32>
    %323 = arith.divf %321, %322 : vector<8x128xf32>
    %324 = vector.extract_strided_slice %317 {offsets = [0, 128], sizes = [8, 128], strides = [1, 1]} : vector<8x512xf32> to vector<8x128xf32>
    %325 = arith.negf %324 : vector<8x128xf32>
    %326 = math.exp %325 : vector<8x128xf32>
    %cst_119 = arith.constant 1.000000e+00 : f32
    %327 = vector.broadcast %cst_119 : f32 to vector<8x128xf32>
    %328 = arith.addf %327, %326 : vector<8x128xf32>
    %329 = arith.divf %327, %328 : vector<8x128xf32>
    %330 = vector.extract_strided_slice %317 {offsets = [0, 256], sizes = [8, 128], strides = [1, 1]} : vector<8x512xf32> to vector<8x128xf32>
    %331 = math.tanh %330 : vector<8x128xf32>
    %332 = vector.extract_strided_slice %317 {offsets = [0, 384], sizes = [8, 128], strides = [1, 1]} : vector<8x512xf32> to vector<8x128xf32>
    %333 = arith.negf %332 : vector<8x128xf32>
    %334 = math.exp %333 : vector<8x128xf32>
    %cst_120 = arith.constant 1.000000e+00 : f32
    %335 = vector.broadcast %cst_120 : f32 to vector<8x128xf32>
    %336 = arith.addf %335, %334 : vector<8x128xf32>
    %337 = arith.divf %335, %336 : vector<8x128xf32>
    %338 = arith.mulf %329, %297 : vector<8x128xf32>
    %339 = arith.mulf %323, %331 : vector<8x128xf32>
    %340 = arith.addf %338, %339 : vector<8x128xf32>
    %341 = math.tanh %340 : vector<8x128xf32>
    %342 = arith.mulf %337, %341 : vector<8x128xf32>
    %c8_i32_121 = arith.constant 8 : i32
    %343 = arith.muli %c7_i32, %c8_i32_121 : i32
    %344 = tpu.assume_multiple %343, 8 : i32
    %345 = arith.truncf %342 : vector<8x128xf32> to vector<8x128xbf16>
    %c0_122 = arith.constant 0 : index
    %c0_123 = arith.constant 0 : index
    %346 = vector.load %arg4[%c0_122, %c0_123] : memref<128x512xbf16, #tpu.memory_space<vmem>>, vector<128x512xbf16>
    %cst_124 = arith.constant dense<0.000000e+00> : vector<8x512xf32>
    %347 = tpu.matmul %345, %346, %cst_124 {dimension_numbers = #tpu.dot_dimension_numbers<[1], [0], [0], [1], [0, 0, 1, 1], [], []>} : vector<8x128xbf16>, vector<128x512xbf16>, vector<8x512xf32> -> vector<8x512xf32>
    %c0_125 = arith.constant 0 : index
    %c0_126 = arith.constant 0 : index
    %348 = vector.load %arg6[%c0_125, %c0_126] : memref<1x512xf32, #tpu.memory_space<vmem>>, vector<1x512xf32>
    %349 = vector.broadcast %348 : vector<1x512xf32> to vector<8x512xf32>
    %350 = arith.addf %347, %349 : vector<8x512xf32>
    %351 = arith.index_cast %344 : i32 to index
    %c0_127 = arith.constant 0 : index
    %352 = vector.load %arg11[%351, %c0_127] : memref<64x512xf32, #tpu.memory_space<vmem>>, vector<8x512xf32>
    tpu.vector_store %arg11[%351, %c0_127], %350 {strides = array<i32>} : memref<64x512xf32, #tpu.memory_space<vmem>>, vector<8x512xf32>,
    %c8_i32_128 = arith.constant 8 : i32
    tpu.wait_dma2 semaphore(%arg13 : memref<!tpu.dma_semaphore, #tpu.memory_space<semaphore_mem>>) src(%arg7 : memref<1024x128xbf16, #tpu.memory_space<any>>) dst(%arg12 : memref<1024x128xbf16, #tpu.memory_space<vmem>>)
    %cst_129 = arith.constant 0.000000e+00 : f32
    %353 = vector.broadcast %cst_129 : f32 to vector<8x128xf32>
    %cst_130 = arith.constant 0.000000e+00 : f32
    %354 = vector.broadcast %cst_130 : f32 to vector<8x128xf32>
    %cst_131 = arith.constant 0.000000e+00 : f32
    %355 = vector.broadcast %cst_131 : f32 to vector<8x128xf32>
    %c0_132 = arith.constant 0 : index
    %c0_133 = arith.constant 0 : index
    %356 = vector.load %arg8[%c0_132, %c0_133] : memref<1x128xf32, #tpu.memory_space<vmem>>, vector<1x128xf32>
    %357 = vector.broadcast %356 : vector<1x128xf32> to vector<8x128xf32>
    %358 = arith.addf %355, %357 : vector<8x128xf32>
    %c0_i32_134 = arith.constant 0 : i32
    %c8_i32_135 = arith.constant 8 : i32
    %359 = arith.muli %c0_i32_134, %c8_i32_135 : i32
    %360 = tpu.assume_multiple %359, 8 : i32
    %361 = arith.index_cast %360 : i32 to index
    %c0_136 = arith.constant 0 : index
    %362 = vector.load %arg11[%361, %c0_136] : memref<64x512xf32, #tpu.memory_space<vmem>>, vector<8x512xf32>
    %363 = arith.truncf %353 : vector<8x128xf32> to vector<8x128xbf16>
    %c0_137 = arith.constant 0 : index
    %c0_138 = arith.constant 0 : index
    %364 = vector.load %arg5[%c0_137, %c0_138] : memref<128x512xbf16, #tpu.memory_space<vmem>>, vector<128x512xbf16>
    %cst_139 = arith.constant dense<0.000000e+00> : vector<8x512xf32>
    %365 = tpu.matmul %363, %364, %cst_139 {dimension_numbers = #tpu.dot_dimension_numbers<[1], [0], [0], [1], [0, 0, 1, 1], [], []>} : vector<8x128xbf16>, vector<128x512xbf16>, vector<8x512xf32> -> vector<8x512xf32>
    %366 = arith.addf %362, %365 : vector<8x512xf32>
    %367 = vector.extract_strided_slice %366 {offsets = [0, 0], sizes = [8, 128], strides = [1, 1]} : vector<8x512xf32> to vector<8x128xf32>
    %368 = arith.negf %367 : vector<8x128xf32>
    %369 = math.exp %368 : vector<8x128xf32>
    %cst_140 = arith.constant 1.000000e+00 : f32
    %370 = vector.broadcast %cst_140 : f32 to vector<8x128xf32>
    %371 = arith.addf %370, %369 : vector<8x128xf32>
    %372 = arith.divf %370, %371 : vector<8x128xf32>
    %373 = vector.extract_strided_slice %366 {offsets = [0, 128], sizes = [8, 128], strides = [1, 1]} : vector<8x512xf32> to vector<8x128xf32>
    %374 = arith.negf %373 : vector<8x128xf32>
    %375 = math.exp %374 : vector<8x128xf32>
    %cst_141 = arith.constant 1.000000e+00 : f32
    %376 = vector.broadcast %cst_141 : f32 to vector<8x128xf32>
    %377 = arith.addf %376, %375 : vector<8x128xf32>
    %378 = arith.divf %376, %377 : vector<8x128xf32>
    %379 = vector.extract_strided_slice %366 {offsets = [0, 256], sizes = [8, 128], strides = [1, 1]} : vector<8x512xf32> to vector<8x128xf32>
    %380 = math.tanh %379 : vector<8x128xf32>
    %381 = vector.extract_strided_slice %366 {offsets = [0, 384], sizes = [8, 128], strides = [1, 1]} : vector<8x512xf32> to vector<8x128xf32>
    %382 = arith.negf %381 : vector<8x128xf32>
    %383 = math.exp %382 : vector<8x128xf32>
    %cst_142 = arith.constant 1.000000e+00 : f32
    %384 = vector.broadcast %cst_142 : f32 to vector<8x128xf32>
    %385 = arith.addf %384, %383 : vector<8x128xf32>
    %386 = arith.divf %384, %385 : vector<8x128xf32>
    %387 = arith.mulf %378, %354 : vector<8x128xf32>
    %388 = arith.mulf %372, %380 : vector<8x128xf32>
    %389 = arith.addf %387, %388 : vector<8x128xf32>
    %390 = math.tanh %389 : vector<8x128xf32>
    %391 = arith.mulf %386, %390 : vector<8x128xf32>
    %c128_i32 = arith.constant 128 : i32
    %392 = arith.muli %c0_i32_134, %c128_i32 : i32
    %393 = tpu.assume_multiple %392, 128 : i32
    %394 = arith.truncf %391 : vector<8x128xf32> to vector<8x128xbf16>
    %395 = arith.index_cast %393 : i32 to index
    %c0_143 = arith.constant 0 : index
    %396 = vector.load %arg12[%395, %c0_143] : memref<1024x128xbf16, #tpu.memory_space<vmem>>, vector<128x128xbf16>
    %cst_144 = arith.constant dense<0.000000e+00> : vector<8x128xf32>
    %397 = tpu.matmul %394, %396, %cst_144 {dimension_numbers = #tpu.dot_dimension_numbers<[1], [0], [0], [1], [0, 0, 1, 1], [], []>} : vector<8x128xbf16>, vector<128x128xbf16>, vector<8x128xf32> -> vector<8x128xf32>
    %398 = arith.addf %358, %397 : vector<8x128xf32>
    %c1_i32_145 = arith.constant 1 : i32
    %c8_i32_146 = arith.constant 8 : i32
    %399 = arith.muli %c1_i32_145, %c8_i32_146 : i32
    %400 = tpu.assume_multiple %399, 8 : i32
    %401 = arith.index_cast %400 : i32 to index
    %c0_147 = arith.constant 0 : index
    %402 = vector.load %arg11[%401, %c0_147] : memref<64x512xf32, #tpu.memory_space<vmem>>, vector<8x512xf32>
    %403 = arith.truncf %391 : vector<8x128xf32> to vector<8x128xbf16>
    %c0_148 = arith.constant 0 : index
    %c0_149 = arith.constant 0 : index
    %404 = vector.load %arg5[%c0_148, %c0_149] : memref<128x512xbf16, #tpu.memory_space<vmem>>, vector<128x512xbf16>
    %cst_150 = arith.constant dense<0.000000e+00> : vector<8x512xf32>
    %405 = tpu.matmul %403, %404, %cst_150 {dimension_numbers = #tpu.dot_dimension_numbers<[1], [0], [0], [1], [0, 0, 1, 1], [], []>} : vector<8x128xbf16>, vector<128x512xbf16>, vector<8x512xf32> -> vector<8x512xf32>
    %406 = arith.addf %402, %405 : vector<8x512xf32>
    %407 = vector.extract_strided_slice %406 {offsets = [0, 0], sizes = [8, 128], strides = [1, 1]} : vector<8x512xf32> to vector<8x128xf32>
    %408 = arith.negf %407 : vector<8x128xf32>
    %409 = math.exp %408 : vector<8x128xf32>
    %cst_151 = arith.constant 1.000000e+00 : f32
    %410 = vector.broadcast %cst_151 : f32 to vector<8x128xf32>
    %411 = arith.addf %410, %409 : vector<8x128xf32>
    %412 = arith.divf %410, %411 : vector<8x128xf32>
    %413 = vector.extract_strided_slice %406 {offsets = [0, 128], sizes = [8, 128], strides = [1, 1]} : vector<8x512xf32> to vector<8x128xf32>
    %414 = arith.negf %413 : vector<8x128xf32>
    %415 = math.exp %414 : vector<8x128xf32>
    %cst_152 = arith.constant 1.000000e+00 : f32
    %416 = vector.broadcast %cst_152 : f32 to vector<8x128xf32>
    %417 = arith.addf %416, %415 : vector<8x128xf32>
    %418 = arith.divf %416, %417 : vector<8x128xf32>
    %419 = vector.extract_strided_slice %406 {offsets = [0, 256], sizes = [8, 128], strides = [1, 1]} : vector<8x512xf32> to vector<8x128xf32>
    %420 = math.tanh %419 : vector<8x128xf32>
    %421 = vector.extract_strided_slice %406 {offsets = [0, 384], sizes = [8, 128], strides = [1, 1]} : vector<8x512xf32> to vector<8x128xf32>
    %422 = arith.negf %421 : vector<8x128xf32>
    %423 = math.exp %422 : vector<8x128xf32>
    %cst_153 = arith.constant 1.000000e+00 : f32
    %424 = vector.broadcast %cst_153 : f32 to vector<8x128xf32>
    %425 = arith.addf %424, %423 : vector<8x128xf32>
    %426 = arith.divf %424, %425 : vector<8x128xf32>
    %427 = arith.mulf %418, %389 : vector<8x128xf32>
    %428 = arith.mulf %412, %420 : vector<8x128xf32>
    %429 = arith.addf %427, %428 : vector<8x128xf32>
    %430 = math.tanh %429 : vector<8x128xf32>
    %431 = arith.mulf %426, %430 : vector<8x128xf32>
    %c128_i32_154 = arith.constant 128 : i32
    %432 = arith.muli %c1_i32_145, %c128_i32_154 : i32
    %433 = tpu.assume_multiple %432, 128 : i32
    %434 = arith.truncf %431 : vector<8x128xf32> to vector<8x128xbf16>
    %435 = arith.index_cast %433 : i32 to index
    %c0_155 = arith.constant 0 : index
    %436 = vector.load %arg12[%435, %c0_155] : memref<1024x128xbf16, #tpu.memory_space<vmem>>, vector<128x128xbf16>
    %cst_156 = arith.constant dense<0.000000e+00> : vector<8x128xf32>
    %437 = tpu.matmul %434, %436, %cst_156 {dimension_numbers = #tpu.dot_dimension_numbers<[1], [0], [0], [1], [0, 0, 1, 1], [], []>} : vector<8x128xbf16>, vector<128x128xbf16>, vector<8x128xf32> -> vector<8x128xf32>
    %438 = arith.addf %398, %437 : vector<8x128xf32>
    %c2_i32_157 = arith.constant 2 : i32
    %c8_i32_158 = arith.constant 8 : i32
    %439 = arith.muli %c2_i32_157, %c8_i32_158 : i32
    %440 = tpu.assume_multiple %439, 8 : i32
    %441 = arith.index_cast %440 : i32 to index
    %c0_159 = arith.constant 0 : index
    %442 = vector.load %arg11[%441, %c0_159] : memref<64x512xf32, #tpu.memory_space<vmem>>, vector<8x512xf32>
    %443 = arith.truncf %431 : vector<8x128xf32> to vector<8x128xbf16>
    %c0_160 = arith.constant 0 : index
    %c0_161 = arith.constant 0 : index
    %444 = vector.load %arg5[%c0_160, %c0_161] : memref<128x512xbf16, #tpu.memory_space<vmem>>, vector<128x512xbf16>
    %cst_162 = arith.constant dense<0.000000e+00> : vector<8x512xf32>
    %445 = tpu.matmul %443, %444, %cst_162 {dimension_numbers = #tpu.dot_dimension_numbers<[1], [0], [0], [1], [0, 0, 1, 1], [], []>} : vector<8x128xbf16>, vector<128x512xbf16>, vector<8x512xf32> -> vector<8x512xf32>
    %446 = arith.addf %442, %445 : vector<8x512xf32>
    %447 = vector.extract_strided_slice %446 {offsets = [0, 0], sizes = [8, 128], strides = [1, 1]} : vector<8x512xf32> to vector<8x128xf32>
    %448 = arith.negf %447 : vector<8x128xf32>
    %449 = math.exp %448 : vector<8x128xf32>
    %cst_163 = arith.constant 1.000000e+00 : f32
    %450 = vector.broadcast %cst_163 : f32 to vector<8x128xf32>
    %451 = arith.addf %450, %449 : vector<8x128xf32>
    %452 = arith.divf %450, %451 : vector<8x128xf32>
    %453 = vector.extract_strided_slice %446 {offsets = [0, 128], sizes = [8, 128], strides = [1, 1]} : vector<8x512xf32> to vector<8x128xf32>
    %454 = arith.negf %453 : vector<8x128xf32>
    %455 = math.exp %454 : vector<8x128xf32>
    %cst_164 = arith.constant 1.000000e+00 : f32
    %456 = vector.broadcast %cst_164 : f32 to vector<8x128xf32>
    %457 = arith.addf %456, %455 : vector<8x128xf32>
    %458 = arith.divf %456, %457 : vector<8x128xf32>
    %459 = vector.extract_strided_slice %446 {offsets = [0, 256], sizes = [8, 128], strides = [1, 1]} : vector<8x512xf32> to vector<8x128xf32>
    %460 = math.tanh %459 : vector<8x128xf32>
    %461 = vector.extract_strided_slice %446 {offsets = [0, 384], sizes = [8, 128], strides = [1, 1]} : vector<8x512xf32> to vector<8x128xf32>
    %462 = arith.negf %461 : vector<8x128xf32>
    %463 = math.exp %462 : vector<8x128xf32>
    %cst_165 = arith.constant 1.000000e+00 : f32
    %464 = vector.broadcast %cst_165 : f32 to vector<8x128xf32>
    %465 = arith.addf %464, %463 : vector<8x128xf32>
    %466 = arith.divf %464, %465 : vector<8x128xf32>
    %467 = arith.mulf %458, %429 : vector<8x128xf32>
    %468 = arith.mulf %452, %460 : vector<8x128xf32>
    %469 = arith.addf %467, %468 : vector<8x128xf32>
    %470 = math.tanh %469 : vector<8x128xf32>
    %471 = arith.mulf %466, %470 : vector<8x128xf32>
    %c128_i32_166 = arith.constant 128 : i32
    %472 = arith.muli %c2_i32_157, %c128_i32_166 : i32
    %473 = tpu.assume_multiple %472, 128 : i32
    %474 = arith.truncf %471 : vector<8x128xf32> to vector<8x128xbf16>
    %475 = arith.index_cast %473 : i32 to index
    %c0_167 = arith.constant 0 : index
    %476 = vector.load %arg12[%475, %c0_167] : memref<1024x128xbf16, #tpu.memory_space<vmem>>, vector<128x128xbf16>
    %cst_168 = arith.constant dense<0.000000e+00> : vector<8x128xf32>
    %477 = tpu.matmul %474, %476, %cst_168 {dimension_numbers = #tpu.dot_dimension_numbers<[1], [0], [0], [1], [0, 0, 1, 1], [], []>} : vector<8x128xbf16>, vector<128x128xbf16>, vector<8x128xf32> -> vector<8x128xf32>
    %478 = arith.addf %438, %477 : vector<8x128xf32>
    %c3_i32_169 = arith.constant 3 : i32
    %c8_i32_170 = arith.constant 8 : i32
    %479 = arith.muli %c3_i32_169, %c8_i32_170 : i32
    %480 = tpu.assume_multiple %479, 8 : i32
    %481 = arith.index_cast %480 : i32 to index
    %c0_171 = arith.constant 0 : index
    %482 = vector.load %arg11[%481, %c0_171] : memref<64x512xf32, #tpu.memory_space<vmem>>, vector<8x512xf32>
    %483 = arith.truncf %471 : vector<8x128xf32> to vector<8x128xbf16>
    %c0_172 = arith.constant 0 : index
    %c0_173 = arith.constant 0 : index
    %484 = vector.load %arg5[%c0_172, %c0_173] : memref<128x512xbf16, #tpu.memory_space<vmem>>, vector<128x512xbf16>
    %cst_174 = arith.constant dense<0.000000e+00> : vector<8x512xf32>
    %485 = tpu.matmul %483, %484, %cst_174 {dimension_numbers = #tpu.dot_dimension_numbers<[1], [0], [0], [1], [0, 0, 1, 1], [], []>} : vector<8x128xbf16>, vector<128x512xbf16>, vector<8x512xf32> -> vector<8x512xf32>
    %486 = arith.addf %482, %485 : vector<8x512xf32>
    %487 = vector.extract_strided_slice %486 {offsets = [0, 0], sizes = [8, 128], strides = [1, 1]} : vector<8x512xf32> to vector<8x128xf32>
    %488 = arith.negf %487 : vector<8x128xf32>
    %489 = math.exp %488 : vector<8x128xf32>
    %cst_175 = arith.constant 1.000000e+00 : f32
    %490 = vector.broadcast %cst_175 : f32 to vector<8x128xf32>
    %491 = arith.addf %490, %489 : vector<8x128xf32>
    %492 = arith.divf %490, %491 : vector<8x128xf32>
    %493 = vector.extract_strided_slice %486 {offsets = [0, 128], sizes = [8, 128], strides = [1, 1]} : vector<8x512xf32> to vector<8x128xf32>
    %494 = arith.negf %493 : vector<8x128xf32>
    %495 = math.exp %494 : vector<8x128xf32>
    %cst_176 = arith.constant 1.000000e+00 : f32
    %496 = vector.broadcast %cst_176 : f32 to vector<8x128xf32>
    %497 = arith.addf %496, %495 : vector<8x128xf32>
    %498 = arith.divf %496, %497 : vector<8x128xf32>
    %499 = vector.extract_strided_slice %486 {offsets = [0, 256], sizes = [8, 128], strides = [1, 1]} : vector<8x512xf32> to vector<8x128xf32>
    %500 = math.tanh %499 : vector<8x128xf32>
    %501 = vector.extract_strided_slice %486 {offsets = [0, 384], sizes = [8, 128], strides = [1, 1]} : vector<8x512xf32> to vector<8x128xf32>
    %502 = arith.negf %501 : vector<8x128xf32>
    %503 = math.exp %502 : vector<8x128xf32>
    %cst_177 = arith.constant 1.000000e+00 : f32
    %504 = vector.broadcast %cst_177 : f32 to vector<8x128xf32>
    %505 = arith.addf %504, %503 : vector<8x128xf32>
    %506 = arith.divf %504, %505 : vector<8x128xf32>
    %507 = arith.mulf %498, %469 : vector<8x128xf32>
    %508 = arith.mulf %492, %500 : vector<8x128xf32>
    %509 = arith.addf %507, %508 : vector<8x128xf32>
    %510 = math.tanh %509 : vector<8x128xf32>
    %511 = arith.mulf %506, %510 : vector<8x128xf32>
    %c128_i32_178 = arith.constant 128 : i32
    %512 = arith.muli %c3_i32_169, %c128_i32_178 : i32
    %513 = tpu.assume_multiple %512, 128 : i32
    %514 = arith.truncf %511 : vector<8x128xf32> to vector<8x128xbf16>
    %515 = arith.index_cast %513 : i32 to index
    %c0_179 = arith.constant 0 : index
    %516 = vector.load %arg12[%515, %c0_179] : memref<1024x128xbf16, #tpu.memory_space<vmem>>, vector<128x128xbf16>
    %cst_180 = arith.constant dense<0.000000e+00> : vector<8x128xf32>
    %517 = tpu.matmul %514, %516, %cst_180 {dimension_numbers = #tpu.dot_dimension_numbers<[1], [0], [0], [1], [0, 0, 1, 1], [], []>} : vector<8x128xbf16>, vector<128x128xbf16>, vector<8x128xf32> -> vector<8x128xf32>
    %518 = arith.addf %478, %517 : vector<8x128xf32>
    %c4_i32_181 = arith.constant 4 : i32
    %c8_i32_182 = arith.constant 8 : i32
    %519 = arith.muli %c4_i32_181, %c8_i32_182 : i32
    %520 = tpu.assume_multiple %519, 8 : i32
    %521 = arith.index_cast %520 : i32 to index
    %c0_183 = arith.constant 0 : index
    %522 = vector.load %arg11[%521, %c0_183] : memref<64x512xf32, #tpu.memory_space<vmem>>, vector<8x512xf32>
    %523 = arith.truncf %511 : vector<8x128xf32> to vector<8x128xbf16>
    %c0_184 = arith.constant 0 : index
    %c0_185 = arith.constant 0 : index
    %524 = vector.load %arg5[%c0_184, %c0_185] : memref<128x512xbf16, #tpu.memory_space<vmem>>, vector<128x512xbf16>
    %cst_186 = arith.constant dense<0.000000e+00> : vector<8x512xf32>
    %525 = tpu.matmul %523, %524, %cst_186 {dimension_numbers = #tpu.dot_dimension_numbers<[1], [0], [0], [1], [0, 0, 1, 1], [], []>} : vector<8x128xbf16>, vector<128x512xbf16>, vector<8x512xf32> -> vector<8x512xf32>
    %526 = arith.addf %522, %525 : vector<8x512xf32>
    %527 = vector.extract_strided_slice %526 {offsets = [0, 0], sizes = [8, 128], strides = [1, 1]} : vector<8x512xf32> to vector<8x128xf32>
    %528 = arith.negf %527 : vector<8x128xf32>
    %529 = math.exp %528 : vector<8x128xf32>
    %cst_187 = arith.constant 1.000000e+00 : f32
    %530 = vector.broadcast %cst_187 : f32 to vector<8x128xf32>
    %531 = arith.addf %530, %529 : vector<8x128xf32>
    %532 = arith.divf %530, %531 : vector<8x128xf32>
    %533 = vector.extract_strided_slice %526 {offsets = [0, 128], sizes = [8, 128], strides = [1, 1]} : vector<8x512xf32> to vector<8x128xf32>
    %534 = arith.negf %533 : vector<8x128xf32>
    %535 = math.exp %534 : vector<8x128xf32>
    %cst_188 = arith.constant 1.000000e+00 : f32
    %536 = vector.broadcast %cst_188 : f32 to vector<8x128xf32>
    %537 = arith.addf %536, %535 : vector<8x128xf32>
    %538 = arith.divf %536, %537 : vector<8x128xf32>
    %539 = vector.extract_strided_slice %526 {offsets = [0, 256], sizes = [8, 128], strides = [1, 1]} : vector<8x512xf32> to vector<8x128xf32>
    %540 = math.tanh %539 : vector<8x128xf32>
    %541 = vector.extract_strided_slice %526 {offsets = [0, 384], sizes = [8, 128], strides = [1, 1]} : vector<8x512xf32> to vector<8x128xf32>
    %542 = arith.negf %541 : vector<8x128xf32>
    %543 = math.exp %542 : vector<8x128xf32>
    %cst_189 = arith.constant 1.000000e+00 : f32
    %544 = vector.broadcast %cst_189 : f32 to vector<8x128xf32>
    %545 = arith.addf %544, %543 : vector<8x128xf32>
    %546 = arith.divf %544, %545 : vector<8x128xf32>
    %547 = arith.mulf %538, %509 : vector<8x128xf32>
    %548 = arith.mulf %532, %540 : vector<8x128xf32>
    %549 = arith.addf %547, %548 : vector<8x128xf32>
    %550 = math.tanh %549 : vector<8x128xf32>
    %551 = arith.mulf %546, %550 : vector<8x128xf32>
    %c128_i32_190 = arith.constant 128 : i32
    %552 = arith.muli %c4_i32_181, %c128_i32_190 : i32
    %553 = tpu.assume_multiple %552, 128 : i32
    %554 = arith.truncf %551 : vector<8x128xf32> to vector<8x128xbf16>
    %555 = arith.index_cast %553 : i32 to index
    %c0_191 = arith.constant 0 : index
    %556 = vector.load %arg12[%555, %c0_191] : memref<1024x128xbf16, #tpu.memory_space<vmem>>, vector<128x128xbf16>
    %cst_192 = arith.constant dense<0.000000e+00> : vector<8x128xf32>
    %557 = tpu.matmul %554, %556, %cst_192 {dimension_numbers = #tpu.dot_dimension_numbers<[1], [0], [0], [1], [0, 0, 1, 1], [], []>} : vector<8x128xbf16>, vector<128x128xbf16>, vector<8x128xf32> -> vector<8x128xf32>
    %558 = arith.addf %518, %557 : vector<8x128xf32>
    %c5_i32_193 = arith.constant 5 : i32
    %c8_i32_194 = arith.constant 8 : i32
    %559 = arith.muli %c5_i32_193, %c8_i32_194 : i32
    %560 = tpu.assume_multiple %559, 8 : i32
    %561 = arith.index_cast %560 : i32 to index
    %c0_195 = arith.constant 0 : index
    %562 = vector.load %arg11[%561, %c0_195] : memref<64x512xf32, #tpu.memory_space<vmem>>, vector<8x512xf32>
    %563 = arith.truncf %551 : vector<8x128xf32> to vector<8x128xbf16>
    %c0_196 = arith.constant 0 : index
    %c0_197 = arith.constant 0 : index
    %564 = vector.load %arg5[%c0_196, %c0_197] : memref<128x512xbf16, #tpu.memory_space<vmem>>, vector<128x512xbf16>
    %cst_198 = arith.constant dense<0.000000e+00> : vector<8x512xf32>
    %565 = tpu.matmul %563, %564, %cst_198 {dimension_numbers = #tpu.dot_dimension_numbers<[1], [0], [0], [1], [0, 0, 1, 1], [], []>} : vector<8x128xbf16>, vector<128x512xbf16>, vector<8x512xf32> -> vector<8x512xf32>
    %566 = arith.addf %562, %565 : vector<8x512xf32>
    %567 = vector.extract_strided_slice %566 {offsets = [0, 0], sizes = [8, 128], strides = [1, 1]} : vector<8x512xf32> to vector<8x128xf32>
    %568 = arith.negf %567 : vector<8x128xf32>
    %569 = math.exp %568 : vector<8x128xf32>
    %cst_199 = arith.constant 1.000000e+00 : f32
    %570 = vector.broadcast %cst_199 : f32 to vector<8x128xf32>
    %571 = arith.addf %570, %569 : vector<8x128xf32>
    %572 = arith.divf %570, %571 : vector<8x128xf32>
    %573 = vector.extract_strided_slice %566 {offsets = [0, 128], sizes = [8, 128], strides = [1, 1]} : vector<8x512xf32> to vector<8x128xf32>
    %574 = arith.negf %573 : vector<8x128xf32>
    %575 = math.exp %574 : vector<8x128xf32>
    %cst_200 = arith.constant 1.000000e+00 : f32
    %576 = vector.broadcast %cst_200 : f32 to vector<8x128xf32>
    %577 = arith.addf %576, %575 : vector<8x128xf32>
    %578 = arith.divf %576, %577 : vector<8x128xf32>
    %579 = vector.extract_strided_slice %566 {offsets = [0, 256], sizes = [8, 128], strides = [1, 1]} : vector<8x512xf32> to vector<8x128xf32>
    %580 = math.tanh %579 : vector<8x128xf32>
    %581 = vector.extract_strided_slice %566 {offsets = [0, 384], sizes = [8, 128], strides = [1, 1]} : vector<8x512xf32> to vector<8x128xf32>
    %582 = arith.negf %581 : vector<8x128xf32>
    %583 = math.exp %582 : vector<8x128xf32>
    %cst_201 = arith.constant 1.000000e+00 : f32
    %584 = vector.broadcast %cst_201 : f32 to vector<8x128xf32>
    %585 = arith.addf %584, %583 : vector<8x128xf32>
    %586 = arith.divf %584, %585 : vector<8x128xf32>
    %587 = arith.mulf %578, %549 : vector<8x128xf32>
    %588 = arith.mulf %572, %580 : vector<8x128xf32>
    %589 = arith.addf %587, %588 : vector<8x128xf32>
    %590 = math.tanh %589 : vector<8x128xf32>
    %591 = arith.mulf %586, %590 : vector<8x128xf32>
    %c128_i32_202 = arith.constant 128 : i32
    %592 = arith.muli %c5_i32_193, %c128_i32_202 : i32
    %593 = tpu.assume_multiple %592, 128 : i32
    %594 = arith.truncf %591 : vector<8x128xf32> to vector<8x128xbf16>
    %595 = arith.index_cast %593 : i32 to index
    %c0_203 = arith.constant 0 : index
    %596 = vector.load %arg12[%595, %c0_203] : memref<1024x128xbf16, #tpu.memory_space<vmem>>, vector<128x128xbf16>
    %cst_204 = arith.constant dense<0.000000e+00> : vector<8x128xf32>
    %597 = tpu.matmul %594, %596, %cst_204 {dimension_numbers = #tpu.dot_dimension_numbers<[1], [0], [0], [1], [0, 0, 1, 1], [], []>} : vector<8x128xbf16>, vector<128x128xbf16>, vector<8x128xf32> -> vector<8x128xf32>
    %598 = arith.addf %558, %597 : vector<8x128xf32>
    %c6_i32_205 = arith.constant 6 : i32
    %c8_i32_206 = arith.constant 8 : i32
    %599 = arith.muli %c6_i32_205, %c8_i32_206 : i32
    %600 = tpu.assume_multiple %599, 8 : i32
    %601 = arith.index_cast %600 : i32 to index
    %c0_207 = arith.constant 0 : index
    %602 = vector.load %arg11[%601, %c0_207] : memref<64x512xf32, #tpu.memory_space<vmem>>, vector<8x512xf32>
    %603 = arith.truncf %591 : vector<8x128xf32> to vector<8x128xbf16>
    %c0_208 = arith.constant 0 : index
    %c0_209 = arith.constant 0 : index
    %604 = vector.load %arg5[%c0_208, %c0_209] : memref<128x512xbf16, #tpu.memory_space<vmem>>, vector<128x512xbf16>
    %cst_210 = arith.constant dense<0.000000e+00> : vector<8x512xf32>
    %605 = tpu.matmul %603, %604, %cst_210 {dimension_numbers = #tpu.dot_dimension_numbers<[1], [0], [0], [1], [0, 0, 1, 1], [], []>} : vector<8x128xbf16>, vector<128x512xbf16>, vector<8x512xf32> -> vector<8x512xf32>
    %606 = arith.addf %602, %605 : vector<8x512xf32>
    %607 = vector.extract_strided_slice %606 {offsets = [0, 0], sizes = [8, 128], strides = [1, 1]} : vector<8x512xf32> to vector<8x128xf32>
    %608 = arith.negf %607 : vector<8x128xf32>
    %609 = math.exp %608 : vector<8x128xf32>
    %cst_211 = arith.constant 1.000000e+00 : f32
    %610 = vector.broadcast %cst_211 : f32 to vector<8x128xf32>
    %611 = arith.addf %610, %609 : vector<8x128xf32>
    %612 = arith.divf %610, %611 : vector<8x128xf32>
    %613 = vector.extract_strided_slice %606 {offsets = [0, 128], sizes = [8, 128], strides = [1, 1]} : vector<8x512xf32> to vector<8x128xf32>
    %614 = arith.negf %613 : vector<8x128xf32>
    %615 = math.exp %614 : vector<8x128xf32>
    %cst_212 = arith.constant 1.000000e+00 : f32
    %616 = vector.broadcast %cst_212 : f32 to vector<8x128xf32>
    %617 = arith.addf %616, %615 : vector<8x128xf32>
    %618 = arith.divf %616, %617 : vector<8x128xf32>
    %619 = vector.extract_strided_slice %606 {offsets = [0, 256], sizes = [8, 128], strides = [1, 1]} : vector<8x512xf32> to vector<8x128xf32>
    %620 = math.tanh %619 : vector<8x128xf32>
    %621 = vector.extract_strided_slice %606 {offsets = [0, 384], sizes = [8, 128], strides = [1, 1]} : vector<8x512xf32> to vector<8x128xf32>
    %622 = arith.negf %621 : vector<8x128xf32>
    %623 = math.exp %622 : vector<8x128xf32>
    %cst_213 = arith.constant 1.000000e+00 : f32
    %624 = vector.broadcast %cst_213 : f32 to vector<8x128xf32>
    %625 = arith.addf %624, %623 : vector<8x128xf32>
    %626 = arith.divf %624, %625 : vector<8x128xf32>
    %627 = arith.mulf %618, %589 : vector<8x128xf32>
    %628 = arith.mulf %612, %620 : vector<8x128xf32>
    %629 = arith.addf %627, %628 : vector<8x128xf32>
    %630 = math.tanh %629 : vector<8x128xf32>
    %631 = arith.mulf %626, %630 : vector<8x128xf32>
    %c128_i32_214 = arith.constant 128 : i32
    %632 = arith.muli %c6_i32_205, %c128_i32_214 : i32
    %633 = tpu.assume_multiple %632, 128 : i32
    %634 = arith.truncf %631 : vector<8x128xf32> to vector<8x128xbf16>
    %635 = arith.index_cast %633 : i32 to index
    %c0_215 = arith.constant 0 : index
    %636 = vector.load %arg12[%635, %c0_215] : memref<1024x128xbf16, #tpu.memory_space<vmem>>, vector<128x128xbf16>
    %cst_216 = arith.constant dense<0.000000e+00> : vector<8x128xf32>
    %637 = tpu.matmul %634, %636, %cst_216 {dimension_numbers = #tpu.dot_dimension_numbers<[1], [0], [0], [1], [0, 0, 1, 1], [], []>} : vector<8x128xbf16>, vector<128x128xbf16>, vector<8x128xf32> -> vector<8x128xf32>
    %638 = arith.addf %598, %637 : vector<8x128xf32>
    %c7_i32_217 = arith.constant 7 : i32
    %c8_i32_218 = arith.constant 8 : i32
    %639 = arith.muli %c7_i32_217, %c8_i32_218 : i32
    %640 = tpu.assume_multiple %639, 8 : i32
    %641 = arith.index_cast %640 : i32 to index
    %c0_219 = arith.constant 0 : index
    %642 = vector.load %arg11[%641, %c0_219] : memref<64x512xf32, #tpu.memory_space<vmem>>, vector<8x512xf32>
    %643 = arith.truncf %631 : vector<8x128xf32> to vector<8x128xbf16>
    %c0_220 = arith.constant 0 : index
    %c0_221 = arith.constant 0 : index
    %644 = vector.load %arg5[%c0_220, %c0_221] : memref<128x512xbf16, #tpu.memory_space<vmem>>, vector<128x512xbf16>
    %cst_222 = arith.constant dense<0.000000e+00> : vector<8x512xf32>
    %645 = tpu.matmul %643, %644, %cst_222 {dimension_numbers = #tpu.dot_dimension_numbers<[1], [0], [0], [1], [0, 0, 1, 1], [], []>} : vector<8x128xbf16>, vector<128x512xbf16>, vector<8x512xf32> -> vector<8x512xf32>
    %646 = arith.addf %642, %645 : vector<8x512xf32>
    %647 = vector.extract_strided_slice %646 {offsets = [0, 0], sizes = [8, 128], strides = [1, 1]} : vector<8x512xf32> to vector<8x128xf32>
    %648 = arith.negf %647 : vector<8x128xf32>
    %649 = math.exp %648 : vector<8x128xf32>
    %cst_223 = arith.constant 1.000000e+00 : f32
    %650 = vector.broadcast %cst_223 : f32 to vector<8x128xf32>
    %651 = arith.addf %650, %649 : vector<8x128xf32>
    %652 = arith.divf %650, %651 : vector<8x128xf32>
    %653 = vector.extract_strided_slice %646 {offsets = [0, 128], sizes = [8, 128], strides = [1, 1]} : vector<8x512xf32> to vector<8x128xf32>
    %654 = arith.negf %653 : vector<8x128xf32>
    %655 = math.exp %654 : vector<8x128xf32>
    %cst_224 = arith.constant 1.000000e+00 : f32
    %656 = vector.broadcast %cst_224 : f32 to vector<8x128xf32>
    %657 = arith.addf %656, %655 : vector<8x128xf32>
    %658 = arith.divf %656, %657 : vector<8x128xf32>
    %659 = vector.extract_strided_slice %646 {offsets = [0, 256], sizes = [8, 128], strides = [1, 1]} : vector<8x512xf32> to vector<8x128xf32>
    %660 = math.tanh %659 : vector<8x128xf32>
    %661 = vector.extract_strided_slice %646 {offsets = [0, 384], sizes = [8, 128], strides = [1, 1]} : vector<8x512xf32> to vector<8x128xf32>
    %662 = arith.negf %661 : vector<8x128xf32>
    %663 = math.exp %662 : vector<8x128xf32>
    %cst_225 = arith.constant 1.000000e+00 : f32
    %664 = vector.broadcast %cst_225 : f32 to vector<8x128xf32>
    %665 = arith.addf %664, %663 : vector<8x128xf32>
    %666 = arith.divf %664, %665 : vector<8x128xf32>
    %667 = arith.mulf %658, %629 : vector<8x128xf32>
    %668 = arith.mulf %652, %660 : vector<8x128xf32>
    %669 = arith.addf %667, %668 : vector<8x128xf32>
    %670 = math.tanh %669 : vector<8x128xf32>
    %671 = arith.mulf %666, %670 : vector<8x128xf32>
    %c128_i32_226 = arith.constant 128 : i32
    %672 = arith.muli %c7_i32_217, %c128_i32_226 : i32
    %673 = tpu.assume_multiple %672, 128 : i32
    %674 = arith.truncf %671 : vector<8x128xf32> to vector<8x128xbf16>
    %675 = arith.index_cast %673 : i32 to index
    %c0_227 = arith.constant 0 : index
    %676 = vector.load %arg12[%675, %c0_227] : memref<1024x128xbf16, #tpu.memory_space<vmem>>, vector<128x128xbf16>
    %cst_228 = arith.constant dense<0.000000e+00> : vector<8x128xf32>
    %677 = tpu.matmul %674, %676, %cst_228 {dimension_numbers = #tpu.dot_dimension_numbers<[1], [0], [0], [1], [0, 0, 1, 1], [], []>} : vector<8x128xbf16>, vector<128x128xbf16>, vector<8x128xf32> -> vector<8x128xf32>
    %678 = arith.addf %638, %677 : vector<8x128xf32>
    %c8_i32_229 = arith.constant 8 : i32
    %c0_230 = arith.constant 0 : index
    %c0_231 = arith.constant 0 : index
    %679 = vector.load %arg9[%c0_230, %c0_231] : memref<8x128xf32, #tpu.memory_space<vmem>>, vector<8x128xf32>
    tpu.vector_store %arg9[%c0_230, %c0_231], %678 {strides = array<i32>} : memref<8x128xf32, #tpu.memory_space<vmem>>, vector<8x128xf32>,
    return
  }
}

</mosaic_0001>

<llo_original>
// kernel: lstm_classifier_forward.1
$region0: #{lstm_classifier_forward.1}
  #allocation0 [shape = 'u32[]', space=smem, size = 0x4, offset = 0x4, fixed_abs, tag = 'smem constant byte address 0x4 - core index']
  #allocation1 [shape = 'u32[72,128]{1,0:T(1,128)}', space=vmem, size = 0x9000, scoped, tag = 'internal scratch']
  #allocation2 [shape = 'f32[64,512]{1,0:T(8,128)}', space=vmem, size = 0x20000, scoped, tag = 'scratch operand']
  #allocation3 [shape = 'f32[64,512]{1,0:T(8,128)}', space=vmem, size = 0x20000, scoped, tag = 'scratch operand']
  #allocation4 [shape = 'bf16[1024,128]{1,0:T(8,128)(2,1)}', space=vmem, size = 0x40000, scoped, tag = 'scratch operand']
  #allocation5 [shape = 's32[1]{0}', space=sflag, size = 0x4, scoped, tag = 'scratch operand']
  #allocation6 [shape = 's32[]', space=sflag, size = 0x4, offset = 0, fixed_abs, tag = 'sflag constant byte address 0x0 - dummy sync flag']
  %s0 = inlined_call_operand.vmem [shape: bf16[64,16], index: 0, kind: input, shape index: {}]
  %s1 = inlined_call_operand.vmem [shape: bf16[16,512], index: 1, kind: input, shape index: {}]
  %s2 = inlined_call_operand.vmem [shape: bf16[128,512], index: 2, kind: input, shape index: {}]
  %s3 = inlined_call_operand.vmem [shape: f32[1,512], index: 3, kind: input, shape index: {}]
  %s4 = inlined_call_operand.vmem [shape: bf16[128,512], index: 4, kind: input, shape index: {}]
  %s5 = inlined_call_operand.vmem [shape: bf16[128,512], index: 5, kind: input, shape index: {}]
  %s6 = inlined_call_operand.vmem [shape: f32[1,512], index: 6, kind: input, shape index: {}]
  %s7 = inlined_call_operand.vmem [shape: bf16[1024,128], index: 7, kind: input, shape index: {}]
  %s8 = inlined_call_operand.vmem [shape: f32[1,128], index: 8, kind: input, shape index: {}]
  %s9 = inlined_call_operand.vmem [shape: f32[8,128], index: 9, kind: output, shape index: {}]
  %s10 = sld [smem:[#allocation0]]
  $region61: #{lstm_classifier_forward.1} parent=0
    _
  %s12 = ssub.s32 1, %s10
  %s13 = scalar_select 0, %s12, %s10
  // Predicated region
  $region2: #{lstm_classifier_forward.1} parent=0 // pred_check
    _
  $region3: #{lstm_classifier_forward.1} parent=0 // pred_check_branch
    %15 = sbr.rel (0) target = $region5
  $region4: #{lstm_classifier_forward.1} parent=0 // pred_region
    _
  $region5: #{lstm_classifier_forward.1} parent=0 // pred_fallthru
    _
  // Predicated region
  $region6: #{lstm_classifier_forward.1} parent=0 // pred_check
    _
  $region7: #{lstm_classifier_forward.1} parent=0 // pred_check_branch
    %17 = sbr.rel (0) target = $region9
  $region8: #{lstm_classifier_forward.1} parent=0 // pred_region
    _
  $region9: #{lstm_classifier_forward.1} parent=0 // pred_fallthru
    _
  // Predicated region
  $region10: #{lstm_classifier_forward.1} parent=0 // pred_check
    _
  $region11: #{lstm_classifier_forward.1} parent=0 // pred_check_branch
    %19 = sbr.rel (0) target = $region13
  $region12: #{lstm_classifier_forward.1} parent=0 // pred_region
    _
  $region13: #{lstm_classifier_forward.1} parent=0 // pred_fallthru
    _
  // Predicated region
  $region14: #{lstm_classifier_forward.1} parent=0 // pred_check
    _
  $region15: #{lstm_classifier_forward.1} parent=0 // pred_check_branch
    %21 = sbr.rel (0) target = $region17
  $region16: #{lstm_classifier_forward.1} parent=0 // pred_region
    _
  $region17: #{lstm_classifier_forward.1} parent=0 // pred_fallthru
    _
  // Predicated region
  $region18: #{lstm_classifier_forward.1} parent=0 // pred_check
    _
  $region19: #{lstm_classifier_forward.1} parent=0 // pred_check_branch
    %23 = sbr.rel (0) target = $region21
  $region20: #{lstm_classifier_forward.1} parent=0 // pred_region
    _
  $region21: #{lstm_classifier_forward.1} parent=0 // pred_fallthru
    _
  // Predicated region
  $region22: #{lstm_classifier_forward.1} parent=0 // pred_check
    _
  $region23: #{lstm_classifier_forward.1} parent=0 // pred_check_branch
    %25 = sbr.rel (0) target = $region25
  $region24: #{lstm_classifier_forward.1} parent=0 // pred_region
    _
  $region25: #{lstm_classifier_forward.1} parent=0 // pred_fallthru
    _
  // Predicated region
  $region26: #{lstm_classifier_forward.1} parent=0 // pred_check
    _
  $region27: #{lstm_classifier_forward.1} parent=0 // pred_check_branch
    %27 = sbr.rel (0) target = $region29
  $region28: #{lstm_classifier_forward.1} parent=0 // pred_region
    _
  $region29: #{lstm_classifier_forward.1} parent=0 // pred_fallthru
    _
  // Predicated region
  $region30: #{lstm_classifier_forward.1} parent=0 // pred_check
    _
  $region31: #{lstm_classifier_forward.1} parent=0 // pred_check_branch
    %29 = sbr.rel (0) target = $region33
  $region32: #{lstm_classifier_forward.1} parent=0 // pred_region
    _
  $region33: #{lstm_classifier_forward.1} parent=0 // pred_fallthru
    _
  // Predicated region
  $region34: #{lstm_classifier_forward.1} parent=0 // pred_check
    _
  $region35: #{lstm_classifier_forward.1} parent=0 // pred_check_branch
    %32 = sbr.rel (0) target = $region37
  $region36: #{lstm_classifier_forward.1} parent=0 // pred_region
    loop: start=0, step=1, limit=1
    $region38: #{lstm_classifier_forward.1} parent=36 // loop_pre_header
      _
    $region39: #{lstm_classifier_forward.1} parent=36 // loop_header
      %s34 = sphi 0, %s38
      %p35 = scmp.ge.s32.totalorder %s34, 1
      %s39 = sphi %s7, %s7
      %s40 = sphi [#allocation4], [#allocation4]
    $region40: #{lstm_classifier_forward.1} parent=36 // loop_header_branch
      %37 = sbr.rel (%p35) target = $region44
    $region41: #{lstm_classifier_forward.1} parent=36 // loop_body
      %v41 = vld [vmem:[%s39] sm:$0xff]
      %42 = vst [vmem:[%s40] sm:$0xff] %v41
      %v43 = vld [vmem:[%s39 + $0x8] sm:$0xff]
      %44 = vst [vmem:[%s40 + $0x8] sm:$0xff] %v43
      %v45 = vld [vmem:[%s39 + $0x10] sm:$0xff]
      %46 = vst [vmem:[%s40 + $0x10] sm:$0xff] %v45
      %v47 = vld [vmem:[%s39 + $0x18] sm:$0xff]
      %48 = vst [vmem:[%s40 + $0x18] sm:$0xff] %v47
      %v49 = vld [vmem:[%s39 + $0x20] sm:$0xff]
      %50 = vst [vmem:[%s40 + $0x20] sm:$0xff] %v49
      %v51 = vld [vmem:[%s39 + $0x28] sm:$0xff]
      %52 = vst [vmem:[%s40 + $0x28] sm:$0xff] %v51
      %v53 = vld [vmem:[%s39 + $0x30] sm:$0xff]
      %54 = vst [vmem:[%s40 + $0x30] sm:$0xff] %v53
      %v55 = vld [vmem:[%s39 + $0x38] sm:$0xff]
      %56 = vst [vmem:[%s40 + $0x38] sm:$0xff] %v55
      %v57 = vld [vmem:[%s39 + $0x40] sm:$0xff]
      %58 = vst [vmem:[%s40 + $0x40] sm:$0xff] %v57
      %v59 = vld [vmem:[%s39 + $0x48] sm:$0xff]
      %60 = vst [vmem:[%s40 + $0x48] sm:$0xff] %v59
      %v61 = vld [vmem:[%s39 + $0x50] sm:$0xff]
      %62 = vst [vmem:[%s40 + $0x50] sm:$0xff] %v61
      %v63 = vld [vmem:[%s39 + $0x58] sm:$0xff]
      %64 = vst [vmem:[%s40 + $0x58] sm:$0xff] %v63
      %v65 = vld [vmem:[%s39 + $0x60] sm:$0xff]
      %66 = vst [vmem:[%s40 + $0x60] sm:$0xff] %v65
      %v67 = vld [vmem:[%s39 + $0x68] sm:$0xff]
      %68 = vst [vmem:[%s40 + $0x68] sm:$0xff] %v67
      %v69 = vld [vmem:[%s39 + $0x70] sm:$0xff]
      %70 = vst [vmem:[%s40 + $0x70] sm:$0xff] %v69
      %v71 = vld [vmem:[%s39 + $0x78] sm:$0xff]
      %72 = vst [vmem:[%s40 + $0x78] sm:$0xff] %v71
      %v73 = vld [vmem:[%s39 + $0x80] sm:$0xff]
      %74 = vst [vmem:[%s40 + $0x80] sm:$0xff] %v73
      %v75 = vld [vmem:[%s39 + $0x88] sm:$0xff]
      %76 = vst [vmem:[%s40 + $0x88] sm:$0xff] %v75
      %v77 = vld [vmem:[%s39 + $0x90] sm:$0xff]
      %78 = vst [vmem:[%s40 + $0x90] sm:$0xff] %v77
      %v79 = vld [vmem:[%s39 + $0x98] sm:$0xff]
      %80 = vst [vmem:[%s40 + $0x98] sm:$0xff] %v79
      %v81 = vld [vmem:[%s39 + $0xa0] sm:$0xff]
      %82 = vst [vmem:[%s40 + $0xa0] sm:$0xff] %v81
      %v83 = vld [vmem:[%s39 + $0xa8] sm:$0xff]
      %84 = vst [vmem:[%s40 + $0xa8] sm:$0xff] %v83
      %v85 = vld [vmem:[%s39 + $0xb0] sm:$0xff]
      %86 = vst [vmem:[%s40 + $0xb0] sm:$0xff] %v85
      %v87 = vld [vmem:[%s39 + $0xb8] sm:$0xff]
      %88 = vst [vmem:[%s40 + $0xb8] sm:$0xff] %v87
      %v89 = vld [vmem:[%s39 + $0xc0] sm:$0xff]
      %90 = vst [vmem:[%s40 + $0xc0] sm:$0xff] %v89
      %v91 = vld [vmem:[%s39 + $0xc8] sm:$0xff]
      %92 = vst [vmem:[%s40 + $0xc8] sm:$0xff] %v91
      %v93 = vld [vmem:[%s39 + $0xd0] sm:$0xff]
      %94 = vst [vmem:[%s40 + $0xd0] sm:$0xff] %v93
      %v95 = vld [vmem:[%s39 + $0xd8] sm:$0xff]
      %96 = vst [vmem:[%s40 + $0xd8] sm:$0xff] %v95
      %v97 = vld [vmem:[%s39 + $0xe0] sm:$0xff]
      %98 = vst [vmem:[%s40 + $0xe0] sm:$0xff] %v97
      %v99 = vld [vmem:[%s39 + $0xe8] sm:$0xff]
      %100 = vst [vmem:[%s40 + $0xe8] sm:$0xff] %v99
      %v101 = vld [vmem:[%s39 + $0xf0] sm:$0xff]
      %102 = vst [vmem:[%s40 + $0xf0] sm:$0xff] %v101
      %v103 = vld [vmem:[%s39 + $0xf8] sm:$0xff]
      %104 = vst [vmem:[%s40 + $0xf8] sm:$0xff] %v103
      %v105 = vld [vmem:[%s39 + $0x100] sm:$0xff]
      %106 = vst [vmem:[%s40 + $0x100] sm:$0xff] %v105
      %v107 = vld [vmem:[%s39 + $0x108] sm:$0xff]
      %108 = vst [vmem:[%s40 + $0x108] sm:$0xff] %v107
      %v109 = vld [vmem:[%s39 + $0x110] sm:$0xff]
      %110 = vst [vmem:[%s40 + $0x110] sm:$0xff] %v109
      %v111 = vld [vmem:[%s39 + $0x118] sm:$0xff]
      %112 = vst [vmem:[%s40 + $0x118] sm:$0xff] %v111
      %v113 = vld [vmem:[%s39 + $0x120] sm:$0xff]
      %114 = vst [vmem:[%s40 + $0x120] sm:$0xff] %v113
      %v115 = vld [vmem:[%s39 + $0x128] sm:$0xff]
      %116 = vst [vmem:[%s40 + $0x128] sm:$0xff] %v115
      %v117 = vld [vmem:[%s39 + $0x130] sm:$0xff]
      %118 = vst [vmem:[%s40 + $0x130] sm:$0xff] %v117
      %v119 = vld [vmem:[%s39 + $0x138] sm:$0xff]
      %120 = vst [vmem:[%s40 + $0x138] sm:$0xff] %v119
      %v121 = vld [vmem:[%s39 + $0x140] sm:$0xff]
      %122 = vst [vmem:[%s40 + $0x140] sm:$0xff] %v121
      %v123 = vld [vmem:[%s39 + $0x148] sm:$0xff]
      %124 = vst [vmem:[%s40 + $0x148] sm:$0xff] %v123
      %v125 = vld [vmem:[%s39 + $0x150] sm:$0xff]
      %126 = vst [vmem:[%s40 + $0x150] sm:$0xff] %v125
      %v127 = vld [vmem:[%s39 + $0x158] sm:$0xff]
      %128 = vst [vmem:[%s40 + $0x158] sm:$0xff] %v127
      %v129 = vld [vmem:[%s39 + $0x160] sm:$0xff]
      %130 = vst [vmem:[%s40 + $0x160] sm:$0xff] %v129
      %v131 = vld [vmem:[%s39 + $0x168] sm:$0xff]
      %132 = vst [vmem:[%s40 + $0x168] sm:$0xff] %v131
      %v133 = vld [vmem:[%s39 + $0x170] sm:$0xff]
      %134 = vst [vmem:[%s40 + $0x170] sm:$0xff] %v133
      %v135 = vld [vmem:[%s39 + $0x178] sm:$0xff]
      %136 = vst [vmem:[%s40 + $0x178] sm:$0xff] %v135
      %v137 = vld [vmem:[%s39 + $0x180] sm:$0xff]
      %138 = vst [vmem:[%s40 + $0x180] sm:$0xff] %v137
      %v139 = vld [vmem:[%s39 + $0x188] sm:$0xff]
      %140 = vst [vmem:[%s40 + $0x188] sm:$0xff] %v139
      %v141 = vld [vmem:[%s39 + $0x190] sm:$0xff]
      %142 = vst [vmem:[%s40 + $0x190] sm:$0xff] %v141
      %v143 = vld [vmem:[%s39 + $0x198] sm:$0xff]
      %144 = vst [vmem:[%s40 + $0x198] sm:$0xff] %v143
      %v145 = vld [vmem:[%s39 + $0x1a0] sm:$0xff]
      %146 = vst [vmem:[%s40 + $0x1a0] sm:$0xff] %v145
      %v147 = vld [vmem:[%s39 + $0x1a8] sm:$0xff]
      %148 = vst [vmem:[%s40 + $0x1a8] sm:$0xff] %v147
      %v149 = vld [vmem:[%s39 + $0x1b0] sm:$0xff]
      %150 = vst [vmem:[%s40 + $0x1b0] sm:$0xff] %v149
      %v151 = vld [vmem:[%s39 + $0x1b8] sm:$0xff]
      %152 = vst [vmem:[%s40 + $0x1b8] sm:$0xff] %v151
      %v153 = vld [vmem:[%s39 + $0x1c0] sm:$0xff]
      %154 = vst [vmem:[%s40 + $0x1c0] sm:$0xff] %v153
      %v155 = vld [vmem:[%s39 + $0x1c8] sm:$0xff]
      %156 = vst [vmem:[%s40 + $0x1c8] sm:$0xff] %v155
      %v157 = vld [vmem:[%s39 + $0x1d0] sm:$0xff]
      %158 = vst [vmem:[%s40 + $0x1d0] sm:$0xff] %v157
      %v159 = vld [vmem:[%s39 + $0x1d8] sm:$0xff]
      %160 = vst [vmem:[%s40 + $0x1d8] sm:$0xff] %v159
      %v161 = vld [vmem:[%s39 + $0x1e0] sm:$0xff]
      %162 = vst [vmem:[%s40 + $0x1e0] sm:$0xff] %v161
      %v163 = vld [vmem:[%s39 + $0x1e8] sm:$0xff]
      %164 = vst [vmem:[%s40 + $0x1e8] sm:$0xff] %v163
      %v165 = vld [vmem:[%s39 + $0x1f0] sm:$0xff]
      %166 = vst [vmem:[%s40 + $0x1f0] sm:$0xff] %v165
      %v167 = vld [vmem:[%s39 + $0x1f8] sm:$0xff]
      %168 = vst [vmem:[%s40 + $0x1f8] sm:$0xff] %v167
    $region42: #{lstm_classifier_forward.1} parent=36 // loop_footer
      %s38 = sadd.s32 1, %s34
    $region43: #{lstm_classifier_forward.1} parent=36 // loop_footer_branch
      %33 = sbr.rel target = $region39
    $region44: #{lstm_classifier_forward.1} parent=36 // loop_exit
      _
  $region37: #{lstm_classifier_forward.1} parent=0 // pred_fallthru
    _
  // Predicated region
  $region45: #{lstm_classifier_forward.1} parent=0 // pred_check
    _
  $region46: #{lstm_classifier_forward.1} parent=0 // pred_check_branch
    %170 = sbr.rel target = $region48
  $region47: #{lstm_classifier_forward.1} parent=0 // pred_region
    _
  $region48: #{lstm_classifier_forward.1} parent=0 // pred_fallthru
    _
  // Predicated region
  $region49: #{lstm_classifier_forward.1} parent=0 // pred_check
    _
  $region50: #{lstm_classifier_forward.1} parent=0 // pred_check_branch
    %173 = sbr.rel (0) target = $region52
  $region51: #{lstm_classifier_forward.1} parent=0 // pred_region
    %174 = vsyncadd [#allocation5], 8192
  $region52: #{lstm_classifier_forward.1} parent=0 // pred_fallthru
    _
  %v175 = vld [vmem:[%s0] sm:$0xf]
  %v176 = vld [vmem:[%s0 + $0x4] sm:$0xf]
  %v177 = vld [vmem:[%s0 + $0x8] sm:$0xf]
  %v178 = vld [vmem:[%s0 + $0xc] sm:$0xf]
  %v179 = vld [vmem:[%s0 + $0x10] sm:$0xf]
  %v180 = vld [vmem:[%s0 + $0x14] sm:$0xf]
  %v181 = vld [vmem:[%s0 + $0x18] sm:$0xf]
  %v182 = vld [vmem:[%s0 + $0x1c] sm:$0xf]
  %v183 = vld [vmem:[%s1] sm:$0xff]
  %v184 = vld [vmem:[%s1 + $0x8] sm:$0xff]
  %v185 = vld [vmem:[%s1 + $0x10] sm:$0xff]
  %v186 = vld [vmem:[%s1 + $0x18] sm:$0xff]
  %v187 = vld [vmem:[%s3] sm:$0xf]
  %v189 = vperm.slane %v187, 0
  %v190 = vperm.slane %v187, 1
  %v191 = vperm.slane %v187, 2
  %v192 = vperm.slane %v187, 3
  %v205 = vunpack.c.l.b16 %v175
  %v206 = vunpack.c.l.b16 %v176
  %v207 = vunpack.c.l.b16 %v177
  %v208 = vunpack.c.l.b16 %v178
  %v209 = vunpack.c.l.b16 %v179
  %v210 = vunpack.c.l.b16 %v180
  %v211 = vunpack.c.l.b16 %v181
  %v212 = vunpack.c.l.b16 %v182
  %v213 = vpack.c.b16 %v206, %v205
  %v214 = vpack.c.b16 %v208, %v207
  %v215 = vpack.c.b16 %v210, %v209
  %v216 = vpack.c.b16 %v212, %v211
  %v221 = vunpack.c.l.b16 %v183
  %v222 = vunpack.c.h.b16 %v183
  %v223 = vunpack.c.l.b16 %v184
  %v224 = vunpack.c.h.b16 %v184
  %v225 = vunpack.c.l.b16 %v185
  %v226 = vunpack.c.h.b16 %v185
  %v227 = vunpack.c.l.b16 %v186
  %v228 = vunpack.c.h.b16 %v186
  %v229 = vpack.c.b16 %v225, %v221
  %v230 = vpack.c.b16 %v226, %v222
  %v231 = vpack.c.b16 %v227, %v223
  %v232 = vpack.c.b16 %v228, %v224
  %vm237 = vcmask 130048
  %v239 = vsel %vm237, %v213, 0
  %v242 = vsel %vm237, %v214, 0
  %v245 = vsel %vm237, %v215, 0
  %v248 = vsel %vm237, %v216, 0
  %250 = vmatpush.bf16.msra.mxu0 0
  %251 = vmatpush.bf16.msra.mxu0 0
  %252 = vmatpush.bf16.msra.mxu0 0
  %253 = vmatpush.bf16.msra.mxu0 0
  %254 = vmatpush.bf16.msra.mxu0 0
  %255 = vmatpush.bf16.msra.mxu0 0
  %256 = vmatpush.bf16.msra.mxu0 0
  %257 = vmatpush.bf16.msra.mxu0 %v229
  %258 = vmatmul.bf16.gmra.mxu0 %v239
  %v259 = vpop.f32.mrf.mxu0
  %v260 = vadd.f32 %v189, %v259
  %v261 = vpop.f32.mrf.mxu0
  %v262 = vadd.f32 %v189, %v261
  %263 = vmatmul.bf16.gmra.mxu0 %v242
  %v264 = vpop.f32.mrf.mxu0
  %v265 = vadd.f32 %v189, %v264
  %v266 = vpop.f32.mrf.mxu0
  %v267 = vadd.f32 %v189, %v266
  %268 = vmatmul.bf16.gmra.mxu0 %v245
  %v269 = vpop.f32.mrf.mxu0
  %v270 = vadd.f32 %v189, %v269
  %v271 = vpop.f32.mrf.mxu0
  %v272 = vadd.f32 %v189, %v271
  %273 = vmatmul.bf16.gmra.mxu0 %v248
  %v274 = vpop.f32.mrf.mxu0
  %v275 = vadd.f32 %v189, %v274
  %v276 = vpop.f32.mrf.mxu0
  %v277 = vadd.f32 %v189, %v276
  %278 = vdwg.mxu0
  %279 = vmatpush.bf16.msra.mxu0 0
  %280 = vmatpush.bf16.msra.mxu0 0
  %281 = vmatpush.bf16.msra.mxu0 0
  %282 = vmatpush.bf16.msra.mxu0 0
  %283 = vmatpush.bf16.msra.mxu0 0
  %284 = vmatpush.bf16.msra.mxu0 0
  %285 = vmatpush.bf16.msra.mxu0 0
  %286 = vmatpush.bf16.msra.mxu0 %v230
  %287 = vmatmul.bf16.gmra.mxu0 %v239
  %v288 = vpop.f32.mrf.mxu0
  %v289 = vadd.f32 %v190, %v288
  %v290 = vpop.f32.mrf.mxu0
  %v291 = vadd.f32 %v190, %v290
  %292 = vmatmul.bf16.gmra.mxu0 %v242
  %v293 = vpop.f32.mrf.mxu0
  %v294 = vadd.f32 %v190, %v293
  %v295 = vpop.f32.mrf.mxu0
  %v296 = vadd.f32 %v190, %v295
  %297 = vmatmul.bf16.gmra.mxu0 %v245
  %v298 = vpop.f32.mrf.mxu0
  %v299 = vadd.f32 %v190, %v298
  %v300 = vpop.f32.mrf.mxu0
  %v301 = vadd.f32 %v190, %v300
  %302 = vmatmul.bf16.gmra.mxu0 %v248
  %v303 = vpop.f32.mrf.mxu0
  %v304 = vadd.f32 %v190, %v303
  %v305 = vpop.f32.mrf.mxu0
  %v306 = vadd.f32 %v190, %v305
  %307 = vdwg.mxu0
  %308 = vmatpush.bf16.msra.mxu0 0
  %309 = vmatpush.bf16.msra.mxu0 0
  %310 = vmatpush.bf16.msra.mxu0 0
  %311 = vmatpush.bf16.msra.mxu0 0
  %312 = vmatpush.bf16.msra.mxu0 0
  %313 = vmatpush.bf16.msra.mxu0 0
  %314 = vmatpush.bf16.msra.mxu0 0
  %315 = vmatpush.bf16.msra.mxu0 %v231
  %316 = vmatmul.bf16.gmra.mxu0 %v239
  %v317 = vpop.f32.mrf.mxu0
  %v318 = vadd.f32 %v191, %v317
  %v319 = vpop.f32.mrf.mxu0
  %v320 = vadd.f32 %v191, %v319
  %321 = vmatmul.bf16.gmra.mxu0 %v242
  %v322 = vpop.f32.mrf.mxu0
  %v323 = vadd.f32 %v191, %v322
  %v324 = vpop.f32.mrf.mxu0
  %v325 = vadd.f32 %v191, %v324
  %326 = vmatmul.bf16.gmra.mxu0 %v245
  %v327 = vpop.f32.mrf.mxu0
  %v328 = vadd.f32 %v191, %v327
  %v329 = vpop.f32.mrf.mxu0
  %v330 = vadd.f32 %v191, %v329
  %331 = vmatmul.bf16.gmra.mxu0 %v248
  %v332 = vpop.f32.mrf.mxu0
  %v333 = vadd.f32 %v191, %v332
  %v334 = vpop.f32.mrf.mxu0
  %v335 = vadd.f32 %v191, %v334
  %336 = vdwg.mxu0
  %337 = vmatpush.bf16.msra.mxu0 0
  %338 = vmatpush.bf16.msra.mxu0 0
  %339 = vmatpush.bf16.msra.mxu0 0
  %340 = vmatpush.bf16.msra.mxu0 0
  %341 = vmatpush.bf16.msra.mxu0 0
  %342 = vmatpush.bf16.msra.mxu0 0
  %343 = vmatpush.bf16.msra.mxu0 0
  %344 = vmatpush.bf16.msra.mxu0 %v232
  %345 = vmatmul.bf16.gmra.mxu0 %v239
  %v346 = vpop.f32.mrf.mxu0
  %v347 = vadd.f32 %v192, %v346
  %v348 = vpop.f32.mrf.mxu0
  %v349 = vadd.f32 %v192, %v348
  %350 = vmatmul.bf16.gmra.mxu0 %v242
  %v351 = vpop.f32.mrf.mxu0
  %v352 = vadd.f32 %v192, %v351
  %v353 = vpop.f32.mrf.mxu0
  %v354 = vadd.f32 %v192, %v353
  %355 = vmatmul.bf16.gmra.mxu0 %v245
  %v356 = vpop.f32.mrf.mxu0
  %v357 = vadd.f32 %v192, %v356
  %v358 = vpop.f32.mrf.mxu0
  %v359 = vadd.f32 %v192, %v358
  %360 = vmatmul.bf16.gmra.mxu0 %v248
  %v361 = vpop.f32.mrf.mxu0
  %v362 = vadd.f32 %v192, %v361
  %v363 = vpop.f32.mrf.mxu0
  %v364 = vadd.f32 %v192, %v363
  %365 = vdwg.mxu0
  %366 = vst [vmem:[#allocation2] sm:$0xff] %v260
  %367 = vst [vmem:[#allocation2 + $0x8] sm:$0xff] %v289
  %368 = vst [vmem:[#allocation2 + $0x10] sm:$0xff] %v318
  %369 = vst [vmem:[#allocation2 + $0x18] sm:$0xff] %v347
  %370 = vst [vmem:[#allocation2 + $0x20] sm:$0xff] %v262
  %371 = vst [vmem:[#allocation2 + $0x28] sm:$0xff] %v291
  %372 = vst [vmem:[#allocation2 + $0x30] sm:$0xff] %v320
  %373 = vst [vmem:[#allocation2 + $0x38] sm:$0xff] %v349
  %374 = vst [vmem:[#allocation2 + $0x40] sm:$0xff] %v265
  %375 = vst [vmem:[#allocation2 + $0x48] sm:$0xff] %v294
  %376 = vst [vmem:[#allocation2 + $0x50] sm:$0xff] %v323
  %377 = vst [vmem:[#allocation2 + $0x58] sm:$0xff] %v352
  %378 = vst [vmem:[#allocation2 + $0x60] sm:$0xff] %v267
  %379 = vst [vmem:[#allocation2 + $0x68] sm:$0xff] %v296
  %380 = vst [vmem:[#allocation2 + $0x70] sm:$0xff] %v325
  %381 = vst [vmem:[#allocation2 + $0x78] sm:$0xff] %v354
  %382 = vst [vmem:[#allocation2 + $0x80] sm:$0xff] %v270
  %383 = vst [vmem:[#allocation2 + $0x88] sm:$0xff] %v299
  %384 = vst [vmem:[#allocation2 + $0x90] sm:$0xff] %v328
  %385 = vst [vmem:[#allocation2 + $0x98] sm:$0xff] %v357
  %386 = vst [vmem:[#allocation2 + $0xa0] sm:$0xff] %v272
  %387 = vst [vmem:[#allocation2 + $0xa8] sm:$0xff] %v301
  %388 = vst [vmem:[#allocation2 + $0xb0] sm:$0xff] %v330
  %389 = vst [vmem:[#allocation2 + $0xb8] sm:$0xff] %v359
  %390 = vst [vmem:[#allocation2 + $0xc0] sm:$0xff] %v275
  %391 = vst [vmem:[#allocation2 + $0xc8] sm:$0xff] %v304
  %392 = vst [vmem:[#allocation2 + $0xd0] sm:$0xff] %v333
  %393 = vst [vmem:[#allocation2 + $0xd8] sm:$0xff] %v362
  %394 = vst [vmem:[#allocation2 + $0xe0] sm:$0xff] %v277
  %395 = vst [vmem:[#allocation2 + $0xe8] sm:$0xff] %v306
  %396 = vst [vmem:[#allocation2 + $0xf0] sm:$0xff] %v335
  %397 = vst [vmem:[#allocation2 + $0xf8] sm:$0xff] %v364
  %s398 = smul.u32 0, 4
  %s399 = smul.addr %s398, 8
  %s400 = scalar_lea.vmem [#allocation2], %s399
  %v401 = vld [vmem:[%s400] sm:$0xff]
  %v402 = vld [vmem:[%s400 + $0x8] sm:$0xff]
  %v403 = vld [vmem:[%s400 + $0x10] sm:$0xff]
  %v404 = vld [vmem:[%s400 + $0x18] sm:$0xff]
  %v405 = vld [vmem:[%s2] sm:$0xff]
  %v406 = vld [vmem:[%s2 + $0x8] sm:$0xff]
  %v407 = vld [vmem:[%s2 + $0x10] sm:$0xff]
  %v408 = vld [vmem:[%s2 + $0x18] sm:$0xff]
  %v409 = vld [vmem:[%s2 + $0x20] sm:$0xff]
  %v410 = vld [vmem:[%s2 + $0x28] sm:$0xff]
  %v411 = vld [vmem:[%s2 + $0x30] sm:$0xff]
  %v412 = vld [vmem:[%s2 + $0x38] sm:$0xff]
  %v413 = vld [vmem:[%s2 + $0x40] sm:$0xff]
  %v414 = vld [vmem:[%s2 + $0x48] sm:$0xff]
  %v415 = vld [vmem:[%s2 + $0x50] sm:$0xff]
  %v416 = vld [vmem:[%s2 + $0x58] sm:$0xff]
  %v417 = vld [vmem:[%s2 + $0x60] sm:$0xff]
  %v418 = vld [vmem:[%s2 + $0x68] sm:$0xff]
  %v419 = vld [vmem:[%s2 + $0x70] sm:$0xff]
  %v420 = vld [vmem:[%s2 + $0x78] sm:$0xff]
  %v421 = vld [vmem:[%s2 + $0x80] sm:$0xff]
  %v422 = vld [vmem:[%s2 + $0x88] sm:$0xff]
  %v423 = vld [vmem:[%s2 + $0x90] sm:$0xff]
  %v424 = vld [vmem:[%s2 + $0x98] sm:$0xff]
  %v425 = vld [vmem:[%s2 + $0xa0] sm:$0xff]
  %v426 = vld [vmem:[%s2 + $0xa8] sm:$0xff]
  %v427 = vld [vmem:[%s2 + $0xb0] sm:$0xff]
  %v428 = vld [vmem:[%s2 + $0xb8] sm:$0xff]
  %v429 = vld [vmem:[%s2 + $0xc0] sm:$0xff]
  %v430 = vld [vmem:[%s2 + $0xc8] sm:$0xff]
  %v431 = vld [vmem:[%s2 + $0xd0] sm:$0xff]
  %v432 = vld [vmem:[%s2 + $0xd8] sm:$0xff]
  %v433 = vld [vmem:[%s2 + $0xe0] sm:$0xff]
  %v434 = vld [vmem:[%s2 + $0xe8] sm:$0xff]
  %v435 = vld [vmem:[%s2 + $0xf0] sm:$0xff]
  %v436 = vld [vmem:[%s2 + $0xf8] sm:$0xff]
  %v469 = vunpack.c.l.b16 %v405
  %v470 = vunpack.c.h.b16 %v405
  %v471 = vunpack.c.l.b16 %v406
  %v472 = vunpack.c.h.b16 %v406
  %v473 = vunpack.c.l.b16 %v407
  %v474 = vunpack.c.h.b16 %v407
  %v475 = vunpack.c.l.b16 %v408
  %v476 = vunpack.c.h.b16 %v408
  %v477 = vunpack.c.l.b16 %v409
  %v478 = vunpack.c.h.b16 %v409
  %v479 = vunpack.c.l.b16 %v410
  %v480 = vunpack.c.h.b16 %v410
  %v481 = vunpack.c.l.b16 %v411
  %v482 = vunpack.c.h.b16 %v411
  %v483 = vunpack.c.l.b16 %v412
  %v484 = vunpack.c.h.b16 %v412
  %v485 = vunpack.c.l.b16 %v413
  %v486 = vunpack.c.h.b16 %v413
  %v487 = vunpack.c.l.b16 %v414
  %v488 = vunpack.c.h.b16 %v414
  %v489 = vunpack.c.l.b16 %v415
  %v490 = vunpack.c.h.b16 %v415
  %v491 = vunpack.c.l.b16 %v416
  %v492 = vunpack.c.h.b16 %v416
  %v493 = vunpack.c.l.b16 %v417
  %v494 = vunpack.c.h.b16 %v417
  %v495 = vunpack.c.l.b16 %v418
  %v496 = vunpack.c.h.b16 %v418
  %v497 = vunpack.c.l.b16 %v419
  %v498 = vunpack.c.h.b16 %v419
  %v499 = vunpack.c.l.b16 %v420
  %v500 = vunpack.c.h.b16 %v420
  %v501 = vunpack.c.l.b16 %v421
  %v502 = vunpack.c.h.b16 %v421
  %v503 = vunpack.c.l.b16 %v422
  %v504 = vunpack.c.h.b16 %v422
  %v505 = vunpack.c.l.b16 %v423
  %v506 = vunpack.c.h.b16 %v423
  %v507 = vunpack.c.l.b16 %v424
  %v508 = vunpack.c.h.b16 %v424
  %v509 = vunpack.c.l.b16 %v425
  %v510 = vunpack.c.h.b16 %v425
  %v511 = vunpack.c.l.b16 %v426
  %v512 = vunpack.c.h.b16 %v426
  %v513 = vunpack.c.l.b16 %v427
  %v514 = vunpack.c.h.b16 %v427
  %v515 = vunpack.c.l.b16 %v428
  %v516 = vunpack.c.h.b16 %v428
  %v517 = vunpack.c.l.b16 %v429
  %v518 = vunpack.c.h.b16 %v429
  %v519 = vunpack.c.l.b16 %v430
  %v520 = vunpack.c.h.b16 %v430
  %v521 = vunpack.c.l.b16 %v431
  %v522 = vunpack.c.h.b16 %v431
  %v523 = vunpack.c.l.b16 %v432
  %v524 = vunpack.c.h.b16 %v432
  %v525 = vunpack.c.l.b16 %v433
  %v526 = vunpack.c.h.b16 %v433
  %v527 = vunpack.c.l.b16 %v434
  %v528 = vunpack.c.h.b16 %v434
  %v529 = vunpack.c.l.b16 %v435
  %v530 = vunpack.c.h.b16 %v435
  %v531 = vunpack.c.l.b16 %v436
  %v532 = vunpack.c.h.b16 %v436
  %v533 = vpack.c.b16 %v473, %v469
  %v534 = vpack.c.b16 %v474, %v470
  %v535 = vpack.c.b16 %v475, %v471
  %v536 = vpack.c.b16 %v476, %v472
  %v537 = vpack.c.b16 %v481, %v477
  %v538 = vpack.c.b16 %v482, %v478
  %v539 = vpack.c.b16 %v483, %v479
  %v540 = vpack.c.b16 %v484, %v480
  %v541 = vpack.c.b16 %v489, %v485
  %v542 = vpack.c.b16 %v490, %v486
  %v543 = vpack.c.b16 %v491, %v487
  %v544 = vpack.c.b16 %v492, %v488
  %v545 = vpack.c.b16 %v497, %v493
  %v546 = vpack.c.b16 %v498, %v494
  %v547 = vpack.c.b16 %v499, %v495
  %v548 = vpack.c.b16 %v500, %v496
  %v549 = vpack.c.b16 %v505, %v501
  %v550 = vpack.c.b16 %v506, %v502
  %v551 = vpack.c.b16 %v507, %v503
  %v552 = vpack.c.b16 %v508, %v504
  %v553 = vpack.c.b16 %v513, %v509
  %v554 = vpack.c.b16 %v514, %v510
  %v555 = vpack.c.b16 %v515, %v511
  %v556 = vpack.c.b16 %v516, %v512
  %v557 = vpack.c.b16 %v521, %v517
  %v558 = vpack.c.b16 %v522, %v518
  %v559 = vpack.c.b16 %v523, %v519
  %v560 = vpack.c.b16 %v524, %v520
  %v561 = vpack.c.b16 %v529, %v525
  %v562 = vpack.c.b16 %v530, %v526
  %v563 = vpack.c.b16 %v531, %v527
  %v564 = vpack.c.b16 %v532, %v528
  %597 = vmatpush.bf16.msra.mxu0 %v561
  %598 = vmatpush.bf16.msra.mxu0 %v557
  %599 = vmatpush.bf16.msra.mxu0 %v553
  %600 = vmatpush.bf16.msra.mxu0 %v549
  %601 = vmatpush.bf16.msra.mxu0 %v545
  %602 = vmatpush.bf16.msra.mxu0 %v541
  %603 = vmatpush.bf16.msra.mxu0 %v537
  %604 = vmatpush.bf16.msra.mxu0 %v533
  %605 = vmatmul.bf16.gmra.mxu0 0
  %v606 = vpop.f32.mrf.mxu0
  %v607 = vadd.f32 0.0, %v606
  %v608 = vpop.f32.mrf.mxu0
  %609 = vdwg.mxu0
  %610 = vmatpush.bf16.msra.mxu0 %v562
  %611 = vmatpush.bf16.msra.mxu0 %v558
  %612 = vmatpush.bf16.msra.mxu0 %v554
  %613 = vmatpush.bf16.msra.mxu0 %v550
  %614 = vmatpush.bf16.msra.mxu0 %v546
  %615 = vmatpush.bf16.msra.mxu0 %v542
  %616 = vmatpush.bf16.msra.mxu0 %v538
  %617 = vmatpush.bf16.msra.mxu0 %v534
  %618 = vmatmul.bf16.gmra.mxu0 0
  %v619 = vpop.f32.mrf.mxu0
  %v620 = vadd.f32 0.0, %v619
  %v621 = vpop.f32.mrf.mxu0
  %622 = vdwg.mxu0
  %623 = vmatpush.bf16.msra.mxu0 %v563
  %624 = vmatpush.bf16.msra.mxu0 %v559
  %625 = vmatpush.bf16.msra.mxu0 %v555
  %626 = vmatpush.bf16.msra.mxu0 %v551
  %627 = vmatpush.bf16.msra.mxu0 %v547
  %628 = vmatpush.bf16.msra.mxu0 %v543
  %629 = vmatpush.bf16.msra.mxu0 %v539
  %630 = vmatpush.bf16.msra.mxu0 %v535
  %631 = vmatmul.bf16.gmra.mxu0 0
  %v632 = vpop.f32.mrf.mxu0
  %v633 = vadd.f32 0.0, %v632
  %v634 = vpop.f32.mrf.mxu0
  %635 = vdwg.mxu0
  %636 = vmatpush.bf16.msra.mxu0 %v564
  %637 = vmatpush.bf16.msra.mxu0 %v560
  %638 = vmatpush.bf16.msra.mxu0 %v556
  %639 = vmatpush.bf16.msra.mxu0 %v552
  %640 = vmatpush.bf16.msra.mxu0 %v548
  %641 = vmatpush.bf16.msra.mxu0 %v544
  %642 = vmatpush.bf16.msra.mxu0 %v540
  %643 = vmatpush.bf16.msra.mxu0 %v536
  %644 = vmatmul.bf16.gmra.mxu0 0
  %v645 = vpop.f32.mrf.mxu0
  %v646 = vadd.f32 0.0, %v645
  %v647 = vpop.f32.mrf.mxu0
  %648 = vdwg.mxu0
  %v649 = vadd.f32 %v401, %v607
  %v650 = vadd.f32 %v402, %v620
  %v651 = vadd.f32 %v403, %v633
  %v652 = vadd.f32 %v404, %v646
  %v653 = vxor.u32 %v649, 2147483648
  %v654 = vmul.f32 %v653, 1.442695
  %v655 = vpow.pop %v654
  %v656 = vadd.f32 %v655, 1.0
  %v657 = vrcp.pop %v656
  %v658 = vmul.f32 %v656, %v657
  %v659 = vsub.f32 1.0, %v658
  %v660 = vmul.f32 %v657, %v659
  %v661 = vadd.f32 %v657, %v660
  %vm662 = vweird.f32 %v656
  %vm663 = vweird.f32 %v657
  %vm664 = vmor %vm662, %vm663
  %v665 = vsel %vm664, %v657, %v661
  %v666 = vand.u32 2147483647, %v656
  %vm667 = vcmp.eq.f32.partialorder %v666, 8.507059e+37
  %v668 = vand.u32 %v656, 2147483648
  %v669 = vor.u32 1.1754944e-38, %v668
  %v670 = vsel %vm667, %v669, %v665
  %v671 = vmul.f32 1.0, %v670
  %v672 = vxor.u32 %v650, 2147483648
  %v673 = vmul.f32 %v672, 1.442695
  %v674 = vpow.pop %v673
  %v675 = vadd.f32 %v674, 1.0
  %v676 = vrcp.pop %v675
  %v677 = vmul.f32 %v675, %v676
  %v678 = vsub.f32 1.0, %v677
  %v679 = vmul.f32 %v676, %v678
  %v680 = vadd.f32 %v676, %v679
  %vm681 = vweird.f32 %v675
  %vm682 = vweird.f32 %v676
  %vm683 = vmor %vm681, %vm682
  %v684 = vsel %vm683, %v676, %v680
  %v685 = vand.u32 2147483647, %v675
  %vm686 = vcmp.eq.f32.partialorder %v685, 8.507059e+37
  %v687 = vand.u32 %v675, 2147483648
  %v688 = vor.u32 1.1754944e-38, %v687
  %v689 = vsel %vm686, %v688, %v684
  %v690 = vmul.f32 1.0, %v689
  %v691 = vtanh.pop %v651
  %v692 = vxor.u32 %v652, 2147483648
  %v693 = vmul.f32 %v692, 1.442695
  %v694 = vpow.pop %v693
  %v695 = vadd.f32 %v694, 1.0
  %v696 = vrcp.pop %v695
  %v697 = vmul.f32 %v695, %v696
  %v698 = vsub.f32 1.0, %v697
  %v699 = vmul.f32 %v696, %v698
  %v700 = vadd.f32 %v696, %v699
  %vm701 = vweird.f32 %v695
  %vm702 = vweird.f32 %v696
  %vm703 = vmor %vm701, %vm702
  %v704 = vsel %vm703, %v696, %v700
  %v705 = vand.u32 2147483647, %v695
  %vm706 = vcmp.eq.f32.partialorder %v705, 8.507059e+37
  %v707 = vand.u32 %v695, 2147483648
  %v708 = vor.u32 1.1754944e-38, %v707
  %v709 = vsel %vm706, %v708, %v704
  %v710 = vmul.f32 1.0, %v709
  %v711 = vmul.f32 %v690, 0.0
  %v712 = vmul.f32 %v671, %v691
  %v713 = vadd.f32 %v711, %v712
  %v714 = vtanh.pop %v713
  %v715 = vmul.f32 %v710, %v714
  %v716 = vpack.c.bf16 %v715, %v715
  %v717 = vld [vmem:[%s4] sm:$0xff]
  %v718 = vld [vmem:[%s4 + $0x8] sm:$0xff]
  %v719 = vld [vmem:[%s4 + $0x10] sm:$0xff]
  %v720 = vld [vmem:[%s4 + $0x18] sm:$0xff]
  %v721 = vld [vmem:[%s4 + $0x20] sm:$0xff]
  %v722 = vld [vmem:[%s4 + $0x28] sm:$0xff]
  %v723 = vld [vmem:[%s4 + $0x30] sm:$0xff]
  %v724 = vld [vmem:[%s4 + $0x38] sm:$0xff]
  %v725 = vld [vmem:[%s4 + $0x40] sm:$0xff]
  %v726 = vld [vmem:[%s4 + $0x48] sm:$0xff]
  %v727 = vld [vmem:[%s4 + $0x50] sm:$0xff]
  %v728 = vld [vmem:[%s4 + $0x58] sm:$0xff]
  %v729 = vld [vmem:[%s4 + $0x60] sm:$0xff]
  %v730 = vld [vmem:[%s4 + $0x68] sm:$0xff]
  %v731 = vld [vmem:[%s4 + $0x70] sm:$0xff]
  %v732 = vld [vmem:[%s4 + $0x78] sm:$0xff]
  %v733 = vld [vmem:[%s4 + $0x80] sm:$0xff]
  %v734 = vld [vmem:[%s4 + $0x88] sm:$0xff]
  %v735 = vld [vmem:[%s4 + $0x90] sm:$0xff]
  %v736 = vld [vmem:[%s4 + $0x98] sm:$0xff]
  %v737 = vld [vmem:[%s4 + $0xa0] sm:$0xff]
  %v738 = vld [vmem:[%s4 + $0xa8] sm:$0xff]
  %v739 = vld [vmem:[%s4 + $0xb0] sm:$0xff]
  %v740 = vld [vmem:[%s4 + $0xb8] sm:$0xff]
  %v741 = vld [vmem:[%s4 + $0xc0] sm:$0xff]
  %v742 = vld [vmem:[%s4 + $0xc8] sm:$0xff]
  %v743 = vld [vmem:[%s4 + $0xd0] sm:$0xff]
  %v744 = vld [vmem:[%s4 + $0xd8] sm:$0xff]
  %v745 = vld [vmem:[%s4 + $0xe0] sm:$0xff]
  %v746 = vld [vmem:[%s4 + $0xe8] sm:$0xff]
  %v747 = vld [vmem:[%s4 + $0xf0] sm:$0xff]
  %v748 = vld [vmem:[%s4 + $0xf8] sm:$0xff]
  %v749 = vld [vmem:[%s6] sm:$0xf]
  %v751 = vperm.slane %v749, 0
  %v752 = vperm.slane %v749, 1
  %v753 = vperm.slane %v749, 2
  %v754 = vperm.slane %v749, 3
  %v791 = vunpack.c.l.b16 %v717
  %v792 = vunpack.c.h.b16 %v717
  %v793 = vunpack.c.l.b16 %v718
  %v794 = vunpack.c.h.b16 %v718
  %v795 = vunpack.c.l.b16 %v719
  %v796 = vunpack.c.h.b16 %v719
  %v797 = vunpack.c.l.b16 %v720
  %v798 = vunpack.c.h.b16 %v720
  %v799 = vunpack.c.l.b16 %v721
  %v800 = vunpack.c.h.b16 %v721
  %v801 = vunpack.c.l.b16 %v722
  %v802 = vunpack.c.h.b16 %v722
  %v803 = vunpack.c.l.b16 %v723
  %v804 = vunpack.c.h.b16 %v723
  %v805 = vunpack.c.l.b16 %v724
  %v806 = vunpack.c.h.b16 %v724
  %v807 = vunpack.c.l.b16 %v725
  %v808 = vunpack.c.h.b16 %v725
  %v809 = vunpack.c.l.b16 %v726
  %v810 = vunpack.c.h.b16 %v726
  %v811 = vunpack.c.l.b16 %v727
  %v812 = vunpack.c.h.b16 %v727
  %v813 = vunpack.c.l.b16 %v728
  %v814 = vunpack.c.h.b16 %v728
  %v815 = vunpack.c.l.b16 %v729
  %v816 = vunpack.c.h.b16 %v729
  %v817 = vunpack.c.l.b16 %v730
  %v818 = vunpack.c.h.b16 %v730
  %v819 = vunpack.c.l.b16 %v731
  %v820 = vunpack.c.h.b16 %v731
  %v821 = vunpack.c.l.b16 %v732
  %v822 = vunpack.c.h.b16 %v732
  %v823 = vunpack.c.l.b16 %v733
  %v824 = vunpack.c.h.b16 %v733
  %v825 = vunpack.c.l.b16 %v734
  %v826 = vunpack.c.h.b16 %v734
  %v827 = vunpack.c.l.b16 %v735
  %v828 = vunpack.c.h.b16 %v735
  %v829 = vunpack.c.l.b16 %v736
  %v830 = vunpack.c.h.b16 %v736
  %v831 = vunpack.c.l.b16 %v737
  %v832 = vunpack.c.h.b16 %v737
  %v833 = vunpack.c.l.b16 %v738
  %v834 = vunpack.c.h.b16 %v738
  %v835 = vunpack.c.l.b16 %v739
  %v836 = vunpack.c.h.b16 %v739
  %v837 = vunpack.c.l.b16 %v740
  %v838 = vunpack.c.h.b16 %v740
  %v839 = vunpack.c.l.b16 %v741
  %v840 = vunpack.c.h.b16 %v741
  %v841 = vunpack.c.l.b16 %v742
  %v842 = vunpack.c.h.b16 %v742
  %v843 = vunpack.c.l.b16 %v743
  %v844 = vunpack.c.h.b16 %v743
  %v845 = vunpack.c.l.b16 %v744
  %v846 = vunpack.c.h.b16 %v744
  %v847 = vunpack.c.l.b16 %v745
  %v848 = vunpack.c.h.b16 %v745
  %v849 = vunpack.c.l.b16 %v746
  %v850 = vunpack.c.h.b16 %v746
  %v851 = vunpack.c.l.b16 %v747
  %v852 = vunpack.c.h.b16 %v747
  %v853 = vunpack.c.l.b16 %v748
  %v854 = vunpack.c.h.b16 %v748
  %v855 = vpack.c.b16 %v795, %v791
  %v856 = vpack.c.b16 %v796, %v792
  %v857 = vpack.c.b16 %v797, %v793
  %v858 = vpack.c.b16 %v798, %v794
  %v859 = vpack.c.b16 %v803, %v799
  %v860 = vpack.c.b16 %v804, %v800
  %v861 = vpack.c.b16 %v805, %v801
  %v862 = vpack.c.b16 %v806, %v802
  %v863 = vpack.c.b16 %v811, %v807
  %v864 = vpack.c.b16 %v812, %v808
  %v865 = vpack.c.b16 %v813, %v809
  %v866 = vpack.c.b16 %v814, %v810
  %v867 = vpack.c.b16 %v819, %v815
  %v868 = vpack.c.b16 %v820, %v816
  %v869 = vpack.c.b16 %v821, %v817
  %v870 = vpack.c.b16 %v822, %v818
  %v871 = vpack.c.b16 %v827, %v823
  %v872 = vpack.c.b16 %v828, %v824
  %v873 = vpack.c.b16 %v829, %v825
  %v874 = vpack.c.b16 %v830, %v826
  %v875 = vpack.c.b16 %v835, %v831
  %v876 = vpack.c.b16 %v836, %v832
  %v877 = vpack.c.b16 %v837, %v833
  %v878 = vpack.c.b16 %v838, %v834
  %v879 = vpack.c.b16 %v843, %v839
  %v880 = vpack.c.b16 %v844, %v840
  %v881 = vpack.c.b16 %v845, %v841
  %v882 = vpack.c.b16 %v846, %v842
  %v883 = vpack.c.b16 %v851, %v847
  %v884 = vpack.c.b16 %v852, %v848
  %v885 = vpack.c.b16 %v853, %v849
  %v886 = vpack.c.b16 %v854, %v850
  %919 = vmatpush.bf16.msra.mxu0 %v883
  %920 = vmatpush.bf16.msra.mxu0 %v879
  %921 = vmatpush.bf16.msra.mxu0 %v875
  %922 = vmatpush.bf16.msra.mxu0 %v871
  %923 = vmatpush.bf16.msra.mxu0 %v867
  %924 = vmatpush.bf16.msra.mxu0 %v863
  %925 = vmatpush.bf16.msra.mxu0 %v859
  %926 = vmatpush.bf16.msra.mxu0 %v855
  %927 = vmatmul.bf16.gmra.mxu0 %v716
  %v928 = vpop.f32.mrf.mxu0
  %v929 = vadd.f32 %v751, %v928
  %v930 = vpop.f32.mrf.mxu0
  %931 = vdwg.mxu0
  %932 = vmatpush.bf16.msra.mxu0 %v884
  %933 = vmatpush.bf16.msra.mxu0 %v880
  %934 = vmatpush.bf16.msra.mxu0 %v876
  %935 = vmatpush.bf16.msra.mxu0 %v872
  %936 = vmatpush.bf16.msra.mxu0 %v868
  %937 = vmatpush.bf16.msra.mxu0 %v864
  %938 = vmatpush.bf16.msra.mxu0 %v860
  %939 = vmatpush.bf16.msra.mxu0 %v856
  %940 = vmatmul.bf16.gmra.mxu0 %v716
  %v941 = vpop.f32.mrf.mxu0
  %v942 = vadd.f32 %v752, %v941
  %v943 = vpop.f32.mrf.mxu0
  %944 = vdwg.mxu0
  %945 = vmatpush.bf16.msra.mxu0 %v885
  %946 = vmatpush.bf16.msra.mxu0 %v881
  %947 = vmatpush.bf16.msra.mxu0 %v877
  %948 = vmatpush.bf16.msra.mxu0 %v873
  %949 = vmatpush.bf16.msra.mxu0 %v869
  %950 = vmatpush.bf16.msra.mxu0 %v865
  %951 = vmatpush.bf16.msra.mxu0 %v861
  %952 = vmatpush.bf16.msra.mxu0 %v857
  %953 = vmatmul.bf16.gmra.mxu0 %v716
  %v954 = vpop.f32.mrf.mxu0
  %v955 = vadd.f32 %v753, %v954
  %v956 = vpop.f32.mrf.mxu0
  %957 = vdwg.mxu0
  %958 = vmatpush.bf16.msra.mxu0 %v886
  %959 = vmatpush.bf16.msra.mxu0 %v882
  %960 = vmatpush.bf16.msra.mxu0 %v878
  %961 = vmatpush.bf16.msra.mxu0 %v874
  %962 = vmatpush.bf16.msra.mxu0 %v870
  %963 = vmatpush.bf16.msra.mxu0 %v866
  %964 = vmatpush.bf16.msra.mxu0 %v862
  %965 = vmatpush.bf16.msra.mxu0 %v858
  %966 = vmatmul.bf16.gmra.mxu0 %v716
  %v967 = vpop.f32.mrf.mxu0
  %v968 = vadd.f32 %v754, %v967
  %v969 = vpop.f32.mrf.mxu0
  %970 = vdwg.mxu0
  %s971 = smul.addr %s398, 8
  %s972 = scalar_lea.vmem [#allocation3], %s971
  %973 = vst [vmem:[%s972] sm:$0xff] %v929
  %974 = vst [vmem:[%s972 + $0x8] sm:$0xff] %v942
  %975 = vst [vmem:[%s972 + $0x10] sm:$0xff] %v955
  %976 = vst [vmem:[%s972 + $0x18] sm:$0xff] %v968
  %s977 = smul.u32 1, 4
  %s978 = smul.addr %s977, 8
  %s979 = scalar_lea.vmem [#allocation2], %s978
  %v980 = vld [vmem:[%s979] sm:$0xff]
  %v981 = vld [vmem:[%s979 + $0x8] sm:$0xff]
  %v982 = vld [vmem:[%s979 + $0x10] sm:$0xff]
  %v983 = vld [vmem:[%s979 + $0x18] sm:$0xff]
  %v984 = vld [vmem:[%s2] sm:$0xff]
  %v985 = vld [vmem:[%s2 + $0x8] sm:$0xff]
  %v986 = vld [vmem:[%s2 + $0x10] sm:$0xff]
  %v987 = vld [vmem:[%s2 + $0x18] sm:$0xff]
  %v988 = vld [vmem:[%s2 + $0x20] sm:$0xff]
  %v989 = vld [vmem:[%s2 + $0x28] sm:$0xff]
  %v990 = vld [vmem:[%s2 + $0x30] sm:$0xff]
  %v991 = vld [vmem:[%s2 + $0x38] sm:$0xff]
  %v992 = vld [vmem:[%s2 + $0x40] sm:$0xff]
  %v993 = vld [vmem:[%s2 + $0x48] sm:$0xff]
  %v994 = vld [vmem:[%s2 + $0x50] sm:$0xff]
  %v995 = vld [vmem:[%s2 + $0x58] sm:$0xff]
  %v996 = vld [vmem:[%s2 + $0x60] sm:$0xff]
  %v997 = vld [vmem:[%s2 + $0x68] sm:$0xff]
  %v998 = vld [vmem:[%s2 + $0x70] sm:$0xff]
  %v999 = vld [vmem:[%s2 + $0x78] sm:$0xff]
  %v1000 = vld [vmem:[%s2 + $0x80] sm:$0xff]
  %v1001 = vld [vmem:[%s2 + $0x88] sm:$0xff]
  %v1002 = vld [vmem:[%s2 + $0x90] sm:$0xff]
  %v1003 = vld [vmem:[%s2 + $0x98] sm:$0xff]
  %v1004 = vld [vmem:[%s2 + $0xa0] sm:$0xff]
  %v1005 = vld [vmem:[%s2 + $0xa8] sm:$0xff]
  %v1006 = vld [vmem:[%s2 + $0xb0] sm:$0xff]
  %v1007 = vld [vmem:[%s2 + $0xb8] sm:$0xff]
  %v1008 = vld [vmem:[%s2 + $0xc0] sm:$0xff]
  %v1009 = vld [vmem:[%s2 + $0xc8] sm:$0xff]
  %v1010 = vld [vmem:[%s2 + $0xd0] sm:$0xff]
  %v1011 = vld [vmem:[%s2 + $0xd8] sm:$0xff]
  %v1012 = vld [vmem:[%s2 + $0xe0] sm:$0xff]
  %v1013 = vld [vmem:[%s2 + $0xe8] sm:$0xff]
  %v1014 = vld [vmem:[%s2 + $0xf0] sm:$0xff]
  %v1015 = vld [vmem:[%s2 + $0xf8] sm:$0xff]
  %v1048 = vunpack.c.l.b16 %v984
  %v1049 = vunpack.c.h.b16 %v984
  %v1050 = vunpack.c.l.b16 %v985
  %v1051 = vunpack.c.h.b16 %v985
  %v1052 = vunpack.c.l.b16 %v986
  %v1053 = vunpack.c.h.b16 %v986
  %v1054 = vunpack.c.l.b16 %v987
  %v1055 = vunpack.c.h.b16 %v987
  %v1056 = vunpack.c.l.b16 %v988
  %v1057 = vunpack.c.h.b16 %v988
  %v1058 = vunpack.c.l.b16 %v989
  %v1059 = vunpack.c.h.b16 %v989
  %v1060 = vunpack.c.l.b16 %v990
  %v1061 = vunpack.c.h.b16 %v990
  %v1062 = vunpack.c.l.b16 %v991
  %v1063 = vunpack.c.h.b16 %v991
  %v1064 = vunpack.c.l.b16 %v992
  %v1065 = vunpack.c.h.b16 %v992
  %v1066 = vunpack.c.l.b16 %v993
  %v1067 = vunpack.c.h.b16 %v993
  %v1068 = vunpack.c.l.b16 %v994
  %v1069 = vunpack.c.h.b16 %v994
  %v1070 = vunpack.c.l.b16 %v995
  %v1071 = vunpack.c.h.b16 %v995
  %v1072 = vunpack.c.l.b16 %v996
  %v1073 = vunpack.c.h.b16 %v996
  %v1074 = vunpack.c.l.b16 %v997
  %v1075 = vunpack.c.h.b16 %v997
  %v1076 = vunpack.c.l.b16 %v998
  %v1077 = vunpack.c.h.b16 %v998
  %v1078 = vunpack.c.l.b16 %v999
  %v1079 = vunpack.c.h.b16 %v999
  %v1080 = vunpack.c.l.b16 %v1000
  %v1081 = vunpack.c.h.b16 %v1000
  %v1082 = vunpack.c.l.b16 %v1001
  %v1083 = vunpack.c.h.b16 %v1001
  %v1084 = vunpack.c.l.b16 %v1002
  %v1085 = vunpack.c.h.b16 %v1002
  %v1086 = vunpack.c.l.b16 %v1003
  %v1087 = vunpack.c.h.b16 %v1003
  %v1088 = vunpack.c.l.b16 %v1004
  %v1089 = vunpack.c.h.b16 %v1004
  %v1090 = vunpack.c.l.b16 %v1005
  %v1091 = vunpack.c.h.b16 %v1005
  %v1092 = vunpack.c.l.b16 %v1006
  %v1093 = vunpack.c.h.b16 %v1006
  %v1094 = vunpack.c.l.b16 %v1007
  %v1095 = vunpack.c.h.b16 %v1007
  %v1096 = vunpack.c.l.b16 %v1008
  %v1097 = vunpack.c.h.b16 %v1008
  %v1098 = vunpack.c.l.b16 %v1009
  %v1099 = vunpack.c.h.b16 %v1009
  %v1100 = vunpack.c.l.b16 %v1010
  %v1101 = vunpack.c.h.b16 %v1010
  %v1102 = vunpack.c.l.b16 %v1011
  %v1103 = vunpack.c.h.b16 %v1011
  %v1104 = vunpack.c.l.b16 %v1012
  %v1105 = vunpack.c.h.b16 %v1012
  %v1106 = vunpack.c.l.b16 %v1013
  %v1107 = vunpack.c.h.b16 %v1013
  %v1108 = vunpack.c.l.b16 %v1014
  %v1109 = vunpack.c.h.b16 %v1014
  %v1110 = vunpack.c.l.b16 %v1015
  %v1111 = vunpack.c.h.b16 %v1015
  %v1112 = vpack.c.b16 %v1052, %v1048
  %v1113 = vpack.c.b16 %v1053, %v1049
  %v1114 = vpack.c.b16 %v1054, %v1050
  %v1115 = vpack.c.b16 %v1055, %v1051
  %v1116 = vpack.c.b16 %v1060, %v1056
  %v1117 = vpack.c.b16 %v1061, %v1057
  %v1118 = vpack.c.b16 %v1062, %v1058
  %v1119 = vpack.c.b16 %v1063, %v1059
  %v1120 = vpack.c.b16 %v1068, %v1064
  %v1121 = vpack.c.b16 %v1069, %v1065
  %v1122 = vpack.c.b16 %v1070, %v1066
  %v1123 = vpack.c.b16 %v1071, %v1067
  %v1124 = vpack.c.b16 %v1076, %v1072
  %v1125 = vpack.c.b16 %v1077, %v1073
  %v1126 = vpack.c.b16 %v1078, %v1074
  %v1127 = vpack.c.b16 %v1079, %v1075
  %v1128 = vpack.c.b16 %v1084, %v1080
  %v1129 = vpack.c.b16 %v1085, %v1081
  %v1130 = vpack.c.b16 %v1086, %v1082
  %v1131 = vpack.c.b16 %v1087, %v1083
  %v1132 = vpack.c.b16 %v1092, %v1088
  %v1133 = vpack.c.b16 %v1093, %v1089
  %v1134 = vpack.c.b16 %v1094, %v1090
  %v1135 = vpack.c.b16 %v1095, %v1091
  %v1136 = vpack.c.b16 %v1100, %v1096
  %v1137 = vpack.c.b16 %v1101, %v1097
  %v1138 = vpack.c.b16 %v1102, %v1098
  %v1139 = vpack.c.b16 %v1103, %v1099
  %v1140 = vpack.c.b16 %v1108, %v1104
  %v1141 = vpack.c.b16 %v1109, %v1105
  %v1142 = vpack.c.b16 %v1110, %v1106
  %v1143 = vpack.c.b16 %v1111, %v1107
  %1176 = vmatpush.bf16.msra.mxu0 %v1140
  %1177 = vmatpush.bf16.msra.mxu0 %v1136
  %1178 = vmatpush.bf16.msra.mxu0 %v1132
  %1179 = vmatpush.bf16.msra.mxu0 %v1128
  %1180 = vmatpush.bf16.msra.mxu0 %v1124
  %1181 = vmatpush.bf16.msra.mxu0 %v1120
  %1182 = vmatpush.bf16.msra.mxu0 %v1116
  %1183 = vmatpush.bf16.msra.mxu0 %v1112
  %1184 = vmatmul.bf16.gmra.mxu0 %v716
  %v1185 = vpop.f32.mrf.mxu0
  %v1186 = vadd.f32 0.0, %v1185
  %v1187 = vpop.f32.mrf.mxu0
  %1188 = vdwg.mxu0
  %1189 = vmatpush.bf16.msra.mxu0 %v1141
  %1190 = vmatpush.bf16.msra.mxu0 %v1137
  %1191 = vmatpush.bf16.msra.mxu0 %v1133
  %1192 = vmatpush.bf16.msra.mxu0 %v1129
  %1193 = vmatpush.bf16.msra.mxu0 %v1125
  %1194 = vmatpush.bf16.msra.mxu0 %v1121
  %1195 = vmatpush.bf16.msra.mxu0 %v1117
  %1196 = vmatpush.bf16.msra.mxu0 %v1113
  %1197 = vmatmul.bf16.gmra.mxu0 %v716
  %v1198 = vpop.f32.mrf.mxu0
  %v1199 = vadd.f32 0.0, %v1198
  %v1200 = vpop.f32.mrf.mxu0
  %1201 = vdwg.mxu0
  %1202 = vmatpush.bf16.msra.mxu0 %v1142
  %1203 = vmatpush.bf16.msra.mxu0 %v1138
  %1204 = vmatpush.bf16.msra.mxu0 %v1134
  %1205 = vmatpush.bf16.msra.mxu0 %v1130
  %1206 = vmatpush.bf16.msra.mxu0 %v1126
  %1207 = vmatpush.bf16.msra.mxu0 %v1122
  %1208 = vmatpush.bf16.msra.mxu0 %v1118
  %1209 = vmatpush.bf16.msra.mxu0 %v1114
  %1210 = vmatmul.bf16.gmra.mxu0 %v716
  %v1211 = vpop.f32.mrf.mxu0
  %v1212 = vadd.f32 0.0, %v1211
  %v1213 = vpop.f32.mrf.mxu0
  %1214 = vdwg.mxu0
  %1215 = vmatpush.bf16.msra.mxu0 %v1143
  %1216 = vmatpush.bf16.msra.mxu0 %v1139
  %1217 = vmatpush.bf16.msra.mxu0 %v1135
  %1218 = vmatpush.bf16.msra.mxu0 %v1131
  %1219 = vmatpush.bf16.msra.mxu0 %v1127
  %1220 = vmatpush.bf16.msra.mxu0 %v1123
  %1221 = vmatpush.bf16.msra.mxu0 %v1119
  %1222 = vmatpush.bf16.msra.mxu0 %v1115
  %1223 = vmatmul.bf16.gmra.mxu0 %v716
  %v1224 = vpop.f32.mrf.mxu0
  %v1225 = vadd.f32 0.0, %v1224
  %v1226 = vpop.f32.mrf.mxu0
  %1227 = vdwg.mxu0
  %v1228 = vadd.f32 %v980, %v1186
  %v1229 = vadd.f32 %v981, %v1199
  %v1230 = vadd.f32 %v982, %v1212
  %v1231 = vadd.f32 %v983, %v1225
  %v1232 = vxor.u32 %v1228, 2147483648
  %v1233 = vmul.f32 %v1232, 1.442695
  %v1234 = vpow.pop %v1233
  %v1235 = vadd.f32 %v1234, 1.0
  %v1236 = vrcp.pop %v1235
  %v1237 = vmul.f32 %v1235, %v1236
  %v1238 = vsub.f32 1.0, %v1237
  %v1239 = vmul.f32 %v1236, %v1238
  %v1240 = vadd.f32 %v1236, %v1239
  %vm1241 = vweird.f32 %v1235
  %vm1242 = vweird.f32 %v1236
  %vm1243 = vmor %vm1241, %vm1242
  %v1244 = vsel %vm1243, %v1236, %v1240
  %v1245 = vand.u32 2147483647, %v1235
  %vm1246 = vcmp.eq.f32.partialorder %v1245, 8.507059e+37
  %v1247 = vand.u32 %v1235, 2147483648
  %v1248 = vor.u32 1.1754944e-38, %v1247
  %v1249 = vsel %vm1246, %v1248, %v1244
  %v1250 = vmul.f32 1.0, %v1249
  %v1251 = vxor.u32 %v1229, 2147483648
  %v1252 = vmul.f32 %v1251, 1.442695
  %v1253 = vpow.pop %v1252
  %v1254 = vadd.f32 %v1253, 1.0
  %v1255 = vrcp.pop %v1254
  %v1256 = vmul.f32 %v1254, %v1255
  %v1257 = vsub.f32 1.0, %v1256
  %v1258 = vmul.f32 %v1255, %v1257
  %v1259 = vadd.f32 %v1255, %v1258
  %vm1260 = vweird.f32 %v1254
  %vm1261 = vweird.f32 %v1255
  %vm1262 = vmor %vm1260, %vm1261
  %v1263 = vsel %vm1262, %v1255, %v1259
  %v1264 = vand.u32 2147483647, %v1254
  %vm1265 = vcmp.eq.f32.partialorder %v1264, 8.507059e+37
  %v1266 = vand.u32 %v1254, 2147483648
  %v1267 = vor.u32 1.1754944e-38, %v1266
  %v1268 = vsel %vm1265, %v1267, %v1263
  %v1269 = vmul.f32 1.0, %v1268
  %v1270 = vtanh.pop %v1230
  %v1271 = vxor.u32 %v1231, 2147483648
  %v1272 = vmul.f32 %v1271, 1.442695
  %v1273 = vpow.pop %v1272
  %v1274 = vadd.f32 %v1273, 1.0
  %v1275 = vrcp.pop %v1274
  %v1276 = vmul.f32 %v1274, %v1275
  %v1277 = vsub.f32 1.0, %v1276
  %v1278 = vmul.f32 %v1275, %v1277
  %v1279 = vadd.f32 %v1275, %v1278
  %vm1280 = vweird.f32 %v1274
  %vm1281 = vweird.f32 %v1275
  %vm1282 = vmor %vm1280, %vm1281
  %v1283 = vsel %vm1282, %v1275, %v1279
  %v1284 = vand.u32 2147483647, %v1274
  %vm1285 = vcmp.eq.f32.partialorder %v1284, 8.507059e+37
  %v1286 = vand.u32 %v1274, 2147483648
  %v1287 = vor.u32 1.1754944e-38, %v1286
  %v1288 = vsel %vm1285, %v1287, %v1283
  %v1289 = vmul.f32 1.0, %v1288
  %v1290 = vmul.f32 %v1269, %v713
  %v1291 = vmul.f32 %v1250, %v1270
  %v1292 = vadd.f32 %v1290, %v1291
  %v1293 = vtanh.pop %v1292
  %v1294 = vmul.f32 %v1289, %v1293
  %v1295 = vpack.c.bf16 %v1294, %v1294
  %v1296 = vld [vmem:[%s4] sm:$0xff]
  %v1297 = vld [vmem:[%s4 + $0x8] sm:$0xff]
  %v1298 = vld [vmem:[%s4 + $0x10] sm:$0xff]
  %v1299 = vld [vmem:[%s4 + $0x18] sm:$0xff]
  %v1300 = vld [vmem:[%s4 + $0x20] sm:$0xff]
  %v1301 = vld [vmem:[%s4 + $0x28] sm:$0xff]
  %v1302 = vld [vmem:[%s4 + $0x30] sm:$0xff]
  %v1303 = vld [vmem:[%s4 + $0x38] sm:$0xff]
  %v1304 = vld [vmem:[%s4 + $0x40] sm:$0xff]
  %v1305 = vld [vmem:[%s4 + $0x48] sm:$0xff]
  %v1306 = vld [vmem:[%s4 + $0x50] sm:$0xff]
  %v1307 = vld [vmem:[%s4 + $0x58] sm:$0xff]
  %v1308 = vld [vmem:[%s4 + $0x60] sm:$0xff]
  %v1309 = vld [vmem:[%s4 + $0x68] sm:$0xff]
  %v1310 = vld [vmem:[%s4 + $0x70] sm:$0xff]
  %v1311 = vld [vmem:[%s4 + $0x78] sm:$0xff]
  %v1312 = vld [vmem:[%s4 + $0x80] sm:$0xff]
  %v1313 = vld [vmem:[%s4 + $0x88] sm:$0xff]
  %v1314 = vld [vmem:[%s4 + $0x90] sm:$0xff]
  %v1315 = vld [vmem:[%s4 + $0x98] sm:$0xff]
  %v1316 = vld [vmem:[%s4 + $0xa0] sm:$0xff]
  %v1317 = vld [vmem:[%s4 + $0xa8] sm:$0xff]
  %v1318 = vld [vmem:[%s4 + $0xb0] sm:$0xff]
  %v1319 = vld [vmem:[%s4 + $0xb8] sm:$0xff]
  %v1320 = vld [vmem:[%s4 + $0xc0] sm:$0xff]
  %v1321 = vld [vmem:[%s4 + $0xc8] sm:$0xff]
  %v1322 = vld [vmem:[%s4 + $0xd0] sm:$0xff]
  %v1323 = vld [vmem:[%s4 + $0xd8] sm:$0xff]
  %v1324 = vld [vmem:[%s4 + $0xe0] sm:$0xff]
  %v1325 = vld [vmem:[%s4 + $0xe8] sm:$0xff]
  %v1326 = vld [vmem:[%s4 + $0xf0] sm:$0xff]
  %v1327 = vld [vmem:[%s4 + $0xf8] sm:$0xff]
  %v1328 = vld [vmem:[%s6] sm:$0xf]
  %v1330 = vperm.slane %v1328, 0
  %v1331 = vperm.slane %v1328, 1
  %v1332 = vperm.slane %v1328, 2
  %v1333 = vperm.slane %v1328, 3
  %v1370 = vunpack.c.l.b16 %v1296
  %v1371 = vunpack.c.h.b16 %v1296
  %v1372 = vunpack.c.l.b16 %v1297
  %v1373 = vunpack.c.h.b16 %v1297
  %v1374 = vunpack.c.l.b16 %v1298
  %v1375 = vunpack.c.h.b16 %v1298
  %v1376 = vunpack.c.l.b16 %v1299
  %v1377 = vunpack.c.h.b16 %v1299
  %v1378 = vunpack.c.l.b16 %v1300
  %v1379 = vunpack.c.h.b16 %v1300
  %v1380 = vunpack.c.l.b16 %v1301
  %v1381 = vunpack.c.h.b16 %v1301
  %v1382 = vunpack.c.l.b16 %v1302
  %v1383 = vunpack.c.h.b16 %v1302
  %v1384 = vunpack.c.l.b16 %v1303
  %v1385 = vunpack.c.h.b16 %v1303
  %v1386 = vunpack.c.l.b16 %v1304
  %v1387 = vunpack.c.h.b16 %v1304
  %v1388 = vunpack.c.l.b16 %v1305
  %v1389 = vunpack.c.h.b16 %v1305
  %v1390 = vunpack.c.l.b16 %v1306
  %v1391 = vunpack.c.h.b16 %v1306
  %v1392 = vunpack.c.l.b16 %v1307
  %v1393 = vunpack.c.h.b16 %v1307
  %v1394 = vunpack.c.l.b16 %v1308
  %v1395 = vunpack.c.h.b16 %v1308
  %v1396 = vunpack.c.l.b16 %v1309
  %v1397 = vunpack.c.h.b16 %v1309
  %v1398 = vunpack.c.l.b16 %v1310
  %v1399 = vunpack.c.h.b16 %v1310
  %v1400 = vunpack.c.l.b16 %v1311
  %v1401 = vunpack.c.h.b16 %v1311
  %v1402 = vunpack.c.l.b16 %v1312
  %v1403 = vunpack.c.h.b16 %v1312
  %v1404 = vunpack.c.l.b16 %v1313
  %v1405 = vunpack.c.h.b16 %v1313
  %v1406 = vunpack.c.l.b16 %v1314
  %v1407 = vunpack.c.h.b16 %v1314
  %v1408 = vunpack.c.l.b16 %v1315
  %v1409 = vunpack.c.h.b16 %v1315
  %v1410 = vunpack.c.l.b16 %v1316
  %v1411 = vunpack.c.h.b16 %v1316
  %v1412 = vunpack.c.l.b16 %v1317
  %v1413 = vunpack.c.h.b16 %v1317
  %v1414 = vunpack.c.l.b16 %v1318
  %v1415 = vunpack.c.h.b16 %v1318
  %v1416 = vunpack.c.l.b16 %v1319
  %v1417 = vunpack.c.h.b16 %v1319
  %v1418 = vunpack.c.l.b16 %v1320
  %v1419 = vunpack.c.h.b16 %v1320
  %v1420 = vunpack.c.l.b16 %v1321
  %v1421 = vunpack.c.h.b16 %v1321
  %v1422 = vunpack.c.l.b16 %v1322
  %v1423 = vunpack.c.h.b16 %v1322
  %v1424 = vunpack.c.l.b16 %v1323
  %v1425 = vunpack.c.h.b16 %v1323
  %v1426 = vunpack.c.l.b16 %v1324
  %v1427 = vunpack.c.h.b16 %v1324
  %v1428 = vunpack.c.l.b16 %v1325
  %v1429 = vunpack.c.h.b16 %v1325
  %v1430 = vunpack.c.l.b16 %v1326
  %v1431 = vunpack.c.h.b16 %v1326
  %v1432 = vunpack.c.l.b16 %v1327
  %v1433 = vunpack.c.h.b16 %v1327
  %v1434 = vpack.c.b16 %v1374, %v1370
  %v1435 = vpack.c.b16 %v1375, %v1371
  %v1436 = vpack.c.b16 %v1376, %v1372
  %v1437 = vpack.c.b16 %v1377, %v1373
  %v1438 = vpack.c.b16 %v1382, %v1378
  %v1439 = vpack.c.b16 %v1383, %v1379
  %v1440 = vpack.c.b16 %v1384, %v1380
  %v1441 = vpack.c.b16 %v1385, %v1381
  %v1442 = vpack.c.b16 %v1390, %v1386
  %v1443 = vpack.c.b16 %v1391, %v1387
  %v1444 = vpack.c.b16 %v1392, %v1388
  %v1445 = vpack.c.b16 %v1393, %v1389
  %v1446 = vpack.c.b16 %v1398, %v1394
  %v1447 = vpack.c.b16 %v1399, %v1395
  %v1448 = vpack.c.b16 %v1400, %v1396
  %v1449 = vpack.c.b16 %v1401, %v1397
  %v1450 = vpack.c.b16 %v1406, %v1402
  %v1451 = vpack.c.b16 %v1407, %v1403
  %v1452 = vpack.c.b16 %v1408, %v1404
  %v1453 = vpack.c.b16 %v1409, %v1405
  %v1454 = vpack.c.b16 %v1414, %v1410
  %v1455 = vpack.c.b16 %v1415, %v1411
  %v1456 = vpack.c.b16 %v1416, %v1412
  %v1457 = vpack.c.b16 %v1417, %v1413
  %v1458 = vpack.c.b16 %v1422, %v1418
  %v1459 = vpack.c.b16 %v1423, %v1419
  %v1460 = vpack.c.b16 %v1424, %v1420
  %v1461 = vpack.c.b16 %v1425, %v1421
  %v1462 = vpack.c.b16 %v1430, %v1426
  %v1463 = vpack.c.b16 %v1431, %v1427
  %v1464 = vpack.c.b16 %v1432, %v1428
  %v1465 = vpack.c.b16 %v1433, %v1429
  %1498 = vmatpush.bf16.msra.mxu0 %v1462
  %1499 = vmatpush.bf16.msra.mxu0 %v1458
  %1500 = vmatpush.bf16.msra.mxu0 %v1454
  %1501 = vmatpush.bf16.msra.mxu0 %v1450
  %1502 = vmatpush.bf16.msra.mxu0 %v1446
  %1503 = vmatpush.bf16.msra.mxu0 %v1442
  %1504 = vmatpush.bf16.msra.mxu0 %v1438
  %1505 = vmatpush.bf16.msra.mxu0 %v1434
  %1506 = vmatmul.bf16.gmra.mxu0 %v1295
  %v1507 = vpop.f32.mrf.mxu0
  %v1508 = vadd.f32 %v1330, %v1507
  %v1509 = vpop.f32.mrf.mxu0
  %1510 = vdwg.mxu0
  %1511 = vmatpush.bf16.msra.mxu0 %v1463
  %1512 = vmatpush.bf16.msra.mxu0 %v1459
  %1513 = vmatpush.bf16.msra.mxu0 %v1455
  %1514 = vmatpush.bf16.msra.mxu0 %v1451
  %1515 = vmatpush.bf16.msra.mxu0 %v1447
  %1516 = vmatpush.bf16.msra.mxu0 %v1443
  %1517 = vmatpush.bf16.msra.mxu0 %v1439
  %1518 = vmatpush.bf16.msra.mxu0 %v1435
  %1519 = vmatmul.bf16.gmra.mxu0 %v1295
  %v1520 = vpop.f32.mrf.mxu0
  %v1521 = vadd.f32 %v1331, %v1520
  %v1522 = vpop.f32.mrf.mxu0
  %1523 = vdwg.mxu0
  %1524 = vmatpush.bf16.msra.mxu0 %v1464
  %1525 = vmatpush.bf16.msra.mxu0 %v1460
  %1526 = vmatpush.bf16.msra.mxu0 %v1456
  %1527 = vmatpush.bf16.msra.mxu0 %v1452
  %1528 = vmatpush.bf16.msra.mxu0 %v1448
  %1529 = vmatpush.bf16.msra.mxu0 %v1444
  %1530 = vmatpush.bf16.msra.mxu0 %v1440
  %1531 = vmatpush.bf16.msra.mxu0 %v1436
  %1532 = vmatmul.bf16.gmra.mxu0 %v1295
  %v1533 = vpop.f32.mrf.mxu0
  %v1534 = vadd.f32 %v1332, %v1533
  %v1535 = vpop.f32.mrf.mxu0
  %1536 = vdwg.mxu0
  %1537 = vmatpush.bf16.msra.mxu0 %v1465
  %1538 = vmatpush.bf16.msra.mxu0 %v1461
  %1539 = vmatpush.bf16.msra.mxu0 %v1457
  %1540 = vmatpush.bf16.msra.mxu0 %v1453
  %1541 = vmatpush.bf16.msra.mxu0 %v1449
  %1542 = vmatpush.bf16.msra.mxu0 %v1445
  %1543 = vmatpush.bf16.msra.mxu0 %v1441
  %1544 = vmatpush.bf16.msra.mxu0 %v1437
  %1545 = vmatmul.bf16.gmra.mxu0 %v1295
  %v1546 = vpop.f32.mrf.mxu0
  %v1547 = vadd.f32 %v1333, %v1546
  %v1548 = vpop.f32.mrf.mxu0
  %1549 = vdwg.mxu0
  %s1550 = smul.addr %s977, 8
  %s1551 = scalar_lea.vmem [#allocation3], %s1550
  %1552 = vst [vmem:[%s1551] sm:$0xff] %v1508
  %1553 = vst [vmem:[%s1551 + $0x8] sm:$0xff] %v1521
  %1554 = vst [vmem:[%s1551 + $0x10] sm:$0xff] %v1534
  %1555 = vst [vmem:[%s1551 + $0x18] sm:$0xff] %v1547
  %s1556 = smul.u32 2, 4
  %s1557 = smul.addr %s1556, 8
  %s1558 = scalar_lea.vmem [#allocation2], %s1557
  %v1559 = vld [vmem:[%s1558] sm:$0xff]
  %v1560 = vld [vmem:[%s1558 + $0x8] sm:$0xff]
  %v1561 = vld [vmem:[%s1558 + $0x10] sm:$0xff]
  %v1562 = vld [vmem:[%s1558 + $0x18] sm:$0xff]
  %v1563 = vld [vmem:[%s2] sm:$0xff]
  %v1564 = vld [vmem:[%s2 + $0x8] sm:$0xff]
  %v1565 = vld [vmem:[%s2 + $0x10] sm:$0xff]
  %v1566 = vld [vmem:[%s2 + $0x18] sm:$0xff]
  %v1567 = vld [vmem:[%s2 + $0x20] sm:$0xff]
  %v1568 = vld [vmem:[%s2 + $0x28] sm:$0xff]
  %v1569 = vld [vmem:[%s2 + $0x30] sm:$0xff]
  %v1570 = vld [vmem:[%s2 + $0x38] sm:$0xff]
  %v1571 = vld [vmem:[%s2 + $0x40] sm:$0xff]
  %v1572 = vld [vmem:[%s2 + $0x48] sm:$0xff]
  %v1573 = vld [vmem:[%s2 + $0x50] sm:$0xff]
  %v1574 = vld [vmem:[%s2 + $0x58] sm:$0xff]
  %v1575 = vld [vmem:[%s2 + $0x60] sm:$0xff]
  %v1576 = vld [vmem:[%s2 + $0x68] sm:$0xff]
  %v1577 = vld [vmem:[%s2 + $0x70] sm:$0xff]
  %v1578 = vld [vmem:[%s2 + $0x78] sm:$0xff]
  %v1579 = vld [vmem:[%s2 + $0x80] sm:$0xff]
  %v1580 = vld [vmem:[%s2 + $0x88] sm:$0xff]
  %v1581 = vld [vmem:[%s2 + $0x90] sm:$0xff]
  %v1582 = vld [vmem:[%s2 + $0x98] sm:$0xff]
  %v1583 = vld [vmem:[%s2 + $0xa0] sm:$0xff]
  %v1584 = vld [vmem:[%s2 + $0xa8] sm:$0xff]
  %v1585 = vld [vmem:[%s2 + $0xb0] sm:$0xff]
  %v1586 = vld [vmem:[%s2 + $0xb8] sm:$0xff]
  %v1587 = vld [vmem:[%s2 + $0xc0] sm:$0xff]
  %v1588 = vld [vmem:[%s2 + $0xc8] sm:$0xff]
  %v1589 = vld [vmem:[%s2 + $0xd0] sm:$0xff]
  %v1590 = vld [vmem:[%s2 + $0xd8] sm:$0xff]
  %v1591 = vld [vmem:[%s2 + $0xe0] sm:$0xff]
  %v1592 = vld [vmem:[%s2 + $0xe8] sm:$0xff]
  %v1593 = vld [vmem:[%s2 + $0xf0] sm:$0xff]
  %v1594 = vld [vmem:[%s2 + $0xf8] sm:$0xff]
  %v1627 = vunpack.c.l.b16 %v1563
  %v1628 = vunpack.c.h.b16 %v1563
  %v1629 = vunpack.c.l.b16 %v1564
  %v1630 = vunpack.c.h.b16 %v1564
  %v1631 = vunpack.c.l.b16 %v1565
  %v1632 = vunpack.c.h.b16 %v1565
  %v1633 = vunpack.c.l.b16 %v1566
  %v1634 = vunpack.c.h.b16 %v1566
  %v1635 = vunpack.c.l.b16 %v1567
  %v1636 = vunpack.c.h.b16 %v1567
  %v1637 = vunpack.c.l.b16 %v1568
  %v1638 = vunpack.c.h.b16 %v1568
  %v1639 = vunpack.c.l.b16 %v1569
  %v1640 = vunpack.c.h.b16 %v1569
  %v1641 = vunpack.c.l.b16 %v1570
  %v1642 = vunpack.c.h.b16 %v1570
  %v1643 = vunpack.c.l.b16 %v1571
  %v1644 = vunpack.c.h.b16 %v1571
  %v1645 = vunpack.c.l.b16 %v1572
  %v1646 = vunpack.c.h.b16 %v1572
  %v1647 = vunpack.c.l.b16 %v1573
  %v1648 = vunpack.c.h.b16 %v1573
  %v1649 = vunpack.c.l.b16 %v1574
  %v1650 = vunpack.c.h.b16 %v1574
  %v1651 = vunpack.c.l.b16 %v1575
  %v1652 = vunpack.c.h.b16 %v1575
  %v1653 = vunpack.c.l.b16 %v1576
  %v1654 = vunpack.c.h.b16 %v1576
  %v1655 = vunpack.c.l.b16 %v1577
  %v1656 = vunpack.c.h.b16 %v1577
  %v1657 = vunpack.c.l.b16 %v1578
  %v1658 = vunpack.c.h.b16 %v1578
  %v1659 = vunpack.c.l.b16 %v1579
  %v1660 = vunpack.c.h.b16 %v1579
  %v1661 = vunpack.c.l.b16 %v1580
  %v1662 = vunpack.c.h.b16 %v1580
  %v1663 = vunpack.c.l.b16 %v1581
  %v1664 = vunpack.c.h.b16 %v1581
  %v1665 = vunpack.c.l.b16 %v1582
  %v1666 = vunpack.c.h.b16 %v1582
  %v1667 = vunpack.c.l.b16 %v1583
  %v1668 = vunpack.c.h.b16 %v1583
  %v1669 = vunpack.c.l.b16 %v1584
  %v1670 = vunpack.c.h.b16 %v1584
  %v1671 = vunpack.c.l.b16 %v1585
  %v1672 = vunpack.c.h.b16 %v1585
  %v1673 = vunpack.c.l.b16 %v1586
  %v1674 = vunpack.c.h.b16 %v1586
  %v1675 = vunpack.c.l.b16 %v1587
  %v1676 = vunpack.c.h.b16 %v1587
  %v1677 = vunpack.c.l.b16 %v1588
  %v1678 = vunpack.c.h.b16 %v1588
  %v1679 = vunpack.c.l.b16 %v1589
  %v1680 = vunpack.c.h.b16 %v1589
  %v1681 = vunpack.c.l.b16 %v1590
  %v1682 = vunpack.c.h.b16 %v1590
  %v1683 = vunpack.c.l.b16 %v1591
  %v1684 = vunpack.c.h.b16 %v1591
  %v1685 = vunpack.c.l.b16 %v1592
  %v1686 = vunpack.c.h.b16 %v1592
  %v1687 = vunpack.c.l.b16 %v1593
  %v1688 = vunpack.c.h.b16 %v1593
  %v1689 = vunpack.c.l.b16 %v1594
  %v1690 = vunpack.c.h.b16 %v1594
  %v1691 = vpack.c.b16 %v1631, %v1627
  %v1692 = vpack.c.b16 %v1632, %v1628
  %v1693 = vpack.c.b16 %v1633, %v1629
  %v1694 = vpack.c.b16 %v1634, %v1630
  %v1695 = vpack.c.b16 %v1639, %v1635
  %v1696 = vpack.c.b16 %v1640, %v1636
  %v1697 = vpack.c.b16 %v1641, %v1637
  %v1698 = vpack.c.b16 %v1642, %v1638
  %v1699 = vpack.c.b16 %v1647, %v1643
  %v1700 = vpack.c.b16 %v1648, %v1644
  %v1701 = vpack.c.b16 %v1649, %v1645
  %v1702 = vpack.c.b16 %v1650, %v1646
  %v1703 = vpack.c.b16 %v1655, %v1651
  %v1704 = vpack.c.b16 %v1656, %v1652
  %v1705 = vpack.c.b16 %v1657, %v1653
  %v1706 = vpack.c.b16 %v1658, %v1654
  %v1707 = vpack.c.b16 %v1663, %v1659
  %v1708 = vpack.c.b16 %v1664, %v1660
  %v1709 = vpack.c.b16 %v1665, %v1661
  %v1710 = vpack.c.b16 %v1666, %v1662
  %v1711 = vpack.c.b16 %v1671, %v1667
  %v1712 = vpack.c.b16 %v1672, %v1668
  %v1713 = vpack.c.b16 %v1673, %v1669
  %v1714 = vpack.c.b16 %v1674, %v1670
  %v1715 = vpack.c.b16 %v1679, %v1675
  %v1716 = vpack.c.b16 %v1680, %v1676
  %v1717 = vpack.c.b16 %v1681, %v1677
  %v1718 = vpack.c.b16 %v1682, %v1678
  %v1719 = vpack.c.b16 %v1687, %v1683
  %v1720 = vpack.c.b16 %v1688, %v1684
  %v1721 = vpack.c.b16 %v1689, %v1685
  %v1722 = vpack.c.b16 %v1690, %v1686
  %1755 = vmatpush.bf16.msra.mxu0 %v1719
  %1756 = vmatpush.bf16.msra.mxu0 %v1715
  %1757 = vmatpush.bf16.msra.mxu0 %v1711
  %1758 = vmatpush.bf16.msra.mxu0 %v1707
  %1759 = vmatpush.bf16.msra.mxu0 %v1703
  %1760 = vmatpush.bf16.msra.mxu0 %v1699
  %1761 = vmatpush.bf16.msra.mxu0 %v1695
  %1762 = vmatpush.bf16.msra.mxu0 %v1691
  %1763 = vmatmul.bf16.gmra.mxu0 %v1295
  %v1764 = vpop.f32.mrf.mxu0
  %v1765 = vadd.f32 0.0, %v1764
  %v1766 = vpop.f32.mrf.mxu0
  %1767 = vdwg.mxu0
  %1768 = vmatpush.bf16.msra.mxu0 %v1720
  %1769 = vmatpush.bf16.msra.mxu0 %v1716
  %1770 = vmatpush.bf16.msra.mxu0 %v1712
  %1771 = vmatpush.bf16.msra.mxu0 %v1708
  %1772 = vmatpush.bf16.msra.mxu0 %v1704
  %1773 = vmatpush.bf16.msra.mxu0 %v1700
  %1774 = vmatpush.bf16.msra.mxu0 %v1696
  %1775 = vmatpush.bf16.msra.mxu0 %v1692
  %1776 = vmatmul.bf16.gmra.mxu0 %v1295
  %v1777 = vpop.f32.mrf.mxu0
  %v1778 = vadd.f32 0.0, %v1777
  %v1779 = vpop.f32.mrf.mxu0
  %1780 = vdwg.mxu0
  %1781 = vmatpush.bf16.msra.mxu0 %v1721
  %1782 = vmatpush.bf16.msra.mxu0 %v1717
  %1783 = vmatpush.bf16.msra.mxu0 %v1713
  %1784 = vmatpush.bf16.msra.mxu0 %v1709
  %1785 = vmatpush.bf16.msra.mxu0 %v1705
  %1786 = vmatpush.bf16.msra.mxu0 %v1701
  %1787 = vmatpush.bf16.msra.mxu0 %v1697
  %1788 = vmatpush.bf16.msra.mxu0 %v1693
  %1789 = vmatmul.bf16.gmra.mxu0 %v1295
  %v1790 = vpop.f32.mrf.mxu0
  %v1791 = vadd.f32 0.0, %v1790
  %v1792 = vpop.f32.mrf.mxu0
  %1793 = vdwg.mxu0
  %1794 = vmatpush.bf16.msra.mxu0 %v1722
  %1795 = vmatpush.bf16.msra.mxu0 %v1718
  %1796 = vmatpush.bf16.msra.mxu0 %v1714
  %1797 = vmatpush.bf16.msra.mxu0 %v1710
  %1798 = vmatpush.bf16.msra.mxu0 %v1706
  %1799 = vmatpush.bf16.msra.mxu0 %v1702
  %1800 = vmatpush.bf16.msra.mxu0 %v1698
  %1801 = vmatpush.bf16.msra.mxu0 %v1694
  %1802 = vmatmul.bf16.gmra.mxu0 %v1295
  %v1803 = vpop.f32.mrf.mxu0
  %v1804 = vadd.f32 0.0, %v1803
  %v1805 = vpop.f32.mrf.mxu0
  %1806 = vdwg.mxu0
  %v1807 = vadd.f32 %v1559, %v1765
  %v1808 = vadd.f32 %v1560, %v1778
  %v1809 = vadd.f32 %v1561, %v1791
  %v1810 = vadd.f32 %v1562, %v1804
  %v1811 = vxor.u32 %v1807, 2147483648
  %v1812 = vmul.f32 %v1811, 1.442695
  %v1813 = vpow.pop %v1812
  %v1814 = vadd.f32 %v1813, 1.0
  %v1815 = vrcp.pop %v1814
  %v1816 = vmul.f32 %v1814, %v1815
  %v1817 = vsub.f32 1.0, %v1816
  %v1818 = vmul.f32 %v1815, %v1817
  %v1819 = vadd.f32 %v1815, %v1818
  %vm1820 = vweird.f32 %v1814
  %vm1821 = vweird.f32 %v1815
  %vm1822 = vmor %vm1820, %vm1821
  %v1823 = vsel %vm1822, %v1815, %v1819
  %v1824 = vand.u32 2147483647, %v1814
  %vm1825 = vcmp.eq.f32.partialorder %v1824, 8.507059e+37
  %v1826 = vand.u32 %v1814, 2147483648
  %v1827 = vor.u32 1.1754944e-38, %v1826
  %v1828 = vsel %vm1825, %v1827, %v1823
  %v1829 = vmul.f32 1.0, %v1828
  %v1830 = vxor.u32 %v1808, 2147483648
  %v1831 = vmul.f32 %v1830, 1.442695
  %v1832 = vpow.pop %v1831
  %v1833 = vadd.f32 %v1832, 1.0
  %v1834 = vrcp.pop %v1833
  %v1835 = vmul.f32 %v1833, %v1834
  %v1836 = vsub.f32 1.0, %v1835
  %v1837 = vmul.f32 %v1834, %v1836
  %v1838 = vadd.f32 %v1834, %v1837
  %vm1839 = vweird.f32 %v1833
  %vm1840 = vweird.f32 %v1834
  %vm1841 = vmor %vm1839, %vm1840
  %v1842 = vsel %vm1841, %v1834, %v1838
  %v1843 = vand.u32 2147483647, %v1833
  %vm1844 = vcmp.eq.f32.partialorder %v1843, 8.507059e+37
  %v1845 = vand.u32 %v1833, 2147483648
  %v1846 = vor.u32 1.1754944e-38, %v1845
  %v1847 = vsel %vm1844, %v1846, %v1842
  %v1848 = vmul.f32 1.0, %v1847
  %v1849 = vtanh.pop %v1809
  %v1850 = vxor.u32 %v1810, 2147483648
  %v1851 = vmul.f32 %v1850, 1.442695
  %v1852 = vpow.pop %v1851
  %v1853 = vadd.f32 %v1852, 1.0
  %v1854 = vrcp.pop %v1853
  %v1855 = vmul.f32 %v1853, %v1854
  %v1856 = vsub.f32 1.0, %v1855
  %v1857 = vmul.f32 %v1854, %v1856
  %v1858 = vadd.f32 %v1854, %v1857
  %vm1859 = vweird.f32 %v1853
  %vm1860 = vweird.f32 %v1854
  %vm1861 = vmor %vm1859, %vm1860
  %v1862 = vsel %vm1861, %v1854, %v1858
  %v1863 = vand.u32 2147483647, %v1853
  %vm1864 = vcmp.eq.f32.partialorder %v1863, 8.507059e+37
  %v1865 = vand.u32 %v1853, 2147483648
  %v1866 = vor.u32 1.1754944e-38, %v1865
  %v1867 = vsel %vm1864, %v1866, %v1862
  %v1868 = vmul.f32 1.0, %v1867
  %v1869 = vmul.f32 %v1848, %v1292
  %v1870 = vmul.f32 %v1829, %v1849
  %v1871 = vadd.f32 %v1869, %v1870
  %v1872 = vtanh.pop %v1871
  %v1873 = vmul.f32 %v1868, %v1872
  %v1874 = vpack.c.bf16 %v1873, %v1873
  %v1875 = vld [vmem:[%s4] sm:$0xff]
  %v1876 = vld [vmem:[%s4 + $0x8] sm:$0xff]
  %v1877 = vld [vmem:[%s4 + $0x10] sm:$0xff]
  %v1878 = vld [vmem:[%s4 + $0x18] sm:$0xff]
  %v1879 = vld [vmem:[%s4 + $0x20] sm:$0xff]
  %v1880 = vld [vmem:[%s4 + $0x28] sm:$0xff]
  %v1881 = vld [vmem:[%s4 + $0x30] sm:$0xff]
  %v1882 = vld [vmem:[%s4 + $0x38] sm:$0xff]
  %v1883 = vld [vmem:[%s4 + $0x40] sm:$0xff]
  %v1884 = vld [vmem:[%s4 + $0x48] sm:$0xff]
  %v1885 = vld [vmem:[%s4 + $0x50] sm:$0xff]
  %v1886 = vld [vmem:[%s4 + $0x58] sm:$0xff]
  %v1887 = vld [vmem:[%s4 + $0x60] sm:$0xff]
  %v1888 = vld [vmem:[%s4 + $0x68] sm:$0xff]
  %v1889 = vld [vmem:[%s4 + $0x70] sm:$0xff]
  %v1890 = vld [vmem:[%s4 + $0x78] sm:$0xff]
  %v1891 = vld [vmem:[%s4 + $0x80] sm:$0xff]
  %v1892 = vld [vmem:[%s4 + $0x88] sm:$0xff]
  %v1893 = vld [vmem:[%s4 + $0x90] sm:$0xff]
  %v1894 = vld [vmem:[%s4 + $0x98] sm:$0xff]
  %v1895 = vld [vmem:[%s4 + $0xa0] sm:$0xff]
  %v1896 = vld [vmem:[%s4 + $0xa8] sm:$0xff]
  %v1897 = vld [vmem:[%s4 + $0xb0] sm:$0xff]
  %v1898 = vld [vmem:[%s4 + $0xb8] sm:$0xff]
  %v1899 = vld [vmem:[%s4 + $0xc0] sm:$0xff]
  %v1900 = vld [vmem:[%s4 + $0xc8] sm:$0xff]
  %v1901 = vld [vmem:[%s4 + $0xd0] sm:$0xff]
  %v1902 = vld [vmem:[%s4 + $0xd8] sm:$0xff]
  %v1903 = vld [vmem:[%s4 + $0xe0] sm:$0xff]
  %v1904 = vld [vmem:[%s4 + $0xe8] sm:$0xff]
  %v1905 = vld [vmem:[%s4 + $0xf0] sm:$0xff]
  %v1906 = vld [vmem:[%s4 + $0xf8] sm:$0xff]
  %v1907 = vld [vmem:[%s6] sm:$0xf]
  %v1909 = vperm.slane %v1907, 0
  %v1910 = vperm.slane %v1907, 1
  %v1911 = vperm.slane %v1907, 2
  %v1912 = vperm.slane %v1907, 3
  %v1949 = vunpack.c.l.b16 %v1875
  %v1950 = vunpack.c.h.b16 %v1875
  %v1951 = vunpack.c.l.b16 %v1876
  %v1952 = vunpack.c.h.b16 %v1876
  %v1953 = vunpack.c.l.b16 %v1877
  %v1954 = vunpack.c.h.b16 %v1877
  %v1955 = vunpack.c.l.b16 %v1878
  %v1956 = vunpack.c.h.b16 %v1878
  %v1957 = vunpack.c.l.b16 %v1879
  %v1958 = vunpack.c.h.b16 %v1879
  %v1959 = vunpack.c.l.b16 %v1880
  %v1960 = vunpack.c.h.b16 %v1880
  %v1961 = vunpack.c.l.b16 %v1881
  %v1962 = vunpack.c.h.b16 %v1881
  %v1963 = vunpack.c.l.b16 %v1882
  %v1964 = vunpack.c.h.b16 %v1882
  %v1965 = vunpack.c.l.b16 %v1883
  %v1966 = vunpack.c.h.b16 %v1883
  %v1967 = vunpack.c.l.b16 %v1884
  %v1968 = vunpack.c.h.b16 %v1884
  %v1969 = vunpack.c.l.b16 %v1885
  %v1970 = vunpack.c.h.b16 %v1885
  %v1971 = vunpack.c.l.b16 %v1886
  %v1972 = vunpack.c.h.b16 %v1886
  %v1973 = vunpack.c.l.b16 %v1887
  %v1974 = vunpack.c.h.b16 %v1887
  %v1975 = vunpack.c.l.b16 %v1888
  %v1976 = vunpack.c.h.b16 %v1888
  %v1977 = vunpack.c.l.b16 %v1889
  %v1978 = vunpack.c.h.b16 %v1889
  %v1979 = vunpack.c.l.b16 %v1890
  %v1980 = vunpack.c.h.b16 %v1890
  %v1981 = vunpack.c.l.b16 %v1891
  %v1982 = vunpack.c.h.b16 %v1891
  %v1983 = vunpack.c.l.b16 %v1892
  %v1984 = vunpack.c.h.b16 %v1892
  %v1985 = vunpack.c.l.b16 %v1893
  %v1986 = vunpack.c.h.b16 %v1893
  %v1987 = vunpack.c.l.b16 %v1894
  %v1988 = vunpack.c.h.b16 %v1894
  %v1989 = vunpack.c.l.b16 %v1895
  %v1990 = vunpack.c.h.b16 %v1895
  %v1991 = vunpack.c.l.b16 %v1896
  %v1992 = vunpack.c.h.b16 %v1896
  %v1993 = vunpack.c.l.b16 %v1897
  %v1994 = vunpack.c.h.b16 %v1897
  %v1995 = vunpack.c.l.b16 %v1898
  %v1996 = vunpack.c.h.b16 %v1898
  %v1997 = vunpack.c.l.b16 %v1899
  %v1998 = vunpack.c.h.b16 %v1899
  %v1999 = vunpack.c.l.b16 %v1900
  %v2000 = vunpack.c.h.b16 %v1900
  %v2001 = vunpack.c.l.b16 %v1901
  %v2002 = vunpack.c.h.b16 %v1901
  %v2003 = vunpack.c.l.b16 %v1902
  %v2004 = vunpack.c.h.b16 %v1902
  %v2005 = vunpack.c.l.b16 %v1903
  %v2006 = vunpack.c.h.b16 %v1903
  %v2007 = vunpack.c.l.b16 %v1904
  %v2008 = vunpack.c.h.b16 %v1904
  %v2009 = vunpack.c.l.b16 %v1905
  %v2010 = vunpack.c.h.b16 %v1905
  %v2011 = vunpack.c.l.b16 %v1906
  %v2012 = vunpack.c.h.b16 %v1906
  %v2013 = vpack.c.b16 %v1953, %v1949
  %v2014 = vpack.c.b16 %v1954, %v1950
  %v2015 = vpack.c.b16 %v1955, %v1951
  %v2016 = vpack.c.b16 %v1956, %v1952
  %v2017 = vpack.c.b16 %v1961, %v1957
  %v2018 = vpack.c.b16 %v1962, %v1958
  %v2019 = vpack.c.b16 %v1963, %v1959
  %v2020 = vpack.c.b16 %v1964, %v1960
  %v2021 = vpack.c.b16 %v1969, %v1965
  %v2022 = vpack.c.b16 %v1970, %v1966
  %v2023 = vpack.c.b16 %v1971, %v1967
  %v2024 = vpack.c.b16 %v1972, %v1968
  %v2025 = vpack.c.b16 %v1977, %v1973
  %v2026 = vpack.c.b16 %v1978, %v1974
  %v2027 = vpack.c.b16 %v1979, %v1975
  %v2028 = vpack.c.b16 %v1980, %v1976
  %v2029 = vpack.c.b16 %v1985, %v1981
  %v2030 = vpack.c.b16 %v1986, %v1982
  %v2031 = vpack.c.b16 %v1987, %v1983
  %v2032 = vpack.c.b16 %v1988, %v1984
  %v2033 = vpack.c.b16 %v1993, %v1989
  %v2034 = vpack.c.b16 %v1994, %v1990
  %v2035 = vpack.c.b16 %v1995, %v1991
  %v2036 = vpack.c.b16 %v1996, %v1992
  %v2037 = vpack.c.b16 %v2001, %v1997
  %v2038 = vpack.c.b16 %v2002, %v1998
  %v2039 = vpack.c.b16 %v2003, %v1999
  %v2040 = vpack.c.b16 %v2004, %v2000
  %v2041 = vpack.c.b16 %v2009, %v2005
  %v2042 = vpack.c.b16 %v2010, %v2006
  %v2043 = vpack.c.b16 %v2011, %v2007
  %v2044 = vpack.c.b16 %v2012, %v2008
  %2077 = vmatpush.bf16.msra.mxu0 %v2041
  %2078 = vmatpush.bf16.msra.mxu0 %v2037
  %2079 = vmatpush.bf16.msra.mxu0 %v2033
  %2080 = vmatpush.bf16.msra.mxu0 %v2029
  %2081 = vmatpush.bf16.msra.mxu0 %v2025
  %2082 = vmatpush.bf16.msra.mxu0 %v2021
  %2083 = vmatpush.bf16.msra.mxu0 %v2017
  %2084 = vmatpush.bf16.msra.mxu0 %v2013
  %2085 = vmatmul.bf16.gmra.mxu0 %v1874
  %v2086 = vpop.f32.mrf.mxu0
  %v2087 = vadd.f32 %v1909, %v2086
  %v2088 = vpop.f32.mrf.mxu0
  %2089 = vdwg.mxu0
  %2090 = vmatpush.bf16.msra.mxu0 %v2042
  %2091 = vmatpush.bf16.msra.mxu0 %v2038
  %2092 = vmatpush.bf16.msra.mxu0 %v2034
  %2093 = vmatpush.bf16.msra.mxu0 %v2030
  %2094 = vmatpush.bf16.msra.mxu0 %v2026
  %2095 = vmatpush.bf16.msra.mxu0 %v2022
  %2096 = vmatpush.bf16.msra.mxu0 %v2018
  %2097 = vmatpush.bf16.msra.mxu0 %v2014
  %2098 = vmatmul.bf16.gmra.mxu0 %v1874
  %v2099 = vpop.f32.mrf.mxu0
  %v2100 = vadd.f32 %v1910, %v2099
  %v2101 = vpop.f32.mrf.mxu0
  %2102 = vdwg.mxu0
  %2103 = vmatpush.bf16.msra.mxu0 %v2043
  %2104 = vmatpush.bf16.msra.mxu0 %v2039
  %2105 = vmatpush.bf16.msra.mxu0 %v2035
  %2106 = vmatpush.bf16.msra.mxu0 %v2031
  %2107 = vmatpush.bf16.msra.mxu0 %v2027
  %2108 = vmatpush.bf16.msra.mxu0 %v2023
  %2109 = vmatpush.bf16.msra.mxu0 %v2019
  %2110 = vmatpush.bf16.msra.mxu0 %v2015
  %2111 = vmatmul.bf16.gmra.mxu0 %v1874
  %v2112 = vpop.f32.mrf.mxu0
  %v2113 = vadd.f32 %v1911, %v2112
  %v2114 = vpop.f32.mrf.mxu0
  %2115 = vdwg.mxu0
  %2116 = vmatpush.bf16.msra.mxu0 %v2044
  %2117 = vmatpush.bf16.msra.mxu0 %v2040
  %2118 = vmatpush.bf16.msra.mxu0 %v2036
  %2119 = vmatpush.bf16.msra.mxu0 %v2032
  %2120 = vmatpush.bf16.msra.mxu0 %v2028
  %2121 = vmatpush.bf16.msra.mxu0 %v2024
  %2122 = vmatpush.bf16.msra.mxu0 %v2020
  %2123 = vmatpush.bf16.msra.mxu0 %v2016
  %2124 = vmatmul.bf16.gmra.mxu0 %v1874
  %v2125 = vpop.f32.mrf.mxu0
  %v2126 = vadd.f32 %v1912, %v2125
  %v2127 = vpop.f32.mrf.mxu0
  %2128 = vdwg.mxu0
  %s2129 = smul.addr %s1556, 8
  %s2130 = scalar_lea.vmem [#allocation3], %s2129
  %2131 = vst [vmem:[%s2130] sm:$0xff] %v2087
  %2132 = vst [vmem:[%s2130 + $0x8] sm:$0xff] %v2100
  %2133 = vst [vmem:[%s2130 + $0x10] sm:$0xff] %v2113
  %2134 = vst [vmem:[%s2130 + $0x18] sm:$0xff] %v2126
  %s2135 = smul.u32 3, 4
  %s2136 = smul.addr %s2135, 8
  %s2137 = scalar_lea.vmem [#allocation2], %s2136
  %v2138 = vld [vmem:[%s2137] sm:$0xff]
  %v2139 = vld [vmem:[%s2137 + $0x8] sm:$0xff]
  %v2140 = vld [vmem:[%s2137 + $0x10] sm:$0xff]
  %v2141 = vld [vmem:[%s2137 + $0x18] sm:$0xff]
  %v2142 = vld [vmem:[%s2] sm:$0xff]
  %v2143 = vld [vmem:[%s2 + $0x8] sm:$0xff]
  %v2144 = vld [vmem:[%s2 + $0x10] sm:$0xff]
  %v2145 = vld [vmem:[%s2 + $0x18] sm:$0xff]
  %v2146 = vld [vmem:[%s2 + $0x20] sm:$0xff]
  %v2147 = vld [vmem:[%s2 + $0x28] sm:$0xff]
  %v2148 = vld [vmem:[%s2 + $0x30] sm:$0xff]
  %v2149 = vld [vmem:[%s2 + $0x38] sm:$0xff]
  %v2150 = vld [vmem:[%s2 + $0x40] sm:$0xff]
  %v2151 = vld [vmem:[%s2 + $0x48] sm:$0xff]
  %v2152 = vld [vmem:[%s2 + $0x50] sm:$0xff]
  %v2153 = vld [vmem:[%s2 + $0x58] sm:$0xff]
  %v2154 = vld [vmem:[%s2 + $0x60] sm:$0xff]
  %v2155 = vld [vmem:[%s2 + $0x68] sm:$0xff]
  %v2156 = vld [vmem:[%s2 + $0x70] sm:$0xff]
  %v2157 = vld [vmem:[%s2 + $0x78] sm:$0xff]
  %v2158 = vld [vmem:[%s2 + $0x80] sm:$0xff]
  %v2159 = vld [vmem:[%s2 + $0x88] sm:$0xff]
  %v2160 = vld [vmem:[%s2 + $0x90] sm:$0xff]
  %v2161 = vld [vmem:[%s2 + $0x98] sm:$0xff]
  %v2162 = vld [vmem:[%s2 + $0xa0] sm:$0xff]
  %v2163 = vld [vmem:[%s2 + $0xa8] sm:$0xff]
  %v2164 = vld [vmem:[%s2 + $0xb0] sm:$0xff]
  %v2165 = vld [vmem:[%s2 + $0xb8] sm:$0xff]
  %v2166 = vld [vmem:[%s2 + $0xc0] sm:$0xff]
  %v2167 = vld [vmem:[%s2 + $0xc8] sm:$0xff]
  %v2168 = vld [vmem:[%s2 + $0xd0] sm:$0xff]
  %v2169 = vld [vmem:[%s2 + $0xd8] sm:$0xff]
  %v2170 = vld [vmem:[%s2 + $0xe0] sm:$0xff]
  %v2171 = vld [vmem:[%s2 + $0xe8] sm:$0xff]
  %v2172 = vld [vmem:[%s2 + $0xf0] sm:$0xff]
  %v2173 = vld [vmem:[%s2 + $0xf8] sm:$0xff]
  %v2206 = vunpack.c.l.b16 %v2142
  %v2207 = vunpack.c.h.b16 %v2142
  %v2208 = vunpack.c.l.b16 %v2143
  %v2209 = vunpack.c.h.b16 %v2143
  %v2210 = vunpack.c.l.b16 %v2144
  %v2211 = vunpack.c.h.b16 %v2144
  %v2212 = vunpack.c.l.b16 %v2145
  %v2213 = vunpack.c.h.b16 %v2145
  %v2214 = vunpack.c.l.b16 %v2146
  %v2215 = vunpack.c.h.b16 %v2146
  %v2216 = vunpack.c.l.b16 %v2147
  %v2217 = vunpack.c.h.b16 %v2147
  %v2218 = vunpack.c.l.b16 %v2148
  %v2219 = vunpack.c.h.b16 %v2148
  %v2220 = vunpack.c.l.b16 %v2149
  %v2221 = vunpack.c.h.b16 %v2149
  %v2222 = vunpack.c.l.b16 %v2150
  %v2223 = vunpack.c.h.b16 %v2150
  %v2224 = vunpack.c.l.b16 %v2151
  %v2225 = vunpack.c.h.b16 %v2151
  %v2226 = vunpack.c.l.b16 %v2152
  %v2227 = vunpack.c.h.b16 %v2152
  %v2228 = vunpack.c.l.b16 %v2153
  %v2229 = vunpack.c.h.b16 %v2153
  %v2230 = vunpack.c.l.b16 %v2154
  %v2231 = vunpack.c.h.b16 %v2154
  %v2232 = vunpack.c.l.b16 %v2155
  %v2233 = vunpack.c.h.b16 %v2155
  %v2234 = vunpack.c.l.b16 %v2156
  %v2235 = vunpack.c.h.b16 %v2156
  %v2236 = vunpack.c.l.b16 %v2157
  %v2237 = vunpack.c.h.b16 %v2157
  %v2238 = vunpack.c.l.b16 %v2158
  %v2239 = vunpack.c.h.b16 %v2158
  %v2240 = vunpack.c.l.b16 %v2159
  %v2241 = vunpack.c.h.b16 %v2159
  %v2242 = vunpack.c.l.b16 %v2160
  %v2243 = vunpack.c.h.b16 %v2160
  %v2244 = vunpack.c.l.b16 %v2161
  %v2245 = vunpack.c.h.b16 %v2161
  %v2246 = vunpack.c.l.b16 %v2162
  %v2247 = vunpack.c.h.b16 %v2162
  %v2248 = vunpack.c.l.b16 %v2163
  %v2249 = vunpack.c.h.b16 %v2163
  %v2250 = vunpack.c.l.b16 %v2164
  %v2251 = vunpack.c.h.b16 %v2164
  %v2252 = vunpack.c.l.b16 %v2165
  %v2253 = vunpack.c.h.b16 %v2165
  %v2254 = vunpack.c.l.b16 %v2166
  %v2255 = vunpack.c.h.b16 %v2166
  %v2256 = vunpack.c.l.b16 %v2167
  %v2257 = vunpack.c.h.b16 %v2167
  %v2258 = vunpack.c.l.b16 %v2168
  %v2259 = vunpack.c.h.b16 %v2168
  %v2260 = vunpack.c.l.b16 %v2169
  %v2261 = vunpack.c.h.b16 %v2169
  %v2262 = vunpack.c.l.b16 %v2170
  %v2263 = vunpack.c.h.b16 %v2170
  %v2264 = vunpack.c.l.b16 %v2171
  %v2265 = vunpack.c.h.b16 %v2171
  %v2266 = vunpack.c.l.b16 %v2172
  %v2267 = vunpack.c.h.b16 %v2172
  %v2268 = vunpack.c.l.b16 %v2173
  %v2269 = vunpack.c.h.b16 %v2173
  %v2270 = vpack.c.b16 %v2210, %v2206
  %v2271 = vpack.c.b16 %v2211, %v2207
  %v2272 = vpack.c.b16 %v2212, %v2208
  %v2273 = vpack.c.b16 %v2213, %v2209
  %v2274 = vpack.c.b16 %v2218, %v2214
  %v2275 = vpack.c.b16 %v2219, %v2215
  %v2276 = vpack.c.b16 %v2220, %v2216
  %v2277 = vpack.c.b16 %v2221, %v2217
  %v2278 = vpack.c.b16 %v2226, %v2222
  %v2279 = vpack.c.b16 %v2227, %v2223
  %v2280 = vpack.c.b16 %v2228, %v2224
  %v2281 = vpack.c.b16 %v2229, %v2225
  %v2282 = vpack.c.b16 %v2234, %v2230
  %v2283 = vpack.c.b16 %v2235, %v2231
  %v2284 = vpack.c.b16 %v2236, %v2232
  %v2285 = vpack.c.b16 %v2237, %v2233
  %v2286 = vpack.c.b16 %v2242, %v2238
  %v2287 = vpack.c.b16 %v2243, %v2239
  %v2288 = vpack.c.b16 %v2244, %v2240
  %v2289 = vpack.c.b16 %v2245, %v2241
  %v2290 = vpack.c.b16 %v2250, %v2246
  %v2291 = vpack.c.b16 %v2251, %v2247
  %v2292 = vpack.c.b16 %v2252, %v2248
  %v2293 = vpack.c.b16 %v2253, %v2249
  %v2294 = vpack.c.b16 %v2258, %v2254
  %v2295 = vpack.c.b16 %v2259, %v2255
  %v2296 = vpack.c.b16 %v2260, %v2256
  %v2297 = vpack.c.b16 %v2261, %v2257
  %v2298 = vpack.c.b16 %v2266, %v2262
  %v2299 = vpack.c.b16 %v2267, %v2263
  %v2300 = vpack.c.b16 %v2268, %v2264
  %v2301 = vpack.c.b16 %v2269, %v2265
  %2334 = vmatpush.bf16.msra.mxu0 %v2298
  %2335 = vmatpush.bf16.msra.mxu0 %v2294
  %2336 = vmatpush.bf16.msra.mxu0 %v2290
  %2337 = vmatpush.bf16.msra.mxu0 %v2286
  %2338 = vmatpush.bf16.msra.mxu0 %v2282
  %2339 = vmatpush.bf16.msra.mxu0 %v2278
  %2340 = vmatpush.bf16.msra.mxu0 %v2274
  %2341 = vmatpush.bf16.msra.mxu0 %v2270
  %2342 = vmatmul.bf16.gmra.mxu0 %v1874
  %v2343 = vpop.f32.mrf.mxu0
  %v2344 = vadd.f32 0.0, %v2343
  %v2345 = vpop.f32.mrf.mxu0
  %2346 = vdwg.mxu0
  %2347 = vmatpush.bf16.msra.mxu0 %v2299
  %2348 = vmatpush.bf16.msra.mxu0 %v2295
  %2349 = vmatpush.bf16.msra.mxu0 %v2291
  %2350 = vmatpush.bf16.msra.mxu0 %v2287
  %2351 = vmatpush.bf16.msra.mxu0 %v2283
  %2352 = vmatpush.bf16.msra.mxu0 %v2279
  %2353 = vmatpush.bf16.msra.mxu0 %v2275
  %2354 = vmatpush.bf16.msra.mxu0 %v2271
  %2355 = vmatmul.bf16.gmra.mxu0 %v1874
  %v2356 = vpop.f32.mrf.mxu0
  %v2357 = vadd.f32 0.0, %v2356
  %v2358 = vpop.f32.mrf.mxu0
  %2359 = vdwg.mxu0
  %2360 = vmatpush.bf16.msra.mxu0 %v2300
  %2361 = vmatpush.bf16.msra.mxu0 %v2296
  %2362 = vmatpush.bf16.msra.mxu0 %v2292
  %2363 = vmatpush.bf16.msra.mxu0 %v2288
  %2364 = vmatpush.bf16.msra.mxu0 %v2284
  %2365 = vmatpush.bf16.msra.mxu0 %v2280
  %2366 = vmatpush.bf16.msra.mxu0 %v2276
  %2367 = vmatpush.bf16.msra.mxu0 %v2272
  %2368 = vmatmul.bf16.gmra.mxu0 %v1874
  %v2369 = vpop.f32.mrf.mxu0
  %v2370 = vadd.f32 0.0, %v2369
  %v2371 = vpop.f32.mrf.mxu0
  %2372 = vdwg.mxu0
  %2373 = vmatpush.bf16.msra.mxu0 %v2301
  %2374 = vmatpush.bf16.msra.mxu0 %v2297
  %2375 = vmatpush.bf16.msra.mxu0 %v2293
  %2376 = vmatpush.bf16.msra.mxu0 %v2289
  %2377 = vmatpush.bf16.msra.mxu0 %v2285
  %2378 = vmatpush.bf16.msra.mxu0 %v2281
  %2379 = vmatpush.bf16.msra.mxu0 %v2277
  %2380 = vmatpush.bf16.msra.mxu0 %v2273
  %2381 = vmatmul.bf16.gmra.mxu0 %v1874
  %v2382 = vpop.f32.mrf.mxu0
  %v2383 = vadd.f32 0.0, %v2382
  %v2384 = vpop.f32.mrf.mxu0
  %2385 = vdwg.mxu0
  %v2386 = vadd.f32 %v2138, %v2344
  %v2387 = vadd.f32 %v2139, %v2357
  %v2388 = vadd.f32 %v2140, %v2370
  %v2389 = vadd.f32 %v2141, %v2383
  %v2390 = vxor.u32 %v2386, 2147483648
  %v2391 = vmul.f32 %v2390, 1.442695
  %v2392 = vpow.pop %v2391
  %v2393 = vadd.f32 %v2392, 1.0
  %v2394 = vrcp.pop %v2393
  %v2395 = vmul.f32 %v2393, %v2394
  %v2396 = vsub.f32 1.0, %v2395
  %v2397 = vmul.f32 %v2394, %v2396
  %v2398 = vadd.f32 %v2394, %v2397
  %vm2399 = vweird.f32 %v2393
  %vm2400 = vweird.f32 %v2394
  %vm2401 = vmor %vm2399, %vm2400
  %v2402 = vsel %vm2401, %v2394, %v2398
  %v2403 = vand.u32 2147483647, %v2393
  %vm2404 = vcmp.eq.f32.partialorder %v2403, 8.507059e+37
  %v2405 = vand.u32 %v2393, 2147483648
  %v2406 = vor.u32 1.1754944e-38, %v2405
  %v2407 = vsel %vm2404, %v2406, %v2402
  %v2408 = vmul.f32 1.0, %v2407
  %v2409 = vxor.u32 %v2387, 2147483648
  %v2410 = vmul.f32 %v2409, 1.442695
  %v2411 = vpow.pop %v2410
  %v2412 = vadd.f32 %v2411, 1.0
  %v2413 = vrcp.pop %v2412
  %v2414 = vmul.f32 %v2412, %v2413
  %v2415 = vsub.f32 1.0, %v2414
  %v2416 = vmul.f32 %v2413, %v2415
  %v2417 = vadd.f32 %v2413, %v2416
  %vm2418 = vweird.f32 %v2412
  %vm2419 = vweird.f32 %v2413
  %vm2420 = vmor %vm2418, %vm2419
  %v2421 = vsel %vm2420, %v2413, %v2417
  %v2422 = vand.u32 2147483647, %v2412
  %vm2423 = vcmp.eq.f32.partialorder %v2422, 8.507059e+37
  %v2424 = vand.u32 %v2412, 2147483648
  %v2425 = vor.u32 1.1754944e-38, %v2424
  %v2426 = vsel %vm2423, %v2425, %v2421
  %v2427 = vmul.f32 1.0, %v2426
  %v2428 = vtanh.pop %v2388
  %v2429 = vxor.u32 %v2389, 2147483648
  %v2430 = vmul.f32 %v2429, 1.442695
  %v2431 = vpow.pop %v2430
  %v2432 = vadd.f32 %v2431, 1.0
  %v2433 = vrcp.pop %v2432
  %v2434 = vmul.f32 %v2432, %v2433
  %v2435 = vsub.f32 1.0, %v2434
  %v2436 = vmul.f32 %v2433, %v2435
  %v2437 = vadd.f32 %v2433, %v2436
  %vm2438 = vweird.f32 %v2432
  %vm2439 = vweird.f32 %v2433
  %vm2440 = vmor %vm2438, %vm2439
  %v2441 = vsel %vm2440, %v2433, %v2437
  %v2442 = vand.u32 2147483647, %v2432
  %vm2443 = vcmp.eq.f32.partialorder %v2442, 8.507059e+37
  %v2444 = vand.u32 %v2432, 2147483648
  %v2445 = vor.u32 1.1754944e-38, %v2444
  %v2446 = vsel %vm2443, %v2445, %v2441
  %v2447 = vmul.f32 1.0, %v2446
  %v2448 = vmul.f32 %v2427, %v1871
  %v2449 = vmul.f32 %v2408, %v2428
  %v2450 = vadd.f32 %v2448, %v2449
  %v2451 = vtanh.pop %v2450
  %v2452 = vmul.f32 %v2447, %v2451
  %v2453 = vpack.c.bf16 %v2452, %v2452
  %v2454 = vld [vmem:[%s4] sm:$0xff]
  %v2455 = vld [vmem:[%s4 + $0x8] sm:$0xff]
  %v2456 = vld [vmem:[%s4 + $0x10] sm:$0xff]
  %v2457 = vld [vmem:[%s4 + $0x18] sm:$0xff]
  %v2458 = vld [vmem:[%s4 + $0x20] sm:$0xff]
  %v2459 = vld [vmem:[%s4 + $0x28] sm:$0xff]
  %v2460 = vld [vmem:[%s4 + $0x30] sm:$0xff]
  %v2461 = vld [vmem:[%s4 + $0x38] sm:$0xff]
  %v2462 = vld [vmem:[%s4 + $0x40] sm:$0xff]
  %v2463 = vld [vmem:[%s4 + $0x48] sm:$0xff]
  %v2464 = vld [vmem:[%s4 + $0x50] sm:$0xff]
  %v2465 = vld [vmem:[%s4 + $0x58] sm:$0xff]
  %v2466 = vld [vmem:[%s4 + $0x60] sm:$0xff]
  %v2467 = vld [vmem:[%s4 + $0x68] sm:$0xff]
  %v2468 = vld [vmem:[%s4 + $0x70] sm:$0xff]
  %v2469 = vld [vmem:[%s4 + $0x78] sm:$0xff]
  %v2470 = vld [vmem:[%s4 + $0x80] sm:$0xff]
  %v2471 = vld [vmem:[%s4 + $0x88] sm:$0xff]
  %v2472 = vld [vmem:[%s4 + $0x90] sm:$0xff]
  %v2473 = vld [vmem:[%s4 + $0x98] sm:$0xff]
  %v2474 = vld [vmem:[%s4 + $0xa0] sm:$0xff]
  %v2475 = vld [vmem:[%s4 + $0xa8] sm:$0xff]
  %v2476 = vld [vmem:[%s4 + $0xb0] sm:$0xff]
  %v2477 = vld [vmem:[%s4 + $0xb8] sm:$0xff]
  %v2478 = vld [vmem:[%s4 + $0xc0] sm:$0xff]
  %v2479 = vld [vmem:[%s4 + $0xc8] sm:$0xff]
  %v2480 = vld [vmem:[%s4 + $0xd0] sm:$0xff]
  %v2481 = vld [vmem:[%s4 + $0xd8] sm:$0xff]
  %v2482 = vld [vmem:[%s4 + $0xe0] sm:$0xff]
  %v2483 = vld [vmem:[%s4 + $0xe8] sm:$0xff]
  %v2484 = vld [vmem:[%s4 + $0xf0] sm:$0xff]
  %v2485 = vld [vmem:[%s4 + $0xf8] sm:$0xff]
  %v2486 = vld [vmem:[%s6] sm:$0xf]
  %v2488 = vperm.slane %v2486, 0
  %v2489 = vperm.slane %v2486, 1
  %v2490 = vperm.slane %v2486, 2
  %v2491 = vperm.slane %v2486, 3
  %v2528 = vunpack.c.l.b16 %v2454
  %v2529 = vunpack.c.h.b16 %v2454
  %v2530 = vunpack.c.l.b16 %v2455
  %v2531 = vunpack.c.h.b16 %v2455
  %v2532 = vunpack.c.l.b16 %v2456
  %v2533 = vunpack.c.h.b16 %v2456
  %v2534 = vunpack.c.l.b16 %v2457
  %v2535 = vunpack.c.h.b16 %v2457
  %v2536 = vunpack.c.l.b16 %v2458
  %v2537 = vunpack.c.h.b16 %v2458
  %v2538 = vunpack.c.l.b16 %v2459
  %v2539 = vunpack.c.h.b16 %v2459
  %v2540 = vunpack.c.l.b16 %v2460
  %v2541 = vunpack.c.h.b16 %v2460
  %v2542 = vunpack.c.l.b16 %v2461
  %v2543 = vunpack.c.h.b16 %v2461
  %v2544 = vunpack.c.l.b16 %v2462
  %v2545 = vunpack.c.h.b16 %v2462
  %v2546 = vunpack.c.l.b16 %v2463
  %v2547 = vunpack.c.h.b16 %v2463
  %v2548 = vunpack.c.l.b16 %v2464
  %v2549 = vunpack.c.h.b16 %v2464
  %v2550 = vunpack.c.l.b16 %v2465
  %v2551 = vunpack.c.h.b16 %v2465
  %v2552 = vunpack.c.l.b16 %v2466
  %v2553 = vunpack.c.h.b16 %v2466
  %v2554 = vunpack.c.l.b16 %v2467
  %v2555 = vunpack.c.h.b16 %v2467
  %v2556 = vunpack.c.l.b16 %v2468
  %v2557 = vunpack.c.h.b16 %v2468
  %v2558 = vunpack.c.l.b16 %v2469
  %v2559 = vunpack.c.h.b16 %v2469
  %v2560 = vunpack.c.l.b16 %v2470
  %v2561 = vunpack.c.h.b16 %v2470
  %v2562 = vunpack.c.l.b16 %v2471
  %v2563 = vunpack.c.h.b16 %v2471
  %v2564 = vunpack.c.l.b16 %v2472
  %v2565 = vunpack.c.h.b16 %v2472
  %v2566 = vunpack.c.l.b16 %v2473
  %v2567 = vunpack.c.h.b16 %v2473
  %v2568 = vunpack.c.l.b16 %v2474
  %v2569 = vunpack.c.h.b16 %v2474
  %v2570 = vunpack.c.l.b16 %v2475
  %v2571 = vunpack.c.h.b16 %v2475
  %v2572 = vunpack.c.l.b16 %v2476
  %v2573 = vunpack.c.h.b16 %v2476
  %v2574 = vunpack.c.l.b16 %v2477
  %v2575 = vunpack.c.h.b16 %v2477
  %v2576 = vunpack.c.l.b16 %v2478
  %v2577 = vunpack.c.h.b16 %v2478
  %v2578 = vunpack.c.l.b16 %v2479
  %v2579 = vunpack.c.h.b16 %v2479
  %v2580 = vunpack.c.l.b16 %v2480
  %v2581 = vunpack.c.h.b16 %v2480
  %v2582 = vunpack.c.l.b16 %v2481
  %v2583 = vunpack.c.h.b16 %v2481
  %v2584 = vunpack.c.l.b16 %v2482
  %v2585 = vunpack.c.h.b16 %v2482
  %v2586 = vunpack.c.l.b16 %v2483
  %v2587 = vunpack.c.h.b16 %v2483
  %v2588 = vunpack.c.l.b16 %v2484
  %v2589 = vunpack.c.h.b16 %v2484
  %v2590 = vunpack.c.l.b16 %v2485
  %v2591 = vunpack.c.h.b16 %v2485
  %v2592 = vpack.c.b16 %v2532, %v2528
  %v2593 = vpack.c.b16 %v2533, %v2529
  %v2594 = vpack.c.b16 %v2534, %v2530
  %v2595 = vpack.c.b16 %v2535, %v2531
  %v2596 = vpack.c.b16 %v2540, %v2536
  %v2597 = vpack.c.b16 %v2541, %v2537
  %v2598 = vpack.c.b16 %v2542, %v2538
  %v2599 = vpack.c.b16 %v2543, %v2539
  %v2600 = vpack.c.b16 %v2548, %v2544
  %v2601 = vpack.c.b16 %v2549, %v2545
  %v2602 = vpack.c.b16 %v2550, %v2546
  %v2603 = vpack.c.b16 %v2551, %v2547
  %v2604 = vpack.c.b16 %v2556, %v2552
  %v2605 = vpack.c.b16 %v2557, %v2553
  %v2606 = vpack.c.b16 %v2558, %v2554
  %v2607 = vpack.c.b16 %v2559, %v2555
  %v2608 = vpack.c.b16 %v2564, %v2560
  %v2609 = vpack.c.b16 %v2565, %v2561
  %v2610 = vpack.c.b16 %v2566, %v2562
  %v2611 = vpack.c.b16 %v2567, %v2563
  %v2612 = vpack.c.b16 %v2572, %v2568
  %v2613 = vpack.c.b16 %v2573, %v2569
  %v2614 = vpack.c.b16 %v2574, %v2570
  %v2615 = vpack.c.b16 %v2575, %v2571
  %v2616 = vpack.c.b16 %v2580, %v2576
  %v2617 = vpack.c.b16 %v2581, %v2577
  %v2618 = vpack.c.b16 %v2582, %v2578
  %v2619 = vpack.c.b16 %v2583, %v2579
  %v2620 = vpack.c.b16 %v2588, %v2584
  %v2621 = vpack.c.b16 %v2589, %v2585
  %v2622 = vpack.c.b16 %v2590, %v2586
  %v2623 = vpack.c.b16 %v2591, %v2587
  %2656 = vmatpush.bf16.msra.mxu0 %v2620
  %2657 = vmatpush.bf16.msra.mxu0 %v2616
  %2658 = vmatpush.bf16.msra.mxu0 %v2612
  %2659 = vmatpush.bf16.msra.mxu0 %v2608
  %2660 = vmatpush.bf16.msra.mxu0 %v2604
  %2661 = vmatpush.bf16.msra.mxu0 %v2600
  %2662 = vmatpush.bf16.msra.mxu0 %v2596
  %2663 = vmatpush.bf16.msra.mxu0 %v2592
  %2664 = vmatmul.bf16.gmra.mxu0 %v2453
  %v2665 = vpop.f32.mrf.mxu0
  %v2666 = vadd.f32 %v2488, %v2665
  %v2667 = vpop.f32.mrf.mxu0
  %2668 = vdwg.mxu0
  %2669 = vmatpush.bf16.msra.mxu0 %v2621
  %2670 = vmatpush.bf16.msra.mxu0 %v2617
  %2671 = vmatpush.bf16.msra.mxu0 %v2613
  %2672 = vmatpush.bf16.msra.mxu0 %v2609
  %2673 = vmatpush.bf16.msra.mxu0 %v2605
  %2674 = vmatpush.bf16.msra.mxu0 %v2601
  %2675 = vmatpush.bf16.msra.mxu0 %v2597
  %2676 = vmatpush.bf16.msra.mxu0 %v2593
  %2677 = vmatmul.bf16.gmra.mxu0 %v2453
  %v2678 = vpop.f32.mrf.mxu0
  %v2679 = vadd.f32 %v2489, %v2678
  %v2680 = vpop.f32.mrf.mxu0
  %2681 = vdwg.mxu0
  %2682 = vmatpush.bf16.msra.mxu0 %v2622
  %2683 = vmatpush.bf16.msra.mxu0 %v2618
  %2684 = vmatpush.bf16.msra.mxu0 %v2614
  %2685 = vmatpush.bf16.msra.mxu0 %v2610
  %2686 = vmatpush.bf16.msra.mxu0 %v2606
  %2687 = vmatpush.bf16.msra.mxu0 %v2602
  %2688 = vmatpush.bf16.msra.mxu0 %v2598
  %2689 = vmatpush.bf16.msra.mxu0 %v2594
  %2690 = vmatmul.bf16.gmra.mxu0 %v2453
  %v2691 = vpop.f32.mrf.mxu0
  %v2692 = vadd.f32 %v2490, %v2691
  %v2693 = vpop.f32.mrf.mxu0
  %2694 = vdwg.mxu0
  %2695 = vmatpush.bf16.msra.mxu0 %v2623
  %2696 = vmatpush.bf16.msra.mxu0 %v2619
  %2697 = vmatpush.bf16.msra.mxu0 %v2615
  %2698 = vmatpush.bf16.msra.mxu0 %v2611
  %2699 = vmatpush.bf16.msra.mxu0 %v2607
  %2700 = vmatpush.bf16.msra.mxu0 %v2603
  %2701 = vmatpush.bf16.msra.mxu0 %v2599
  %2702 = vmatpush.bf16.msra.mxu0 %v2595
  %2703 = vmatmul.bf16.gmra.mxu0 %v2453
  %v2704 = vpop.f32.mrf.mxu0
  %v2705 = vadd.f32 %v2491, %v2704
  %v2706 = vpop.f32.mrf.mxu0
  %2707 = vdwg.mxu0
  %s2708 = smul.addr %s2135, 8
  %s2709 = scalar_lea.vmem [#allocation3], %s2708
  %2710 = vst [vmem:[%s2709] sm:$0xff] %v2666
  %2711 = vst [vmem:[%s2709 + $0x8] sm:$0xff] %v2679
  %2712 = vst [vmem:[%s2709 + $0x10] sm:$0xff] %v2692
  %2713 = vst [vmem:[%s2709 + $0x18] sm:$0xff] %v2705
  %s2714 = smul.u32 4, 4
  %s2715 = smul.addr %s2714, 8
  %s2716 = scalar_lea.vmem [#allocation2], %s2715
  %v2717 = vld [vmem:[%s2716] sm:$0xff]
  %v2718 = vld [vmem:[%s2716 + $0x8] sm:$0xff]
  %v2719 = vld [vmem:[%s2716 + $0x10] sm:$0xff]
  %v2720 = vld [vmem:[%s2716 + $0x18] sm:$0xff]
  %v2721 = vld [vmem:[%s2] sm:$0xff]
  %v2722 = vld [vmem:[%s2 + $0x8] sm:$0xff]
  %v2723 = vld [vmem:[%s2 + $0x10] sm:$0xff]
  %v2724 = vld [vmem:[%s2 + $0x18] sm:$0xff]
  %v2725 = vld [vmem:[%s2 + $0x20] sm:$0xff]
  %v2726 = vld [vmem:[%s2 + $0x28] sm:$0xff]
  %v2727 = vld [vmem:[%s2 + $0x30] sm:$0xff]
  %v2728 = vld [vmem:[%s2 + $0x38] sm:$0xff]
  %v2729 = vld [vmem:[%s2 + $0x40] sm:$0xff]
  %v2730 = vld [vmem:[%s2 + $0x48] sm:$0xff]
  %v2731 = vld [vmem:[%s2 + $0x50] sm:$0xff]
  %v2732 = vld [vmem:[%s2 + $0x58] sm:$0xff]
  %v2733 = vld [vmem:[%s2 + $0x60] sm:$0xff]
  %v2734 = vld [vmem:[%s2 + $0x68] sm:$0xff]
  %v2735 = vld [vmem:[%s2 + $0x70] sm:$0xff]
  %v2736 = vld [vmem:[%s2 + $0x78] sm:$0xff]
  %v2737 = vld [vmem:[%s2 + $0x80] sm:$0xff]
  %v2738 = vld [vmem:[%s2 + $0x88] sm:$0xff]
  %v2739 = vld [vmem:[%s2 + $0x90] sm:$0xff]
  %v2740 = vld [vmem:[%s2 + $0x98] sm:$0xff]
  %v2741 = vld [vmem:[%s2 + $0xa0] sm:$0xff]
  %v2742 = vld [vmem:[%s2 + $0xa8] sm:$0xff]
  %v2743 = vld [vmem:[%s2 + $0xb0] sm:$0xff]
  %v2744 = vld [vmem:[%s2 + $0xb8] sm:$0xff]
  %v2745 = vld [vmem:[%s2 + $0xc0] sm:$0xff]
  %v2746 = vld [vmem:[%s2 + $0xc8] sm:$0xff]
  %v2747 = vld [vmem:[%s2 + $0xd0] sm:$0xff]
  %v2748 = vld [vmem:[%s2 + $0xd8] sm:$0xff]
  %v2749 = vld [vmem:[%s2 + $0xe0] sm:$0xff]
  %v2750 = vld [vmem:[%s2 + $0xe8] sm:$0xff]
  %v2751 = vld [vmem:[%s2 + $0xf0] sm:$0xff]
  %v2752 = vld [vmem:[%s2 + $0xf8] sm:$0xff]
  %v2785 = vunpack.c.l.b16 %v2721
  %v2786 = vunpack.c.h.b16 %v2721
  %v2787 = vunpack.c.l.b16 %v2722
  %v2788 = vunpack.c.h.b16 %v2722
  %v2789 = vunpack.c.l.b16 %v2723
  %v2790 = vunpack.c.h.b16 %v2723
  %v2791 = vunpack.c.l.b16 %v2724
  %v2792 = vunpack.c.h.b16 %v2724
  %v2793 = vunpack.c.l.b16 %v2725
  %v2794 = vunpack.c.h.b16 %v2725
  %v2795 = vunpack.c.l.b16 %v2726
  %v2796 = vunpack.c.h.b16 %v2726
  %v2797 = vunpack.c.l.b16 %v2727
  %v2798 = vunpack.c.h.b16 %v2727
  %v2799 = vunpack.c.l.b16 %v2728
  %v2800 = vunpack.c.h.b16 %v2728
  %v2801 = vunpack.c.l.b16 %v2729
  %v2802 = vunpack.c.h.b16 %v2729
  %v2803 = vunpack.c.l.b16 %v2730
  %v2804 = vunpack.c.h.b16 %v2730
  %v2805 = vunpack.c.l.b16 %v2731
  %v2806 = vunpack.c.h.b16 %v2731
  %v2807 = vunpack.c.l.b16 %v2732
  %v2808 = vunpack.c.h.b16 %v2732
  %v2809 = vunpack.c.l.b16 %v2733
  %v2810 = vunpack.c.h.b16 %v2733
  %v2811 = vunpack.c.l.b16 %v2734
  %v2812 = vunpack.c.h.b16 %v2734
  %v2813 = vunpack.c.l.b16 %v2735
  %v2814 = vunpack.c.h.b16 %v2735
  %v2815 = vunpack.c.l.b16 %v2736
  %v2816 = vunpack.c.h.b16 %v2736
  %v2817 = vunpack.c.l.b16 %v2737
  %v2818 = vunpack.c.h.b16 %v2737
  %v2819 = vunpack.c.l.b16 %v2738
  %v2820 = vunpack.c.h.b16 %v2738
  %v2821 = vunpack.c.l.b16 %v2739
  %v2822 = vunpack.c.h.b16 %v2739
  %v2823 = vunpack.c.l.b16 %v2740
  %v2824 = vunpack.c.h.b16 %v2740
  %v2825 = vunpack.c.l.b16 %v2741
  %v2826 = vunpack.c.h.b16 %v2741
  %v2827 = vunpack.c.l.b16 %v2742
  %v2828 = vunpack.c.h.b16 %v2742
  %v2829 = vunpack.c.l.b16 %v2743
  %v2830 = vunpack.c.h.b16 %v2743
  %v2831 = vunpack.c.l.b16 %v2744
  %v2832 = vunpack.c.h.b16 %v2744
  %v2833 = vunpack.c.l.b16 %v2745
  %v2834 = vunpack.c.h.b16 %v2745
  %v2835 = vunpack.c.l.b16 %v2746
  %v2836 = vunpack.c.h.b16 %v2746
  %v2837 = vunpack.c.l.b16 %v2747
  %v2838 = vunpack.c.h.b16 %v2747
  %v2839 = vunpack.c.l.b16 %v2748
  %v2840 = vunpack.c.h.b16 %v2748
  %v2841 = vunpack.c.l.b16 %v2749
  %v2842 = vunpack.c.h.b16 %v2749
  %v2843 = vunpack.c.l.b16 %v2750
  %v2844 = vunpack.c.h.b16 %v2750
  %v2845 = vunpack.c.l.b16 %v2751
  %v2846 = vunpack.c.h.b16 %v2751
  %v2847 = vunpack.c.l.b16 %v2752
  %v2848 = vunpack.c.h.b16 %v2752
  %v2849 = vpack.c.b16 %v2789, %v2785
  %v2850 = vpack.c.b16 %v2790, %v2786
  %v2851 = vpack.c.b16 %v2791, %v2787
  %v2852 = vpack.c.b16 %v2792, %v2788
  %v2853 = vpack.c.b16 %v2797, %v2793
  %v2854 = vpack.c.b16 %v2798, %v2794
  %v2855 = vpack.c.b16 %v2799, %v2795
  %v2856 = vpack.c.b16 %v2800, %v2796
  %v2857 = vpack.c.b16 %v2805, %v2801
  %v2858 = vpack.c.b16 %v2806, %v2802
  %v2859 = vpack.c.b16 %v2807, %v2803
  %v2860 = vpack.c.b16 %v2808, %v2804
  %v2861 = vpack.c.b16 %v2813, %v2809
  %v2862 = vpack.c.b16 %v2814, %v2810
  %v2863 = vpack.c.b16 %v2815, %v2811
  %v2864 = vpack.c.b16 %v2816, %v2812
  %v2865 = vpack.c.b16 %v2821, %v2817
  %v2866 = vpack.c.b16 %v2822, %v2818
  %v2867 = vpack.c.b16 %v2823, %v2819
  %v2868 = vpack.c.b16 %v2824, %v2820
  %v2869 = vpack.c.b16 %v2829, %v2825
  %v2870 = vpack.c.b16 %v2830, %v2826
  %v2871 = vpack.c.b16 %v2831, %v2827
  %v2872 = vpack.c.b16 %v2832, %v2828
  %v2873 = vpack.c.b16 %v2837, %v2833
  %v2874 = vpack.c.b16 %v2838, %v2834
  %v2875 = vpack.c.b16 %v2839, %v2835
  %v2876 = vpack.c.b16 %v2840, %v2836
  %v2877 = vpack.c.b16 %v2845, %v2841
  %v2878 = vpack.c.b16 %v2846, %v2842
  %v2879 = vpack.c.b16 %v2847, %v2843
  %v2880 = vpack.c.b16 %v2848, %v2844
  %2913 = vmatpush.bf16.msra.mxu0 %v2877
  %2914 = vmatpush.bf16.msra.mxu0 %v2873
  %2915 = vmatpush.bf16.msra.mxu0 %v2869
  %2916 = vmatpush.bf16.msra.mxu0 %v2865
  %2917 = vmatpush.bf16.msra.mxu0 %v2861
  %2918 = vmatpush.bf16.msra.mxu0 %v2857
  %2919 = vmatpush.bf16.msra.mxu0 %v2853
  %2920 = vmatpush.bf16.msra.mxu0 %v2849
  %2921 = vmatmul.bf16.gmra.mxu0 %v2453
  %v2922 = vpop.f32.mrf.mxu0
  %v2923 = vadd.f32 0.0, %v2922
  %v2924 = vpop.f32.mrf.mxu0
  %2925 = vdwg.mxu0
  %2926 = vmatpush.bf16.msra.mxu0 %v2878
  %2927 = vmatpush.bf16.msra.mxu0 %v2874
  %2928 = vmatpush.bf16.msra.mxu0 %v2870
  %2929 = vmatpush.bf16.msra.mxu0 %v2866
  %2930 = vmatpush.bf16.msra.mxu0 %v2862
  %2931 = vmatpush.bf16.msra.mxu0 %v2858
  %2932 = vmatpush.bf16.msra.mxu0 %v2854
  %2933 = vmatpush.bf16.msra.mxu0 %v2850
  %2934 = vmatmul.bf16.gmra.mxu0 %v2453
  %v2935 = vpop.f32.mrf.mxu0
  %v2936 = vadd.f32 0.0, %v2935
  %v2937 = vpop.f32.mrf.mxu0
  %2938 = vdwg.mxu0
  %2939 = vmatpush.bf16.msra.mxu0 %v2879
  %2940 = vmatpush.bf16.msra.mxu0 %v2875
  %2941 = vmatpush.bf16.msra.mxu0 %v2871
  %2942 = vmatpush.bf16.msra.mxu0 %v2867
  %2943 = vmatpush.bf16.msra.mxu0 %v2863
  %2944 = vmatpush.bf16.msra.mxu0 %v2859
  %2945 = vmatpush.bf16.msra.mxu0 %v2855
  %2946 = vmatpush.bf16.msra.mxu0 %v2851
  %2947 = vmatmul.bf16.gmra.mxu0 %v2453
  %v2948 = vpop.f32.mrf.mxu0
  %v2949 = vadd.f32 0.0, %v2948
  %v2950 = vpop.f32.mrf.mxu0
  %2951 = vdwg.mxu0
  %2952 = vmatpush.bf16.msra.mxu0 %v2880
  %2953 = vmatpush.bf16.msra.mxu0 %v2876
  %2954 = vmatpush.bf16.msra.mxu0 %v2872
  %2955 = vmatpush.bf16.msra.mxu0 %v2868
  %2956 = vmatpush.bf16.msra.mxu0 %v2864
  %2957 = vmatpush.bf16.msra.mxu0 %v2860
  %2958 = vmatpush.bf16.msra.mxu0 %v2856
  %2959 = vmatpush.bf16.msra.mxu0 %v2852
  %2960 = vmatmul.bf16.gmra.mxu0 %v2453
  %v2961 = vpop.f32.mrf.mxu0
  %v2962 = vadd.f32 0.0, %v2961
  %v2963 = vpop.f32.mrf.mxu0
  %2964 = vdwg.mxu0
  %v2965 = vadd.f32 %v2717, %v2923
  %v2966 = vadd.f32 %v2718, %v2936
  %v2967 = vadd.f32 %v2719, %v2949
  %v2968 = vadd.f32 %v2720, %v2962
  %v2969 = vxor.u32 %v2965, 2147483648
  %v2970 = vmul.f32 %v2969, 1.442695
  %v2971 = vpow.pop %v2970
  %v2972 = vadd.f32 %v2971, 1.0
  %v2973 = vrcp.pop %v2972
  %v2974 = vmul.f32 %v2972, %v2973
  %v2975 = vsub.f32 1.0, %v2974
  %v2976 = vmul.f32 %v2973, %v2975
  %v2977 = vadd.f32 %v2973, %v2976
  %vm2978 = vweird.f32 %v2972
  %vm2979 = vweird.f32 %v2973
  %vm2980 = vmor %vm2978, %vm2979
  %v2981 = vsel %vm2980, %v2973, %v2977
  %v2982 = vand.u32 2147483647, %v2972
  %vm2983 = vcmp.eq.f32.partialorder %v2982, 8.507059e+37
  %v2984 = vand.u32 %v2972, 2147483648
  %v2985 = vor.u32 1.1754944e-38, %v2984
  %v2986 = vsel %vm2983, %v2985, %v2981
  %v2987 = vmul.f32 1.0, %v2986
  %v2988 = vxor.u32 %v2966, 2147483648
  %v2989 = vmul.f32 %v2988, 1.442695
  %v2990 = vpow.pop %v2989
  %v2991 = vadd.f32 %v2990, 1.0
  %v2992 = vrcp.pop %v2991
  %v2993 = vmul.f32 %v2991, %v2992
  %v2994 = vsub.f32 1.0, %v2993
  %v2995 = vmul.f32 %v2992, %v2994
  %v2996 = vadd.f32 %v2992, %v2995
  %vm2997 = vweird.f32 %v2991
  %vm2998 = vweird.f32 %v2992
  %vm2999 = vmor %vm2997, %vm2998
  %v3000 = vsel %vm2999, %v2992, %v2996
  %v3001 = vand.u32 2147483647, %v2991
  %vm3002 = vcmp.eq.f32.partialorder %v3001, 8.507059e+37
  %v3003 = vand.u32 %v2991, 2147483648
  %v3004 = vor.u32 1.1754944e-38, %v3003
  %v3005 = vsel %vm3002, %v3004, %v3000
  %v3006 = vmul.f32 1.0, %v3005
  %v3007 = vtanh.pop %v2967
  %v3008 = vxor.u32 %v2968, 2147483648
  %v3009 = vmul.f32 %v3008, 1.442695
  %v3010 = vpow.pop %v3009
  %v3011 = vadd.f32 %v3010, 1.0
  %v3012 = vrcp.pop %v3011
  %v3013 = vmul.f32 %v3011, %v3012
  %v3014 = vsub.f32 1.0, %v3013
  %v3015 = vmul.f32 %v3012, %v3014
  %v3016 = vadd.f32 %v3012, %v3015
  %vm3017 = vweird.f32 %v3011
  %vm3018 = vweird.f32 %v3012
  %vm3019 = vmor %vm3017, %vm3018
  %v3020 = vsel %vm3019, %v3012, %v3016
  %v3021 = vand.u32 2147483647, %v3011
  %vm3022 = vcmp.eq.f32.partialorder %v3021, 8.507059e+37
  %v3023 = vand.u32 %v3011, 2147483648
  %v3024 = vor.u32 1.1754944e-38, %v3023
  %v3025 = vsel %vm3022, %v3024, %v3020
  %v3026 = vmul.f32 1.0, %v3025
  %v3027 = vmul.f32 %v3006, %v2450
  %v3028 = vmul.f32 %v2987, %v3007
  %v3029 = vadd.f32 %v3027, %v3028
  %v3030 = vtanh.pop %v3029
  %v3031 = vmul.f32 %v3026, %v3030
  %v3032 = vpack.c.bf16 %v3031, %v3031
  %v3033 = vld [vmem:[%s4] sm:$0xff]
  %v3034 = vld [vmem:[%s4 + $0x8] sm:$0xff]
  %v3035 = vld [vmem:[%s4 + $0x10] sm:$0xff]
  %v3036 = vld [vmem:[%s4 + $0x18] sm:$0xff]
  %v3037 = vld [vmem:[%s4 + $0x20] sm:$0xff]
  %v3038 = vld [vmem:[%s4 + $0x28] sm:$0xff]
  %v3039 = vld [vmem:[%s4 + $0x30] sm:$0xff]
  %v3040 = vld [vmem:[%s4 + $0x38] sm:$0xff]
  %v3041 = vld [vmem:[%s4 + $0x40] sm:$0xff]
  %v3042 = vld [vmem:[%s4 + $0x48] sm:$0xff]
  %v3043 = vld [vmem:[%s4 + $0x50] sm:$0xff]
  %v3044 = vld [vmem:[%s4 + $0x58] sm:$0xff]
  %v3045 = vld [vmem:[%s4 + $0x60] sm:$0xff]
  %v3046 = vld [vmem:[%s4 + $0x68] sm:$0xff]
  %v3047 = vld [vmem:[%s4 + $0x70] sm:$0xff]
  %v3048 = vld [vmem:[%s4 + $0x78] sm:$0xff]
  %v3049 = vld [vmem:[%s4 + $0x80] sm:$0xff]
  %v3050 = vld [vmem:[%s4 + $0x88] sm:$0xff]
  %v3051 = vld [vmem:[%s4 + $0x90] sm:$0xff]
  %v3052 = vld [vmem:[%s4 + $0x98] sm:$0xff]
  %v3053 = vld [vmem:[%s4 + $0xa0] sm:$0xff]
  %v3054 = vld [vmem:[%s4 + $0xa8] sm:$0xff]
  %v3055 = vld [vmem:[%s4 + $0xb0] sm:$0xff]
  %v3056 = vld [vmem:[%s4 + $0xb8] sm:$0xff]
  %v3057 = vld [vmem:[%s4 + $0xc0] sm:$0xff]
  %v3058 = vld [vmem:[%s4 + $0xc8] sm:$0xff]
  %v3059 = vld [vmem:[%s4 + $0xd0] sm:$0xff]
  %v3060 = vld [vmem:[%s4 + $0xd8] sm:$0xff]
  %v3061 = vld [vmem:[%s4 + $0xe0] sm:$0xff]
  %v3062 = vld [vmem:[%s4 + $0xe8] sm:$0xff]
  %v3063 = vld [vmem:[%s4 + $0xf0] sm:$0xff]
  %v3064 = vld [vmem:[%s4 + $0xf8] sm:$0xff]
  %v3065 = vld [vmem:[%s6] sm:$0xf]
  %v3067 = vperm.slane %v3065, 0
  %v3068 = vperm.slane %v3065, 1
  %v3069 = vperm.slane %v3065, 2
  %v3070 = vperm.slane %v3065, 3
  %v3107 = vunpack.c.l.b16 %v3033
  %v3108 = vunpack.c.h.b16 %v3033
  %v3109 = vunpack.c.l.b16 %v3034
  %v3110 = vunpack.c.h.b16 %v3034
  %v3111 = vunpack.c.l.b16 %v3035
  %v3112 = vunpack.c.h.b16 %v3035
  %v3113 = vunpack.c.l.b16 %v3036
  %v3114 = vunpack.c.h.b16 %v3036
  %v3115 = vunpack.c.l.b16 %v3037
  %v3116 = vunpack.c.h.b16 %v3037
  %v3117 = vunpack.c.l.b16 %v3038
  %v3118 = vunpack.c.h.b16 %v3038
  %v3119 = vunpack.c.l.b16 %v3039
  %v3120 = vunpack.c.h.b16 %v3039
  %v3121 = vunpack.c.l.b16 %v3040
  %v3122 = vunpack.c.h.b16 %v3040
  %v3123 = vunpack.c.l.b16 %v3041
  %v3124 = vunpack.c.h.b16 %v3041
  %v3125 = vunpack.c.l.b16 %v3042
  %v3126 = vunpack.c.h.b16 %v3042
  %v3127 = vunpack.c.l.b16 %v3043
  %v3128 = vunpack.c.h.b16 %v3043
  %v3129 = vunpack.c.l.b16 %v3044
  %v3130 = vunpack.c.h.b16 %v3044
  %v3131 = vunpack.c.l.b16 %v3045
  %v3132 = vunpack.c.h.b16 %v3045
  %v3133 = vunpack.c.l.b16 %v3046
  %v3134 = vunpack.c.h.b16 %v3046
  %v3135 = vunpack.c.l.b16 %v3047
  %v3136 = vunpack.c.h.b16 %v3047
  %v3137 = vunpack.c.l.b16 %v3048
  %v3138 = vunpack.c.h.b16 %v3048
  %v3139 = vunpack.c.l.b16 %v3049
  %v3140 = vunpack.c.h.b16 %v3049
  %v3141 = vunpack.c.l.b16 %v3050
  %v3142 = vunpack.c.h.b16 %v3050
  %v3143 = vunpack.c.l.b16 %v3051
  %v3144 = vunpack.c.h.b16 %v3051
  %v3145 = vunpack.c.l.b16 %v3052
  %v3146 = vunpack.c.h.b16 %v3052
  %v3147 = vunpack.c.l.b16 %v3053
  %v3148 = vunpack.c.h.b16 %v3053
  %v3149 = vunpack.c.l.b16 %v3054
  %v3150 = vunpack.c.h.b16 %v3054
  %v3151 = vunpack.c.l.b16 %v3055
  %v3152 = vunpack.c.h.b16 %v3055
  %v3153 = vunpack.c.l.b16 %v3056
  %v3154 = vunpack.c.h.b16 %v3056
  %v3155 = vunpack.c.l.b16 %v3057
  %v3156 = vunpack.c.h.b16 %v3057
  %v3157 = vunpack.c.l.b16 %v3058
  %v3158 = vunpack.c.h.b16 %v3058
  %v3159 = vunpack.c.l.b16 %v3059
  %v3160 = vunpack.c.h.b16 %v3059
  %v3161 = vunpack.c.l.b16 %v3060
  %v3162 = vunpack.c.h.b16 %v3060
  %v3163 = vunpack.c.l.b16 %v3061
  %v3164 = vunpack.c.h.b16 %v3061
  %v3165 = vunpack.c.l.b16 %v3062
  %v3166 = vunpack.c.h.b16 %v3062
  %v3167 = vunpack.c.l.b16 %v3063
  %v3168 = vunpack.c.h.b16 %v3063
  %v3169 = vunpack.c.l.b16 %v3064
  %v3170 = vunpack.c.h.b16 %v3064
  %v3171 = vpack.c.b16 %v3111, %v3107
  %v3172 = vpack.c.b16 %v3112, %v3108
  %v3173 = vpack.c.b16 %v3113, %v3109
  %v3174 = vpack.c.b16 %v3114, %v3110
  %v3175 = vpack.c.b16 %v3119, %v3115
  %v3176 = vpack.c.b16 %v3120, %v3116
  %v3177 = vpack.c.b16 %v3121, %v3117
  %v3178 = vpack.c.b16 %v3122, %v3118
  %v3179 = vpack.c.b16 %v3127, %v3123
  %v3180 = vpack.c.b16 %v3128, %v3124
  %v3181 = vpack.c.b16 %v3129, %v3125
  %v3182 = vpack.c.b16 %v3130, %v3126
  %v3183 = vpack.c.b16 %v3135, %v3131
  %v3184 = vpack.c.b16 %v3136, %v3132
  %v3185 = vpack.c.b16 %v3137, %v3133
  %v3186 = vpack.c.b16 %v3138, %v3134
  %v3187 = vpack.c.b16 %v3143, %v3139
  %v3188 = vpack.c.b16 %v3144, %v3140
  %v3189 = vpack.c.b16 %v3145, %v3141
  %v3190 = vpack.c.b16 %v3146, %v3142
  %v3191 = vpack.c.b16 %v3151, %v3147
  %v3192 = vpack.c.b16 %v3152, %v3148
  %v3193 = vpack.c.b16 %v3153, %v3149
  %v3194 = vpack.c.b16 %v3154, %v3150
  %v3195 = vpack.c.b16 %v3159, %v3155
  %v3196 = vpack.c.b16 %v3160, %v3156
  %v3197 = vpack.c.b16 %v3161, %v3157
  %v3198 = vpack.c.b16 %v3162, %v3158
  %v3199 = vpack.c.b16 %v3167, %v3163
  %v3200 = vpack.c.b16 %v3168, %v3164
  %v3201 = vpack.c.b16 %v3169, %v3165
  %v3202 = vpack.c.b16 %v3170, %v3166
  %3235 = vmatpush.bf16.msra.mxu0 %v3199
  %3236 = vmatpush.bf16.msra.mxu0 %v3195
  %3237 = vmatpush.bf16.msra.mxu0 %v3191
  %3238 = vmatpush.bf16.msra.mxu0 %v3187
  %3239 = vmatpush.bf16.msra.mxu0 %v3183
  %3240 = vmatpush.bf16.msra.mxu0 %v3179
  %3241 = vmatpush.bf16.msra.mxu0 %v3175
  %3242 = vmatpush.bf16.msra.mxu0 %v3171
  %3243 = vmatmul.bf16.gmra.mxu0 %v3032
  %v3244 = vpop.f32.mrf.mxu0
  %v3245 = vadd.f32 %v3067, %v3244
  %v3246 = vpop.f32.mrf.mxu0
  %3247 = vdwg.mxu0
  %3248 = vmatpush.bf16.msra.mxu0 %v3200
  %3249 = vmatpush.bf16.msra.mxu0 %v3196
  %3250 = vmatpush.bf16.msra.mxu0 %v3192
  %3251 = vmatpush.bf16.msra.mxu0 %v3188
  %3252 = vmatpush.bf16.msra.mxu0 %v3184
  %3253 = vmatpush.bf16.msra.mxu0 %v3180
  %3254 = vmatpush.bf16.msra.mxu0 %v3176
  %3255 = vmatpush.bf16.msra.mxu0 %v3172
  %3256 = vmatmul.bf16.gmra.mxu0 %v3032
  %v3257 = vpop.f32.mrf.mxu0
  %v3258 = vadd.f32 %v3068, %v3257
  %v3259 = vpop.f32.mrf.mxu0
  %3260 = vdwg.mxu0
  %3261 = vmatpush.bf16.msra.mxu0 %v3201
  %3262 = vmatpush.bf16.msra.mxu0 %v3197
  %3263 = vmatpush.bf16.msra.mxu0 %v3193
  %3264 = vmatpush.bf16.msra.mxu0 %v3189
  %3265 = vmatpush.bf16.msra.mxu0 %v3185
  %3266 = vmatpush.bf16.msra.mxu0 %v3181
  %3267 = vmatpush.bf16.msra.mxu0 %v3177
  %3268 = vmatpush.bf16.msra.mxu0 %v3173
  %3269 = vmatmul.bf16.gmra.mxu0 %v3032
  %v3270 = vpop.f32.mrf.mxu0
  %v3271 = vadd.f32 %v3069, %v3270
  %v3272 = vpop.f32.mrf.mxu0
  %3273 = vdwg.mxu0
  %3274 = vmatpush.bf16.msra.mxu0 %v3202
  %3275 = vmatpush.bf16.msra.mxu0 %v3198
  %3276 = vmatpush.bf16.msra.mxu0 %v3194
  %3277 = vmatpush.bf16.msra.mxu0 %v3190
  %3278 = vmatpush.bf16.msra.mxu0 %v3186
  %3279 = vmatpush.bf16.msra.mxu0 %v3182
  %3280 = vmatpush.bf16.msra.mxu0 %v3178
  %3281 = vmatpush.bf16.msra.mxu0 %v3174
  %3282 = vmatmul.bf16.gmra.mxu0 %v3032
  %v3283 = vpop.f32.mrf.mxu0
  %v3284 = vadd.f32 %v3070, %v3283
  %v3285 = vpop.f32.mrf.mxu0
  %3286 = vdwg.mxu0
  %s3287 = smul.addr %s2714, 8
  %s3288 = scalar_lea.vmem [#allocation3], %s3287
  %3289 = vst [vmem:[%s3288] sm:$0xff] %v3245
  %3290 = vst [vmem:[%s3288 + $0x8] sm:$0xff] %v3258
  %3291 = vst [vmem:[%s3288 + $0x10] sm:$0xff] %v3271
  %3292 = vst [vmem:[%s3288 + $0x18] sm:$0xff] %v3284
  %s3293 = smul.u32 5, 4
  %s3294 = smul.addr %s3293, 8
  %s3295 = scalar_lea.vmem [#allocation2], %s3294
  %v3296 = vld [vmem:[%s3295] sm:$0xff]
  %v3297 = vld [vmem:[%s3295 + $0x8] sm:$0xff]
  %v3298 = vld [vmem:[%s3295 + $0x10] sm:$0xff]
  %v3299 = vld [vmem:[%s3295 + $0x18] sm:$0xff]
  %v3300 = vld [vmem:[%s2] sm:$0xff]
  %v3301 = vld [vmem:[%s2 + $0x8] sm:$0xff]
  %v3302 = vld [vmem:[%s2 + $0x10] sm:$0xff]
  %v3303 = vld [vmem:[%s2 + $0x18] sm:$0xff]
  %v3304 = vld [vmem:[%s2 + $0x20] sm:$0xff]
  %v3305 = vld [vmem:[%s2 + $0x28] sm:$0xff]
  %v3306 = vld [vmem:[%s2 + $0x30] sm:$0xff]
  %v3307 = vld [vmem:[%s2 + $0x38] sm:$0xff]
  %v3308 = vld [vmem:[%s2 + $0x40] sm:$0xff]
  %v3309 = vld [vmem:[%s2 + $0x48] sm:$0xff]
  %v3310 = vld [vmem:[%s2 + $0x50] sm:$0xff]
  %v3311 = vld [vmem:[%s2 + $0x58] sm:$0xff]
  %v3312 = vld [vmem:[%s2 + $0x60] sm:$0xff]
  %v3313 = vld [vmem:[%s2 + $0x68] sm:$0xff]
  %v3314 = vld [vmem:[%s2 + $0x70] sm:$0xff]
  %v3315 = vld [vmem:[%s2 + $0x78] sm:$0xff]
  %v3316 = vld [vmem:[%s2 + $0x80] sm:$0xff]
  %v3317 = vld [vmem:[%s2 + $0x88] sm:$0xff]
  %v3318 = vld [vmem:[%s2 + $0x90] sm:$0xff]
  %v3319 = vld [vmem:[%s2 + $0x98] sm:$0xff]
  %v3320 = vld [vmem:[%s2 + $0xa0] sm:$0xff]
  %v3321 = vld [vmem:[%s2 + $0xa8] sm:$0xff]
  %v3322 = vld [vmem:[%s2 + $0xb0] sm:$0xff]
  %v3323 = vld [vmem:[%s2 + $0xb8] sm:$0xff]
  %v3324 = vld [vmem:[%s2 + $0xc0] sm:$0xff]
  %v3325 = vld [vmem:[%s2 + $0xc8] sm:$0xff]
  %v3326 = vld [vmem:[%s2 + $0xd0] sm:$0xff]
  %v3327 = vld [vmem:[%s2 + $0xd8] sm:$0xff]
  %v3328 = vld [vmem:[%s2 + $0xe0] sm:$0xff]
  %v3329 = vld [vmem:[%s2 + $0xe8] sm:$0xff]
  %v3330 = vld [vmem:[%s2 + $0xf0] sm:$0xff]
  %v3331 = vld [vmem:[%s2 + $0xf8] sm:$0xff]
  %v3364 = vunpack.c.l.b16 %v3300
  %v3365 = vunpack.c.h.b16 %v3300
  %v3366 = vunpack.c.l.b16 %v3301
  %v3367 = vunpack.c.h.b16 %v3301
  %v3368 = vunpack.c.l.b16 %v3302
  %v3369 = vunpack.c.h.b16 %v3302
  %v3370 = vunpack.c.l.b16 %v3303
  %v3371 = vunpack.c.h.b16 %v3303
  %v3372 = vunpack.c.l.b16 %v3304
  %v3373 = vunpack.c.h.b16 %v3304
  %v3374 = vunpack.c.l.b16 %v3305
  %v3375 = vunpack.c.h.b16 %v3305
  %v3376 = vunpack.c.l.b16 %v3306
  %v3377 = vunpack.c.h.b16 %v3306
  %v3378 = vunpack.c.l.b16 %v3307
  %v3379 = vunpack.c.h.b16 %v3307
  %v3380 = vunpack.c.l.b16 %v3308
  %v3381 = vunpack.c.h.b16 %v3308
  %v3382 = vunpack.c.l.b16 %v3309
  %v3383 = vunpack.c.h.b16 %v3309
  %v3384 = vunpack.c.l.b16 %v3310
  %v3385 = vunpack.c.h.b16 %v3310
  %v3386 = vunpack.c.l.b16 %v3311
  %v3387 = vunpack.c.h.b16 %v3311
  %v3388 = vunpack.c.l.b16 %v3312
  %v3389 = vunpack.c.h.b16 %v3312
  %v3390 = vunpack.c.l.b16 %v3313
  %v3391 = vunpack.c.h.b16 %v3313
  %v3392 = vunpack.c.l.b16 %v3314
  %v3393 = vunpack.c.h.b16 %v3314
  %v3394 = vunpack.c.l.b16 %v3315
  %v3395 = vunpack.c.h.b16 %v3315
  %v3396 = vunpack.c.l.b16 %v3316
  %v3397 = vunpack.c.h.b16 %v3316
  %v3398 = vunpack.c.l.b16 %v3317
  %v3399 = vunpack.c.h.b16 %v3317
  %v3400 = vunpack.c.l.b16 %v3318
  %v3401 = vunpack.c.h.b16 %v3318
  %v3402 = vunpack.c.l.b16 %v3319
  %v3403 = vunpack.c.h.b16 %v3319
  %v3404 = vunpack.c.l.b16 %v3320
  %v3405 = vunpack.c.h.b16 %v3320
  %v3406 = vunpack.c.l.b16 %v3321
  %v3407 = vunpack.c.h.b16 %v3321
  %v3408 = vunpack.c.l.b16 %v3322
  %v3409 = vunpack.c.h.b16 %v3322
  %v3410 = vunpack.c.l.b16 %v3323
  %v3411 = vunpack.c.h.b16 %v3323
  %v3412 = vunpack.c.l.b16 %v3324
  %v3413 = vunpack.c.h.b16 %v3324
  %v3414 = vunpack.c.l.b16 %v3325
  %v3415 = vunpack.c.h.b16 %v3325
  %v3416 = vunpack.c.l.b16 %v3326
  %v3417 = vunpack.c.h.b16 %v3326
  %v3418 = vunpack.c.l.b16 %v3327
  %v3419 = vunpack.c.h.b16 %v3327
  %v3420 = vunpack.c.l.b16 %v3328
  %v3421 = vunpack.c.h.b16 %v3328
  %v3422 = vunpack.c.l.b16 %v3329
  %v3423 = vunpack.c.h.b16 %v3329
  %v3424 = vunpack.c.l.b16 %v3330
  %v3425 = vunpack.c.h.b16 %v3330
  %v3426 = vunpack.c.l.b16 %v3331
  %v3427 = vunpack.c.h.b16 %v3331
  %v3428 = vpack.c.b16 %v3368, %v3364
  %v3429 = vpack.c.b16 %v3369, %v3365
  %v3430 = vpack.c.b16 %v3370, %v3366
  %v3431 = vpack.c.b16 %v3371, %v3367
  %v3432 = vpack.c.b16 %v3376, %v3372
  %v3433 = vpack.c.b16 %v3377, %v3373
  %v3434 = vpack.c.b16 %v3378, %v3374
  %v3435 = vpack.c.b16 %v3379, %v3375
  %v3436 = vpack.c.b16 %v3384, %v3380
  %v3437 = vpack.c.b16 %v3385, %v3381
  %v3438 = vpack.c.b16 %v3386, %v3382
  %v3439 = vpack.c.b16 %v3387, %v3383
  %v3440 = vpack.c.b16 %v3392, %v3388
  %v3441 = vpack.c.b16 %v3393, %v3389
  %v3442 = vpack.c.b16 %v3394, %v3390
  %v3443 = vpack.c.b16 %v3395, %v3391
  %v3444 = vpack.c.b16 %v3400, %v3396
  %v3445 = vpack.c.b16 %v3401, %v3397
  %v3446 = vpack.c.b16 %v3402, %v3398
  %v3447 = vpack.c.b16 %v3403, %v3399
  %v3448 = vpack.c.b16 %v3408, %v3404
  %v3449 = vpack.c.b16 %v3409, %v3405
  %v3450 = vpack.c.b16 %v3410, %v3406
  %v3451 = vpack.c.b16 %v3411, %v3407
  %v3452 = vpack.c.b16 %v3416, %v3412
  %v3453 = vpack.c.b16 %v3417, %v3413
  %v3454 = vpack.c.b16 %v3418, %v3414
  %v3455 = vpack.c.b16 %v3419, %v3415
  %v3456 = vpack.c.b16 %v3424, %v3420
  %v3457 = vpack.c.b16 %v3425, %v3421
  %v3458 = vpack.c.b16 %v3426, %v3422
  %v3459 = vpack.c.b16 %v3427, %v3423
  %3492 = vmatpush.bf16.msra.mxu0 %v3456
  %3493 = vmatpush.bf16.msra.mxu0 %v3452
  %3494 = vmatpush.bf16.msra.mxu0 %v3448
  %3495 = vmatpush.bf16.msra.mxu0 %v3444
  %3496 = vmatpush.bf16.msra.mxu0 %v3440
  %3497 = vmatpush.bf16.msra.mxu0 %v3436
  %3498 = vmatpush.bf16.msra.mxu0 %v3432
  %3499 = vmatpush.bf16.msra.mxu0 %v3428
  %3500 = vmatmul.bf16.gmra.mxu0 %v3032
  %v3501 = vpop.f32.mrf.mxu0
  %v3502 = vadd.f32 0.0, %v3501
  %v3503 = vpop.f32.mrf.mxu0
  %3504 = vdwg.mxu0
  %3505 = vmatpush.bf16.msra.mxu0 %v3457
  %3506 = vmatpush.bf16.msra.mxu0 %v3453
  %3507 = vmatpush.bf16.msra.mxu0 %v3449
  %3508 = vmatpush.bf16.msra.mxu0 %v3445
  %3509 = vmatpush.bf16.msra.mxu0 %v3441
  %3510 = vmatpush.bf16.msra.mxu0 %v3437
  %3511 = vmatpush.bf16.msra.mxu0 %v3433
  %3512 = vmatpush.bf16.msra.mxu0 %v3429
  %3513 = vmatmul.bf16.gmra.mxu0 %v3032
  %v3514 = vpop.f32.mrf.mxu0
  %v3515 = vadd.f32 0.0, %v3514
  %v3516 = vpop.f32.mrf.mxu0
  %3517 = vdwg.mxu0
  %3518 = vmatpush.bf16.msra.mxu0 %v3458
  %3519 = vmatpush.bf16.msra.mxu0 %v3454
  %3520 = vmatpush.bf16.msra.mxu0 %v3450
  %3521 = vmatpush.bf16.msra.mxu0 %v3446
  %3522 = vmatpush.bf16.msra.mxu0 %v3442
  %3523 = vmatpush.bf16.msra.mxu0 %v3438
  %3524 = vmatpush.bf16.msra.mxu0 %v3434
  %3525 = vmatpush.bf16.msra.mxu0 %v3430
  %3526 = vmatmul.bf16.gmra.mxu0 %v3032
  %v3527 = vpop.f32.mrf.mxu0
  %v3528 = vadd.f32 0.0, %v3527
  %v3529 = vpop.f32.mrf.mxu0
  %3530 = vdwg.mxu0
  %3531 = vmatpush.bf16.msra.mxu0 %v3459
  %3532 = vmatpush.bf16.msra.mxu0 %v3455
  %3533 = vmatpush.bf16.msra.mxu0 %v3451
  %3534 = vmatpush.bf16.msra.mxu0 %v3447
  %3535 = vmatpush.bf16.msra.mxu0 %v3443
  %3536 = vmatpush.bf16.msra.mxu0 %v3439
  %3537 = vmatpush.bf16.msra.mxu0 %v3435
  %3538 = vmatpush.bf16.msra.mxu0 %v3431
  %3539 = vmatmul.bf16.gmra.mxu0 %v3032
  %v3540 = vpop.f32.mrf.mxu0
  %v3541 = vadd.f32 0.0, %v3540
  %v3542 = vpop.f32.mrf.mxu0
  %3543 = vdwg.mxu0
  %v3544 = vadd.f32 %v3296, %v3502
  %v3545 = vadd.f32 %v3297, %v3515
  %v3546 = vadd.f32 %v3298, %v3528
  %v3547 = vadd.f32 %v3299, %v3541
  %v3548 = vxor.u32 %v3544, 2147483648
  %v3549 = vmul.f32 %v3548, 1.442695
  %v3550 = vpow.pop %v3549
  %v3551 = vadd.f32 %v3550, 1.0
  %v3552 = vrcp.pop %v3551
  %v3553 = vmul.f32 %v3551, %v3552
  %v3554 = vsub.f32 1.0, %v3553
  %v3555 = vmul.f32 %v3552, %v3554
  %v3556 = vadd.f32 %v3552, %v3555
  %vm3557 = vweird.f32 %v3551
  %vm3558 = vweird.f32 %v3552
  %vm3559 = vmor %vm3557, %vm3558
  %v3560 = vsel %vm3559, %v3552, %v3556
  %v3561 = vand.u32 2147483647, %v3551
  %vm3562 = vcmp.eq.f32.partialorder %v3561, 8.507059e+37
  %v3563 = vand.u32 %v3551, 2147483648
  %v3564 = vor.u32 1.1754944e-38, %v3563
  %v3565 = vsel %vm3562, %v3564, %v3560
  %v3566 = vmul.f32 1.0, %v3565
  %v3567 = vxor.u32 %v3545, 2147483648
  %v3568 = vmul.f32 %v3567, 1.442695
  %v3569 = vpow.pop %v3568
  %v3570 = vadd.f32 %v3569, 1.0
  %v3571 = vrcp.pop %v3570
  %v3572 = vmul.f32 %v3570, %v3571
  %v3573 = vsub.f32 1.0, %v3572
  %v3574 = vmul.f32 %v3571, %v3573
  %v3575 = vadd.f32 %v3571, %v3574
  %vm3576 = vweird.f32 %v3570
  %vm3577 = vweird.f32 %v3571
  %vm3578 = vmor %vm3576, %vm3577
  %v3579 = vsel %vm3578, %v3571, %v3575
  %v3580 = vand.u32 2147483647, %v3570
  %vm3581 = vcmp.eq.f32.partialorder %v3580, 8.507059e+37
  %v3582 = vand.u32 %v3570, 2147483648
  %v3583 = vor.u32 1.1754944e-38, %v3582
  %v3584 = vsel %vm3581, %v3583, %v3579
  %v3585 = vmul.f32 1.0, %v3584
  %v3586 = vtanh.pop %v3546
  %v3587 = vxor.u32 %v3547, 2147483648
  %v3588 = vmul.f32 %v3587, 1.442695
  %v3589 = vpow.pop %v3588
  %v3590 = vadd.f32 %v3589, 1.0
  %v3591 = vrcp.pop %v3590
  %v3592 = vmul.f32 %v3590, %v3591
  %v3593 = vsub.f32 1.0, %v3592
  %v3594 = vmul.f32 %v3591, %v3593
  %v3595 = vadd.f32 %v3591, %v3594
  %vm3596 = vweird.f32 %v3590
  %vm3597 = vweird.f32 %v3591
  %vm3598 = vmor %vm3596, %vm3597
  %v3599 = vsel %vm3598, %v3591, %v3595
  %v3600 = vand.u32 2147483647, %v3590
  %vm3601 = vcmp.eq.f32.partialorder %v3600, 8.507059e+37
  %v3602 = vand.u32 %v3590, 2147483648
  %v3603 = vor.u32 1.1754944e-38, %v3602
  %v3604 = vsel %vm3601, %v3603, %v3599
  %v3605 = vmul.f32 1.0, %v3604
  %v3606 = vmul.f32 %v3585, %v3029
  %v3607 = vmul.f32 %v3566, %v3586
  %v3608 = vadd.f32 %v3606, %v3607
  %v3609 = vtanh.pop %v3608
  %v3610 = vmul.f32 %v3605, %v3609
  %v3611 = vpack.c.bf16 %v3610, %v3610
  %v3612 = vld [vmem:[%s4] sm:$0xff]
  %v3613 = vld [vmem:[%s4 + $0x8] sm:$0xff]
  %v3614 = vld [vmem:[%s4 + $0x10] sm:$0xff]
  %v3615 = vld [vmem:[%s4 + $0x18] sm:$0xff]
  %v3616 = vld [vmem:[%s4 + $0x20] sm:$0xff]
  %v3617 = vld [vmem:[%s4 + $0x28] sm:$0xff]
  %v3618 = vld [vmem:[%s4 + $0x30] sm:$0xff]
  %v3619 = vld [vmem:[%s4 + $0x38] sm:$0xff]
  %v3620 = vld [vmem:[%s4 + $0x40] sm:$0xff]
  %v3621 = vld [vmem:[%s4 + $0x48] sm:$0xff]
  %v3622 = vld [vmem:[%s4 + $0x50] sm:$0xff]
  %v3623 = vld [vmem:[%s4 + $0x58] sm:$0xff]
  %v3624 = vld [vmem:[%s4 + $0x60] sm:$0xff]
  %v3625 = vld [vmem:[%s4 + $0x68] sm:$0xff]
  %v3626 = vld [vmem:[%s4 + $0x70] sm:$0xff]
  %v3627 = vld [vmem:[%s4 + $0x78] sm:$0xff]
  %v3628 = vld [vmem:[%s4 + $0x80] sm:$0xff]
  %v3629 = vld [vmem:[%s4 + $0x88] sm:$0xff]
  %v3630 = vld [vmem:[%s4 + $0x90] sm:$0xff]
  %v3631 = vld [vmem:[%s4 + $0x98] sm:$0xff]
  %v3632 = vld [vmem:[%s4 + $0xa0] sm:$0xff]
  %v3633 = vld [vmem:[%s4 + $0xa8] sm:$0xff]
  %v3634 = vld [vmem:[%s4 + $0xb0] sm:$0xff]
  %v3635 = vld [vmem:[%s4 + $0xb8] sm:$0xff]
  %v3636 = vld [vmem:[%s4 + $0xc0] sm:$0xff]
  %v3637 = vld [vmem:[%s4 + $0xc8] sm:$0xff]
  %v3638 = vld [vmem:[%s4 + $0xd0] sm:$0xff]
  %v3639 = vld [vmem:[%s4 + $0xd8] sm:$0xff]
  %v3640 = vld [vmem:[%s4 + $0xe0] sm:$0xff]
  %v3641 = vld [vmem:[%s4 + $0xe8] sm:$0xff]
  %v3642 = vld [vmem:[%s4 + $0xf0] sm:$0xff]
  %v3643 = vld [vmem:[%s4 + $0xf8] sm:$0xff]
  %v3644 = vld [vmem:[%s6] sm:$0xf]
  %v3646 = vperm.slane %v3644, 0
  %v3647 = vperm.slane %v3644, 1
  %v3648 = vperm.slane %v3644, 2
  %v3649 = vperm.slane %v3644, 3
  %v3686 = vunpack.c.l.b16 %v3612
  %v3687 = vunpack.c.h.b16 %v3612
  %v3688 = vunpack.c.l.b16 %v3613
  %v3689 = vunpack.c.h.b16 %v3613
  %v3690 = vunpack.c.l.b16 %v3614
  %v3691 = vunpack.c.h.b16 %v3614
  %v3692 = vunpack.c.l.b16 %v3615
  %v3693 = vunpack.c.h.b16 %v3615
  %v3694 = vunpack.c.l.b16 %v3616
  %v3695 = vunpack.c.h.b16 %v3616
  %v3696 = vunpack.c.l.b16 %v3617
  %v3697 = vunpack.c.h.b16 %v3617
  %v3698 = vunpack.c.l.b16 %v3618
  %v3699 = vunpack.c.h.b16 %v3618
  %v3700 = vunpack.c.l.b16 %v3619
  %v3701 = vunpack.c.h.b16 %v3619
  %v3702 = vunpack.c.l.b16 %v3620
  %v3703 = vunpack.c.h.b16 %v3620
  %v3704 = vunpack.c.l.b16 %v3621
  %v3705 = vunpack.c.h.b16 %v3621
  %v3706 = vunpack.c.l.b16 %v3622
  %v3707 = vunpack.c.h.b16 %v3622
  %v3708 = vunpack.c.l.b16 %v3623
  %v3709 = vunpack.c.h.b16 %v3623
  %v3710 = vunpack.c.l.b16 %v3624
  %v3711 = vunpack.c.h.b16 %v3624
  %v3712 = vunpack.c.l.b16 %v3625
  %v3713 = vunpack.c.h.b16 %v3625
  %v3714 = vunpack.c.l.b16 %v3626
  %v3715 = vunpack.c.h.b16 %v3626
  %v3716 = vunpack.c.l.b16 %v3627
  %v3717 = vunpack.c.h.b16 %v3627
  %v3718 = vunpack.c.l.b16 %v3628
  %v3719 = vunpack.c.h.b16 %v3628
  %v3720 = vunpack.c.l.b16 %v3629
  %v3721 = vunpack.c.h.b16 %v3629
  %v3722 = vunpack.c.l.b16 %v3630
  %v3723 = vunpack.c.h.b16 %v3630
  %v3724 = vunpack.c.l.b16 %v3631
  %v3725 = vunpack.c.h.b16 %v3631
  %v3726 = vunpack.c.l.b16 %v3632
  %v3727 = vunpack.c.h.b16 %v3632
  %v3728 = vunpack.c.l.b16 %v3633
  %v3729 = vunpack.c.h.b16 %v3633
  %v3730 = vunpack.c.l.b16 %v3634
  %v3731 = vunpack.c.h.b16 %v3634
  %v3732 = vunpack.c.l.b16 %v3635
  %v3733 = vunpack.c.h.b16 %v3635
  %v3734 = vunpack.c.l.b16 %v3636
  %v3735 = vunpack.c.h.b16 %v3636
  %v3736 = vunpack.c.l.b16 %v3637
  %v3737 = vunpack.c.h.b16 %v3637
  %v3738 = vunpack.c.l.b16 %v3638
  %v3739 = vunpack.c.h.b16 %v3638
  %v3740 = vunpack.c.l.b16 %v3639
  %v3741 = vunpack.c.h.b16 %v3639
  %v3742 = vunpack.c.l.b16 %v3640
  %v3743 = vunpack.c.h.b16 %v3640
  %v3744 = vunpack.c.l.b16 %v3641
  %v3745 = vunpack.c.h.b16 %v3641
  %v3746 = vunpack.c.l.b16 %v3642
  %v3747 = vunpack.c.h.b16 %v3642
  %v3748 = vunpack.c.l.b16 %v3643
  %v3749 = vunpack.c.h.b16 %v3643
  %v3750 = vpack.c.b16 %v3690, %v3686
  %v3751 = vpack.c.b16 %v3691, %v3687
  %v3752 = vpack.c.b16 %v3692, %v3688
  %v3753 = vpack.c.b16 %v3693, %v3689
  %v3754 = vpack.c.b16 %v3698, %v3694
  %v3755 = vpack.c.b16 %v3699, %v3695
  %v3756 = vpack.c.b16 %v3700, %v3696
  %v3757 = vpack.c.b16 %v3701, %v3697
  %v3758 = vpack.c.b16 %v3706, %v3702
  %v3759 = vpack.c.b16 %v3707, %v3703
  %v3760 = vpack.c.b16 %v3708, %v3704
  %v3761 = vpack.c.b16 %v3709, %v3705
  %v3762 = vpack.c.b16 %v3714, %v3710
  %v3763 = vpack.c.b16 %v3715, %v3711
  %v3764 = vpack.c.b16 %v3716, %v3712
  %v3765 = vpack.c.b16 %v3717, %v3713
  %v3766 = vpack.c.b16 %v3722, %v3718
  %v3767 = vpack.c.b16 %v3723, %v3719
  %v3768 = vpack.c.b16 %v3724, %v3720
  %v3769 = vpack.c.b16 %v3725, %v3721
  %v3770 = vpack.c.b16 %v3730, %v3726
  %v3771 = vpack.c.b16 %v3731, %v3727
  %v3772 = vpack.c.b16 %v3732, %v3728
  %v3773 = vpack.c.b16 %v3733, %v3729
  %v3774 = vpack.c.b16 %v3738, %v3734
  %v3775 = vpack.c.b16 %v3739, %v3735
  %v3776 = vpack.c.b16 %v3740, %v3736
  %v3777 = vpack.c.b16 %v3741, %v3737
  %v3778 = vpack.c.b16 %v3746, %v3742
  %v3779 = vpack.c.b16 %v3747, %v3743
  %v3780 = vpack.c.b16 %v3748, %v3744
  %v3781 = vpack.c.b16 %v3749, %v3745
  %3814 = vmatpush.bf16.msra.mxu0 %v3778
  %3815 = vmatpush.bf16.msra.mxu0 %v3774
  %3816 = vmatpush.bf16.msra.mxu0 %v3770
  %3817 = vmatpush.bf16.msra.mxu0 %v3766
  %3818 = vmatpush.bf16.msra.mxu0 %v3762
  %3819 = vmatpush.bf16.msra.mxu0 %v3758
  %3820 = vmatpush.bf16.msra.mxu0 %v3754
  %3821 = vmatpush.bf16.msra.mxu0 %v3750
  %3822 = vmatmul.bf16.gmra.mxu0 %v3611
  %v3823 = vpop.f32.mrf.mxu0
  %v3824 = vadd.f32 %v3646, %v3823
  %v3825 = vpop.f32.mrf.mxu0
  %3826 = vdwg.mxu0
  %3827 = vmatpush.bf16.msra.mxu0 %v3779
  %3828 = vmatpush.bf16.msra.mxu0 %v3775
  %3829 = vmatpush.bf16.msra.mxu0 %v3771
  %3830 = vmatpush.bf16.msra.mxu0 %v3767
  %3831 = vmatpush.bf16.msra.mxu0 %v3763
  %3832 = vmatpush.bf16.msra.mxu0 %v3759
  %3833 = vmatpush.bf16.msra.mxu0 %v3755
  %3834 = vmatpush.bf16.msra.mxu0 %v3751
  %3835 = vmatmul.bf16.gmra.mxu0 %v3611
  %v3836 = vpop.f32.mrf.mxu0
  %v3837 = vadd.f32 %v3647, %v3836
  %v3838 = vpop.f32.mrf.mxu0
  %3839 = vdwg.mxu0
  %3840 = vmatpush.bf16.msra.mxu0 %v3780
  %3841 = vmatpush.bf16.msra.mxu0 %v3776
  %3842 = vmatpush.bf16.msra.mxu0 %v3772
  %3843 = vmatpush.bf16.msra.mxu0 %v3768
  %3844 = vmatpush.bf16.msra.mxu0 %v3764
  %3845 = vmatpush.bf16.msra.mxu0 %v3760
  %3846 = vmatpush.bf16.msra.mxu0 %v3756
  %3847 = vmatpush.bf16.msra.mxu0 %v3752
  %3848 = vmatmul.bf16.gmra.mxu0 %v3611
  %v3849 = vpop.f32.mrf.mxu0
  %v3850 = vadd.f32 %v3648, %v3849
  %v3851 = vpop.f32.mrf.mxu0
  %3852 = vdwg.mxu0
  %3853 = vmatpush.bf16.msra.mxu0 %v3781
  %3854 = vmatpush.bf16.msra.mxu0 %v3777
  %3855 = vmatpush.bf16.msra.mxu0 %v3773
  %3856 = vmatpush.bf16.msra.mxu0 %v3769
  %3857 = vmatpush.bf16.msra.mxu0 %v3765
  %3858 = vmatpush.bf16.msra.mxu0 %v3761
  %3859 = vmatpush.bf16.msra.mxu0 %v3757
  %3860 = vmatpush.bf16.msra.mxu0 %v3753
  %3861 = vmatmul.bf16.gmra.mxu0 %v3611
  %v3862 = vpop.f32.mrf.mxu0
  %v3863 = vadd.f32 %v3649, %v3862
  %v3864 = vpop.f32.mrf.mxu0
  %3865 = vdwg.mxu0
  %s3866 = smul.addr %s3293, 8
  %s3867 = scalar_lea.vmem [#allocation3], %s3866
  %3868 = vst [vmem:[%s3867] sm:$0xff] %v3824
  %3869 = vst [vmem:[%s3867 + $0x8] sm:$0xff] %v3837
  %3870 = vst [vmem:[%s3867 + $0x10] sm:$0xff] %v3850
  %3871 = vst [vmem:[%s3867 + $0x18] sm:$0xff] %v3863
  %s3872 = smul.u32 6, 4
  %s3873 = smul.addr %s3872, 8
  %s3874 = scalar_lea.vmem [#allocation2], %s3873
  %v3875 = vld [vmem:[%s3874] sm:$0xff]
  %v3876 = vld [vmem:[%s3874 + $0x8] sm:$0xff]
  %v3877 = vld [vmem:[%s3874 + $0x10] sm:$0xff]
  %v3878 = vld [vmem:[%s3874 + $0x18] sm:$0xff]
  %v3879 = vld [vmem:[%s2] sm:$0xff]
  %v3880 = vld [vmem:[%s2 + $0x8] sm:$0xff]
  %v3881 = vld [vmem:[%s2 + $0x10] sm:$0xff]
  %v3882 = vld [vmem:[%s2 + $0x18] sm:$0xff]
  %v3883 = vld [vmem:[%s2 + $0x20] sm:$0xff]
  %v3884 = vld [vmem:[%s2 + $0x28] sm:$0xff]
  %v3885 = vld [vmem:[%s2 + $0x30] sm:$0xff]
  %v3886 = vld [vmem:[%s2 + $0x38] sm:$0xff]
  %v3887 = vld [vmem:[%s2 + $0x40] sm:$0xff]
  %v3888 = vld [vmem:[%s2 + $0x48] sm:$0xff]
  %v3889 = vld [vmem:[%s2 + $0x50] sm:$0xff]
  %v3890 = vld [vmem:[%s2 + $0x58] sm:$0xff]
  %v3891 = vld [vmem:[%s2 + $0x60] sm:$0xff]
  %v3892 = vld [vmem:[%s2 + $0x68] sm:$0xff]
  %v3893 = vld [vmem:[%s2 + $0x70] sm:$0xff]
  %v3894 = vld [vmem:[%s2 + $0x78] sm:$0xff]
  %v3895 = vld [vmem:[%s2 + $0x80] sm:$0xff]
  %v3896 = vld [vmem:[%s2 + $0x88] sm:$0xff]
  %v3897 = vld [vmem:[%s2 + $0x90] sm:$0xff]
  %v3898 = vld [vmem:[%s2 + $0x98] sm:$0xff]
  %v3899 = vld [vmem:[%s2 + $0xa0] sm:$0xff]
  %v3900 = vld [vmem:[%s2 + $0xa8] sm:$0xff]
  %v3901 = vld [vmem:[%s2 + $0xb0] sm:$0xff]
  %v3902 = vld [vmem:[%s2 + $0xb8] sm:$0xff]
  %v3903 = vld [vmem:[%s2 + $0xc0] sm:$0xff]
  %v3904 = vld [vmem:[%s2 + $0xc8] sm:$0xff]
  %v3905 = vld [vmem:[%s2 + $0xd0] sm:$0xff]
  %v3906 = vld [vmem:[%s2 + $0xd8] sm:$0xff]
  %v3907 = vld [vmem:[%s2 + $0xe0] sm:$0xff]
  %v3908 = vld [vmem:[%s2 + $0xe8] sm:$0xff]
  %v3909 = vld [vmem:[%s2 + $0xf0] sm:$0xff]
  %v3910 = vld [vmem:[%s2 + $0xf8] sm:$0xff]
  %v3943 = vunpack.c.l.b16 %v3879
  %v3944 = vunpack.c.h.b16 %v3879
  %v3945 = vunpack.c.l.b16 %v3880
  %v3946 = vunpack.c.h.b16 %v3880
  %v3947 = vunpack.c.l.b16 %v3881
  %v3948 = vunpack.c.h.b16 %v3881
  %v3949 = vunpack.c.l.b16 %v3882
  %v3950 = vunpack.c.h.b16 %v3882
  %v3951 = vunpack.c.l.b16 %v3883
  %v3952 = vunpack.c.h.b16 %v3883
  %v3953 = vunpack.c.l.b16 %v3884
  %v3954 = vunpack.c.h.b16 %v3884
  %v3955 = vunpack.c.l.b16 %v3885
  %v3956 = vunpack.c.h.b16 %v3885
  %v3957 = vunpack.c.l.b16 %v3886
  %v3958 = vunpack.c.h.b16 %v3886
  %v3959 = vunpack.c.l.b16 %v3887
  %v3960 = vunpack.c.h.b16 %v3887
  %v3961 = vunpack.c.l.b16 %v3888
  %v3962 = vunpack.c.h.b16 %v3888
  %v3963 = vunpack.c.l.b16 %v3889
  %v3964 = vunpack.c.h.b16 %v3889
  %v3965 = vunpack.c.l.b16 %v3890
  %v3966 = vunpack.c.h.b16 %v3890
  %v3967 = vunpack.c.l.b16 %v3891
  %v3968 = vunpack.c.h.b16 %v3891
  %v3969 = vunpack.c.l.b16 %v3892
  %v3970 = vunpack.c.h.b16 %v3892
  %v3971 = vunpack.c.l.b16 %v3893
  %v3972 = vunpack.c.h.b16 %v3893
  %v3973 = vunpack.c.l.b16 %v3894
  %v3974 = vunpack.c.h.b16 %v3894
  %v3975 = vunpack.c.l.b16 %v3895
  %v3976 = vunpack.c.h.b16 %v3895
  %v3977 = vunpack.c.l.b16 %v3896
  %v3978 = vunpack.c.h.b16 %v3896
  %v3979 = vunpack.c.l.b16 %v3897
  %v3980 = vunpack.c.h.b16 %v3897
  %v3981 = vunpack.c.l.b16 %v3898
  %v3982 = vunpack.c.h.b16 %v3898
  %v3983 = vunpack.c.l.b16 %v3899
  %v3984 = vunpack.c.h.b16 %v3899
  %v3985 = vunpack.c.l.b16 %v3900
  %v3986 = vunpack.c.h.b16 %v3900
  %v3987 = vunpack.c.l.b16 %v3901
  %v3988 = vunpack.c.h.b16 %v3901
  %v3989 = vunpack.c.l.b16 %v3902
  %v3990 = vunpack.c.h.b16 %v3902
  %v3991 = vunpack.c.l.b16 %v3903
  %v3992 = vunpack.c.h.b16 %v3903
  %v3993 = vunpack.c.l.b16 %v3904
  %v3994 = vunpack.c.h.b16 %v3904
  %v3995 = vunpack.c.l.b16 %v3905
  %v3996 = vunpack.c.h.b16 %v3905
  %v3997 = vunpack.c.l.b16 %v3906
  %v3998 = vunpack.c.h.b16 %v3906
  %v3999 = vunpack.c.l.b16 %v3907
  %v4000 = vunpack.c.h.b16 %v3907
  %v4001 = vunpack.c.l.b16 %v3908
  %v4002 = vunpack.c.h.b16 %v3908
  %v4003 = vunpack.c.l.b16 %v3909
  %v4004 = vunpack.c.h.b16 %v3909
  %v4005 = vunpack.c.l.b16 %v3910
  %v4006 = vunpack.c.h.b16 %v3910
  %v4007 = vpack.c.b16 %v3947, %v3943
  %v4008 = vpack.c.b16 %v3948, %v3944
  %v4009 = vpack.c.b16 %v3949, %v3945
  %v4010 = vpack.c.b16 %v3950, %v3946
  %v4011 = vpack.c.b16 %v3955, %v3951
  %v4012 = vpack.c.b16 %v3956, %v3952
  %v4013 = vpack.c.b16 %v3957, %v3953
  %v4014 = vpack.c.b16 %v3958, %v3954
  %v4015 = vpack.c.b16 %v3963, %v3959
  %v4016 = vpack.c.b16 %v3964, %v3960
  %v4017 = vpack.c.b16 %v3965, %v3961
  %v4018 = vpack.c.b16 %v3966, %v3962
  %v4019 = vpack.c.b16 %v3971, %v3967
  %v4020 = vpack.c.b16 %v3972, %v3968
  %v4021 = vpack.c.b16 %v3973, %v3969
  %v4022 = vpack.c.b16 %v3974, %v3970
  %v4023 = vpack.c.b16 %v3979, %v3975
  %v4024 = vpack.c.b16 %v3980, %v3976
  %v4025 = vpack.c.b16 %v3981, %v3977
  %v4026 = vpack.c.b16 %v3982, %v3978
  %v4027 = vpack.c.b16 %v3987, %v3983
  %v4028 = vpack.c.b16 %v3988, %v3984
  %v4029 = vpack.c.b16 %v3989, %v3985
  %v4030 = vpack.c.b16 %v3990, %v3986
  %v4031 = vpack.c.b16 %v3995, %v3991
  %v4032 = vpack.c.b16 %v3996, %v3992
  %v4033 = vpack.c.b16 %v3997, %v3993
  %v4034 = vpack.c.b16 %v3998, %v3994
  %v4035 = vpack.c.b16 %v4003, %v3999
  %v4036 = vpack.c.b16 %v4004, %v4000
  %v4037 = vpack.c.b16 %v4005, %v4001
  %v4038 = vpack.c.b16 %v4006, %v4002
  %4071 = vmatpush.bf16.msra.mxu0 %v4035
  %4072 = vmatpush.bf16.msra.mxu0 %v4031
  %4073 = vmatpush.bf16.msra.mxu0 %v4027
  %4074 = vmatpush.bf16.msra.mxu0 %v4023
  %4075 = vmatpush.bf16.msra.mxu0 %v4019
  %4076 = vmatpush.bf16.msra.mxu0 %v4015
  %4077 = vmatpush.bf16.msra.mxu0 %v4011
  %4078 = vmatpush.bf16.msra.mxu0 %v4007
  %4079 = vmatmul.bf16.gmra.mxu0 %v3611
  %v4080 = vpop.f32.mrf.mxu0
  %v4081 = vadd.f32 0.0, %v4080
  %v4082 = vpop.f32.mrf.mxu0
  %4083 = vdwg.mxu0
  %4084 = vmatpush.bf16.msra.mxu0 %v4036
  %4085 = vmatpush.bf16.msra.mxu0 %v4032
  %4086 = vmatpush.bf16.msra.mxu0 %v4028
  %4087 = vmatpush.bf16.msra.mxu0 %v4024
  %4088 = vmatpush.bf16.msra.mxu0 %v4020
  %4089 = vmatpush.bf16.msra.mxu0 %v4016
  %4090 = vmatpush.bf16.msra.mxu0 %v4012
  %4091 = vmatpush.bf16.msra.mxu0 %v4008
  %4092 = vmatmul.bf16.gmra.mxu0 %v3611
  %v4093 = vpop.f32.mrf.mxu0
  %v4094 = vadd.f32 0.0, %v4093
  %v4095 = vpop.f32.mrf.mxu0
  %4096 = vdwg.mxu0
  %4097 = vmatpush.bf16.msra.mxu0 %v4037
  %4098 = vmatpush.bf16.msra.mxu0 %v4033
  %4099 = vmatpush.bf16.msra.mxu0 %v4029
  %4100 = vmatpush.bf16.msra.mxu0 %v4025
  %4101 = vmatpush.bf16.msra.mxu0 %v4021
  %4102 = vmatpush.bf16.msra.mxu0 %v4017
  %4103 = vmatpush.bf16.msra.mxu0 %v4013
  %4104 = vmatpush.bf16.msra.mxu0 %v4009
  %4105 = vmatmul.bf16.gmra.mxu0 %v3611
  %v4106 = vpop.f32.mrf.mxu0
  %v4107 = vadd.f32 0.0, %v4106
  %v4108 = vpop.f32.mrf.mxu0
  %4109 = vdwg.mxu0
  %4110 = vmatpush.bf16.msra.mxu0 %v4038
  %4111 = vmatpush.bf16.msra.mxu0 %v4034
  %4112 = vmatpush.bf16.msra.mxu0 %v4030
  %4113 = vmatpush.bf16.msra.mxu0 %v4026
  %4114 = vmatpush.bf16.msra.mxu0 %v4022
  %4115 = vmatpush.bf16.msra.mxu0 %v4018
  %4116 = vmatpush.bf16.msra.mxu0 %v4014
  %4117 = vmatpush.bf16.msra.mxu0 %v4010
  %4118 = vmatmul.bf16.gmra.mxu0 %v3611
  %v4119 = vpop.f32.mrf.mxu0
  %v4120 = vadd.f32 0.0, %v4119
  %v4121 = vpop.f32.mrf.mxu0
  %4122 = vdwg.mxu0
  %v4123 = vadd.f32 %v3875, %v4081
  %v4124 = vadd.f32 %v3876, %v4094
  %v4125 = vadd.f32 %v3877, %v4107
  %v4126 = vadd.f32 %v3878, %v4120
  %v4127 = vxor.u32 %v4123, 2147483648
  %v4128 = vmul.f32 %v4127, 1.442695
  %v4129 = vpow.pop %v4128
  %v4130 = vadd.f32 %v4129, 1.0
  %v4131 = vrcp.pop %v4130
  %v4132 = vmul.f32 %v4130, %v4131
  %v4133 = vsub.f32 1.0, %v4132
  %v4134 = vmul.f32 %v4131, %v4133
  %v4135 = vadd.f32 %v4131, %v4134
  %vm4136 = vweird.f32 %v4130
  %vm4137 = vweird.f32 %v4131
  %vm4138 = vmor %vm4136, %vm4137
  %v4139 = vsel %vm4138, %v4131, %v4135
  %v4140 = vand.u32 2147483647, %v4130
  %vm4141 = vcmp.eq.f32.partialorder %v4140, 8.507059e+37
  %v4142 = vand.u32 %v4130, 2147483648
  %v4143 = vor.u32 1.1754944e-38, %v4142
  %v4144 = vsel %vm4141, %v4143, %v4139
  %v4145 = vmul.f32 1.0, %v4144
  %v4146 = vxor.u32 %v4124, 2147483648
  %v4147 = vmul.f32 %v4146, 1.442695
  %v4148 = vpow.pop %v4147
  %v4149 = vadd.f32 %v4148, 1.0
  %v4150 = vrcp.pop %v4149
  %v4151 = vmul.f32 %v4149, %v4150
  %v4152 = vsub.f32 1.0, %v4151
  %v4153 = vmul.f32 %v4150, %v4152
  %v4154 = vadd.f32 %v4150, %v4153
  %vm4155 = vweird.f32 %v4149
  %vm4156 = vweird.f32 %v4150
  %vm4157 = vmor %vm4155, %vm4156
  %v4158 = vsel %vm4157, %v4150, %v4154
  %v4159 = vand.u32 2147483647, %v4149
  %vm4160 = vcmp.eq.f32.partialorder %v4159, 8.507059e+37
  %v4161 = vand.u32 %v4149, 2147483648
  %v4162 = vor.u32 1.1754944e-38, %v4161
  %v4163 = vsel %vm4160, %v4162, %v4158
  %v4164 = vmul.f32 1.0, %v4163
  %v4165 = vtanh.pop %v4125
  %v4166 = vxor.u32 %v4126, 2147483648
  %v4167 = vmul.f32 %v4166, 1.442695
  %v4168 = vpow.pop %v4167
  %v4169 = vadd.f32 %v4168, 1.0
  %v4170 = vrcp.pop %v4169
  %v4171 = vmul.f32 %v4169, %v4170
  %v4172 = vsub.f32 1.0, %v4171
  %v4173 = vmul.f32 %v4170, %v4172
  %v4174 = vadd.f32 %v4170, %v4173
  %vm4175 = vweird.f32 %v4169
  %vm4176 = vweird.f32 %v4170
  %vm4177 = vmor %vm4175, %vm4176
  %v4178 = vsel %vm4177, %v4170, %v4174
  %v4179 = vand.u32 2147483647, %v4169
  %vm4180 = vcmp.eq.f32.partialorder %v4179, 8.507059e+37
  %v4181 = vand.u32 %v4169, 2147483648
  %v4182 = vor.u32 1.1754944e-38, %v4181
  %v4183 = vsel %vm4180, %v4182, %v4178
  %v4184 = vmul.f32 1.0, %v4183
  %v4185 = vmul.f32 %v4164, %v3608
  %v4186 = vmul.f32 %v4145, %v4165
  %v4187 = vadd.f32 %v4185, %v4186
  %v4188 = vtanh.pop %v4187
  %v4189 = vmul.f32 %v4184, %v4188
  %v4190 = vpack.c.bf16 %v4189, %v4189
  %v4191 = vld [vmem:[%s4] sm:$0xff]
  %v4192 = vld [vmem:[%s4 + $0x8] sm:$0xff]
  %v4193 = vld [vmem:[%s4 + $0x10] sm:$0xff]
  %v4194 = vld [vmem:[%s4 + $0x18] sm:$0xff]
  %v4195 = vld [vmem:[%s4 + $0x20] sm:$0xff]
  %v4196 = vld [vmem:[%s4 + $0x28] sm:$0xff]
  %v4197 = vld [vmem:[%s4 + $0x30] sm:$0xff]
  %v4198 = vld [vmem:[%s4 + $0x38] sm:$0xff]
  %v4199 = vld [vmem:[%s4 + $0x40] sm:$0xff]
  %v4200 = vld [vmem:[%s4 + $0x48] sm:$0xff]
  %v4201 = vld [vmem:[%s4 + $0x50] sm:$0xff]
  %v4202 = vld [vmem:[%s4 + $0x58] sm:$0xff]
  %v4203 = vld [vmem:[%s4 + $0x60] sm:$0xff]
  %v4204 = vld [vmem:[%s4 + $0x68] sm:$0xff]
  %v4205 = vld [vmem:[%s4 + $0x70] sm:$0xff]
  %v4206 = vld [vmem:[%s4 + $0x78] sm:$0xff]
  %v4207 = vld [vmem:[%s4 + $0x80] sm:$0xff]
  %v4208 = vld [vmem:[%s4 + $0x88] sm:$0xff]
  %v4209 = vld [vmem:[%s4 + $0x90] sm:$0xff]
  %v4210 = vld [vmem:[%s4 + $0x98] sm:$0xff]
  %v4211 = vld [vmem:[%s4 + $0xa0] sm:$0xff]
  %v4212 = vld [vmem:[%s4 + $0xa8] sm:$0xff]
  %v4213 = vld [vmem:[%s4 + $0xb0] sm:$0xff]
  %v4214 = vld [vmem:[%s4 + $0xb8] sm:$0xff]
  %v4215 = vld [vmem:[%s4 + $0xc0] sm:$0xff]
  %v4216 = vld [vmem:[%s4 + $0xc8] sm:$0xff]
  %v4217 = vld [vmem:[%s4 + $0xd0] sm:$0xff]
  %v4218 = vld [vmem:[%s4 + $0xd8] sm:$0xff]
  %v4219 = vld [vmem:[%s4 + $0xe0] sm:$0xff]
  %v4220 = vld [vmem:[%s4 + $0xe8] sm:$0xff]
  %v4221 = vld [vmem:[%s4 + $0xf0] sm:$0xff]
  %v4222 = vld [vmem:[%s4 + $0xf8] sm:$0xff]
  %v4223 = vld [vmem:[%s6] sm:$0xf]
  %v4225 = vperm.slane %v4223, 0
  %v4226 = vperm.slane %v4223, 1
  %v4227 = vperm.slane %v4223, 2
  %v4228 = vperm.slane %v4223, 3
  %v4265 = vunpack.c.l.b16 %v4191
  %v4266 = vunpack.c.h.b16 %v4191
  %v4267 = vunpack.c.l.b16 %v4192
  %v4268 = vunpack.c.h.b16 %v4192
  %v4269 = vunpack.c.l.b16 %v4193
  %v4270 = vunpack.c.h.b16 %v4193
  %v4271 = vunpack.c.l.b16 %v4194
  %v4272 = vunpack.c.h.b16 %v4194
  %v4273 = vunpack.c.l.b16 %v4195
  %v4274 = vunpack.c.h.b16 %v4195
  %v4275 = vunpack.c.l.b16 %v4196
  %v4276 = vunpack.c.h.b16 %v4196
  %v4277 = vunpack.c.l.b16 %v4197
  %v4278 = vunpack.c.h.b16 %v4197
  %v4279 = vunpack.c.l.b16 %v4198
  %v4280 = vunpack.c.h.b16 %v4198
  %v4281 = vunpack.c.l.b16 %v4199
  %v4282 = vunpack.c.h.b16 %v4199
  %v4283 = vunpack.c.l.b16 %v4200
  %v4284 = vunpack.c.h.b16 %v4200
  %v4285 = vunpack.c.l.b16 %v4201
  %v4286 = vunpack.c.h.b16 %v4201
  %v4287 = vunpack.c.l.b16 %v4202
  %v4288 = vunpack.c.h.b16 %v4202
  %v4289 = vunpack.c.l.b16 %v4203
  %v4290 = vunpack.c.h.b16 %v4203
  %v4291 = vunpack.c.l.b16 %v4204
  %v4292 = vunpack.c.h.b16 %v4204
  %v4293 = vunpack.c.l.b16 %v4205
  %v4294 = vunpack.c.h.b16 %v4205
  %v4295 = vunpack.c.l.b16 %v4206
  %v4296 = vunpack.c.h.b16 %v4206
  %v4297 = vunpack.c.l.b16 %v4207
  %v4298 = vunpack.c.h.b16 %v4207
  %v4299 = vunpack.c.l.b16 %v4208
  %v4300 = vunpack.c.h.b16 %v4208
  %v4301 = vunpack.c.l.b16 %v4209
  %v4302 = vunpack.c.h.b16 %v4209
  %v4303 = vunpack.c.l.b16 %v4210
  %v4304 = vunpack.c.h.b16 %v4210
  %v4305 = vunpack.c.l.b16 %v4211
  %v4306 = vunpack.c.h.b16 %v4211
  %v4307 = vunpack.c.l.b16 %v4212
  %v4308 = vunpack.c.h.b16 %v4212
  %v4309 = vunpack.c.l.b16 %v4213
  %v4310 = vunpack.c.h.b16 %v4213
  %v4311 = vunpack.c.l.b16 %v4214
  %v4312 = vunpack.c.h.b16 %v4214
  %v4313 = vunpack.c.l.b16 %v4215
  %v4314 = vunpack.c.h.b16 %v4215
  %v4315 = vunpack.c.l.b16 %v4216
  %v4316 = vunpack.c.h.b16 %v4216
  %v4317 = vunpack.c.l.b16 %v4217
  %v4318 = vunpack.c.h.b16 %v4217
  %v4319 = vunpack.c.l.b16 %v4218
  %v4320 = vunpack.c.h.b16 %v4218
  %v4321 = vunpack.c.l.b16 %v4219
  %v4322 = vunpack.c.h.b16 %v4219
  %v4323 = vunpack.c.l.b16 %v4220
  %v4324 = vunpack.c.h.b16 %v4220
  %v4325 = vunpack.c.l.b16 %v4221
  %v4326 = vunpack.c.h.b16 %v4221
  %v4327 = vunpack.c.l.b16 %v4222
  %v4328 = vunpack.c.h.b16 %v4222
  %v4329 = vpack.c.b16 %v4269, %v4265
  %v4330 = vpack.c.b16 %v4270, %v4266
  %v4331 = vpack.c.b16 %v4271, %v4267
  %v4332 = vpack.c.b16 %v4272, %v4268
  %v4333 = vpack.c.b16 %v4277, %v4273
  %v4334 = vpack.c.b16 %v4278, %v4274
  %v4335 = vpack.c.b16 %v4279, %v4275
  %v4336 = vpack.c.b16 %v4280, %v4276
  %v4337 = vpack.c.b16 %v4285, %v4281
  %v4338 = vpack.c.b16 %v4286, %v4282
  %v4339 = vpack.c.b16 %v4287, %v4283
  %v4340 = vpack.c.b16 %v4288, %v4284
  %v4341 = vpack.c.b16 %v4293, %v4289
  %v4342 = vpack.c.b16 %v4294, %v4290
  %v4343 = vpack.c.b16 %v4295, %v4291
  %v4344 = vpack.c.b16 %v4296, %v4292
  %v4345 = vpack.c.b16 %v4301, %v4297
  %v4346 = vpack.c.b16 %v4302, %v4298
  %v4347 = vpack.c.b16 %v4303, %v4299
  %v4348 = vpack.c.b16 %v4304, %v4300
  %v4349 = vpack.c.b16 %v4309, %v4305
  %v4350 = vpack.c.b16 %v4310, %v4306
  %v4351 = vpack.c.b16 %v4311, %v4307
  %v4352 = vpack.c.b16 %v4312, %v4308
  %v4353 = vpack.c.b16 %v4317, %v4313
  %v4354 = vpack.c.b16 %v4318, %v4314
  %v4355 = vpack.c.b16 %v4319, %v4315
  %v4356 = vpack.c.b16 %v4320, %v4316
  %v4357 = vpack.c.b16 %v4325, %v4321
  %v4358 = vpack.c.b16 %v4326, %v4322
  %v4359 = vpack.c.b16 %v4327, %v4323
  %v4360 = vpack.c.b16 %v4328, %v4324
  %4393 = vmatpush.bf16.msra.mxu0 %v4357
  %4394 = vmatpush.bf16.msra.mxu0 %v4353
  %4395 = vmatpush.bf16.msra.mxu0 %v4349
  %4396 = vmatpush.bf16.msra.mxu0 %v4345
  %4397 = vmatpush.bf16.msra.mxu0 %v4341
  %4398 = vmatpush.bf16.msra.mxu0 %v4337
  %4399 = vmatpush.bf16.msra.mxu0 %v4333
  %4400 = vmatpush.bf16.msra.mxu0 %v4329
  %4401 = vmatmul.bf16.gmra.mxu0 %v4190
  %v4402 = vpop.f32.mrf.mxu0
  %v4403 = vadd.f32 %v4225, %v4402
  %v4404 = vpop.f32.mrf.mxu0
  %4405 = vdwg.mxu0
  %4406 = vmatpush.bf16.msra.mxu0 %v4358
  %4407 = vmatpush.bf16.msra.mxu0 %v4354
  %4408 = vmatpush.bf16.msra.mxu0 %v4350
  %4409 = vmatpush.bf16.msra.mxu0 %v4346
  %4410 = vmatpush.bf16.msra.mxu0 %v4342
  %4411 = vmatpush.bf16.msra.mxu0 %v4338
  %4412 = vmatpush.bf16.msra.mxu0 %v4334
  %4413 = vmatpush.bf16.msra.mxu0 %v4330
  %4414 = vmatmul.bf16.gmra.mxu0 %v4190
  %v4415 = vpop.f32.mrf.mxu0
  %v4416 = vadd.f32 %v4226, %v4415
  %v4417 = vpop.f32.mrf.mxu0
  %4418 = vdwg.mxu0
  %4419 = vmatpush.bf16.msra.mxu0 %v4359
  %4420 = vmatpush.bf16.msra.mxu0 %v4355
  %4421 = vmatpush.bf16.msra.mxu0 %v4351
  %4422 = vmatpush.bf16.msra.mxu0 %v4347
  %4423 = vmatpush.bf16.msra.mxu0 %v4343
  %4424 = vmatpush.bf16.msra.mxu0 %v4339
  %4425 = vmatpush.bf16.msra.mxu0 %v4335
  %4426 = vmatpush.bf16.msra.mxu0 %v4331
  %4427 = vmatmul.bf16.gmra.mxu0 %v4190
  %v4428 = vpop.f32.mrf.mxu0
  %v4429 = vadd.f32 %v4227, %v4428
  %v4430 = vpop.f32.mrf.mxu0
  %4431 = vdwg.mxu0
  %4432 = vmatpush.bf16.msra.mxu0 %v4360
  %4433 = vmatpush.bf16.msra.mxu0 %v4356
  %4434 = vmatpush.bf16.msra.mxu0 %v4352
  %4435 = vmatpush.bf16.msra.mxu0 %v4348
  %4436 = vmatpush.bf16.msra.mxu0 %v4344
  %4437 = vmatpush.bf16.msra.mxu0 %v4340
  %4438 = vmatpush.bf16.msra.mxu0 %v4336
  %4439 = vmatpush.bf16.msra.mxu0 %v4332
  %4440 = vmatmul.bf16.gmra.mxu0 %v4190
  %v4441 = vpop.f32.mrf.mxu0
  %v4442 = vadd.f32 %v4228, %v4441
  %v4443 = vpop.f32.mrf.mxu0
  %4444 = vdwg.mxu0
  %s4445 = smul.addr %s3872, 8
  %s4446 = scalar_lea.vmem [#allocation3], %s4445
  %4447 = vst [vmem:[%s4446] sm:$0xff] %v4403
  %4448 = vst [vmem:[%s4446 + $0x8] sm:$0xff] %v4416
  %4449 = vst [vmem:[%s4446 + $0x10] sm:$0xff] %v4429
  %4450 = vst [vmem:[%s4446 + $0x18] sm:$0xff] %v4442
  %s4451 = smul.u32 7, 4
  %s4452 = smul.addr %s4451, 8
  %s4453 = scalar_lea.vmem [#allocation2], %s4452
  %v4454 = vld [vmem:[%s4453] sm:$0xff]
  %v4455 = vld [vmem:[%s4453 + $0x8] sm:$0xff]
  %v4456 = vld [vmem:[%s4453 + $0x10] sm:$0xff]
  %v4457 = vld [vmem:[%s4453 + $0x18] sm:$0xff]
  %v4458 = vld [vmem:[%s2] sm:$0xff]
  %v4459 = vld [vmem:[%s2 + $0x8] sm:$0xff]
  %v4460 = vld [vmem:[%s2 + $0x10] sm:$0xff]
  %v4461 = vld [vmem:[%s2 + $0x18] sm:$0xff]
  %v4462 = vld [vmem:[%s2 + $0x20] sm:$0xff]
  %v4463 = vld [vmem:[%s2 + $0x28] sm:$0xff]
  %v4464 = vld [vmem:[%s2 + $0x30] sm:$0xff]
  %v4465 = vld [vmem:[%s2 + $0x38] sm:$0xff]
  %v4466 = vld [vmem:[%s2 + $0x40] sm:$0xff]
  %v4467 = vld [vmem:[%s2 + $0x48] sm:$0xff]
  %v4468 = vld [vmem:[%s2 + $0x50] sm:$0xff]
  %v4469 = vld [vmem:[%s2 + $0x58] sm:$0xff]
  %v4470 = vld [vmem:[%s2 + $0x60] sm:$0xff]
  %v4471 = vld [vmem:[%s2 + $0x68] sm:$0xff]
  %v4472 = vld [vmem:[%s2 + $0x70] sm:$0xff]
  %v4473 = vld [vmem:[%s2 + $0x78] sm:$0xff]
  %v4474 = vld [vmem:[%s2 + $0x80] sm:$0xff]
  %v4475 = vld [vmem:[%s2 + $0x88] sm:$0xff]
  %v4476 = vld [vmem:[%s2 + $0x90] sm:$0xff]
  %v4477 = vld [vmem:[%s2 + $0x98] sm:$0xff]
  %v4478 = vld [vmem:[%s2 + $0xa0] sm:$0xff]
  %v4479 = vld [vmem:[%s2 + $0xa8] sm:$0xff]
  %v4480 = vld [vmem:[%s2 + $0xb0] sm:$0xff]
  %v4481 = vld [vmem:[%s2 + $0xb8] sm:$0xff]
  %v4482 = vld [vmem:[%s2 + $0xc0] sm:$0xff]
  %v4483 = vld [vmem:[%s2 + $0xc8] sm:$0xff]
  %v4484 = vld [vmem:[%s2 + $0xd0] sm:$0xff]
  %v4485 = vld [vmem:[%s2 + $0xd8] sm:$0xff]
  %v4486 = vld [vmem:[%s2 + $0xe0] sm:$0xff]
  %v4487 = vld [vmem:[%s2 + $0xe8] sm:$0xff]
  %v4488 = vld [vmem:[%s2 + $0xf0] sm:$0xff]
  %v4489 = vld [vmem:[%s2 + $0xf8] sm:$0xff]
  %v4522 = vunpack.c.l.b16 %v4458
  %v4523 = vunpack.c.h.b16 %v4458
  %v4524 = vunpack.c.l.b16 %v4459
  %v4525 = vunpack.c.h.b16 %v4459
  %v4526 = vunpack.c.l.b16 %v4460
  %v4527 = vunpack.c.h.b16 %v4460
  %v4528 = vunpack.c.l.b16 %v4461
  %v4529 = vunpack.c.h.b16 %v4461
  %v4530 = vunpack.c.l.b16 %v4462
  %v4531 = vunpack.c.h.b16 %v4462
  %v4532 = vunpack.c.l.b16 %v4463
  %v4533 = vunpack.c.h.b16 %v4463
  %v4534 = vunpack.c.l.b16 %v4464
  %v4535 = vunpack.c.h.b16 %v4464
  %v4536 = vunpack.c.l.b16 %v4465
  %v4537 = vunpack.c.h.b16 %v4465
  %v4538 = vunpack.c.l.b16 %v4466
  %v4539 = vunpack.c.h.b16 %v4466
  %v4540 = vunpack.c.l.b16 %v4467
  %v4541 = vunpack.c.h.b16 %v4467
  %v4542 = vunpack.c.l.b16 %v4468
  %v4543 = vunpack.c.h.b16 %v4468
  %v4544 = vunpack.c.l.b16 %v4469
  %v4545 = vunpack.c.h.b16 %v4469
  %v4546 = vunpack.c.l.b16 %v4470
  %v4547 = vunpack.c.h.b16 %v4470
  %v4548 = vunpack.c.l.b16 %v4471
  %v4549 = vunpack.c.h.b16 %v4471
  %v4550 = vunpack.c.l.b16 %v4472
  %v4551 = vunpack.c.h.b16 %v4472
  %v4552 = vunpack.c.l.b16 %v4473
  %v4553 = vunpack.c.h.b16 %v4473
  %v4554 = vunpack.c.l.b16 %v4474
  %v4555 = vunpack.c.h.b16 %v4474
  %v4556 = vunpack.c.l.b16 %v4475
  %v4557 = vunpack.c.h.b16 %v4475
  %v4558 = vunpack.c.l.b16 %v4476
  %v4559 = vunpack.c.h.b16 %v4476
  %v4560 = vunpack.c.l.b16 %v4477
  %v4561 = vunpack.c.h.b16 %v4477
  %v4562 = vunpack.c.l.b16 %v4478
  %v4563 = vunpack.c.h.b16 %v4478
  %v4564 = vunpack.c.l.b16 %v4479
  %v4565 = vunpack.c.h.b16 %v4479
  %v4566 = vunpack.c.l.b16 %v4480
  %v4567 = vunpack.c.h.b16 %v4480
  %v4568 = vunpack.c.l.b16 %v4481
  %v4569 = vunpack.c.h.b16 %v4481
  %v4570 = vunpack.c.l.b16 %v4482
  %v4571 = vunpack.c.h.b16 %v4482
  %v4572 = vunpack.c.l.b16 %v4483
  %v4573 = vunpack.c.h.b16 %v4483
  %v4574 = vunpack.c.l.b16 %v4484
  %v4575 = vunpack.c.h.b16 %v4484
  %v4576 = vunpack.c.l.b16 %v4485
  %v4577 = vunpack.c.h.b16 %v4485
  %v4578 = vunpack.c.l.b16 %v4486
  %v4579 = vunpack.c.h.b16 %v4486
  %v4580 = vunpack.c.l.b16 %v4487
  %v4581 = vunpack.c.h.b16 %v4487
  %v4582 = vunpack.c.l.b16 %v4488
  %v4583 = vunpack.c.h.b16 %v4488
  %v4584 = vunpack.c.l.b16 %v4489
  %v4585 = vunpack.c.h.b16 %v4489
  %v4586 = vpack.c.b16 %v4526, %v4522
  %v4587 = vpack.c.b16 %v4527, %v4523
  %v4588 = vpack.c.b16 %v4528, %v4524
  %v4589 = vpack.c.b16 %v4529, %v4525
  %v4590 = vpack.c.b16 %v4534, %v4530
  %v4591 = vpack.c.b16 %v4535, %v4531
  %v4592 = vpack.c.b16 %v4536, %v4532
  %v4593 = vpack.c.b16 %v4537, %v4533
  %v4594 = vpack.c.b16 %v4542, %v4538
  %v4595 = vpack.c.b16 %v4543, %v4539
  %v4596 = vpack.c.b16 %v4544, %v4540
  %v4597 = vpack.c.b16 %v4545, %v4541
  %v4598 = vpack.c.b16 %v4550, %v4546
  %v4599 = vpack.c.b16 %v4551, %v4547
  %v4600 = vpack.c.b16 %v4552, %v4548
  %v4601 = vpack.c.b16 %v4553, %v4549
  %v4602 = vpack.c.b16 %v4558, %v4554
  %v4603 = vpack.c.b16 %v4559, %v4555
  %v4604 = vpack.c.b16 %v4560, %v4556
  %v4605 = vpack.c.b16 %v4561, %v4557
  %v4606 = vpack.c.b16 %v4566, %v4562
  %v4607 = vpack.c.b16 %v4567, %v4563
  %v4608 = vpack.c.b16 %v4568, %v4564
  %v4609 = vpack.c.b16 %v4569, %v4565
  %v4610 = vpack.c.b16 %v4574, %v4570
  %v4611 = vpack.c.b16 %v4575, %v4571
  %v4612 = vpack.c.b16 %v4576, %v4572
  %v4613 = vpack.c.b16 %v4577, %v4573
  %v4614 = vpack.c.b16 %v4582, %v4578
  %v4615 = vpack.c.b16 %v4583, %v4579
  %v4616 = vpack.c.b16 %v4584, %v4580
  %v4617 = vpack.c.b16 %v4585, %v4581
  %4650 = vmatpush.bf16.msra.mxu0 %v4614
  %4651 = vmatpush.bf16.msra.mxu0 %v4610
  %4652 = vmatpush.bf16.msra.mxu0 %v4606
  %4653 = vmatpush.bf16.msra.mxu0 %v4602
  %4654 = vmatpush.bf16.msra.mxu0 %v4598
  %4655 = vmatpush.bf16.msra.mxu0 %v4594
  %4656 = vmatpush.bf16.msra.mxu0 %v4590
  %4657 = vmatpush.bf16.msra.mxu0 %v4586
  %4658 = vmatmul.bf16.gmra.mxu0 %v4190
  %v4659 = vpop.f32.mrf.mxu0
  %v4660 = vadd.f32 0.0, %v4659
  %v4661 = vpop.f32.mrf.mxu0
  %4662 = vdwg.mxu0
  %4663 = vmatpush.bf16.msra.mxu0 %v4615
  %4664 = vmatpush.bf16.msra.mxu0 %v4611
  %4665 = vmatpush.bf16.msra.mxu0 %v4607
  %4666 = vmatpush.bf16.msra.mxu0 %v4603
  %4667 = vmatpush.bf16.msra.mxu0 %v4599
  %4668 = vmatpush.bf16.msra.mxu0 %v4595
  %4669 = vmatpush.bf16.msra.mxu0 %v4591
  %4670 = vmatpush.bf16.msra.mxu0 %v4587
  %4671 = vmatmul.bf16.gmra.mxu0 %v4190
  %v4672 = vpop.f32.mrf.mxu0
  %v4673 = vadd.f32 0.0, %v4672
  %v4674 = vpop.f32.mrf.mxu0
  %4675 = vdwg.mxu0
  %4676 = vmatpush.bf16.msra.mxu0 %v4616
  %4677 = vmatpush.bf16.msra.mxu0 %v4612
  %4678 = vmatpush.bf16.msra.mxu0 %v4608
  %4679 = vmatpush.bf16.msra.mxu0 %v4604
  %4680 = vmatpush.bf16.msra.mxu0 %v4600
  %4681 = vmatpush.bf16.msra.mxu0 %v4596
  %4682 = vmatpush.bf16.msra.mxu0 %v4592
  %4683 = vmatpush.bf16.msra.mxu0 %v4588
  %4684 = vmatmul.bf16.gmra.mxu0 %v4190
  %v4685 = vpop.f32.mrf.mxu0
  %v4686 = vadd.f32 0.0, %v4685
  %v4687 = vpop.f32.mrf.mxu0
  %4688 = vdwg.mxu0
  %4689 = vmatpush.bf16.msra.mxu0 %v4617
  %4690 = vmatpush.bf16.msra.mxu0 %v4613
  %4691 = vmatpush.bf16.msra.mxu0 %v4609
  %4692 = vmatpush.bf16.msra.mxu0 %v4605
  %4693 = vmatpush.bf16.msra.mxu0 %v4601
  %4694 = vmatpush.bf16.msra.mxu0 %v4597
  %4695 = vmatpush.bf16.msra.mxu0 %v4593
  %4696 = vmatpush.bf16.msra.mxu0 %v4589
  %4697 = vmatmul.bf16.gmra.mxu0 %v4190
  %v4698 = vpop.f32.mrf.mxu0
  %v4699 = vadd.f32 0.0, %v4698
  %v4700 = vpop.f32.mrf.mxu0
  %4701 = vdwg.mxu0
  %v4702 = vadd.f32 %v4454, %v4660
  %v4703 = vadd.f32 %v4455, %v4673
  %v4704 = vadd.f32 %v4456, %v4686
  %v4705 = vadd.f32 %v4457, %v4699
  %v4706 = vxor.u32 %v4702, 2147483648
  %v4707 = vmul.f32 %v4706, 1.442695
  %v4708 = vpow.pop %v4707
  %v4709 = vadd.f32 %v4708, 1.0
  %v4710 = vrcp.pop %v4709
  %v4711 = vmul.f32 %v4709, %v4710
  %v4712 = vsub.f32 1.0, %v4711
  %v4713 = vmul.f32 %v4710, %v4712
  %v4714 = vadd.f32 %v4710, %v4713
  %vm4715 = vweird.f32 %v4709
  %vm4716 = vweird.f32 %v4710
  %vm4717 = vmor %vm4715, %vm4716
  %v4718 = vsel %vm4717, %v4710, %v4714
  %v4719 = vand.u32 2147483647, %v4709
  %vm4720 = vcmp.eq.f32.partialorder %v4719, 8.507059e+37
  %v4721 = vand.u32 %v4709, 2147483648
  %v4722 = vor.u32 1.1754944e-38, %v4721
  %v4723 = vsel %vm4720, %v4722, %v4718
  %v4724 = vmul.f32 1.0, %v4723
  %v4725 = vxor.u32 %v4703, 2147483648
  %v4726 = vmul.f32 %v4725, 1.442695
  %v4727 = vpow.pop %v4726
  %v4728 = vadd.f32 %v4727, 1.0
  %v4729 = vrcp.pop %v4728
  %v4730 = vmul.f32 %v4728, %v4729
  %v4731 = vsub.f32 1.0, %v4730
  %v4732 = vmul.f32 %v4729, %v4731
  %v4733 = vadd.f32 %v4729, %v4732
  %vm4734 = vweird.f32 %v4728
  %vm4735 = vweird.f32 %v4729
  %vm4736 = vmor %vm4734, %vm4735
  %v4737 = vsel %vm4736, %v4729, %v4733
  %v4738 = vand.u32 2147483647, %v4728
  %vm4739 = vcmp.eq.f32.partialorder %v4738, 8.507059e+37
  %v4740 = vand.u32 %v4728, 2147483648
  %v4741 = vor.u32 1.1754944e-38, %v4740
  %v4742 = vsel %vm4739, %v4741, %v4737
  %v4743 = vmul.f32 1.0, %v4742
  %v4744 = vtanh.pop %v4704
  %v4745 = vxor.u32 %v4705, 2147483648
  %v4746 = vmul.f32 %v4745, 1.442695
  %v4747 = vpow.pop %v4746
  %v4748 = vadd.f32 %v4747, 1.0
  %v4749 = vrcp.pop %v4748
  %v4750 = vmul.f32 %v4748, %v4749
  %v4751 = vsub.f32 1.0, %v4750
  %v4752 = vmul.f32 %v4749, %v4751
  %v4753 = vadd.f32 %v4749, %v4752
  %vm4754 = vweird.f32 %v4748
  %vm4755 = vweird.f32 %v4749
  %vm4756 = vmor %vm4754, %vm4755
  %v4757 = vsel %vm4756, %v4749, %v4753
  %v4758 = vand.u32 2147483647, %v4748
  %vm4759 = vcmp.eq.f32.partialorder %v4758, 8.507059e+37
  %v4760 = vand.u32 %v4748, 2147483648
  %v4761 = vor.u32 1.1754944e-38, %v4760
  %v4762 = vsel %vm4759, %v4761, %v4757
  %v4763 = vmul.f32 1.0, %v4762
  %v4764 = vmul.f32 %v4743, %v4187
  %v4765 = vmul.f32 %v4724, %v4744
  %v4766 = vadd.f32 %v4764, %v4765
  %v4767 = vtanh.pop %v4766
  %v4768 = vmul.f32 %v4763, %v4767
  %v4769 = vpack.c.bf16 %v4768, %v4768
  %v4770 = vld [vmem:[%s4] sm:$0xff]
  %v4771 = vld [vmem:[%s4 + $0x8] sm:$0xff]
  %v4772 = vld [vmem:[%s4 + $0x10] sm:$0xff]
  %v4773 = vld [vmem:[%s4 + $0x18] sm:$0xff]
  %v4774 = vld [vmem:[%s4 + $0x20] sm:$0xff]
  %v4775 = vld [vmem:[%s4 + $0x28] sm:$0xff]
  %v4776 = vld [vmem:[%s4 + $0x30] sm:$0xff]
  %v4777 = vld [vmem:[%s4 + $0x38] sm:$0xff]
  %v4778 = vld [vmem:[%s4 + $0x40] sm:$0xff]
  %v4779 = vld [vmem:[%s4 + $0x48] sm:$0xff]
  %v4780 = vld [vmem:[%s4 + $0x50] sm:$0xff]
  %v4781 = vld [vmem:[%s4 + $0x58] sm:$0xff]
  %v4782 = vld [vmem:[%s4 + $0x60] sm:$0xff]
  %v4783 = vld [vmem:[%s4 + $0x68] sm:$0xff]
  %v4784 = vld [vmem:[%s4 + $0x70] sm:$0xff]
  %v4785 = vld [vmem:[%s4 + $0x78] sm:$0xff]
  %v4786 = vld [vmem:[%s4 + $0x80] sm:$0xff]
  %v4787 = vld [vmem:[%s4 + $0x88] sm:$0xff]
  %v4788 = vld [vmem:[%s4 + $0x90] sm:$0xff]
  %v4789 = vld [vmem:[%s4 + $0x98] sm:$0xff]
  %v4790 = vld [vmem:[%s4 + $0xa0] sm:$0xff]
  %v4791 = vld [vmem:[%s4 + $0xa8] sm:$0xff]
  %v4792 = vld [vmem:[%s4 + $0xb0] sm:$0xff]
  %v4793 = vld [vmem:[%s4 + $0xb8] sm:$0xff]
  %v4794 = vld [vmem:[%s4 + $0xc0] sm:$0xff]
  %v4795 = vld [vmem:[%s4 + $0xc8] sm:$0xff]
  %v4796 = vld [vmem:[%s4 + $0xd0] sm:$0xff]
  %v4797 = vld [vmem:[%s4 + $0xd8] sm:$0xff]
  %v4798 = vld [vmem:[%s4 + $0xe0] sm:$0xff]
  %v4799 = vld [vmem:[%s4 + $0xe8] sm:$0xff]
  %v4800 = vld [vmem:[%s4 + $0xf0] sm:$0xff]
  %v4801 = vld [vmem:[%s4 + $0xf8] sm:$0xff]
  %v4802 = vld [vmem:[%s6] sm:$0xf]
  %v4804 = vperm.slane %v4802, 0
  %v4805 = vperm.slane %v4802, 1
  %v4806 = vperm.slane %v4802, 2
  %v4807 = vperm.slane %v4802, 3
  %v4844 = vunpack.c.l.b16 %v4770
  %v4845 = vunpack.c.h.b16 %v4770
  %v4846 = vunpack.c.l.b16 %v4771
  %v4847 = vunpack.c.h.b16 %v4771
  %v4848 = vunpack.c.l.b16 %v4772
  %v4849 = vunpack.c.h.b16 %v4772
  %v4850 = vunpack.c.l.b16 %v4773
  %v4851 = vunpack.c.h.b16 %v4773
  %v4852 = vunpack.c.l.b16 %v4774
  %v4853 = vunpack.c.h.b16 %v4774
  %v4854 = vunpack.c.l.b16 %v4775
  %v4855 = vunpack.c.h.b16 %v4775
  %v4856 = vunpack.c.l.b16 %v4776
  %v4857 = vunpack.c.h.b16 %v4776
  %v4858 = vunpack.c.l.b16 %v4777
  %v4859 = vunpack.c.h.b16 %v4777
  %v4860 = vunpack.c.l.b16 %v4778
  %v4861 = vunpack.c.h.b16 %v4778
  %v4862 = vunpack.c.l.b16 %v4779
  %v4863 = vunpack.c.h.b16 %v4779
  %v4864 = vunpack.c.l.b16 %v4780
  %v4865 = vunpack.c.h.b16 %v4780
  %v4866 = vunpack.c.l.b16 %v4781
  %v4867 = vunpack.c.h.b16 %v4781
  %v4868 = vunpack.c.l.b16 %v4782
  %v4869 = vunpack.c.h.b16 %v4782
  %v4870 = vunpack.c.l.b16 %v4783
  %v4871 = vunpack.c.h.b16 %v4783
  %v4872 = vunpack.c.l.b16 %v4784
  %v4873 = vunpack.c.h.b16 %v4784
  %v4874 = vunpack.c.l.b16 %v4785
  %v4875 = vunpack.c.h.b16 %v4785
  %v4876 = vunpack.c.l.b16 %v4786
  %v4877 = vunpack.c.h.b16 %v4786
  %v4878 = vunpack.c.l.b16 %v4787
  %v4879 = vunpack.c.h.b16 %v4787
  %v4880 = vunpack.c.l.b16 %v4788
  %v4881 = vunpack.c.h.b16 %v4788
  %v4882 = vunpack.c.l.b16 %v4789
  %v4883 = vunpack.c.h.b16 %v4789
  %v4884 = vunpack.c.l.b16 %v4790
  %v4885 = vunpack.c.h.b16 %v4790
  %v4886 = vunpack.c.l.b16 %v4791
  %v4887 = vunpack.c.h.b16 %v4791
  %v4888 = vunpack.c.l.b16 %v4792
  %v4889 = vunpack.c.h.b16 %v4792
  %v4890 = vunpack.c.l.b16 %v4793
  %v4891 = vunpack.c.h.b16 %v4793
  %v4892 = vunpack.c.l.b16 %v4794
  %v4893 = vunpack.c.h.b16 %v4794
  %v4894 = vunpack.c.l.b16 %v4795
  %v4895 = vunpack.c.h.b16 %v4795
  %v4896 = vunpack.c.l.b16 %v4796
  %v4897 = vunpack.c.h.b16 %v4796
  %v4898 = vunpack.c.l.b16 %v4797
  %v4899 = vunpack.c.h.b16 %v4797
  %v4900 = vunpack.c.l.b16 %v4798
  %v4901 = vunpack.c.h.b16 %v4798
  %v4902 = vunpack.c.l.b16 %v4799
  %v4903 = vunpack.c.h.b16 %v4799
  %v4904 = vunpack.c.l.b16 %v4800
  %v4905 = vunpack.c.h.b16 %v4800
  %v4906 = vunpack.c.l.b16 %v4801
  %v4907 = vunpack.c.h.b16 %v4801
  %v4908 = vpack.c.b16 %v4848, %v4844
  %v4909 = vpack.c.b16 %v4849, %v4845
  %v4910 = vpack.c.b16 %v4850, %v4846
  %v4911 = vpack.c.b16 %v4851, %v4847
  %v4912 = vpack.c.b16 %v4856, %v4852
  %v4913 = vpack.c.b16 %v4857, %v4853
  %v4914 = vpack.c.b16 %v4858, %v4854
  %v4915 = vpack.c.b16 %v4859, %v4855
  %v4916 = vpack.c.b16 %v4864, %v4860
  %v4917 = vpack.c.b16 %v4865, %v4861
  %v4918 = vpack.c.b16 %v4866, %v4862
  %v4919 = vpack.c.b16 %v4867, %v4863
  %v4920 = vpack.c.b16 %v4872, %v4868
  %v4921 = vpack.c.b16 %v4873, %v4869
  %v4922 = vpack.c.b16 %v4874, %v4870
  %v4923 = vpack.c.b16 %v4875, %v4871
  %v4924 = vpack.c.b16 %v4880, %v4876
  %v4925 = vpack.c.b16 %v4881, %v4877
  %v4926 = vpack.c.b16 %v4882, %v4878
  %v4927 = vpack.c.b16 %v4883, %v4879
  %v4928 = vpack.c.b16 %v4888, %v4884
  %v4929 = vpack.c.b16 %v4889, %v4885
  %v4930 = vpack.c.b16 %v4890, %v4886
  %v4931 = vpack.c.b16 %v4891, %v4887
  %v4932 = vpack.c.b16 %v4896, %v4892
  %v4933 = vpack.c.b16 %v4897, %v4893
  %v4934 = vpack.c.b16 %v4898, %v4894
  %v4935 = vpack.c.b16 %v4899, %v4895
  %v4936 = vpack.c.b16 %v4904, %v4900
  %v4937 = vpack.c.b16 %v4905, %v4901
  %v4938 = vpack.c.b16 %v4906, %v4902
  %v4939 = vpack.c.b16 %v4907, %v4903
  %4972 = vmatpush.bf16.msra.mxu0 %v4936
  %4973 = vmatpush.bf16.msra.mxu0 %v4932
  %4974 = vmatpush.bf16.msra.mxu0 %v4928
  %4975 = vmatpush.bf16.msra.mxu0 %v4924
  %4976 = vmatpush.bf16.msra.mxu0 %v4920
  %4977 = vmatpush.bf16.msra.mxu0 %v4916
  %4978 = vmatpush.bf16.msra.mxu0 %v4912
  %4979 = vmatpush.bf16.msra.mxu0 %v4908
  %4980 = vmatmul.bf16.gmra.mxu0 %v4769
  %v4981 = vpop.f32.mrf.mxu0
  %v4982 = vadd.f32 %v4804, %v4981
  %v4983 = vpop.f32.mrf.mxu0
  %4984 = vdwg.mxu0
  %4985 = vmatpush.bf16.msra.mxu0 %v4937
  %4986 = vmatpush.bf16.msra.mxu0 %v4933
  %4987 = vmatpush.bf16.msra.mxu0 %v4929
  %4988 = vmatpush.bf16.msra.mxu0 %v4925
  %4989 = vmatpush.bf16.msra.mxu0 %v4921
  %4990 = vmatpush.bf16.msra.mxu0 %v4917
  %4991 = vmatpush.bf16.msra.mxu0 %v4913
  %4992 = vmatpush.bf16.msra.mxu0 %v4909
  %4993 = vmatmul.bf16.gmra.mxu0 %v4769
  %v4994 = vpop.f32.mrf.mxu0
  %v4995 = vadd.f32 %v4805, %v4994
  %v4996 = vpop.f32.mrf.mxu0
  %4997 = vdwg.mxu0
  %4998 = vmatpush.bf16.msra.mxu0 %v4938
  %4999 = vmatpush.bf16.msra.mxu0 %v4934
  %5000 = vmatpush.bf16.msra.mxu0 %v4930
  %5001 = vmatpush.bf16.msra.mxu0 %v4926
  %5002 = vmatpush.bf16.msra.mxu0 %v4922
  %5003 = vmatpush.bf16.msra.mxu0 %v4918
  %5004 = vmatpush.bf16.msra.mxu0 %v4914
  %5005 = vmatpush.bf16.msra.mxu0 %v4910
  %5006 = vmatmul.bf16.gmra.mxu0 %v4769
  %v5007 = vpop.f32.mrf.mxu0
  %v5008 = vadd.f32 %v4806, %v5007
  %v5009 = vpop.f32.mrf.mxu0
  %5010 = vdwg.mxu0
  %5011 = vmatpush.bf16.msra.mxu0 %v4939
  %5012 = vmatpush.bf16.msra.mxu0 %v4935
  %5013 = vmatpush.bf16.msra.mxu0 %v4931
  %5014 = vmatpush.bf16.msra.mxu0 %v4927
  %5015 = vmatpush.bf16.msra.mxu0 %v4923
  %5016 = vmatpush.bf16.msra.mxu0 %v4919
  %5017 = vmatpush.bf16.msra.mxu0 %v4915
  %5018 = vmatpush.bf16.msra.mxu0 %v4911
  %5019 = vmatmul.bf16.gmra.mxu0 %v4769
  %v5020 = vpop.f32.mrf.mxu0
  %v5021 = vadd.f32 %v4807, %v5020
  %v5022 = vpop.f32.mrf.mxu0
  %5023 = vdwg.mxu0
  %s5024 = smul.addr %s4451, 8
  %s5025 = scalar_lea.vmem [#allocation3], %s5024
  %5026 = vst [vmem:[%s5025] sm:$0xff] %v4982
  %5027 = vst [vmem:[%s5025 + $0x8] sm:$0xff] %v4995
  %5028 = vst [vmem:[%s5025 + $0x10] sm:$0xff] %v5008
  %5029 = vst [vmem:[%s5025 + $0x18] sm:$0xff] %v5021
  %s5030 = smul.u32 4, 128
  %s5031 = smul.u32 %s5030, 1
  %s5032 = sshll.u32 %s5031, 4
  %5033 = dma.done [#allocation5], %s5032
  %v5034 = vld [vmem:[%s8] sm:$0x1]
  %v5036 = vperm.slane %v5034, 0
  %v5038 = vadd.f32 %v5036, 0.0
  %v5039 = vld [vmem:[%s972] sm:$0xff]
  %v5040 = vld [vmem:[%s972 + $0x8] sm:$0xff]
  %v5041 = vld [vmem:[%s972 + $0x10] sm:$0xff]
  %v5042 = vld [vmem:[%s972 + $0x18] sm:$0xff]
  %v5043 = vld [vmem:[%s5] sm:$0xff]
  %v5044 = vld [vmem:[%s5 + $0x8] sm:$0xff]
  %v5045 = vld [vmem:[%s5 + $0x10] sm:$0xff]
  %v5046 = vld [vmem:[%s5 + $0x18] sm:$0xff]
  %v5047 = vld [vmem:[%s5 + $0x20] sm:$0xff]
  %v5048 = vld [vmem:[%s5 + $0x28] sm:$0xff]
  %v5049 = vld [vmem:[%s5 + $0x30] sm:$0xff]
  %v5050 = vld [vmem:[%s5 + $0x38] sm:$0xff]
  %v5051 = vld [vmem:[%s5 + $0x40] sm:$0xff]
  %v5052 = vld [vmem:[%s5 + $0x48] sm:$0xff]
  %v5053 = vld [vmem:[%s5 + $0x50] sm:$0xff]
  %v5054 = vld [vmem:[%s5 + $0x58] sm:$0xff]
  %v5055 = vld [vmem:[%s5 + $0x60] sm:$0xff]
  %v5056 = vld [vmem:[%s5 + $0x68] sm:$0xff]
  %v5057 = vld [vmem:[%s5 + $0x70] sm:$0xff]
  %v5058 = vld [vmem:[%s5 + $0x78] sm:$0xff]
  %v5059 = vld [vmem:[%s5 + $0x80] sm:$0xff]
  %v5060 = vld [vmem:[%s5 + $0x88] sm:$0xff]
  %v5061 = vld [vmem:[%s5 + $0x90] sm:$0xff]
  %v5062 = vld [vmem:[%s5 + $0x98] sm:$0xff]
  %v5063 = vld [vmem:[%s5 + $0xa0] sm:$0xff]
  %v5064 = vld [vmem:[%s5 + $0xa8] sm:$0xff]
  %v5065 = vld [vmem:[%s5 + $0xb0] sm:$0xff]
  %v5066 = vld [vmem:[%s5 + $0xb8] sm:$0xff]
  %v5067 = vld [vmem:[%s5 + $0xc0] sm:$0xff]
  %v5068 = vld [vmem:[%s5 + $0xc8] sm:$0xff]
  %v5069 = vld [vmem:[%s5 + $0xd0] sm:$0xff]
  %v5070 = vld [vmem:[%s5 + $0xd8] sm:$0xff]
  %v5071 = vld [vmem:[%s5 + $0xe0] sm:$0xff]
  %v5072 = vld [vmem:[%s5 + $0xe8] sm:$0xff]
  %v5073 = vld [vmem:[%s5 + $0xf0] sm:$0xff]
  %v5074 = vld [vmem:[%s5 + $0xf8] sm:$0xff]
  %v5107 = vunpack.c.l.b16 %v5043
  %v5108 = vunpack.c.h.b16 %v5043
  %v5109 = vunpack.c.l.b16 %v5044
  %v5110 = vunpack.c.h.b16 %v5044
  %v5111 = vunpack.c.l.b16 %v5045
  %v5112 = vunpack.c.h.b16 %v5045
  %v5113 = vunpack.c.l.b16 %v5046
  %v5114 = vunpack.c.h.b16 %v5046
  %v5115 = vunpack.c.l.b16 %v5047
  %v5116 = vunpack.c.h.b16 %v5047
  %v5117 = vunpack.c.l.b16 %v5048
  %v5118 = vunpack.c.h.b16 %v5048
  %v5119 = vunpack.c.l.b16 %v5049
  %v5120 = vunpack.c.h.b16 %v5049
  %v5121 = vunpack.c.l.b16 %v5050
  %v5122 = vunpack.c.h.b16 %v5050
  %v5123 = vunpack.c.l.b16 %v5051
  %v5124 = vunpack.c.h.b16 %v5051
  %v5125 = vunpack.c.l.b16 %v5052
  %v5126 = vunpack.c.h.b16 %v5052
  %v5127 = vunpack.c.l.b16 %v5053
  %v5128 = vunpack.c.h.b16 %v5053
  %v5129 = vunpack.c.l.b16 %v5054
  %v5130 = vunpack.c.h.b16 %v5054
  %v5131 = vunpack.c.l.b16 %v5055
  %v5132 = vunpack.c.h.b16 %v5055
  %v5133 = vunpack.c.l.b16 %v5056
  %v5134 = vunpack.c.h.b16 %v5056
  %v5135 = vunpack.c.l.b16 %v5057
  %v5136 = vunpack.c.h.b16 %v5057
  %v5137 = vunpack.c.l.b16 %v5058
  %v5138 = vunpack.c.h.b16 %v5058
  %v5139 = vunpack.c.l.b16 %v5059
  %v5140 = vunpack.c.h.b16 %v5059
  %v5141 = vunpack.c.l.b16 %v5060
  %v5142 = vunpack.c.h.b16 %v5060
  %v5143 = vunpack.c.l.b16 %v5061
  %v5144 = vunpack.c.h.b16 %v5061
  %v5145 = vunpack.c.l.b16 %v5062
  %v5146 = vunpack.c.h.b16 %v5062
  %v5147 = vunpack.c.l.b16 %v5063
  %v5148 = vunpack.c.h.b16 %v5063
  %v5149 = vunpack.c.l.b16 %v5064
  %v5150 = vunpack.c.h.b16 %v5064
  %v5151 = vunpack.c.l.b16 %v5065
  %v5152 = vunpack.c.h.b16 %v5065
  %v5153 = vunpack.c.l.b16 %v5066
  %v5154 = vunpack.c.h.b16 %v5066
  %v5155 = vunpack.c.l.b16 %v5067
  %v5156 = vunpack.c.h.b16 %v5067
  %v5157 = vunpack.c.l.b16 %v5068
  %v5158 = vunpack.c.h.b16 %v5068
  %v5159 = vunpack.c.l.b16 %v5069
  %v5160 = vunpack.c.h.b16 %v5069
  %v5161 = vunpack.c.l.b16 %v5070
  %v5162 = vunpack.c.h.b16 %v5070
  %v5163 = vunpack.c.l.b16 %v5071
  %v5164 = vunpack.c.h.b16 %v5071
  %v5165 = vunpack.c.l.b16 %v5072
  %v5166 = vunpack.c.h.b16 %v5072
  %v5167 = vunpack.c.l.b16 %v5073
  %v5168 = vunpack.c.h.b16 %v5073
  %v5169 = vunpack.c.l.b16 %v5074
  %v5170 = vunpack.c.h.b16 %v5074
  %v5171 = vpack.c.b16 %v5111, %v5107
  %v5172 = vpack.c.b16 %v5112, %v5108
  %v5173 = vpack.c.b16 %v5113, %v5109
  %v5174 = vpack.c.b16 %v5114, %v5110
  %v5175 = vpack.c.b16 %v5119, %v5115
  %v5176 = vpack.c.b16 %v5120, %v5116
  %v5177 = vpack.c.b16 %v5121, %v5117
  %v5178 = vpack.c.b16 %v5122, %v5118
  %v5179 = vpack.c.b16 %v5127, %v5123
  %v5180 = vpack.c.b16 %v5128, %v5124
  %v5181 = vpack.c.b16 %v5129, %v5125
  %v5182 = vpack.c.b16 %v5130, %v5126
  %v5183 = vpack.c.b16 %v5135, %v5131
  %v5184 = vpack.c.b16 %v5136, %v5132
  %v5185 = vpack.c.b16 %v5137, %v5133
  %v5186 = vpack.c.b16 %v5138, %v5134
  %v5187 = vpack.c.b16 %v5143, %v5139
  %v5188 = vpack.c.b16 %v5144, %v5140
  %v5189 = vpack.c.b16 %v5145, %v5141
  %v5190 = vpack.c.b16 %v5146, %v5142
  %v5191 = vpack.c.b16 %v5151, %v5147
  %v5192 = vpack.c.b16 %v5152, %v5148
  %v5193 = vpack.c.b16 %v5153, %v5149
  %v5194 = vpack.c.b16 %v5154, %v5150
  %v5195 = vpack.c.b16 %v5159, %v5155
  %v5196 = vpack.c.b16 %v5160, %v5156
  %v5197 = vpack.c.b16 %v5161, %v5157
  %v5198 = vpack.c.b16 %v5162, %v5158
  %v5199 = vpack.c.b16 %v5167, %v5163
  %v5200 = vpack.c.b16 %v5168, %v5164
  %v5201 = vpack.c.b16 %v5169, %v5165
  %v5202 = vpack.c.b16 %v5170, %v5166
  %5235 = vmatpush.bf16.msra.mxu0 %v5199
  %5236 = vmatpush.bf16.msra.mxu0 %v5195
  %5237 = vmatpush.bf16.msra.mxu0 %v5191
  %5238 = vmatpush.bf16.msra.mxu0 %v5187
  %5239 = vmatpush.bf16.msra.mxu0 %v5183
  %5240 = vmatpush.bf16.msra.mxu0 %v5179
  %5241 = vmatpush.bf16.msra.mxu0 %v5175
  %5242 = vmatpush.bf16.msra.mxu0 %v5171
  %5243 = vmatmul.bf16.gmra.mxu0 0
  %v5244 = vpop.f32.mrf.mxu0
  %v5245 = vadd.f32 0.0, %v5244
  %v5246 = vpop.f32.mrf.mxu0
  %5247 = vdwg.mxu0
  %5248 = vmatpush.bf16.msra.mxu0 %v5200
  %5249 = vmatpush.bf16.msra.mxu0 %v5196
  %5250 = vmatpush.bf16.msra.mxu0 %v5192
  %5251 = vmatpush.bf16.msra.mxu0 %v5188
  %5252 = vmatpush.bf16.msra.mxu0 %v5184
  %5253 = vmatpush.bf16.msra.mxu0 %v5180
  %5254 = vmatpush.bf16.msra.mxu0 %v5176
  %5255 = vmatpush.bf16.msra.mxu0 %v5172
  %5256 = vmatmul.bf16.gmra.mxu0 0
  %v5257 = vpop.f32.mrf.mxu0
  %v5258 = vadd.f32 0.0, %v5257
  %v5259 = vpop.f32.mrf.mxu0
  %5260 = vdwg.mxu0
  %5261 = vmatpush.bf16.msra.mxu0 %v5201
  %5262 = vmatpush.bf16.msra.mxu0 %v5197
  %5263 = vmatpush.bf16.msra.mxu0 %v5193
  %5264 = vmatpush.bf16.msra.mxu0 %v5189
  %5265 = vmatpush.bf16.msra.mxu0 %v5185
  %5266 = vmatpush.bf16.msra.mxu0 %v5181
  %5267 = vmatpush.bf16.msra.mxu0 %v5177
  %5268 = vmatpush.bf16.msra.mxu0 %v5173
  %5269 = vmatmul.bf16.gmra.mxu0 0
  %v5270 = vpop.f32.mrf.mxu0
  %v5271 = vadd.f32 0.0, %v5270
  %v5272 = vpop.f32.mrf.mxu0
  %5273 = vdwg.mxu0
  %5274 = vmatpush.bf16.msra.mxu0 %v5202
  %5275 = vmatpush.bf16.msra.mxu0 %v5198
  %5276 = vmatpush.bf16.msra.mxu0 %v5194
  %5277 = vmatpush.bf16.msra.mxu0 %v5190
  %5278 = vmatpush.bf16.msra.mxu0 %v5186
  %5279 = vmatpush.bf16.msra.mxu0 %v5182
  %5280 = vmatpush.bf16.msra.mxu0 %v5178
  %5281 = vmatpush.bf16.msra.mxu0 %v5174
  %5282 = vmatmul.bf16.gmra.mxu0 0
  %v5283 = vpop.f32.mrf.mxu0
  %v5284 = vadd.f32 0.0, %v5283
  %v5285 = vpop.f32.mrf.mxu0
  %5286 = vdwg.mxu0
  %v5287 = vadd.f32 %v5039, %v5245
  %v5288 = vadd.f32 %v5040, %v5258
  %v5289 = vadd.f32 %v5041, %v5271
  %v5290 = vadd.f32 %v5042, %v5284
  %v5291 = vxor.u32 %v5287, 2147483648
  %v5292 = vmul.f32 %v5291, 1.442695
  %v5293 = vpow.pop %v5292
  %v5294 = vadd.f32 %v5293, 1.0
  %v5295 = vrcp.pop %v5294
  %v5296 = vmul.f32 %v5294, %v5295
  %v5297 = vsub.f32 1.0, %v5296
  %v5298 = vmul.f32 %v5295, %v5297
  %v5299 = vadd.f32 %v5295, %v5298
  %vm5300 = vweird.f32 %v5294
  %vm5301 = vweird.f32 %v5295
  %vm5302 = vmor %vm5300, %vm5301
  %v5303 = vsel %vm5302, %v5295, %v5299
  %v5304 = vand.u32 2147483647, %v5294
  %vm5305 = vcmp.eq.f32.partialorder %v5304, 8.507059e+37
  %v5306 = vand.u32 %v5294, 2147483648
  %v5307 = vor.u32 1.1754944e-38, %v5306
  %v5308 = vsel %vm5305, %v5307, %v5303
  %v5309 = vmul.f32 1.0, %v5308
  %v5310 = vxor.u32 %v5288, 2147483648
  %v5311 = vmul.f32 %v5310, 1.442695
  %v5312 = vpow.pop %v5311
  %v5313 = vadd.f32 %v5312, 1.0
  %v5314 = vrcp.pop %v5313
  %v5315 = vmul.f32 %v5313, %v5314
  %v5316 = vsub.f32 1.0, %v5315
  %v5317 = vmul.f32 %v5314, %v5316
  %v5318 = vadd.f32 %v5314, %v5317
  %vm5319 = vweird.f32 %v5313
  %vm5320 = vweird.f32 %v5314
  %vm5321 = vmor %vm5319, %vm5320
  %v5322 = vsel %vm5321, %v5314, %v5318
  %v5323 = vand.u32 2147483647, %v5313
  %vm5324 = vcmp.eq.f32.partialorder %v5323, 8.507059e+37
  %v5325 = vand.u32 %v5313, 2147483648
  %v5326 = vor.u32 1.1754944e-38, %v5325
  %v5327 = vsel %vm5324, %v5326, %v5322
  %v5328 = vmul.f32 1.0, %v5327
  %v5329 = vtanh.pop %v5289
  %v5330 = vxor.u32 %v5290, 2147483648
  %v5331 = vmul.f32 %v5330, 1.442695
  %v5332 = vpow.pop %v5331
  %v5333 = vadd.f32 %v5332, 1.0
  %v5334 = vrcp.pop %v5333
  %v5335 = vmul.f32 %v5333, %v5334
  %v5336 = vsub.f32 1.0, %v5335
  %v5337 = vmul.f32 %v5334, %v5336
  %v5338 = vadd.f32 %v5334, %v5337
  %vm5339 = vweird.f32 %v5333
  %vm5340 = vweird.f32 %v5334
  %vm5341 = vmor %vm5339, %vm5340
  %v5342 = vsel %vm5341, %v5334, %v5338
  %v5343 = vand.u32 2147483647, %v5333
  %vm5344 = vcmp.eq.f32.partialorder %v5343, 8.507059e+37
  %v5345 = vand.u32 %v5333, 2147483648
  %v5346 = vor.u32 1.1754944e-38, %v5345
  %v5347 = vsel %vm5344, %v5346, %v5342
  %v5348 = vmul.f32 1.0, %v5347
  %v5349 = vmul.f32 %v5328, 0.0
  %v5350 = vmul.f32 %v5309, %v5329
  %v5351 = vadd.f32 %v5349, %v5350
  %v5352 = vtanh.pop %v5351
  %v5353 = vmul.f32 %v5348, %v5352
  %v5354 = vpack.c.bf16 %v5353, %v5353
  %v5355 = vld [vmem:[#allocation4] sm:$0xf]
  %v5356 = vld [vmem:[#allocation4 + $0x4] sm:$0xf]
  %v5357 = vld [vmem:[#allocation4 + $0x8] sm:$0xf]
  %v5358 = vld [vmem:[#allocation4 + $0xc] sm:$0xf]
  %v5359 = vld [vmem:[#allocation4 + $0x10] sm:$0xf]
  %v5360 = vld [vmem:[#allocation4 + $0x14] sm:$0xf]
  %v5361 = vld [vmem:[#allocation4 + $0x18] sm:$0xf]
  %v5362 = vld [vmem:[#allocation4 + $0x1c] sm:$0xf]
  %v5363 = vld [vmem:[#allocation4 + $0x20] sm:$0xf]
  %v5364 = vld [vmem:[#allocation4 + $0x24] sm:$0xf]
  %v5365 = vld [vmem:[#allocation4 + $0x28] sm:$0xf]
  %v5366 = vld [vmem:[#allocation4 + $0x2c] sm:$0xf]
  %v5367 = vld [vmem:[#allocation4 + $0x30] sm:$0xf]
  %v5368 = vld [vmem:[#allocation4 + $0x34] sm:$0xf]
  %v5369 = vld [vmem:[#allocation4 + $0x38] sm:$0xf]
  %v5370 = vld [vmem:[#allocation4 + $0x3c] sm:$0xf]
  %v5387 = vunpack.c.l.b16 %v5355
  %v5388 = vunpack.c.l.b16 %v5356
  %v5389 = vunpack.c.l.b16 %v5357
  %v5390 = vunpack.c.l.b16 %v5358
  %v5391 = vunpack.c.l.b16 %v5359
  %v5392 = vunpack.c.l.b16 %v5360
  %v5393 = vunpack.c.l.b16 %v5361
  %v5394 = vunpack.c.l.b16 %v5362
  %v5395 = vunpack.c.l.b16 %v5363
  %v5396 = vunpack.c.l.b16 %v5364
  %v5397 = vunpack.c.l.b16 %v5365
  %v5398 = vunpack.c.l.b16 %v5366
  %v5399 = vunpack.c.l.b16 %v5367
  %v5400 = vunpack.c.l.b16 %v5368
  %v5401 = vunpack.c.l.b16 %v5369
  %v5402 = vunpack.c.l.b16 %v5370
  %v5403 = vpack.c.b16 %v5388, %v5387
  %v5404 = vpack.c.b16 %v5390, %v5389
  %v5405 = vpack.c.b16 %v5392, %v5391
  %v5406 = vpack.c.b16 %v5394, %v5393
  %v5407 = vpack.c.b16 %v5396, %v5395
  %v5408 = vpack.c.b16 %v5398, %v5397
  %v5409 = vpack.c.b16 %v5400, %v5399
  %v5410 = vpack.c.b16 %v5402, %v5401
  %5419 = vmatpush.bf16.msra.mxu0 %v5410
  %5420 = vmatpush.bf16.msra.mxu0 %v5409
  %5421 = vmatpush.bf16.msra.mxu0 %v5408
  %5422 = vmatpush.bf16.msra.mxu0 %v5407
  %5423 = vmatpush.bf16.msra.mxu0 %v5406
  %5424 = vmatpush.bf16.msra.mxu0 %v5405
  %5425 = vmatpush.bf16.msra.mxu0 %v5404
  %5426 = vmatpush.bf16.msra.mxu0 %v5403
  %5427 = vmatmul.bf16.gmra.mxu0 %v5354
  %v5428 = vpop.f32.mrf.mxu0
  %v5429 = vadd.f32 0.0, %v5428
  %v5430 = vpop.f32.mrf.mxu0
  %5431 = vdwg.mxu0
  %v5432 = vadd.f32 %v5038, %v5429
  %v5433 = vld [vmem:[%s1551] sm:$0xff]
  %v5434 = vld [vmem:[%s1551 + $0x8] sm:$0xff]
  %v5435 = vld [vmem:[%s1551 + $0x10] sm:$0xff]
  %v5436 = vld [vmem:[%s1551 + $0x18] sm:$0xff]
  %5437 = vmatpush.bf16.msra.mxu0 %v5199
  %5438 = vmatpush.bf16.msra.mxu0 %v5195
  %5439 = vmatpush.bf16.msra.mxu0 %v5191
  %5440 = vmatpush.bf16.msra.mxu0 %v5187
  %5441 = vmatpush.bf16.msra.mxu0 %v5183
  %5442 = vmatpush.bf16.msra.mxu0 %v5179
  %5443 = vmatpush.bf16.msra.mxu0 %v5175
  %5444 = vmatpush.bf16.msra.mxu0 %v5171
  %5445 = vmatmul.bf16.gmra.mxu0 %v5354
  %v5446 = vpop.f32.mrf.mxu0
  %v5447 = vadd.f32 0.0, %v5446
  %v5448 = vpop.f32.mrf.mxu0
  %5449 = vdwg.mxu0
  %5450 = vmatpush.bf16.msra.mxu0 %v5200
  %5451 = vmatpush.bf16.msra.mxu0 %v5196
  %5452 = vmatpush.bf16.msra.mxu0 %v5192
  %5453 = vmatpush.bf16.msra.mxu0 %v5188
  %5454 = vmatpush.bf16.msra.mxu0 %v5184
  %5455 = vmatpush.bf16.msra.mxu0 %v5180
  %5456 = vmatpush.bf16.msra.mxu0 %v5176
  %5457 = vmatpush.bf16.msra.mxu0 %v5172
  %5458 = vmatmul.bf16.gmra.mxu0 %v5354
  %v5459 = vpop.f32.mrf.mxu0
  %v5460 = vadd.f32 0.0, %v5459
  %v5461 = vpop.f32.mrf.mxu0
  %5462 = vdwg.mxu0
  %5463 = vmatpush.bf16.msra.mxu0 %v5201
  %5464 = vmatpush.bf16.msra.mxu0 %v5197
  %5465 = vmatpush.bf16.msra.mxu0 %v5193
  %5466 = vmatpush.bf16.msra.mxu0 %v5189
  %5467 = vmatpush.bf16.msra.mxu0 %v5185
  %5468 = vmatpush.bf16.msra.mxu0 %v5181
  %5469 = vmatpush.bf16.msra.mxu0 %v5177
  %5470 = vmatpush.bf16.msra.mxu0 %v5173
  %5471 = vmatmul.bf16.gmra.mxu0 %v5354
  %v5472 = vpop.f32.mrf.mxu0
  %v5473 = vadd.f32 0.0, %v5472
  %v5474 = vpop.f32.mrf.mxu0
  %5475 = vdwg.mxu0
  %5476 = vmatpush.bf16.msra.mxu0 %v5202
  %5477 = vmatpush.bf16.msra.mxu0 %v5198
  %5478 = vmatpush.bf16.msra.mxu0 %v5194
  %5479 = vmatpush.bf16.msra.mxu0 %v5190
  %5480 = vmatpush.bf16.msra.mxu0 %v5186
  %5481 = vmatpush.bf16.msra.mxu0 %v5182
  %5482 = vmatpush.bf16.msra.mxu0 %v5178
  %5483 = vmatpush.bf16.msra.mxu0 %v5174
  %5484 = vmatmul.bf16.gmra.mxu0 %v5354
  %v5485 = vpop.f32.mrf.mxu0
  %v5486 = vadd.f32 0.0, %v5485
  %v5487 = vpop.f32.mrf.mxu0
  %5488 = vdwg.mxu0
  %v5489 = vadd.f32 %v5433, %v5447
  %v5490 = vadd.f32 %v5434, %v5460
  %v5491 = vadd.f32 %v5435, %v5473
  %v5492 = vadd.f32 %v5436, %v5486
  %v5493 = vxor.u32 %v5489, 2147483648
  %v5494 = vmul.f32 %v5493, 1.442695
  %v5495 = vpow.pop %v5494
  %v5496 = vadd.f32 %v5495, 1.0
  %v5497 = vrcp.pop %v5496
  %v5498 = vmul.f32 %v5496, %v5497
  %v5499 = vsub.f32 1.0, %v5498
  %v5500 = vmul.f32 %v5497, %v5499
  %v5501 = vadd.f32 %v5497, %v5500
  %vm5502 = vweird.f32 %v5496
  %vm5503 = vweird.f32 %v5497
  %vm5504 = vmor %vm5502, %vm5503
  %v5505 = vsel %vm5504, %v5497, %v5501
  %v5506 = vand.u32 2147483647, %v5496
  %vm5507 = vcmp.eq.f32.partialorder %v5506, 8.507059e+37
  %v5508 = vand.u32 %v5496, 2147483648
  %v5509 = vor.u32 1.1754944e-38, %v5508
  %v5510 = vsel %vm5507, %v5509, %v5505
  %v5511 = vmul.f32 1.0, %v5510
  %v5512 = vxor.u32 %v5490, 2147483648
  %v5513 = vmul.f32 %v5512, 1.442695
  %v5514 = vpow.pop %v5513
  %v5515 = vadd.f32 %v5514, 1.0
  %v5516 = vrcp.pop %v5515
  %v5517 = vmul.f32 %v5515, %v5516
  %v5518 = vsub.f32 1.0, %v5517
  %v5519 = vmul.f32 %v5516, %v5518
  %v5520 = vadd.f32 %v5516, %v5519
  %vm5521 = vweird.f32 %v5515
  %vm5522 = vweird.f32 %v5516
  %vm5523 = vmor %vm5521, %vm5522
  %v5524 = vsel %vm5523, %v5516, %v5520
  %v5525 = vand.u32 2147483647, %v5515
  %vm5526 = vcmp.eq.f32.partialorder %v5525, 8.507059e+37
  %v5527 = vand.u32 %v5515, 2147483648
  %v5528 = vor.u32 1.1754944e-38, %v5527
  %v5529 = vsel %vm5526, %v5528, %v5524
  %v5530 = vmul.f32 1.0, %v5529
  %v5531 = vtanh.pop %v5491
  %v5532 = vxor.u32 %v5492, 2147483648
  %v5533 = vmul.f32 %v5532, 1.442695
  %v5534 = vpow.pop %v5533
  %v5535 = vadd.f32 %v5534, 1.0
  %v5536 = vrcp.pop %v5535
  %v5537 = vmul.f32 %v5535, %v5536
  %v5538 = vsub.f32 1.0, %v5537
  %v5539 = vmul.f32 %v5536, %v5538
  %v5540 = vadd.f32 %v5536, %v5539
  %vm5541 = vweird.f32 %v5535
  %vm5542 = vweird.f32 %v5536
  %vm5543 = vmor %vm5541, %vm5542
  %v5544 = vsel %vm5543, %v5536, %v5540
  %v5545 = vand.u32 2147483647, %v5535
  %vm5546 = vcmp.eq.f32.partialorder %v5545, 8.507059e+37
  %v5547 = vand.u32 %v5535, 2147483648
  %v5548 = vor.u32 1.1754944e-38, %v5547
  %v5549 = vsel %vm5546, %v5548, %v5544
  %v5550 = vmul.f32 1.0, %v5549
  %v5551 = vmul.f32 %v5530, %v5351
  %v5552 = vmul.f32 %v5511, %v5531
  %v5553 = vadd.f32 %v5551, %v5552
  %v5554 = vtanh.pop %v5553
  %v5555 = vmul.f32 %v5550, %v5554
  %v5556 = vpack.c.bf16 %v5555, %v5555
  %s5557 = scalar_lea.vmem [#allocation4], 64
  %v5558 = vld [vmem:[%s5557] sm:$0xf]
  %v5559 = vld [vmem:[%s5557 + $0x4] sm:$0xf]
  %v5560 = vld [vmem:[%s5557 + $0x8] sm:$0xf]
  %v5561 = vld [vmem:[%s5557 + $0xc] sm:$0xf]
  %v5562 = vld [vmem:[%s5557 + $0x10] sm:$0xf]
  %v5563 = vld [vmem:[%s5557 + $0x14] sm:$0xf]
  %v5564 = vld [vmem:[%s5557 + $0x18] sm:$0xf]
  %v5565 = vld [vmem:[%s5557 + $0x1c] sm:$0xf]
  %v5566 = vld [vmem:[%s5557 + $0x20] sm:$0xf]
  %v5567 = vld [vmem:[%s5557 + $0x24] sm:$0xf]
  %v5568 = vld [vmem:[%s5557 + $0x28] sm:$0xf]
  %v5569 = vld [vmem:[%s5557 + $0x2c] sm:$0xf]
  %v5570 = vld [vmem:[%s5557 + $0x30] sm:$0xf]
  %v5571 = vld [vmem:[%s5557 + $0x34] sm:$0xf]
  %v5572 = vld [vmem:[%s5557 + $0x38] sm:$0xf]
  %v5573 = vld [vmem:[%s5557 + $0x3c] sm:$0xf]
  %v5590 = vunpack.c.l.b16 %v5558
  %v5591 = vunpack.c.l.b16 %v5559
  %v5592 = vunpack.c.l.b16 %v5560
  %v5593 = vunpack.c.l.b16 %v5561
  %v5594 = vunpack.c.l.b16 %v5562
  %v5595 = vunpack.c.l.b16 %v5563
  %v5596 = vunpack.c.l.b16 %v5564
  %v5597 = vunpack.c.l.b16 %v5565
  %v5598 = vunpack.c.l.b16 %v5566
  %v5599 = vunpack.c.l.b16 %v5567
  %v5600 = vunpack.c.l.b16 %v5568
  %v5601 = vunpack.c.l.b16 %v5569
  %v5602 = vunpack.c.l.b16 %v5570
  %v5603 = vunpack.c.l.b16 %v5571
  %v5604 = vunpack.c.l.b16 %v5572
  %v5605 = vunpack.c.l.b16 %v5573
  %v5606 = vpack.c.b16 %v5591, %v5590
  %v5607 = vpack.c.b16 %v5593, %v5592
  %v5608 = vpack.c.b16 %v5595, %v5594
  %v5609 = vpack.c.b16 %v5597, %v5596
  %v5610 = vpack.c.b16 %v5599, %v5598
  %v5611 = vpack.c.b16 %v5601, %v5600
  %v5612 = vpack.c.b16 %v5603, %v5602
  %v5613 = vpack.c.b16 %v5605, %v5604
  %5622 = vmatpush.bf16.msra.mxu0 %v5613
  %5623 = vmatpush.bf16.msra.mxu0 %v5612
  %5624 = vmatpush.bf16.msra.mxu0 %v5611
  %5625 = vmatpush.bf16.msra.mxu0 %v5610
  %5626 = vmatpush.bf16.msra.mxu0 %v5609
  %5627 = vmatpush.bf16.msra.mxu0 %v5608
  %5628 = vmatpush.bf16.msra.mxu0 %v5607
  %5629 = vmatpush.bf16.msra.mxu0 %v5606
  %5630 = vmatmul.bf16.gmra.mxu0 %v5556
  %v5631 = vpop.f32.mrf.mxu0
  %v5632 = vadd.f32 0.0, %v5631
  %v5633 = vpop.f32.mrf.mxu0
  %5634 = vdwg.mxu0
  %v5635 = vadd.f32 %v5432, %v5632
  %v5636 = vld [vmem:[%s2130] sm:$0xff]
  %v5637 = vld [vmem:[%s2130 + $0x8] sm:$0xff]
  %v5638 = vld [vmem:[%s2130 + $0x10] sm:$0xff]
  %v5639 = vld [vmem:[%s2130 + $0x18] sm:$0xff]
  %5640 = vmatpush.bf16.msra.mxu0 %v5199
  %5641 = vmatpush.bf16.msra.mxu0 %v5195
  %5642 = vmatpush.bf16.msra.mxu0 %v5191
  %5643 = vmatpush.bf16.msra.mxu0 %v5187
  %5644 = vmatpush.bf16.msra.mxu0 %v5183
  %5645 = vmatpush.bf16.msra.mxu0 %v5179
  %5646 = vmatpush.bf16.msra.mxu0 %v5175
  %5647 = vmatpush.bf16.msra.mxu0 %v5171
  %5648 = vmatmul.bf16.gmra.mxu0 %v5556
  %v5649 = vpop.f32.mrf.mxu0
  %v5650 = vadd.f32 0.0, %v5649
  %v5651 = vpop.f32.mrf.mxu0
  %5652 = vdwg.mxu0
  %5653 = vmatpush.bf16.msra.mxu0 %v5200
  %5654 = vmatpush.bf16.msra.mxu0 %v5196
  %5655 = vmatpush.bf16.msra.mxu0 %v5192
  %5656 = vmatpush.bf16.msra.mxu0 %v5188
  %5657 = vmatpush.bf16.msra.mxu0 %v5184
  %5658 = vmatpush.bf16.msra.mxu0 %v5180
  %5659 = vmatpush.bf16.msra.mxu0 %v5176
  %5660 = vmatpush.bf16.msra.mxu0 %v5172
  %5661 = vmatmul.bf16.gmra.mxu0 %v5556
  %v5662 = vpop.f32.mrf.mxu0
  %v5663 = vadd.f32 0.0, %v5662
  %v5664 = vpop.f32.mrf.mxu0
  %5665 = vdwg.mxu0
  %5666 = vmatpush.bf16.msra.mxu0 %v5201
  %5667 = vmatpush.bf16.msra.mxu0 %v5197
  %5668 = vmatpush.bf16.msra.mxu0 %v5193
  %5669 = vmatpush.bf16.msra.mxu0 %v5189
  %5670 = vmatpush.bf16.msra.mxu0 %v5185
  %5671 = vmatpush.bf16.msra.mxu0 %v5181
  %5672 = vmatpush.bf16.msra.mxu0 %v5177
  %5673 = vmatpush.bf16.msra.mxu0 %v5173
  %5674 = vmatmul.bf16.gmra.mxu0 %v5556
  %v5675 = vpop.f32.mrf.mxu0
  %v5676 = vadd.f32 0.0, %v5675
  %v5677 = vpop.f32.mrf.mxu0
  %5678 = vdwg.mxu0
  %5679 = vmatpush.bf16.msra.mxu0 %v5202
  %5680 = vmatpush.bf16.msra.mxu0 %v5198
  %5681 = vmatpush.bf16.msra.mxu0 %v5194
  %5682 = vmatpush.bf16.msra.mxu0 %v5190
  %5683 = vmatpush.bf16.msra.mxu0 %v5186
  %5684 = vmatpush.bf16.msra.mxu0 %v5182
  %5685 = vmatpush.bf16.msra.mxu0 %v5178
  %5686 = vmatpush.bf16.msra.mxu0 %v5174
  %5687 = vmatmul.bf16.gmra.mxu0 %v5556
  %v5688 = vpop.f32.mrf.mxu0
  %v5689 = vadd.f32 0.0, %v5688
  %v5690 = vpop.f32.mrf.mxu0
  %5691 = vdwg.mxu0
  %v5692 = vadd.f32 %v5636, %v5650
  %v5693 = vadd.f32 %v5637, %v5663
  %v5694 = vadd.f32 %v5638, %v5676
  %v5695 = vadd.f32 %v5639, %v5689
  %v5696 = vxor.u32 %v5692, 2147483648
  %v5697 = vmul.f32 %v5696, 1.442695
  %v5698 = vpow.pop %v5697
  %v5699 = vadd.f32 %v5698, 1.0
  %v5700 = vrcp.pop %v5699
  %v5701 = vmul.f32 %v5699, %v5700
  %v5702 = vsub.f32 1.0, %v5701
  %v5703 = vmul.f32 %v5700, %v5702
  %v5704 = vadd.f32 %v5700, %v5703
  %vm5705 = vweird.f32 %v5699
  %vm5706 = vweird.f32 %v5700
  %vm5707 = vmor %vm5705, %vm5706
  %v5708 = vsel %vm5707, %v5700, %v5704
  %v5709 = vand.u32 2147483647, %v5699
  %vm5710 = vcmp.eq.f32.partialorder %v5709, 8.507059e+37
  %v5711 = vand.u32 %v5699, 2147483648
  %v5712 = vor.u32 1.1754944e-38, %v5711
  %v5713 = vsel %vm5710, %v5712, %v5708
  %v5714 = vmul.f32 1.0, %v5713
  %v5715 = vxor.u32 %v5693, 2147483648
  %v5716 = vmul.f32 %v5715, 1.442695
  %v5717 = vpow.pop %v5716
  %v5718 = vadd.f32 %v5717, 1.0
  %v5719 = vrcp.pop %v5718
  %v5720 = vmul.f32 %v5718, %v5719
  %v5721 = vsub.f32 1.0, %v5720
  %v5722 = vmul.f32 %v5719, %v5721
  %v5723 = vadd.f32 %v5719, %v5722
  %vm5724 = vweird.f32 %v5718
  %vm5725 = vweird.f32 %v5719
  %vm5726 = vmor %vm5724, %vm5725
  %v5727 = vsel %vm5726, %v5719, %v5723
  %v5728 = vand.u32 2147483647, %v5718
  %vm5729 = vcmp.eq.f32.partialorder %v5728, 8.507059e+37
  %v5730 = vand.u32 %v5718, 2147483648
  %v5731 = vor.u32 1.1754944e-38, %v5730
  %v5732 = vsel %vm5729, %v5731, %v5727
  %v5733 = vmul.f32 1.0, %v5732
  %v5734 = vtanh.pop %v5694
  %v5735 = vxor.u32 %v5695, 2147483648
  %v5736 = vmul.f32 %v5735, 1.442695
  %v5737 = vpow.pop %v5736
  %v5738 = vadd.f32 %v5737, 1.0
  %v5739 = vrcp.pop %v5738
  %v5740 = vmul.f32 %v5738, %v5739
  %v5741 = vsub.f32 1.0, %v5740
  %v5742 = vmul.f32 %v5739, %v5741
  %v5743 = vadd.f32 %v5739, %v5742
  %vm5744 = vweird.f32 %v5738
  %vm5745 = vweird.f32 %v5739
  %vm5746 = vmor %vm5744, %vm5745
  %v5747 = vsel %vm5746, %v5739, %v5743
  %v5748 = vand.u32 2147483647, %v5738
  %vm5749 = vcmp.eq.f32.partialorder %v5748, 8.507059e+37
  %v5750 = vand.u32 %v5738, 2147483648
  %v5751 = vor.u32 1.1754944e-38, %v5750
  %v5752 = vsel %vm5749, %v5751, %v5747
  %v5753 = vmul.f32 1.0, %v5752
  %v5754 = vmul.f32 %v5733, %v5553
  %v5755 = vmul.f32 %v5714, %v5734
  %v5756 = vadd.f32 %v5754, %v5755
  %v5757 = vtanh.pop %v5756
  %v5758 = vmul.f32 %v5753, %v5757
  %v5759 = vpack.c.bf16 %v5758, %v5758
  %s5760 = scalar_lea.vmem [#allocation4], 128
  %v5761 = vld [vmem:[%s5760] sm:$0xf]
  %v5762 = vld [vmem:[%s5760 + $0x4] sm:$0xf]
  %v5763 = vld [vmem:[%s5760 + $0x8] sm:$0xf]
  %v5764 = vld [vmem:[%s5760 + $0xc] sm:$0xf]
  %v5765 = vld [vmem:[%s5760 + $0x10] sm:$0xf]
  %v5766 = vld [vmem:[%s5760 + $0x14] sm:$0xf]
  %v5767 = vld [vmem:[%s5760 + $0x18] sm:$0xf]
  %v5768 = vld [vmem:[%s5760 + $0x1c] sm:$0xf]
  %v5769 = vld [vmem:[%s5760 + $0x20] sm:$0xf]
  %v5770 = vld [vmem:[%s5760 + $0x24] sm:$0xf]
  %v5771 = vld [vmem:[%s5760 + $0x28] sm:$0xf]
  %v5772 = vld [vmem:[%s5760 + $0x2c] sm:$0xf]
  %v5773 = vld [vmem:[%s5760 + $0x30] sm:$0xf]
  %v5774 = vld [vmem:[%s5760 + $0x34] sm:$0xf]
  %v5775 = vld [vmem:[%s5760 + $0x38] sm:$0xf]
  %v5776 = vld [vmem:[%s5760 + $0x3c] sm:$0xf]
  %v5793 = vunpack.c.l.b16 %v5761
  %v5794 = vunpack.c.l.b16 %v5762
  %v5795 = vunpack.c.l.b16 %v5763
  %v5796 = vunpack.c.l.b16 %v5764
  %v5797 = vunpack.c.l.b16 %v5765
  %v5798 = vunpack.c.l.b16 %v5766
  %v5799 = vunpack.c.l.b16 %v5767
  %v5800 = vunpack.c.l.b16 %v5768
  %v5801 = vunpack.c.l.b16 %v5769
  %v5802 = vunpack.c.l.b16 %v5770
  %v5803 = vunpack.c.l.b16 %v5771
  %v5804 = vunpack.c.l.b16 %v5772
  %v5805 = vunpack.c.l.b16 %v5773
  %v5806 = vunpack.c.l.b16 %v5774
  %v5807 = vunpack.c.l.b16 %v5775
  %v5808 = vunpack.c.l.b16 %v5776
  %v5809 = vpack.c.b16 %v5794, %v5793
  %v5810 = vpack.c.b16 %v5796, %v5795
  %v5811 = vpack.c.b16 %v5798, %v5797
  %v5812 = vpack.c.b16 %v5800, %v5799
  %v5813 = vpack.c.b16 %v5802, %v5801
  %v5814 = vpack.c.b16 %v5804, %v5803
  %v5815 = vpack.c.b16 %v5806, %v5805
  %v5816 = vpack.c.b16 %v5808, %v5807
  %5825 = vmatpush.bf16.msra.mxu0 %v5816
  %5826 = vmatpush.bf16.msra.mxu0 %v5815
  %5827 = vmatpush.bf16.msra.mxu0 %v5814
  %5828 = vmatpush.bf16.msra.mxu0 %v5813
  %5829 = vmatpush.bf16.msra.mxu0 %v5812
  %5830 = vmatpush.bf16.msra.mxu0 %v5811
  %5831 = vmatpush.bf16.msra.mxu0 %v5810
  %5832 = vmatpush.bf16.msra.mxu0 %v5809
  %5833 = vmatmul.bf16.gmra.mxu0 %v5759
  %v5834 = vpop.f32.mrf.mxu0
  %v5835 = vadd.f32 0.0, %v5834
  %v5836 = vpop.f32.mrf.mxu0
  %5837 = vdwg.mxu0
  %v5838 = vadd.f32 %v5635, %v5835
  %v5839 = vld [vmem:[%s2709] sm:$0xff]
  %v5840 = vld [vmem:[%s2709 + $0x8] sm:$0xff]
  %v5841 = vld [vmem:[%s2709 + $0x10] sm:$0xff]
  %v5842 = vld [vmem:[%s2709 + $0x18] sm:$0xff]
  %5843 = vmatpush.bf16.msra.mxu0 %v5199
  %5844 = vmatpush.bf16.msra.mxu0 %v5195
  %5845 = vmatpush.bf16.msra.mxu0 %v5191
  %5846 = vmatpush.bf16.msra.mxu0 %v5187
  %5847 = vmatpush.bf16.msra.mxu0 %v5183
  %5848 = vmatpush.bf16.msra.mxu0 %v5179
  %5849 = vmatpush.bf16.msra.mxu0 %v5175
  %5850 = vmatpush.bf16.msra.mxu0 %v5171
  %5851 = vmatmul.bf16.gmra.mxu0 %v5759
  %v5852 = vpop.f32.mrf.mxu0
  %v5853 = vadd.f32 0.0, %v5852
  %v5854 = vpop.f32.mrf.mxu0
  %5855 = vdwg.mxu0
  %5856 = vmatpush.bf16.msra.mxu0 %v5200
  %5857 = vmatpush.bf16.msra.mxu0 %v5196
  %5858 = vmatpush.bf16.msra.mxu0 %v5192
  %5859 = vmatpush.bf16.msra.mxu0 %v5188
  %5860 = vmatpush.bf16.msra.mxu0 %v5184
  %5861 = vmatpush.bf16.msra.mxu0 %v5180
  %5862 = vmatpush.bf16.msra.mxu0 %v5176
  %5863 = vmatpush.bf16.msra.mxu0 %v5172
  %5864 = vmatmul.bf16.gmra.mxu0 %v5759
  %v5865 = vpop.f32.mrf.mxu0
  %v5866 = vadd.f32 0.0, %v5865
  %v5867 = vpop.f32.mrf.mxu0
  %5868 = vdwg.mxu0
  %5869 = vmatpush.bf16.msra.mxu0 %v5201
  %5870 = vmatpush.bf16.msra.mxu0 %v5197
  %5871 = vmatpush.bf16.msra.mxu0 %v5193
  %5872 = vmatpush.bf16.msra.mxu0 %v5189
  %5873 = vmatpush.bf16.msra.mxu0 %v5185
  %5874 = vmatpush.bf16.msra.mxu0 %v5181
  %5875 = vmatpush.bf16.msra.mxu0 %v5177
  %5876 = vmatpush.bf16.msra.mxu0 %v5173
  %5877 = vmatmul.bf16.gmra.mxu0 %v5759
  %v5878 = vpop.f32.mrf.mxu0
  %v5879 = vadd.f32 0.0, %v5878
  %v5880 = vpop.f32.mrf.mxu0
  %5881 = vdwg.mxu0
  %5882 = vmatpush.bf16.msra.mxu0 %v5202
  %5883 = vmatpush.bf16.msra.mxu0 %v5198
  %5884 = vmatpush.bf16.msra.mxu0 %v5194
  %5885 = vmatpush.bf16.msra.mxu0 %v5190
  %5886 = vmatpush.bf16.msra.mxu0 %v5186
  %5887 = vmatpush.bf16.msra.mxu0 %v5182
  %5888 = vmatpush.bf16.msra.mxu0 %v5178
  %5889 = vmatpush.bf16.msra.mxu0 %v5174
  %5890 = vmatmul.bf16.gmra.mxu0 %v5759
  %v5891 = vpop.f32.mrf.mxu0
  %v5892 = vadd.f32 0.0, %v5891
  %v5893 = vpop.f32.mrf.mxu0
  %5894 = vdwg.mxu0
  %v5895 = vadd.f32 %v5839, %v5853
  %v5896 = vadd.f32 %v5840, %v5866
  %v5897 = vadd.f32 %v5841, %v5879
  %v5898 = vadd.f32 %v5842, %v5892
  %v5899 = vxor.u32 %v5895, 2147483648
  %v5900 = vmul.f32 %v5899, 1.442695
  %v5901 = vpow.pop %v5900
  %v5902 = vadd.f32 %v5901, 1.0
  %v5903 = vrcp.pop %v5902
  %v5904 = vmul.f32 %v5902, %v5903
  %v5905 = vsub.f32 1.0, %v5904
  %v5906 = vmul.f32 %v5903, %v5905
  %v5907 = vadd.f32 %v5903, %v5906
  %vm5908 = vweird.f32 %v5902
  %vm5909 = vweird.f32 %v5903
  %vm5910 = vmor %vm5908, %vm5909
  %v5911 = vsel %vm5910, %v5903, %v5907
  %v5912 = vand.u32 2147483647, %v5902
  %vm5913 = vcmp.eq.f32.partialorder %v5912, 8.507059e+37
  %v5914 = vand.u32 %v5902, 2147483648
  %v5915 = vor.u32 1.1754944e-38, %v5914
  %v5916 = vsel %vm5913, %v5915, %v5911
  %v5917 = vmul.f32 1.0, %v5916
  %v5918 = vxor.u32 %v5896, 2147483648
  %v5919 = vmul.f32 %v5918, 1.442695
  %v5920 = vpow.pop %v5919
  %v5921 = vadd.f32 %v5920, 1.0
  %v5922 = vrcp.pop %v5921
  %v5923 = vmul.f32 %v5921, %v5922
  %v5924 = vsub.f32 1.0, %v5923
  %v5925 = vmul.f32 %v5922, %v5924
  %v5926 = vadd.f32 %v5922, %v5925
  %vm5927 = vweird.f32 %v5921
  %vm5928 = vweird.f32 %v5922
  %vm5929 = vmor %vm5927, %vm5928
  %v5930 = vsel %vm5929, %v5922, %v5926
  %v5931 = vand.u32 2147483647, %v5921
  %vm5932 = vcmp.eq.f32.partialorder %v5931, 8.507059e+37
  %v5933 = vand.u32 %v5921, 2147483648
  %v5934 = vor.u32 1.1754944e-38, %v5933
  %v5935 = vsel %vm5932, %v5934, %v5930
  %v5936 = vmul.f32 1.0, %v5935
  %v5937 = vtanh.pop %v5897
  %v5938 = vxor.u32 %v5898, 2147483648
  %v5939 = vmul.f32 %v5938, 1.442695
  %v5940 = vpow.pop %v5939
  %v5941 = vadd.f32 %v5940, 1.0
  %v5942 = vrcp.pop %v5941
  %v5943 = vmul.f32 %v5941, %v5942
  %v5944 = vsub.f32 1.0, %v5943
  %v5945 = vmul.f32 %v5942, %v5944
  %v5946 = vadd.f32 %v5942, %v5945
  %vm5947 = vweird.f32 %v5941
  %vm5948 = vweird.f32 %v5942
  %vm5949 = vmor %vm5947, %vm5948
  %v5950 = vsel %vm5949, %v5942, %v5946
  %v5951 = vand.u32 2147483647, %v5941
  %vm5952 = vcmp.eq.f32.partialorder %v5951, 8.507059e+37
  %v5953 = vand.u32 %v5941, 2147483648
  %v5954 = vor.u32 1.1754944e-38, %v5953
  %v5955 = vsel %vm5952, %v5954, %v5950
  %v5956 = vmul.f32 1.0, %v5955
  %v5957 = vmul.f32 %v5936, %v5756
  %v5958 = vmul.f32 %v5917, %v5937
  %v5959 = vadd.f32 %v5957, %v5958
  %v5960 = vtanh.pop %v5959
  %v5961 = vmul.f32 %v5956, %v5960
  %v5962 = vpack.c.bf16 %v5961, %v5961
  %s5963 = scalar_lea.vmem [#allocation4], 192
  %v5964 = vld [vmem:[%s5963] sm:$0xf]
  %v5965 = vld [vmem:[%s5963 + $0x4] sm:$0xf]
  %v5966 = vld [vmem:[%s5963 + $0x8] sm:$0xf]
  %v5967 = vld [vmem:[%s5963 + $0xc] sm:$0xf]
  %v5968 = vld [vmem:[%s5963 + $0x10] sm:$0xf]
  %v5969 = vld [vmem:[%s5963 + $0x14] sm:$0xf]
  %v5970 = vld [vmem:[%s5963 + $0x18] sm:$0xf]
  %v5971 = vld [vmem:[%s5963 + $0x1c] sm:$0xf]
  %v5972 = vld [vmem:[%s5963 + $0x20] sm:$0xf]
  %v5973 = vld [vmem:[%s5963 + $0x24] sm:$0xf]
  %v5974 = vld [vmem:[%s5963 + $0x28] sm:$0xf]
  %v5975 = vld [vmem:[%s5963 + $0x2c] sm:$0xf]
  %v5976 = vld [vmem:[%s5963 + $0x30] sm:$0xf]
  %v5977 = vld [vmem:[%s5963 + $0x34] sm:$0xf]
  %v5978 = vld [vmem:[%s5963 + $0x38] sm:$0xf]
  %v5979 = vld [vmem:[%s5963 + $0x3c] sm:$0xf]
  %v5996 = vunpack.c.l.b16 %v5964
  %v5997 = vunpack.c.l.b16 %v5965
  %v5998 = vunpack.c.l.b16 %v5966
  %v5999 = vunpack.c.l.b16 %v5967
  %v6000 = vunpack.c.l.b16 %v5968
  %v6001 = vunpack.c.l.b16 %v5969
  %v6002 = vunpack.c.l.b16 %v5970
  %v6003 = vunpack.c.l.b16 %v5971
  %v6004 = vunpack.c.l.b16 %v5972
  %v6005 = vunpack.c.l.b16 %v5973
  %v6006 = vunpack.c.l.b16 %v5974
  %v6007 = vunpack.c.l.b16 %v5975
  %v6008 = vunpack.c.l.b16 %v5976
  %v6009 = vunpack.c.l.b16 %v5977
  %v6010 = vunpack.c.l.b16 %v5978
  %v6011 = vunpack.c.l.b16 %v5979
  %v6012 = vpack.c.b16 %v5997, %v5996
  %v6013 = vpack.c.b16 %v5999, %v5998
  %v6014 = vpack.c.b16 %v6001, %v6000
  %v6015 = vpack.c.b16 %v6003, %v6002
  %v6016 = vpack.c.b16 %v6005, %v6004
  %v6017 = vpack.c.b16 %v6007, %v6006
  %v6018 = vpack.c.b16 %v6009, %v6008
  %v6019 = vpack.c.b16 %v6011, %v6010
  %6028 = vmatpush.bf16.msra.mxu0 %v6019
  %6029 = vmatpush.bf16.msra.mxu0 %v6018
  %6030 = vmatpush.bf16.msra.mxu0 %v6017
  %6031 = vmatpush.bf16.msra.mxu0 %v6016
  %6032 = vmatpush.bf16.msra.mxu0 %v6015
  %6033 = vmatpush.bf16.msra.mxu0 %v6014
  %6034 = vmatpush.bf16.msra.mxu0 %v6013
  %6035 = vmatpush.bf16.msra.mxu0 %v6012
  %6036 = vmatmul.bf16.gmra.mxu0 %v5962
  %v6037 = vpop.f32.mrf.mxu0
  %v6038 = vadd.f32 0.0, %v6037
  %v6039 = vpop.f32.mrf.mxu0
  %6040 = vdwg.mxu0
  %v6041 = vadd.f32 %v5838, %v6038
  %v6042 = vld [vmem:[%s3288] sm:$0xff]
  %v6043 = vld [vmem:[%s3288 + $0x8] sm:$0xff]
  %v6044 = vld [vmem:[%s3288 + $0x10] sm:$0xff]
  %v6045 = vld [vmem:[%s3288 + $0x18] sm:$0xff]
  %6046 = vmatpush.bf16.msra.mxu0 %v5199
  %6047 = vmatpush.bf16.msra.mxu0 %v5195
  %6048 = vmatpush.bf16.msra.mxu0 %v5191
  %6049 = vmatpush.bf16.msra.mxu0 %v5187
  %6050 = vmatpush.bf16.msra.mxu0 %v5183
  %6051 = vmatpush.bf16.msra.mxu0 %v5179
  %6052 = vmatpush.bf16.msra.mxu0 %v5175
  %6053 = vmatpush.bf16.msra.mxu0 %v5171
  %6054 = vmatmul.bf16.gmra.mxu0 %v5962
  %v6055 = vpop.f32.mrf.mxu0
  %v6056 = vadd.f32 0.0, %v6055
  %v6057 = vpop.f32.mrf.mxu0
  %6058 = vdwg.mxu0
  %6059 = vmatpush.bf16.msra.mxu0 %v5200
  %6060 = vmatpush.bf16.msra.mxu0 %v5196
  %6061 = vmatpush.bf16.msra.mxu0 %v5192
  %6062 = vmatpush.bf16.msra.mxu0 %v5188
  %6063 = vmatpush.bf16.msra.mxu0 %v5184
  %6064 = vmatpush.bf16.msra.mxu0 %v5180
  %6065 = vmatpush.bf16.msra.mxu0 %v5176
  %6066 = vmatpush.bf16.msra.mxu0 %v5172
  %6067 = vmatmul.bf16.gmra.mxu0 %v5962
  %v6068 = vpop.f32.mrf.mxu0
  %v6069 = vadd.f32 0.0, %v6068
  %v6070 = vpop.f32.mrf.mxu0
  %6071 = vdwg.mxu0
  %6072 = vmatpush.bf16.msra.mxu0 %v5201
  %6073 = vmatpush.bf16.msra.mxu0 %v5197
  %6074 = vmatpush.bf16.msra.mxu0 %v5193
  %6075 = vmatpush.bf16.msra.mxu0 %v5189
  %6076 = vmatpush.bf16.msra.mxu0 %v5185
  %6077 = vmatpush.bf16.msra.mxu0 %v5181
  %6078 = vmatpush.bf16.msra.mxu0 %v5177
  %6079 = vmatpush.bf16.msra.mxu0 %v5173
  %6080 = vmatmul.bf16.gmra.mxu0 %v5962
  %v6081 = vpop.f32.mrf.mxu0
  %v6082 = vadd.f32 0.0, %v6081
  %v6083 = vpop.f32.mrf.mxu0
  %6084 = vdwg.mxu0
  %6085 = vmatpush.bf16.msra.mxu0 %v5202
  %6086 = vmatpush.bf16.msra.mxu0 %v5198
  %6087 = vmatpush.bf16.msra.mxu0 %v5194
  %6088 = vmatpush.bf16.msra.mxu0 %v5190
  %6089 = vmatpush.bf16.msra.mxu0 %v5186
  %6090 = vmatpush.bf16.msra.mxu0 %v5182
  %6091 = vmatpush.bf16.msra.mxu0 %v5178
  %6092 = vmatpush.bf16.msra.mxu0 %v5174
  %6093 = vmatmul.bf16.gmra.mxu0 %v5962
  %v6094 = vpop.f32.mrf.mxu0
  %v6095 = vadd.f32 0.0, %v6094
  %v6096 = vpop.f32.mrf.mxu0
  %6097 = vdwg.mxu0
  %v6098 = vadd.f32 %v6042, %v6056
  %v6099 = vadd.f32 %v6043, %v6069
  %v6100 = vadd.f32 %v6044, %v6082
  %v6101 = vadd.f32 %v6045, %v6095
  %v6102 = vxor.u32 %v6098, 2147483648
  %v6103 = vmul.f32 %v6102, 1.442695
  %v6104 = vpow.pop %v6103
  %v6105 = vadd.f32 %v6104, 1.0
  %v6106 = vrcp.pop %v6105
  %v6107 = vmul.f32 %v6105, %v6106
  %v6108 = vsub.f32 1.0, %v6107
  %v6109 = vmul.f32 %v6106, %v6108
  %v6110 = vadd.f32 %v6106, %v6109
  %vm6111 = vweird.f32 %v6105
  %vm6112 = vweird.f32 %v6106
  %vm6113 = vmor %vm6111, %vm6112
  %v6114 = vsel %vm6113, %v6106, %v6110
  %v6115 = vand.u32 2147483647, %v6105
  %vm6116 = vcmp.eq.f32.partialorder %v6115, 8.507059e+37
  %v6117 = vand.u32 %v6105, 2147483648
  %v6118 = vor.u32 1.1754944e-38, %v6117
  %v6119 = vsel %vm6116, %v6118, %v6114
  %v6120 = vmul.f32 1.0, %v6119
  %v6121 = vxor.u32 %v6099, 2147483648
  %v6122 = vmul.f32 %v6121, 1.442695
  %v6123 = vpow.pop %v6122
  %v6124 = vadd.f32 %v6123, 1.0
  %v6125 = vrcp.pop %v6124
  %v6126 = vmul.f32 %v6124, %v6125
  %v6127 = vsub.f32 1.0, %v6126
  %v6128 = vmul.f32 %v6125, %v6127
  %v6129 = vadd.f32 %v6125, %v6128
  %vm6130 = vweird.f32 %v6124
  %vm6131 = vweird.f32 %v6125
  %vm6132 = vmor %vm6130, %vm6131
  %v6133 = vsel %vm6132, %v6125, %v6129
  %v6134 = vand.u32 2147483647, %v6124
  %vm6135 = vcmp.eq.f32.partialorder %v6134, 8.507059e+37
  %v6136 = vand.u32 %v6124, 2147483648
  %v6137 = vor.u32 1.1754944e-38, %v6136
  %v6138 = vsel %vm6135, %v6137, %v6133
  %v6139 = vmul.f32 1.0, %v6138
  %v6140 = vtanh.pop %v6100
  %v6141 = vxor.u32 %v6101, 2147483648
  %v6142 = vmul.f32 %v6141, 1.442695
  %v6143 = vpow.pop %v6142
  %v6144 = vadd.f32 %v6143, 1.0
  %v6145 = vrcp.pop %v6144
  %v6146 = vmul.f32 %v6144, %v6145
  %v6147 = vsub.f32 1.0, %v6146
  %v6148 = vmul.f32 %v6145, %v6147
  %v6149 = vadd.f32 %v6145, %v6148
  %vm6150 = vweird.f32 %v6144
  %vm6151 = vweird.f32 %v6145
  %vm6152 = vmor %vm6150, %vm6151
  %v6153 = vsel %vm6152, %v6145, %v6149
  %v6154 = vand.u32 2147483647, %v6144
  %vm6155 = vcmp.eq.f32.partialorder %v6154, 8.507059e+37
  %v6156 = vand.u32 %v6144, 2147483648
  %v6157 = vor.u32 1.1754944e-38, %v6156
  %v6158 = vsel %vm6155, %v6157, %v6153
  %v6159 = vmul.f32 1.0, %v6158
  %v6160 = vmul.f32 %v6139, %v5959
  %v6161 = vmul.f32 %v6120, %v6140
  %v6162 = vadd.f32 %v6160, %v6161
  %v6163 = vtanh.pop %v6162
  %v6164 = vmul.f32 %v6159, %v6163
  %v6165 = vpack.c.bf16 %v6164, %v6164
  %s6166 = scalar_lea.vmem [#allocation4], 256
  %v6167 = vld [vmem:[%s6166] sm:$0xf]
  %v6168 = vld [vmem:[%s6166 + $0x4] sm:$0xf]
  %v6169 = vld [vmem:[%s6166 + $0x8] sm:$0xf]
  %v6170 = vld [vmem:[%s6166 + $0xc] sm:$0xf]
  %v6171 = vld [vmem:[%s6166 + $0x10] sm:$0xf]
  %v6172 = vld [vmem:[%s6166 + $0x14] sm:$0xf]
  %v6173 = vld [vmem:[%s6166 + $0x18] sm:$0xf]
  %v6174 = vld [vmem:[%s6166 + $0x1c] sm:$0xf]
  %v6175 = vld [vmem:[%s6166 + $0x20] sm:$0xf]
  %v6176 = vld [vmem:[%s6166 + $0x24] sm:$0xf]
  %v6177 = vld [vmem:[%s6166 + $0x28] sm:$0xf]
  %v6178 = vld [vmem:[%s6166 + $0x2c] sm:$0xf]
  %v6179 = vld [vmem:[%s6166 + $0x30] sm:$0xf]
  %v6180 = vld [vmem:[%s6166 + $0x34] sm:$0xf]
  %v6181 = vld [vmem:[%s6166 + $0x38] sm:$0xf]
  %v6182 = vld [vmem:[%s6166 + $0x3c] sm:$0xf]
  %v6199 = vunpack.c.l.b16 %v6167
  %v6200 = vunpack.c.l.b16 %v6168
  %v6201 = vunpack.c.l.b16 %v6169
  %v6202 = vunpack.c.l.b16 %v6170
  %v6203 = vunpack.c.l.b16 %v6171
  %v6204 = vunpack.c.l.b16 %v6172
  %v6205 = vunpack.c.l.b16 %v6173
  %v6206 = vunpack.c.l.b16 %v6174
  %v6207 = vunpack.c.l.b16 %v6175
  %v6208 = vunpack.c.l.b16 %v6176
  %v6209 = vunpack.c.l.b16 %v6177
  %v6210 = vunpack.c.l.b16 %v6178
  %v6211 = vunpack.c.l.b16 %v6179
  %v6212 = vunpack.c.l.b16 %v6180
  %v6213 = vunpack.c.l.b16 %v6181
  %v6214 = vunpack.c.l.b16 %v6182
  %v6215 = vpack.c.b16 %v6200, %v6199
  %v6216 = vpack.c.b16 %v6202, %v6201
  %v6217 = vpack.c.b16 %v6204, %v6203
  %v6218 = vpack.c.b16 %v6206, %v6205
  %v6219 = vpack.c.b16 %v6208, %v6207
  %v6220 = vpack.c.b16 %v6210, %v6209
  %v6221 = vpack.c.b16 %v6212, %v6211
  %v6222 = vpack.c.b16 %v6214, %v6213
  %6231 = vmatpush.bf16.msra.mxu0 %v6222
  %6232 = vmatpush.bf16.msra.mxu0 %v6221
  %6233 = vmatpush.bf16.msra.mxu0 %v6220
  %6234 = vmatpush.bf16.msra.mxu0 %v6219
  %6235 = vmatpush.bf16.msra.mxu0 %v6218
  %6236 = vmatpush.bf16.msra.mxu0 %v6217
  %6237 = vmatpush.bf16.msra.mxu0 %v6216
  %6238 = vmatpush.bf16.msra.mxu0 %v6215
  %6239 = vmatmul.bf16.gmra.mxu0 %v6165
  %v6240 = vpop.f32.mrf.mxu0
  %v6241 = vadd.f32 0.0, %v6240
  %v6242 = vpop.f32.mrf.mxu0
  %6243 = vdwg.mxu0
  %v6244 = vadd.f32 %v6041, %v6241
  %v6245 = vld [vmem:[%s3867] sm:$0xff]
  %v6246 = vld [vmem:[%s3867 + $0x8] sm:$0xff]
  %v6247 = vld [vmem:[%s3867 + $0x10] sm:$0xff]
  %v6248 = vld [vmem:[%s3867 + $0x18] sm:$0xff]
  %6249 = vmatpush.bf16.msra.mxu0 %v5199
  %6250 = vmatpush.bf16.msra.mxu0 %v5195
  %6251 = vmatpush.bf16.msra.mxu0 %v5191
  %6252 = vmatpush.bf16.msra.mxu0 %v5187
  %6253 = vmatpush.bf16.msra.mxu0 %v5183
  %6254 = vmatpush.bf16.msra.mxu0 %v5179
  %6255 = vmatpush.bf16.msra.mxu0 %v5175
  %6256 = vmatpush.bf16.msra.mxu0 %v5171
  %6257 = vmatmul.bf16.gmra.mxu0 %v6165
  %v6258 = vpop.f32.mrf.mxu0
  %v6259 = vadd.f32 0.0, %v6258
  %v6260 = vpop.f32.mrf.mxu0
  %6261 = vdwg.mxu0
  %6262 = vmatpush.bf16.msra.mxu0 %v5200
  %6263 = vmatpush.bf16.msra.mxu0 %v5196
  %6264 = vmatpush.bf16.msra.mxu0 %v5192
  %6265 = vmatpush.bf16.msra.mxu0 %v5188
  %6266 = vmatpush.bf16.msra.mxu0 %v5184
  %6267 = vmatpush.bf16.msra.mxu0 %v5180
  %6268 = vmatpush.bf16.msra.mxu0 %v5176
  %6269 = vmatpush.bf16.msra.mxu0 %v5172
  %6270 = vmatmul.bf16.gmra.mxu0 %v6165
  %v6271 = vpop.f32.mrf.mxu0
  %v6272 = vadd.f32 0.0, %v6271
  %v6273 = vpop.f32.mrf.mxu0
  %6274 = vdwg.mxu0
  %6275 = vmatpush.bf16.msra.mxu0 %v5201
  %6276 = vmatpush.bf16.msra.mxu0 %v5197
  %6277 = vmatpush.bf16.msra.mxu0 %v5193
  %6278 = vmatpush.bf16.msra.mxu0 %v5189
  %6279 = vmatpush.bf16.msra.mxu0 %v5185
  %6280 = vmatpush.bf16.msra.mxu0 %v5181
  %6281 = vmatpush.bf16.msra.mxu0 %v5177
  %6282 = vmatpush.bf16.msra.mxu0 %v5173
  %6283 = vmatmul.bf16.gmra.mxu0 %v6165
  %v6284 = vpop.f32.mrf.mxu0
  %v6285 = vadd.f32 0.0, %v6284
  %v6286 = vpop.f32.mrf.mxu0
  %6287 = vdwg.mxu0
  %6288 = vmatpush.bf16.msra.mxu0 %v5202
  %6289 = vmatpush.bf16.msra.mxu0 %v5198
  %6290 = vmatpush.bf16.msra.mxu0 %v5194
  %6291 = vmatpush.bf16.msra.mxu0 %v5190
  %6292 = vmatpush.bf16.msra.mxu0 %v5186
  %6293 = vmatpush.bf16.msra.mxu0 %v5182
  %6294 = vmatpush.bf16.msra.mxu0 %v5178
  %6295 = vmatpush.bf16.msra.mxu0 %v5174
  %6296 = vmatmul.bf16.gmra.mxu0 %v6165
  %v6297 = vpop.f32.mrf.mxu0
  %v6298 = vadd.f32 0.0, %v6297
  %v6299 = vpop.f32.mrf.mxu0
  %6300 = vdwg.mxu0
  %v6301 = vadd.f32 %v6245, %v6259
  %v6302 = vadd.f32 %v6246, %v6272
  %v6303 = vadd.f32 %v6247, %v6285
  %v6304 = vadd.f32 %v6248, %v6298
  %v6305 = vxor.u32 %v6301, 2147483648
  %v6306 = vmul.f32 %v6305, 1.442695
  %v6307 = vpow.pop %v6306
  %v6308 = vadd.f32 %v6307, 1.0
  %v6309 = vrcp.pop %v6308
  %v6310 = vmul.f32 %v6308, %v6309
  %v6311 = vsub.f32 1.0, %v6310
  %v6312 = vmul.f32 %v6309, %v6311
  %v6313 = vadd.f32 %v6309, %v6312
  %vm6314 = vweird.f32 %v6308
  %vm6315 = vweird.f32 %v6309
  %vm6316 = vmor %vm6314, %vm6315
  %v6317 = vsel %vm6316, %v6309, %v6313
  %v6318 = vand.u32 2147483647, %v6308
  %vm6319 = vcmp.eq.f32.partialorder %v6318, 8.507059e+37
  %v6320 = vand.u32 %v6308, 2147483648
  %v6321 = vor.u32 1.1754944e-38, %v6320
  %v6322 = vsel %vm6319, %v6321, %v6317
  %v6323 = vmul.f32 1.0, %v6322
  %v6324 = vxor.u32 %v6302, 2147483648
  %v6325 = vmul.f32 %v6324, 1.442695
  %v6326 = vpow.pop %v6325
  %v6327 = vadd.f32 %v6326, 1.0
  %v6328 = vrcp.pop %v6327
  %v6329 = vmul.f32 %v6327, %v6328
  %v6330 = vsub.f32 1.0, %v6329
  %v6331 = vmul.f32 %v6328, %v6330
  %v6332 = vadd.f32 %v6328, %v6331
  %vm6333 = vweird.f32 %v6327
  %vm6334 = vweird.f32 %v6328
  %vm6335 = vmor %vm6333, %vm6334
  %v6336 = vsel %vm6335, %v6328, %v6332
  %v6337 = vand.u32 2147483647, %v6327
  %vm6338 = vcmp.eq.f32.partialorder %v6337, 8.507059e+37
  %v6339 = vand.u32 %v6327, 2147483648
  %v6340 = vor.u32 1.1754944e-38, %v6339
  %v6341 = vsel %vm6338, %v6340, %v6336
  %v6342 = vmul.f32 1.0, %v6341
  %v6343 = vtanh.pop %v6303
  %v6344 = vxor.u32 %v6304, 2147483648
  %v6345 = vmul.f32 %v6344, 1.442695
  %v6346 = vpow.pop %v6345
  %v6347 = vadd.f32 %v6346, 1.0
  %v6348 = vrcp.pop %v6347
  %v6349 = vmul.f32 %v6347, %v6348
  %v6350 = vsub.f32 1.0, %v6349
  %v6351 = vmul.f32 %v6348, %v6350
  %v6352 = vadd.f32 %v6348, %v6351
  %vm6353 = vweird.f32 %v6347
  %vm6354 = vweird.f32 %v6348
  %vm6355 = vmor %vm6353, %vm6354
  %v6356 = vsel %vm6355, %v6348, %v6352
  %v6357 = vand.u32 2147483647, %v6347
  %vm6358 = vcmp.eq.f32.partialorder %v6357, 8.507059e+37
  %v6359 = vand.u32 %v6347, 2147483648
  %v6360 = vor.u32 1.1754944e-38, %v6359
  %v6361 = vsel %vm6358, %v6360, %v6356
  %v6362 = vmul.f32 1.0, %v6361
  %v6363 = vmul.f32 %v6342, %v6162
  %v6364 = vmul.f32 %v6323, %v6343
  %v6365 = vadd.f32 %v6363, %v6364
  %v6366 = vtanh.pop %v6365
  %v6367 = vmul.f32 %v6362, %v6366
  %v6368 = vpack.c.bf16 %v6367, %v6367
  %s6369 = scalar_lea.vmem [#allocation4], 320
  %v6370 = vld [vmem:[%s6369] sm:$0xf]
  %v6371 = vld [vmem:[%s6369 + $0x4] sm:$0xf]
  %v6372 = vld [vmem:[%s6369 + $0x8] sm:$0xf]
  %v6373 = vld [vmem:[%s6369 + $0xc] sm:$0xf]
  %v6374 = vld [vmem:[%s6369 + $0x10] sm:$0xf]
  %v6375 = vld [vmem:[%s6369 + $0x14] sm:$0xf]
  %v6376 = vld [vmem:[%s6369 + $0x18] sm:$0xf]
  %v6377 = vld [vmem:[%s6369 + $0x1c] sm:$0xf]
  %v6378 = vld [vmem:[%s6369 + $0x20] sm:$0xf]
  %v6379 = vld [vmem:[%s6369 + $0x24] sm:$0xf]
  %v6380 = vld [vmem:[%s6369 + $0x28] sm:$0xf]
  %v6381 = vld [vmem:[%s6369 + $0x2c] sm:$0xf]
  %v6382 = vld [vmem:[%s6369 + $0x30] sm:$0xf]
  %v6383 = vld [vmem:[%s6369 + $0x34] sm:$0xf]
  %v6384 = vld [vmem:[%s6369 + $0x38] sm:$0xf]
  %v6385 = vld [vmem:[%s6369 + $0x3c] sm:$0xf]
  %v6402 = vunpack.c.l.b16 %v6370
  %v6403 = vunpack.c.l.b16 %v6371
  %v6404 = vunpack.c.l.b16 %v6372
  %v6405 = vunpack.c.l.b16 %v6373
  %v6406 = vunpack.c.l.b16 %v6374
  %v6407 = vunpack.c.l.b16 %v6375
  %v6408 = vunpack.c.l.b16 %v6376
  %v6409 = vunpack.c.l.b16 %v6377
  %v6410 = vunpack.c.l.b16 %v6378
  %v6411 = vunpack.c.l.b16 %v6379
  %v6412 = vunpack.c.l.b16 %v6380
  %v6413 = vunpack.c.l.b16 %v6381
  %v6414 = vunpack.c.l.b16 %v6382
  %v6415 = vunpack.c.l.b16 %v6383
  %v6416 = vunpack.c.l.b16 %v6384
  %v6417 = vunpack.c.l.b16 %v6385
  %v6418 = vpack.c.b16 %v6403, %v6402
  %v6419 = vpack.c.b16 %v6405, %v6404
  %v6420 = vpack.c.b16 %v6407, %v6406
  %v6421 = vpack.c.b16 %v6409, %v6408
  %v6422 = vpack.c.b16 %v6411, %v6410
  %v6423 = vpack.c.b16 %v6413, %v6412
  %v6424 = vpack.c.b16 %v6415, %v6414
  %v6425 = vpack.c.b16 %v6417, %v6416
  %6434 = vmatpush.bf16.msra.mxu0 %v6425
  %6435 = vmatpush.bf16.msra.mxu0 %v6424
  %6436 = vmatpush.bf16.msra.mxu0 %v6423
  %6437 = vmatpush.bf16.msra.mxu0 %v6422
  %6438 = vmatpush.bf16.msra.mxu0 %v6421
  %6439 = vmatpush.bf16.msra.mxu0 %v6420
  %6440 = vmatpush.bf16.msra.mxu0 %v6419
  %6441 = vmatpush.bf16.msra.mxu0 %v6418
  %6442 = vmatmul.bf16.gmra.mxu0 %v6368
  %v6443 = vpop.f32.mrf.mxu0
  %v6444 = vadd.f32 0.0, %v6443
  %v6445 = vpop.f32.mrf.mxu0
  %6446 = vdwg.mxu0
  %v6447 = vadd.f32 %v6244, %v6444
  %v6448 = vld [vmem:[%s4446] sm:$0xff]
  %v6449 = vld [vmem:[%s4446 + $0x8] sm:$0xff]
  %v6450 = vld [vmem:[%s4446 + $0x10] sm:$0xff]
  %v6451 = vld [vmem:[%s4446 + $0x18] sm:$0xff]
  %6452 = vmatpush.bf16.msra.mxu0 %v5199
  %6453 = vmatpush.bf16.msra.mxu0 %v5195
  %6454 = vmatpush.bf16.msra.mxu0 %v5191
  %6455 = vmatpush.bf16.msra.mxu0 %v5187
  %6456 = vmatpush.bf16.msra.mxu0 %v5183
  %6457 = vmatpush.bf16.msra.mxu0 %v5179
  %6458 = vmatpush.bf16.msra.mxu0 %v5175
  %6459 = vmatpush.bf16.msra.mxu0 %v5171
  %6460 = vmatmul.bf16.gmra.mxu0 %v6368
  %v6461 = vpop.f32.mrf.mxu0
  %v6462 = vadd.f32 0.0, %v6461
  %v6463 = vpop.f32.mrf.mxu0
  %6464 = vdwg.mxu0
  %6465 = vmatpush.bf16.msra.mxu0 %v5200
  %6466 = vmatpush.bf16.msra.mxu0 %v5196
  %6467 = vmatpush.bf16.msra.mxu0 %v5192
  %6468 = vmatpush.bf16.msra.mxu0 %v5188
  %6469 = vmatpush.bf16.msra.mxu0 %v5184
  %6470 = vmatpush.bf16.msra.mxu0 %v5180
  %6471 = vmatpush.bf16.msra.mxu0 %v5176
  %6472 = vmatpush.bf16.msra.mxu0 %v5172
  %6473 = vmatmul.bf16.gmra.mxu0 %v6368
  %v6474 = vpop.f32.mrf.mxu0
  %v6475 = vadd.f32 0.0, %v6474
  %v6476 = vpop.f32.mrf.mxu0
  %6477 = vdwg.mxu0
  %6478 = vmatpush.bf16.msra.mxu0 %v5201
  %6479 = vmatpush.bf16.msra.mxu0 %v5197
  %6480 = vmatpush.bf16.msra.mxu0 %v5193
  %6481 = vmatpush.bf16.msra.mxu0 %v5189
  %6482 = vmatpush.bf16.msra.mxu0 %v5185
  %6483 = vmatpush.bf16.msra.mxu0 %v5181
  %6484 = vmatpush.bf16.msra.mxu0 %v5177
  %6485 = vmatpush.bf16.msra.mxu0 %v5173
  %6486 = vmatmul.bf16.gmra.mxu0 %v6368
  %v6487 = vpop.f32.mrf.mxu0
  %v6488 = vadd.f32 0.0, %v6487
  %v6489 = vpop.f32.mrf.mxu0
  %6490 = vdwg.mxu0
  %6491 = vmatpush.bf16.msra.mxu0 %v5202
  %6492 = vmatpush.bf16.msra.mxu0 %v5198
  %6493 = vmatpush.bf16.msra.mxu0 %v5194
  %6494 = vmatpush.bf16.msra.mxu0 %v5190
  %6495 = vmatpush.bf16.msra.mxu0 %v5186
  %6496 = vmatpush.bf16.msra.mxu0 %v5182
  %6497 = vmatpush.bf16.msra.mxu0 %v5178
  %6498 = vmatpush.bf16.msra.mxu0 %v5174
  %6499 = vmatmul.bf16.gmra.mxu0 %v6368
  %v6500 = vpop.f32.mrf.mxu0
  %v6501 = vadd.f32 0.0, %v6500
  %v6502 = vpop.f32.mrf.mxu0
  %6503 = vdwg.mxu0
  %v6504 = vadd.f32 %v6448, %v6462
  %v6505 = vadd.f32 %v6449, %v6475
  %v6506 = vadd.f32 %v6450, %v6488
  %v6507 = vadd.f32 %v6451, %v6501
  %v6508 = vxor.u32 %v6504, 2147483648
  %v6509 = vmul.f32 %v6508, 1.442695
  %v6510 = vpow.pop %v6509
  %v6511 = vadd.f32 %v6510, 1.0
  %v6512 = vrcp.pop %v6511
  %v6513 = vmul.f32 %v6511, %v6512
  %v6514 = vsub.f32 1.0, %v6513
  %v6515 = vmul.f32 %v6512, %v6514
  %v6516 = vadd.f32 %v6512, %v6515
  %vm6517 = vweird.f32 %v6511
  %vm6518 = vweird.f32 %v6512
  %vm6519 = vmor %vm6517, %vm6518
  %v6520 = vsel %vm6519, %v6512, %v6516
  %v6521 = vand.u32 2147483647, %v6511
  %vm6522 = vcmp.eq.f32.partialorder %v6521, 8.507059e+37
  %v6523 = vand.u32 %v6511, 2147483648
  %v6524 = vor.u32 1.1754944e-38, %v6523
  %v6525 = vsel %vm6522, %v6524, %v6520
  %v6526 = vmul.f32 1.0, %v6525
  %v6527 = vxor.u32 %v6505, 2147483648
  %v6528 = vmul.f32 %v6527, 1.442695
  %v6529 = vpow.pop %v6528
  %v6530 = vadd.f32 %v6529, 1.0
  %v6531 = vrcp.pop %v6530
  %v6532 = vmul.f32 %v6530, %v6531
  %v6533 = vsub.f32 1.0, %v6532
  %v6534 = vmul.f32 %v6531, %v6533
  %v6535 = vadd.f32 %v6531, %v6534
  %vm6536 = vweird.f32 %v6530
  %vm6537 = vweird.f32 %v6531
  %vm6538 = vmor %vm6536, %vm6537
  %v6539 = vsel %vm6538, %v6531, %v6535
  %v6540 = vand.u32 2147483647, %v6530
  %vm6541 = vcmp.eq.f32.partialorder %v6540, 8.507059e+37
  %v6542 = vand.u32 %v6530, 2147483648
  %v6543 = vor.u32 1.1754944e-38, %v6542
  %v6544 = vsel %vm6541, %v6543, %v6539
  %v6545 = vmul.f32 1.0, %v6544
  %v6546 = vtanh.pop %v6506
  %v6547 = vxor.u32 %v6507, 2147483648
  %v6548 = vmul.f32 %v6547, 1.442695
  %v6549 = vpow.pop %v6548
  %v6550 = vadd.f32 %v6549, 1.0
  %v6551 = vrcp.pop %v6550
  %v6552 = vmul.f32 %v6550, %v6551
  %v6553 = vsub.f32 1.0, %v6552
  %v6554 = vmul.f32 %v6551, %v6553
  %v6555 = vadd.f32 %v6551, %v6554
  %vm6556 = vweird.f32 %v6550
  %vm6557 = vweird.f32 %v6551
  %vm6558 = vmor %vm6556, %vm6557
  %v6559 = vsel %vm6558, %v6551, %v6555
  %v6560 = vand.u32 2147483647, %v6550
  %vm6561 = vcmp.eq.f32.partialorder %v6560, 8.507059e+37
  %v6562 = vand.u32 %v6550, 2147483648
  %v6563 = vor.u32 1.1754944e-38, %v6562
  %v6564 = vsel %vm6561, %v6563, %v6559
  %v6565 = vmul.f32 1.0, %v6564
  %v6566 = vmul.f32 %v6545, %v6365
  %v6567 = vmul.f32 %v6526, %v6546
  %v6568 = vadd.f32 %v6566, %v6567
  %v6569 = vtanh.pop %v6568
  %v6570 = vmul.f32 %v6565, %v6569
  %v6571 = vpack.c.bf16 %v6570, %v6570
  %s6572 = scalar_lea.vmem [#allocation4], 384
  %v6573 = vld [vmem:[%s6572] sm:$0xf]
  %v6574 = vld [vmem:[%s6572 + $0x4] sm:$0xf]
  %v6575 = vld [vmem:[%s6572 + $0x8] sm:$0xf]
  %v6576 = vld [vmem:[%s6572 + $0xc] sm:$0xf]
  %v6577 = vld [vmem:[%s6572 + $0x10] sm:$0xf]
  %v6578 = vld [vmem:[%s6572 + $0x14] sm:$0xf]
  %v6579 = vld [vmem:[%s6572 + $0x18] sm:$0xf]
  %v6580 = vld [vmem:[%s6572 + $0x1c] sm:$0xf]
  %v6581 = vld [vmem:[%s6572 + $0x20] sm:$0xf]
  %v6582 = vld [vmem:[%s6572 + $0x24] sm:$0xf]
  %v6583 = vld [vmem:[%s6572 + $0x28] sm:$0xf]
  %v6584 = vld [vmem:[%s6572 + $0x2c] sm:$0xf]
  %v6585 = vld [vmem:[%s6572 + $0x30] sm:$0xf]
  %v6586 = vld [vmem:[%s6572 + $0x34] sm:$0xf]
  %v6587 = vld [vmem:[%s6572 + $0x38] sm:$0xf]
  %v6588 = vld [vmem:[%s6572 + $0x3c] sm:$0xf]
  %v6605 = vunpack.c.l.b16 %v6573
  %v6606 = vunpack.c.l.b16 %v6574
  %v6607 = vunpack.c.l.b16 %v6575
  %v6608 = vunpack.c.l.b16 %v6576
  %v6609 = vunpack.c.l.b16 %v6577
  %v6610 = vunpack.c.l.b16 %v6578
  %v6611 = vunpack.c.l.b16 %v6579
  %v6612 = vunpack.c.l.b16 %v6580
  %v6613 = vunpack.c.l.b16 %v6581
  %v6614 = vunpack.c.l.b16 %v6582
  %v6615 = vunpack.c.l.b16 %v6583
  %v6616 = vunpack.c.l.b16 %v6584
  %v6617 = vunpack.c.l.b16 %v6585
  %v6618 = vunpack.c.l.b16 %v6586
  %v6619 = vunpack.c.l.b16 %v6587
  %v6620 = vunpack.c.l.b16 %v6588
  %v6621 = vpack.c.b16 %v6606, %v6605
  %v6622 = vpack.c.b16 %v6608, %v6607
  %v6623 = vpack.c.b16 %v6610, %v6609
  %v6624 = vpack.c.b16 %v6612, %v6611
  %v6625 = vpack.c.b16 %v6614, %v6613
  %v6626 = vpack.c.b16 %v6616, %v6615
  %v6627 = vpack.c.b16 %v6618, %v6617
  %v6628 = vpack.c.b16 %v6620, %v6619
  %6637 = vmatpush.bf16.msra.mxu0 %v6628
  %6638 = vmatpush.bf16.msra.mxu0 %v6627
  %6639 = vmatpush.bf16.msra.mxu0 %v6626
  %6640 = vmatpush.bf16.msra.mxu0 %v6625
  %6641 = vmatpush.bf16.msra.mxu0 %v6624
  %6642 = vmatpush.bf16.msra.mxu0 %v6623
  %6643 = vmatpush.bf16.msra.mxu0 %v6622
  %6644 = vmatpush.bf16.msra.mxu0 %v6621
  %6645 = vmatmul.bf16.gmra.mxu0 %v6571
  %v6646 = vpop.f32.mrf.mxu0
  %v6647 = vadd.f32 0.0, %v6646
  %v6648 = vpop.f32.mrf.mxu0
  %6649 = vdwg.mxu0
  %v6650 = vadd.f32 %v6447, %v6647
  %v6651 = vld [vmem:[%s5025] sm:$0xff]
  %v6652 = vld [vmem:[%s5025 + $0x8] sm:$0xff]
  %v6653 = vld [vmem:[%s5025 + $0x10] sm:$0xff]
  %v6654 = vld [vmem:[%s5025 + $0x18] sm:$0xff]
  %6655 = vmatpush.bf16.msra.mxu0 %v5199
  %6656 = vmatpush.bf16.msra.mxu0 %v5195
  %6657 = vmatpush.bf16.msra.mxu0 %v5191
  %6658 = vmatpush.bf16.msra.mxu0 %v5187
  %6659 = vmatpush.bf16.msra.mxu0 %v5183
  %6660 = vmatpush.bf16.msra.mxu0 %v5179
  %6661 = vmatpush.bf16.msra.mxu0 %v5175
  %6662 = vmatpush.bf16.msra.mxu0 %v5171
  %6663 = vmatmul.bf16.gmra.mxu0 %v6571
  %v6664 = vpop.f32.mrf.mxu0
  %v6665 = vadd.f32 0.0, %v6664
  %v6666 = vpop.f32.mrf.mxu0
  %6667 = vdwg.mxu0
  %6668 = vmatpush.bf16.msra.mxu0 %v5200
  %6669 = vmatpush.bf16.msra.mxu0 %v5196
  %6670 = vmatpush.bf16.msra.mxu0 %v5192
  %6671 = vmatpush.bf16.msra.mxu0 %v5188
  %6672 = vmatpush.bf16.msra.mxu0 %v5184
  %6673 = vmatpush.bf16.msra.mxu0 %v5180
  %6674 = vmatpush.bf16.msra.mxu0 %v5176
  %6675 = vmatpush.bf16.msra.mxu0 %v5172
  %6676 = vmatmul.bf16.gmra.mxu0 %v6571
  %v6677 = vpop.f32.mrf.mxu0
  %v6678 = vadd.f32 0.0, %v6677
  %v6679 = vpop.f32.mrf.mxu0
  %6680 = vdwg.mxu0
  %6681 = vmatpush.bf16.msra.mxu0 %v5201
  %6682 = vmatpush.bf16.msra.mxu0 %v5197
  %6683 = vmatpush.bf16.msra.mxu0 %v5193
  %6684 = vmatpush.bf16.msra.mxu0 %v5189
  %6685 = vmatpush.bf16.msra.mxu0 %v5185
  %6686 = vmatpush.bf16.msra.mxu0 %v5181
  %6687 = vmatpush.bf16.msra.mxu0 %v5177
  %6688 = vmatpush.bf16.msra.mxu0 %v5173
  %6689 = vmatmul.bf16.gmra.mxu0 %v6571
  %v6690 = vpop.f32.mrf.mxu0
  %v6691 = vadd.f32 0.0, %v6690
  %v6692 = vpop.f32.mrf.mxu0
  %6693 = vdwg.mxu0
  %6694 = vmatpush.bf16.msra.mxu0 %v5202
  %6695 = vmatpush.bf16.msra.mxu0 %v5198
  %6696 = vmatpush.bf16.msra.mxu0 %v5194
  %6697 = vmatpush.bf16.msra.mxu0 %v5190
  %6698 = vmatpush.bf16.msra.mxu0 %v5186
  %6699 = vmatpush.bf16.msra.mxu0 %v5182
  %6700 = vmatpush.bf16.msra.mxu0 %v5178
  %6701 = vmatpush.bf16.msra.mxu0 %v5174
  %6702 = vmatmul.bf16.gmra.mxu0 %v6571
  %v6703 = vpop.f32.mrf.mxu0
  %v6704 = vadd.f32 0.0, %v6703
  %v6705 = vpop.f32.mrf.mxu0
  %6706 = vdwg.mxu0
  %v6707 = vadd.f32 %v6651, %v6665
  %v6708 = vadd.f32 %v6652, %v6678
  %v6709 = vadd.f32 %v6653, %v6691
  %v6710 = vadd.f32 %v6654, %v6704
  %v6711 = vxor.u32 %v6707, 2147483648
  %v6712 = vmul.f32 %v6711, 1.442695
  %v6713 = vpow.pop %v6712
  %v6714 = vadd.f32 %v6713, 1.0
  %v6715 = vrcp.pop %v6714
  %v6716 = vmul.f32 %v6714, %v6715
  %v6717 = vsub.f32 1.0, %v6716
  %v6718 = vmul.f32 %v6715, %v6717
  %v6719 = vadd.f32 %v6715, %v6718
  %vm6720 = vweird.f32 %v6714
  %vm6721 = vweird.f32 %v6715
  %vm6722 = vmor %vm6720, %vm6721
  %v6723 = vsel %vm6722, %v6715, %v6719
  %v6724 = vand.u32 2147483647, %v6714
  %vm6725 = vcmp.eq.f32.partialorder %v6724, 8.507059e+37
  %v6726 = vand.u32 %v6714, 2147483648
  %v6727 = vor.u32 1.1754944e-38, %v6726
  %v6728 = vsel %vm6725, %v6727, %v6723
  %v6729 = vmul.f32 1.0, %v6728
  %v6730 = vxor.u32 %v6708, 2147483648
  %v6731 = vmul.f32 %v6730, 1.442695
  %v6732 = vpow.pop %v6731
  %v6733 = vadd.f32 %v6732, 1.0
  %v6734 = vrcp.pop %v6733
  %v6735 = vmul.f32 %v6733, %v6734
  %v6736 = vsub.f32 1.0, %v6735
  %v6737 = vmul.f32 %v6734, %v6736
  %v6738 = vadd.f32 %v6734, %v6737
  %vm6739 = vweird.f32 %v6733
  %vm6740 = vweird.f32 %v6734
  %vm6741 = vmor %vm6739, %vm6740
  %v6742 = vsel %vm6741, %v6734, %v6738
  %v6743 = vand.u32 2147483647, %v6733
  %vm6744 = vcmp.eq.f32.partialorder %v6743, 8.507059e+37
  %v6745 = vand.u32 %v6733, 2147483648
  %v6746 = vor.u32 1.1754944e-38, %v6745
  %v6747 = vsel %vm6744, %v6746, %v6742
  %v6748 = vmul.f32 1.0, %v6747
  %v6749 = vtanh.pop %v6709
  %v6750 = vxor.u32 %v6710, 2147483648
  %v6751 = vmul.f32 %v6750, 1.442695
  %v6752 = vpow.pop %v6751
  %v6753 = vadd.f32 %v6752, 1.0
  %v6754 = vrcp.pop %v6753
  %v6755 = vmul.f32 %v6753, %v6754
  %v6756 = vsub.f32 1.0, %v6755
  %v6757 = vmul.f32 %v6754, %v6756
  %v6758 = vadd.f32 %v6754, %v6757
  %vm6759 = vweird.f32 %v6753
  %vm6760 = vweird.f32 %v6754
  %vm6761 = vmor %vm6759, %vm6760
  %v6762 = vsel %vm6761, %v6754, %v6758
  %v6763 = vand.u32 2147483647, %v6753
  %vm6764 = vcmp.eq.f32.partialorder %v6763, 8.507059e+37
  %v6765 = vand.u32 %v6753, 2147483648
  %v6766 = vor.u32 1.1754944e-38, %v6765
  %v6767 = vsel %vm6764, %v6766, %v6762
  %v6768 = vmul.f32 1.0, %v6767
  %v6769 = vmul.f32 %v6748, %v6568
  %v6770 = vmul.f32 %v6729, %v6749
  %v6771 = vadd.f32 %v6769, %v6770
  %v6772 = vtanh.pop %v6771
  %v6773 = vmul.f32 %v6768, %v6772
  %v6774 = vpack.c.bf16 %v6773, %v6773
  %s6775 = scalar_lea.vmem [#allocation4], 448
  %v6776 = vld [vmem:[%s6775] sm:$0xf]
  %v6777 = vld [vmem:[%s6775 + $0x4] sm:$0xf]
  %v6778 = vld [vmem:[%s6775 + $0x8] sm:$0xf]
  %v6779 = vld [vmem:[%s6775 + $0xc] sm:$0xf]
  %v6780 = vld [vmem:[%s6775 + $0x10] sm:$0xf]
  %v6781 = vld [vmem:[%s6775 + $0x14] sm:$0xf]
  %v6782 = vld [vmem:[%s6775 + $0x18] sm:$0xf]
  %v6783 = vld [vmem:[%s6775 + $0x1c] sm:$0xf]
  %v6784 = vld [vmem:[%s6775 + $0x20] sm:$0xf]
  %v6785 = vld [vmem:[%s6775 + $0x24] sm:$0xf]
  %v6786 = vld [vmem:[%s6775 + $0x28] sm:$0xf]
  %v6787 = vld [vmem:[%s6775 + $0x2c] sm:$0xf]
  %v6788 = vld [vmem:[%s6775 + $0x30] sm:$0xf]
  %v6789 = vld [vmem:[%s6775 + $0x34] sm:$0xf]
  %v6790 = vld [vmem:[%s6775 + $0x38] sm:$0xf]
  %v6791 = vld [vmem:[%s6775 + $0x3c] sm:$0xf]
  %v6808 = vunpack.c.l.b16 %v6776
  %v6809 = vunpack.c.l.b16 %v6777
  %v6810 = vunpack.c.l.b16 %v6778
  %v6811 = vunpack.c.l.b16 %v6779
  %v6812 = vunpack.c.l.b16 %v6780
  %v6813 = vunpack.c.l.b16 %v6781
  %v6814 = vunpack.c.l.b16 %v6782
  %v6815 = vunpack.c.l.b16 %v6783
  %v6816 = vunpack.c.l.b16 %v6784
  %v6817 = vunpack.c.l.b16 %v6785
  %v6818 = vunpack.c.l.b16 %v6786
  %v6819 = vunpack.c.l.b16 %v6787
  %v6820 = vunpack.c.l.b16 %v6788
  %v6821 = vunpack.c.l.b16 %v6789
  %v6822 = vunpack.c.l.b16 %v6790
  %v6823 = vunpack.c.l.b16 %v6791
  %v6824 = vpack.c.b16 %v6809, %v6808
  %v6825 = vpack.c.b16 %v6811, %v6810
  %v6826 = vpack.c.b16 %v6813, %v6812
  %v6827 = vpack.c.b16 %v6815, %v6814
  %v6828 = vpack.c.b16 %v6817, %v6816
  %v6829 = vpack.c.b16 %v6819, %v6818
  %v6830 = vpack.c.b16 %v6821, %v6820
  %v6831 = vpack.c.b16 %v6823, %v6822
  %6840 = vmatpush.bf16.msra.mxu0 %v6831
  %6841 = vmatpush.bf16.msra.mxu0 %v6830
  %6842 = vmatpush.bf16.msra.mxu0 %v6829
  %6843 = vmatpush.bf16.msra.mxu0 %v6828
  %6844 = vmatpush.bf16.msra.mxu0 %v6827
  %6845 = vmatpush.bf16.msra.mxu0 %v6826
  %6846 = vmatpush.bf16.msra.mxu0 %v6825
  %6847 = vmatpush.bf16.msra.mxu0 %v6824
  %6848 = vmatmul.bf16.gmra.mxu0 %v6774
  %v6849 = vpop.f32.mrf.mxu0
  %v6850 = vadd.f32 0.0, %v6849
  %v6851 = vpop.f32.mrf.mxu0
  %6852 = vdwg.mxu0
  %v6853 = vadd.f32 %v6650, %v6850
  %6854 = vst [vmem:[%s9] sm:$0xff] %v6853
  // Predicated region
  $region53: #{lstm_classifier_forward.1} parent=0 // pred_check
    _
  $region54: #{lstm_classifier_forward.1} parent=0 // pred_check_branch
    %6856 = sbr.rel (0) target = $region56
  $region55: #{lstm_classifier_forward.1} parent=0 // pred_region
    _
  $region56: #{lstm_classifier_forward.1} parent=0 // pred_fallthru
    _
  // Predicated region
  $region57: #{lstm_classifier_forward.1} parent=0 // pred_check
    _
  $region58: #{lstm_classifier_forward.1} parent=0 // pred_check_branch
    %6858 = sbr.rel (0) target = $region60
  $region59: #{lstm_classifier_forward.1} parent=0 // pred_region
    _
  $region60: #{lstm_classifier_forward.1} parent=0 // pred_fallthru
    _
  %6859 = vsyncmov [#allocation5]
  %s6860 = vpop.sfrf %6859
  %p6861 = scmp.eq.s32.totalorder %s6860, 0
  %p6862 = pneg %p6861
  %6864 = shalt.err (%p6862)

</llo_original>
